<compile_context>
chip_gen: v7x
topology: tpu7x:2x2x1
jax: 0.10.0
libtpu: 0.0.40
codegen_flags: <defaults>
</compile_context>

<pallas_src>
import functools

import jax
import jax.numpy as jnp
from jax import lax
from jax.experimental import pallas as pl
from jax.experimental.pallas import tpu as pltpu


def _recurrent_block_kernel(x_ref, w_ref, scale_ref, bias_ref, out_ref,
                            xbuf_ref, xin_ref, *, t):
    """One batch element per grid step.

    x_ref     : (1, H, W, C)          NHWC input (unpadded, C real channels)
    w_ref     : (9*Cp, Cp)  bf16      conv weights, tap-major rows (ky*3+kx, cin)
    scale_ref : (1, Cp)     f32       folded BN scale (zero in padded channels)
    bias_ref  : (1, Cp)     f32       folded BN/conv bias (zero in padded channels)
    out_ref   : (1, H, W, Cp)         lane-dense output (padded channels are 0)
    xbuf_ref  : (H+2, W+LPAD+1, Cp) bf16  spatially padded recurrent conv input
    xin_ref   : (H, W, Cp)  f32       channel-padded original x (for the x + x1 add)
    """
    H, W = out_ref.shape[1], out_ref.shape[2]
    Cp = out_ref.shape[3]
    C = x_ref.shape[3]
    LPAD = xbuf_ref.shape[1] - W - 1   # left halo width; chosen so interior stores
                                       # start on an aligned sublane offset.

    # ---- per-image init: zero the halo ONCE (not per recurrence step) ----
    xbuf_ref[...] = jnp.zeros(xbuf_ref.shape, xbuf_ref.dtype)

    x0 = x_ref[0].astype(jnp.float32)                       # (H, W, C)
    if Cp > C:                                              # lane-pad channels in-kernel
        x0 = jnp.concatenate(
            [x0, jnp.zeros((H, W, Cp - C), jnp.float32)], axis=-1)
    xin_ref[...] = x0                                       # keep original x for x + x1
    xbuf_ref[1:1 + H, LPAD:LPAD + W, :] = x0.astype(xbuf_ref.dtype)

    # Hoisted out of the t loop (tiny (1, Cp) values; no vreg pressure).
    scale = scale_ref[...]
    bias = bias_ref[...]

    y = None
    for it in range(t):
        # im2col: one (H*W, 9*Cp) x (9*Cp, Cp) bf16 matmul instead of 9 tiny matmuls.
        taps = []
        for ky in range(3):
            for kx in range(3):
                taps.append(
                    xbuf_ref[ky:ky + H, (LPAD - 1) + kx:(LPAD - 1) + kx + W, :]
                    .reshape(H * W, Cp))
        patch = jnp.concatenate(taps, axis=-1)               # (H*W, 9*Cp) bf16
        acc = jnp.dot(patch, w_ref[...],
                      preferred_element_type=jnp.float32)    # (H*W, Cp) f32

        # folded BatchNorm (eval) + conv bias + ReLU, in f32 on lane-dense tiles.
        y = jnp.maximum(acc * scale + bias, 0.0)             # (H*W, Cp)

        if it < t - 1:
            # next recurrent conv input = x + x1 (interior only; halo stays zero).
            nxt = xin_ref[...] + y.reshape(H, W, Cp)
            xbuf_ref[1:1 + H, LPAD:LPAD + W, :] = nxt.astype(xbuf_ref.dtype)

    out_ref[0] = y.reshape(H, W, Cp).astype(out_ref.dtype)


def recurrent_block_pallas(x_nchw, w_oihw, conv_bias, gamma, beta, *, t=2, eps=1e-5):
    """x_nchw: (N, C, H, W) float32. Returns (N, C, H, W)."""
    if t < 1:
        raise ValueError("RecurrentBlock requires t >= 1")
    N, C, H, W = x_nchw.shape
    Cp = ((C + 127) // 128) * 128      # lane-dense channel count
    LPAD = 16                          # aligned interior-store offset (bf16 sublane tile)

    # Fold BN (eval mode: running_mean=0, running_var=1) and conv bias.
    scale = (gamma / jnp.sqrt(1.0 + eps)).astype(jnp.float32)        # (C,)
    bias_eff = (beta + scale * conv_bias).astype(jnp.float32)        # (C,)
    scale_p = jnp.zeros((1, Cp), jnp.float32).at[0, :C].set(scale)
    bias_p = jnp.zeros((1, Cp), jnp.float32).at[0, :C].set(bias_eff)

    # (O, I, kh, kw) -> (kh, kw, I, O) -> zero-pad channels -> (9*Cp, Cp) bf16 rows.
    w_taps = jnp.transpose(w_oihw, (2, 3, 1, 0))                     # (3,3,C,C)
    w_taps = jnp.pad(w_taps, ((0, 0), (0, 0), (0, Cp - C), (0, Cp - C)))
    w_mat = w_taps.reshape(9 * Cp, Cp).astype(jnp.bfloat16)

    # NCHW -> NHWC at the module boundary only (padding is done in-kernel).
    x_nhwc = jnp.transpose(x_nchw, (0, 2, 3, 1))

    out_nhwc = pl.pallas_call(
        functools.partial(_recurrent_block_kernel, t=t),
        out_shape=jax.ShapeDtypeStruct((N, H, W, Cp), x_nchw.dtype),
        grid_spec=pltpu.PrefetchScalarGridSpec(
            num_scalar_prefetch=0,
            grid=(N,),
            in_specs=[
                pl.BlockSpec((1, H, W, C), lambda n: (n, 0, 0, 0)),
                pl.BlockSpec((9 * Cp, Cp), lambda n: (0, 0)),
                pl.BlockSpec((1, Cp), lambda n: (0, 0)),
                pl.BlockSpec((1, Cp), lambda n: (0, 0)),
            ],
            out_specs=pl.BlockSpec((1, H, W, Cp), lambda n: (n, 0, 0, 0)),
            scratch_shapes=[
                pltpu.VMEM((H + 2, W + LPAD + 1, Cp), jnp.bfloat16),  # padded recurrent input
                pltpu.VMEM((H, W, Cp), jnp.float32),                  # channel-padded x
            ],
        ),
        compiler_params=pltpu.CompilerParams(
            dimension_semantics=("parallel",)),
    )(x_nhwc, w_mat, scale_p, bias_p)

    # Drop padded channels, back to PyTorch-style NCHW.
    return jnp.transpose(out_nhwc[..., :C], (0, 3, 1, 2))


def recurrent_block_ref(x_nchw, w_oihw, conv_bias, gamma, beta, *, t=2, eps=1e-5):
    """Pure-JAX f32 reference matching the PyTorch forward (BN in eval mode)."""
    def conv_bn_relu(inp):
        z = lax.conv_general_dilated(
            inp, w_oihw, window_strides=(1, 1), padding="SAME",
            dimension_numbers=("NCHW", "OIHW", "NCHW"))
        z = z + conv_bias[None, :, None, None]
        z = gamma[None, :, None, None] * z / jnp.sqrt(1.0 + eps) \
            + beta[None, :, None, None]
        return jnp.maximum(z, 0.0)

    x1 = None
    for i in range(t):
        x1 = conv_bn_relu(x_nchw if i == 0 else x_nchw + x1)
    return x1


if __name__ == "__main__":
    key = jax.random.PRNGKey(0)
    N, C, H, W = 2, 8, 16, 16
    t = 2

    k_x, k_w, k_b, k_g, k_be = jax.random.split(key, 5)
    x = jax.random.normal(k_x, (N, C, H, W), dtype=jnp.float32)
    # Deterministic synthetic parameters (shapes from nn.Conv2d / nn.BatchNorm2d).
    w = jax.random.normal(k_w, (C, C, 3, 3), dtype=jnp.float32) * 0.1
    conv_bias = jax.random.normal(k_b, (C,), dtype=jnp.float32) * 0.1
    gamma = 1.0 + 0.1 * jax.random.normal(k_g, (C,), dtype=jnp.float32)
    beta = 0.1 * jax.random.normal(k_be, (C,), dtype=jnp.float32)

    out = jax.block_until_ready(
        recurrent_block_pallas(x, w, conv_bias, gamma, beta, t=t))
    ref = jax.block_until_ready(
        recurrent_block_ref(x, w, conv_bias, gamma, beta, t=t))

    assert out.shape == (N, C, H, W), out.shape
    # Tolerance loosened vs. the pure-f32 version: matmul operands are bf16
    # (f32 accumulation), and the recurrent buffer is stored in bf16.
    assert jnp.allclose(out, ref, atol=1e-1, rtol=5e-2), \
        float(jnp.max(jnp.abs(out - ref)))
    print("KERNEL_OK")
</pallas_src>

<mosaic_0001>
module attributes {stable_mosaic.version = 11 : i64} {
  func.func @_recurrent_block_kernel(%arg0: i32, %arg1: memref<1x16x16x8xf32, #tpu.memory_space<vmem>>, %arg2: memref<1152x128xbf16, #tpu.memory_space<vmem>>, %arg3: memref<1x128xf32, #tpu.memory_space<vmem>>, %arg4: memref<1x128xf32, #tpu.memory_space<vmem>>, %arg5: memref<1x16x16x128xf32, #tpu.memory_space<vmem>>, %arg6: memref<18x33x128xbf16, #tpu.memory_space<vmem>>, %arg7: memref<16x16x128xf32, #tpu.memory_space<vmem>>) attributes {dimension_semantics = [#tpu.dimension_semantics<parallel>], iteration_bounds = array<i64: 2>, scalar_prefetch = 0 : i64, scratch_operands = 2 : i64, tpu.core_type = #tpu.core_type<tc>, window_params = [{transform_indices = @transform_0, window_bounds = array<i64: 1, 16, 16, 8>}, {pipeline_mode = #tpu.pipeline_mode<synchronous>, transform_indices = @transform_1, window_bounds = array<i64: 1152, 128>}, {pipeline_mode = #tpu.pipeline_mode<synchronous>, transform_indices = @transform_2, window_bounds = array<i64: 1, 128>}, {pipeline_mode = #tpu.pipeline_mode<synchronous>, transform_indices = @transform_3, window_bounds = array<i64: 1, 128>}, {transform_indices = @transform_4, window_bounds = array<i64: 1, 16, 16, 128>}]} {
    %cst = arith.constant 0.000000e+00 : bf16
    %0 = vector.broadcast %cst : bf16 to vector<18x33x128xbf16>
    %c0 = arith.constant 0 : index
    %c0_0 = arith.constant 0 : index
    %c0_1 = arith.constant 0 : index
    %1 = vector.load %arg6[%c0, %c0_0, %c0_1] : memref<18x33x128xbf16, #tpu.memory_space<vmem>>, vector<18x33x128xbf16>
    tpu.vector_store %arg6[%c0, %c0_0, %c0_1], %0 {strides = array<i32>} : memref<18x33x128xbf16, #tpu.memory_space<vmem>>, vector<18x33x128xbf16>,
    %c0_2 = arith.constant 0 : index
    %c0_3 = arith.constant 0 : index
    %c0_4 = arith.constant 0 : index
    %c0_5 = arith.constant 0 : index
    %2 = vector.load %arg1[%c0_2, %c0_3, %c0_4, %c0_5] : memref<1x16x16x8xf32, #tpu.memory_space<vmem>>, vector<1x16x16x8xf32>
    %3 = vector.shape_cast %2 : vector<1x16x16x8xf32> to vector<16x16x8xf32>
    %cst_6 = arith.constant 0.000000e+00 : f32
    %4 = vector.broadcast %cst_6 : f32 to vector<16x16x120xf32>
    %5 = tpu.concatenate %3, %4 in 2 : vector<16x16x8xf32>, vector<16x16x120xf32> -> vector<16x16x128xf32>
    %c0_7 = arith.constant 0 : index
    %c0_8 = arith.constant 0 : index
    %c0_9 = arith.constant 0 : index
    %6 = vector.load %arg7[%c0_7, %c0_8, %c0_9] : memref<16x16x128xf32, #tpu.memory_space<vmem>>, vector<16x16x128xf32>
    tpu.vector_store %arg7[%c0_7, %c0_8, %c0_9], %5 {strides = array<i32>} : memref<16x16x128xf32, #tpu.memory_space<vmem>>, vector<16x16x128xf32>,
    %7 = arith.truncf %5 : vector<16x16x128xf32> to vector<16x16x128xbf16>
    %c1 = arith.constant 1 : index
    %c16 = arith.constant 16 : index
    %c0_10 = arith.constant 0 : index
    %8 = vector.load %arg6[%c1, %c16, %c0_10] : memref<18x33x128xbf16, #tpu.memory_space<vmem>>, vector<16x16x128xbf16>
    tpu.vector_store %arg6[%c1, %c16, %c0_10], %7 {strides = array<i32>} : memref<18x33x128xbf16, #tpu.memory_space<vmem>>, vector<16x16x128xbf16>,
    %c0_11 = arith.constant 0 : index
    %c0_12 = arith.constant 0 : index
    %9 = vector.load %arg3[%c0_11, %c0_12] : memref<1x128xf32, #tpu.memory_space<vmem>>, vector<1x128xf32>
    %c0_13 = arith.constant 0 : index
    %c0_14 = arith.constant 0 : index
    %10 = vector.load %arg4[%c0_13, %c0_14] : memref<1x128xf32, #tpu.memory_space<vmem>>, vector<1x128xf32>
    %c0_15 = arith.constant 0 : index
    %c15 = arith.constant 15 : index
    %c0_16 = arith.constant 0 : index
    %11 = vector.load %arg6[%c0_15, %c15, %c0_16] : memref<18x33x128xbf16, #tpu.memory_space<vmem>>, vector<16x16x128xbf16>
    %12 = vector.shape_cast %11 : vector<16x16x128xbf16> to vector<256x128xbf16>
    %c0_17 = arith.constant 0 : index
    %c16_18 = arith.constant 16 : index
    %c0_19 = arith.constant 0 : index
    %13 = vector.load %arg6[%c0_17, %c16_18, %c0_19] : memref<18x33x128xbf16, #tpu.memory_space<vmem>>, vector<16x16x128xbf16>
    %14 = vector.shape_cast %13 : vector<16x16x128xbf16> to vector<256x128xbf16>
    %c0_20 = arith.constant 0 : index
    %c17 = arith.constant 17 : index
    %c0_21 = arith.constant 0 : index
    %15 = vector.load %arg6[%c0_20, %c17, %c0_21] : memref<18x33x128xbf16, #tpu.memory_space<vmem>>, vector<16x16x128xbf16>
    %16 = vector.shape_cast %15 : vector<16x16x128xbf16> to vector<256x128xbf16>
    %c1_22 = arith.constant 1 : index
    %c15_23 = arith.constant 15 : index
    %c0_24 = arith.constant 0 : index
    %17 = vector.load %arg6[%c1_22, %c15_23, %c0_24] : memref<18x33x128xbf16, #tpu.memory_space<vmem>>, vector<16x16x128xbf16>
    %18 = vector.shape_cast %17 : vector<16x16x128xbf16> to vector<256x128xbf16>
    %c1_25 = arith.constant 1 : index
    %c16_26 = arith.constant 16 : index
    %c0_27 = arith.constant 0 : index
    %19 = vector.load %arg6[%c1_25, %c16_26, %c0_27] : memref<18x33x128xbf16, #tpu.memory_space<vmem>>, vector<16x16x128xbf16>
    %20 = vector.shape_cast %19 : vector<16x16x128xbf16> to vector<256x128xbf16>
    %c1_28 = arith.constant 1 : index
    %c17_29 = arith.constant 17 : index
    %c0_30 = arith.constant 0 : index
    %21 = vector.load %arg6[%c1_28, %c17_29, %c0_30] : memref<18x33x128xbf16, #tpu.memory_space<vmem>>, vector<16x16x128xbf16>
    %22 = vector.shape_cast %21 : vector<16x16x128xbf16> to vector<256x128xbf16>
    %c2 = arith.constant 2 : index
    %c15_31 = arith.constant 15 : index
    %c0_32 = arith.constant 0 : index
    %23 = vector.load %arg6[%c2, %c15_31, %c0_32] : memref<18x33x128xbf16, #tpu.memory_space<vmem>>, vector<16x16x128xbf16>
    %24 = vector.shape_cast %23 : vector<16x16x128xbf16> to vector<256x128xbf16>
    %c2_33 = arith.constant 2 : index
    %c16_34 = arith.constant 16 : index
    %c0_35 = arith.constant 0 : index
    %25 = vector.load %arg6[%c2_33, %c16_34, %c0_35] : memref<18x33x128xbf16, #tpu.memory_space<vmem>>, vector<16x16x128xbf16>
    %26 = vector.shape_cast %25 : vector<16x16x128xbf16> to vector<256x128xbf16>
    %c2_36 = arith.constant 2 : index
    %c17_37 = arith.constant 17 : index
    %c0_38 = arith.constant 0 : index
    %27 = vector.load %arg6[%c2_36, %c17_37, %c0_38] : memref<18x33x128xbf16, #tpu.memory_space<vmem>>, vector<16x16x128xbf16>
    %28 = vector.shape_cast %27 : vector<16x16x128xbf16> to vector<256x128xbf16>
    %29 = tpu.concatenate %12, %14, %16, %18, %20, %22, %24, %26, %28 in 1 : vector<256x128xbf16>, vector<256x128xbf16>, vector<256x128xbf16>, vector<256x128xbf16>, vector<256x128xbf16>, vector<256x128xbf16>, vector<256x128xbf16>, vector<256x128xbf16>, vector<256x128xbf16> -> vector<256x1152xbf16>
    %c0_39 = arith.constant 0 : index
    %c0_40 = arith.constant 0 : index
    %30 = vector.load %arg2[%c0_39, %c0_40] : memref<1152x128xbf16, #tpu.memory_space<vmem>>, vector<1152x128xbf16>
    %cst_41 = arith.constant dense<0.000000e+00> : vector<256x128xf32>
    %31 = tpu.matmul %29, %30, %cst_41 {dimension_numbers = #tpu.dot_dimension_numbers<[1], [0], [0], [1], [0, 0, 1, 1], [], []>} : vector<256x1152xbf16>, vector<1152x128xbf16>, vector<256x128xf32> -> vector<256x128xf32>
    %32 = vector.broadcast %9 : vector<1x128xf32> to vector<256x128xf32>
    %33 = arith.mulf %31, %32 : vector<256x128xf32>
    %34 = vector.broadcast %10 : vector<1x128xf32> to vector<256x128xf32>
    %35 = arith.addf %33, %34 : vector<256x128xf32>
    %cst_42 = arith.constant 0.000000e+00 : f32
    %36 = vector.broadcast %cst_42 : f32 to vector<256x128xf32>
    %37 = arith.maximumf %35, %36 : vector<256x128xf32>
    %c0_43 = arith.constant 0 : index
    %c0_44 = arith.constant 0 : index
    %c0_45 = arith.constant 0 : index
    %38 = vector.load %arg7[%c0_43, %c0_44, %c0_45] : memref<16x16x128xf32, #tpu.memory_space<vmem>>, vector<16x16x128xf32>
    %39 = vector.shape_cast %37 : vector<256x128xf32> to vector<16x16x128xf32>
    %40 = arith.addf %38, %39 : vector<16x16x128xf32>
    %41 = arith.truncf %40 : vector<16x16x128xf32> to vector<16x16x128xbf16>
    %c1_46 = arith.constant 1 : index
    %c16_47 = arith.constant 16 : index
    %c0_48 = arith.constant 0 : index
    %42 = vector.load %arg6[%c1_46, %c16_47, %c0_48] : memref<18x33x128xbf16, #tpu.memory_space<vmem>>, vector<16x16x128xbf16>
    tpu.vector_store %arg6[%c1_46, %c16_47, %c0_48], %41 {strides = array<i32>} : memref<18x33x128xbf16, #tpu.memory_space<vmem>>, vector<16x16x128xbf16>,
    %c0_49 = arith.constant 0 : index
    %c15_50 = arith.constant 15 : index
    %c0_51 = arith.constant 0 : index
    %43 = vector.load %arg6[%c0_49, %c15_50, %c0_51] : memref<18x33x128xbf16, #tpu.memory_space<vmem>>, vector<16x16x128xbf16>
    %44 = vector.shape_cast %43 : vector<16x16x128xbf16> to vector<256x128xbf16>
    %c0_52 = arith.constant 0 : index
    %c16_53 = arith.constant 16 : index
    %c0_54 = arith.constant 0 : index
    %45 = vector.load %arg6[%c0_52, %c16_53, %c0_54] : memref<18x33x128xbf16, #tpu.memory_space<vmem>>, vector<16x16x128xbf16>
    %46 = vector.shape_cast %45 : vector<16x16x128xbf16> to vector<256x128xbf16>
    %c0_55 = arith.constant 0 : index
    %c17_56 = arith.constant 17 : index
    %c0_57 = arith.constant 0 : index
    %47 = vector.load %arg6[%c0_55, %c17_56, %c0_57] : memref<18x33x128xbf16, #tpu.memory_space<vmem>>, vector<16x16x128xbf16>
    %48 = vector.shape_cast %47 : vector<16x16x128xbf16> to vector<256x128xbf16>
    %c1_58 = arith.constant 1 : index
    %c15_59 = arith.constant 15 : index
    %c0_60 = arith.constant 0 : index
    %49 = vector.load %arg6[%c1_58, %c15_59, %c0_60] : memref<18x33x128xbf16, #tpu.memory_space<vmem>>, vector<16x16x128xbf16>
    %50 = vector.shape_cast %49 : vector<16x16x128xbf16> to vector<256x128xbf16>
    %c1_61 = arith.constant 1 : index
    %c16_62 = arith.constant 16 : index
    %c0_63 = arith.constant 0 : index
    %51 = vector.load %arg6[%c1_61, %c16_62, %c0_63] : memref<18x33x128xbf16, #tpu.memory_space<vmem>>, vector<16x16x128xbf16>
    %52 = vector.shape_cast %51 : vector<16x16x128xbf16> to vector<256x128xbf16>
    %c1_64 = arith.constant 1 : index
    %c17_65 = arith.constant 17 : index
    %c0_66 = arith.constant 0 : index
    %53 = vector.load %arg6[%c1_64, %c17_65, %c0_66] : memref<18x33x128xbf16, #tpu.memory_space<vmem>>, vector<16x16x128xbf16>
    %54 = vector.shape_cast %53 : vector<16x16x128xbf16> to vector<256x128xbf16>
    %c2_67 = arith.constant 2 : index
    %c15_68 = arith.constant 15 : index
    %c0_69 = arith.constant 0 : index
    %55 = vector.load %arg6[%c2_67, %c15_68, %c0_69] : memref<18x33x128xbf16, #tpu.memory_space<vmem>>, vector<16x16x128xbf16>
    %56 = vector.shape_cast %55 : vector<16x16x128xbf16> to vector<256x128xbf16>
    %c2_70 = arith.constant 2 : index
    %c16_71 = arith.constant 16 : index
    %c0_72 = arith.constant 0 : index
    %57 = vector.load %arg6[%c2_70, %c16_71, %c0_72] : memref<18x33x128xbf16, #tpu.memory_space<vmem>>, vector<16x16x128xbf16>
    %58 = vector.shape_cast %57 : vector<16x16x128xbf16> to vector<256x128xbf16>
    %c2_73 = arith.constant 2 : index
    %c17_74 = arith.constant 17 : index
    %c0_75 = arith.constant 0 : index
    %59 = vector.load %arg6[%c2_73, %c17_74, %c0_75] : memref<18x33x128xbf16, #tpu.memory_space<vmem>>, vector<16x16x128xbf16>
    %60 = vector.shape_cast %59 : vector<16x16x128xbf16> to vector<256x128xbf16>
    %61 = tpu.concatenate %44, %46, %48, %50, %52, %54, %56, %58, %60 in 1 : vector<256x128xbf16>, vector<256x128xbf16>, vector<256x128xbf16>, vector<256x128xbf16>, vector<256x128xbf16>, vector<256x128xbf16>, vector<256x128xbf16>, vector<256x128xbf16>, vector<256x128xbf16> -> vector<256x1152xbf16>
    %c0_76 = arith.constant 0 : index
    %c0_77 = arith.constant 0 : index
    %62 = vector.load %arg2[%c0_76, %c0_77] : memref<1152x128xbf16, #tpu.memory_space<vmem>>, vector<1152x128xbf16>
    %cst_78 = arith.constant dense<0.000000e+00> : vector<256x128xf32>
    %63 = tpu.matmul %61, %62, %cst_78 {dimension_numbers = #tpu.dot_dimension_numbers<[1], [0], [0], [1], [0, 0, 1, 1], [], []>} : vector<256x1152xbf16>, vector<1152x128xbf16>, vector<256x128xf32> -> vector<256x128xf32>
    %64 = vector.broadcast %9 : vector<1x128xf32> to vector<256x128xf32>
    %65 = arith.mulf %63, %64 : vector<256x128xf32>
    %66 = vector.broadcast %10 : vector<1x128xf32> to vector<256x128xf32>
    %67 = arith.addf %65, %66 : vector<256x128xf32>
    %cst_79 = arith.constant 0.000000e+00 : f32
    %68 = vector.broadcast %cst_79 : f32 to vector<256x128xf32>
    %69 = arith.maximumf %67, %68 : vector<256x128xf32>
    %70 = vector.shape_cast %69 : vector<256x128xf32> to vector<16x16x128xf32>
    %c0_80 = arith.constant 0 : index
    %c0_81 = arith.constant 0 : index
    %c0_82 = arith.constant 0 : index
    %c0_83 = arith.constant 0 : index
    %71 = vector.load %arg5[%c0_80, %c0_81, %c0_82, %c0_83] : memref<1x16x16x128xf32, #tpu.memory_space<vmem>>, vector<1x16x16x128xf32>
    %72 = vector.shape_cast %71 : vector<1x16x16x128xf32> to vector<16x16x128xf32>
    %73 = vector.shape_cast %70 : vector<16x16x128xf32> to vector<1x16x16x128xf32>
    tpu.vector_store %arg5[%c0_80, %c0_81, %c0_82, %c0_83], %73 {strides = array<i32>} : memref<1x16x16x128xf32, #tpu.memory_space<vmem>>, vector<1x16x16x128xf32>,
    return
  }
  func.func @transform_0(%arg0: i32) -> (i32, i32, i32, i32) {
    %c0_i32 = arith.constant 0 : i32
    %c0_i32_0 = arith.constant 0 : i32
    %c0_i32_1 = arith.constant 0 : i32
    %c0_i32_2 = arith.constant 0 : i32
    return %arg0, %c0_i32, %c0_i32_0, %c0_i32_1 : i32, i32, i32, i32
  }
  func.func @transform_1(%arg0: i32) -> (i32, i32) {
    %c0_i32 = arith.constant 0 : i32
    %c0_i32_0 = arith.constant 0 : i32
    %c0_i32_1 = arith.constant 0 : i32
    return %c0_i32, %c0_i32_0 : i32, i32
  }
  func.func @transform_2(%arg0: i32) -> (i32, i32) {
    %c0_i32 = arith.constant 0 : i32
    %c0_i32_0 = arith.constant 0 : i32
    %c0_i32_1 = arith.constant 0 : i32
    return %c0_i32, %c0_i32_0 : i32, i32
  }
  func.func @transform_3(%arg0: i32) -> (i32, i32) {
    %c0_i32 = arith.constant 0 : i32
    %c0_i32_0 = arith.constant 0 : i32
    %c0_i32_1 = arith.constant 0 : i32
    return %c0_i32, %c0_i32_0 : i32, i32
  }
  func.func @transform_4(%arg0: i32) -> (i32, i32, i32, i32) {
    %c0_i32 = arith.constant 0 : i32
    %c0_i32_0 = arith.constant 0 : i32
    %c0_i32_1 = arith.constant 0 : i32
    %c0_i32_2 = arith.constant 0 : i32
    return %arg0, %c0_i32, %c0_i32_0, %c0_i32_1 : i32, i32, i32, i32
  }
}

</mosaic_0001>

<llo_original>
// kernel: tpu_custom_call.1
$region0: #{tpu_custom_call.1}
  #allocation0 [shape = 'u32[]', space=smem, size = 0x4, offset = 0x4, fixed_abs, tag = 'smem constant byte address 0x4 - core index']
  #allocation1 [shape = 'u32[144,128]{1,0:T(1,128)}', space=vmem, size = 0x12000, scoped, tag = 'internal scratch']
  #allocation2 [shape = 'bf16[18,33,128]{2,1,0:T(8,128)(2,1)}', space=vmem, size = 0x2d000, scoped, tag = 'scratch operand']
  #allocation3 [shape = 'f32[16,16,128]{2,1,0:T(8,128)}', space=vmem, size = 0x20000, scoped, tag = 'scratch operand']
  %s0 = inlined_call_operand.vmem [shape: f32[2,16,16,8], index: 0, kind: input, shape index: {}]
  %s1 = inlined_call_operand.vmem [shape: bf16[1152,128], index: 1, kind: input, shape index: {}]
  %s2 = inlined_call_operand.vmem [shape: f32[1,128], index: 2, kind: input, shape index: {}]
  %s3 = inlined_call_operand.vmem [shape: f32[1,128], index: 3, kind: input, shape index: {}]
  %s4 = inlined_call_operand.hbm [shape: f32[2,16,16,128], index: 4, kind: output, shape index: {}]
  %s5 = sld [smem:[#allocation0]]
  $region49: #{tpu_custom_call.1} parent=0
    _
  %s7 = ssub.s32 1, %s5
  %s8 = scalar_select 0, %s7, %s5
  $region1: #{tpu_custom_call.1} parent=0
    #allocation4 [shape = 'u8[262144]{0}', space=vmem, size = 0x40000, scoped, tag = 'output window, operand 0']
    #allocation5 [shape = 's32[2]{0}', space=sflag, size = 0x8, scoped, tag = 'scoped memory for tpu_custom_call.1']
    %9 = vsyncpa [#allocation5], 0
    %s10 = scalar_lea.sflag [#allocation5], 1
    %11 = vsyncpa %s10, 0
    loop: start=0, step=1, limit=4
    $region2: #{tpu_custom_call.1} parent=1 // loop_pre_header
      _
    $region3: #{tpu_custom_call.1} parent=1 // loop_header
      %s13 = sphi 0, %s17
      %p14 = scmp.ge.s32.totalorder %s13, 4
      %s23 = sphi 0, %s25
      %s26 = sphi 0, %s23
      %s27 = sphi 0, %s26
      %s43 = sphi 0, %s27
      %s47 = sphi 0, %s47
      %s49 = sphi 0, %s47
      %s50 = sphi 0, %s49
      %s64 = sphi 0, %s50
      %s68 = sphi 0, %s68
      %s70 = sphi 0, %s68
      %s71 = sphi 0, %s70
      %s85 = sphi 0, %s71
      %s89 = sphi 0, %s89
      %s91 = sphi 0, %s89
      %s92 = sphi 0, %s91
      %s106 = sphi 0, %s92
      %s112 = sphi 0, %s114
      %s115 = sphi 0, %s112
      %s116 = sphi 0, %s115
      %s132 = sphi 0, %s116
    $region4: #{tpu_custom_call.1} parent=1 // loop_header_branch
      %16 = sbr.rel (%p14) target = $region8
    $region5: #{tpu_custom_call.1} parent=1 // loop_body
      %s18 = ssub.s32 %s13, 1
      %s19 = ssub.s32 %s13, 2
      %s20 = sadd.s32 %s13, 1
      %s21 = ssub.s32 %s13, %s20
      %p22 = scmp.eq.s32.totalorder %s21, 0
      %s24 = sadd.s32 %s23, 1
      %s25 = scalar_select %p22, %s23, %s24
      %p28 = pneg %p22
      %p29 = scmp.eq.s32.totalorder %s13, 1
      %p30 = por %p28, %p29
      %p31 = scmp.ne.s32.totalorder %s23, %s26
      %p32 = scmp.eq.s32.totalorder %s13, 0
      %p33 = por %p31, %p32
      %p34 = scmp.ne.s32.totalorder %s23, %s26
      %p35 = scmp.eq.s32.totalorder %s18, 1
      %p36 = por %p34, %p35
      %p37 = scmp.ne.s32.totalorder %s26, %s27
      %p38 = scmp.eq.s32.totalorder %s18, 0
      %p39 = por %p37, %p38
      %p40 = scmp.ne.s32.totalorder %s26, %s27
      %p41 = scmp.eq.s32.totalorder %s19, 1
      %p42 = por %p40, %p41
      %p44 = scmp.ne.s32.totalorder %s27, %s43
      %p45 = scmp.eq.s32.totalorder %s19, 0
      %p46 = por %p44, %p45
      %s48 = sadd.s32 %s47, 1
      %p51 = scmp.eq.s32.totalorder %s13, 1
      %p52 = scmp.ne.s32.totalorder %s47, %s49
      %p53 = scmp.eq.s32.totalorder %s13, 0
      %p54 = por %p52, %p53
      %p55 = scmp.ne.s32.totalorder %s47, %s49
      %p56 = scmp.eq.s32.totalorder %s18, 1
      %p57 = por %p55, %p56
      %p58 = scmp.ne.s32.totalorder %s49, %s50
      %p59 = scmp.eq.s32.totalorder %s18, 0
      %p60 = por %p58, %p59
      %p61 = scmp.ne.s32.totalorder %s49, %s50
      %p62 = scmp.eq.s32.totalorder %s19, 1
      %p63 = por %p61, %p62
      %p65 = scmp.ne.s32.totalorder %s50, %s64
      %p66 = scmp.eq.s32.totalorder %s19, 0
      %p67 = por %p65, %p66
      %s69 = sadd.s32 %s68, 1
      %p72 = scmp.eq.s32.totalorder %s13, 1
      %p73 = scmp.ne.s32.totalorder %s68, %s70
      %p74 = scmp.eq.s32.totalorder %s13, 0
      %p75 = por %p73, %p74
      %p76 = scmp.ne.s32.totalorder %s68, %s70
      %p77 = scmp.eq.s32.totalorder %s18, 1
      %p78 = por %p76, %p77
      %p79 = scmp.ne.s32.totalorder %s70, %s71
      %p80 = scmp.eq.s32.totalorder %s18, 0
      %p81 = por %p79, %p80
      %p82 = scmp.ne.s32.totalorder %s70, %s71
      %p83 = scmp.eq.s32.totalorder %s19, 1
      %p84 = por %p82, %p83
      %p86 = scmp.ne.s32.totalorder %s71, %s85
      %p87 = scmp.eq.s32.totalorder %s19, 0
      %p88 = por %p86, %p87
      %s90 = sadd.s32 %s89, 1
      %p93 = scmp.eq.s32.totalorder %s13, 1
      %p94 = scmp.ne.s32.totalorder %s89, %s91
      %p95 = scmp.eq.s32.totalorder %s13, 0
      %p96 = por %p94, %p95
      %p97 = scmp.ne.s32.totalorder %s89, %s91
      %p98 = scmp.eq.s32.totalorder %s18, 1
      %p99 = por %p97, %p98
      %p100 = scmp.ne.s32.totalorder %s91, %s92
      %p101 = scmp.eq.s32.totalorder %s18, 0
      %p102 = por %p100, %p101
      %p103 = scmp.ne.s32.totalorder %s91, %s92
      %p104 = scmp.eq.s32.totalorder %s19, 1
      %p105 = por %p103, %p104
      %p107 = scmp.ne.s32.totalorder %s92, %s106
      %p108 = scmp.eq.s32.totalorder %s19, 0
      %p109 = por %p107, %p108
      %s110 = ssub.s32 %s13, %s20
      %p111 = scmp.eq.s32.totalorder %s110, 0
      %s113 = sadd.s32 %s112, 1
      %s114 = scalar_select %p111, %s112, %s113
      %p117 = pneg %p111
      %p118 = scmp.eq.s32.totalorder %s13, 1
      %p119 = por %p117, %p118
      %p120 = scmp.ne.s32.totalorder %s112, %s115
      %p121 = scmp.eq.s32.totalorder %s13, 0
      %p122 = por %p120, %p121
      %p123 = scmp.ne.s32.totalorder %s112, %s115
      %p124 = scmp.eq.s32.totalorder %s18, 1
      %p125 = por %p123, %p124
      %p126 = scmp.ne.s32.totalorder %s115, %s116
      %p127 = scmp.eq.s32.totalorder %s18, 0
      %p128 = por %p126, %p127
      %p129 = scmp.ne.s32.totalorder %s115, %s116
      %p130 = scmp.eq.s32.totalorder %s19, 1
      %p131 = por %p129, %p130
      %p133 = scmp.ne.s32.totalorder %s116, %s132
      %p134 = scmp.eq.s32.totalorder %s19, 0
      %p135 = por %p133, %p134
      %p136 = scmp.le.s32.totalorder 1, %s13
      %p137 = scmp.lt.s32.totalorder %s13, 3
      %p138 = pnand %p136, %p137
      %p139 = pneg %p138
      // Predicated region
      $region9: #{tpu_custom_call.1} parent=5 // pred_check
        _
      $region10: #{tpu_custom_call.1} parent=5 // pred_check_branch
        %141 = sbr.rel (%p138) target = $region12
      $region11: #{tpu_custom_call.1} parent=5 // pred_region
        %s142 = ssub.s32 %s13, 1
        // Predicated region
        $region13: #{tpu_custom_call.1} parent=11 // pred_check
          %p143 = pneg %p60
        $region14: #{tpu_custom_call.1} parent=11 // pred_check_branch
          %145 = sbr.rel (%p143) target = $region16
        $region15: #{tpu_custom_call.1} parent=11 // pred_region
          _
        $region16: #{tpu_custom_call.1} parent=11 // pred_fallthru
          _
        // Predicated region
        $region17: #{tpu_custom_call.1} parent=11 // pred_check
          %p146 = pneg %p81
        $region18: #{tpu_custom_call.1} parent=11 // pred_check_branch
          %148 = sbr.rel (%p146) target = $region20
        $region19: #{tpu_custom_call.1} parent=11 // pred_region
          _
        $region20: #{tpu_custom_call.1} parent=11 // pred_fallthru
          _
        // Predicated region
        $region21: #{tpu_custom_call.1} parent=11 // pred_check
          %p149 = pneg %p102
        $region22: #{tpu_custom_call.1} parent=11 // pred_check_branch
          %151 = sbr.rel (%p149) target = $region24
        $region23: #{tpu_custom_call.1} parent=11 // pred_region
          _
        $region24: #{tpu_custom_call.1} parent=11 // pred_fallthru
          _
      $region12: #{tpu_custom_call.1} parent=5 // pred_fallthru
        _
      %p152 = scmp.lt.s32.totalorder %s13, 2
      // Predicated region
      $region25: #{tpu_custom_call.1} parent=5 // pred_check
        %p153 = pneg %p152
      $region26: #{tpu_custom_call.1} parent=5 // pred_check_branch
        %155 = sbr.rel (%p153) target = $region28
      $region27: #{tpu_custom_call.1} parent=5 // pred_region
        // Predicated region
        $region29: #{tpu_custom_call.1} parent=27 // pred_check
          %p156 = pneg %p33
        $region30: #{tpu_custom_call.1} parent=27 // pred_check_branch
          %158 = sbr.rel (%p156) target = $region32
        $region31: #{tpu_custom_call.1} parent=27 // pred_region
          %p159 = scmp.lt.s32.totalorder %s13, 1
          %s160 = scalar_select %p159, %s13, 1
          %s161 = smul.addr %s160, 32
          %s162 = smul.addr %s161, 8
          %s163 = scalar_lea.vmem %s0, %s162
        $region32: #{tpu_custom_call.1} parent=27 // pred_fallthru
          _
      $region28: #{tpu_custom_call.1} parent=5 // pred_fallthru
        _
      %p164 = scmp.le.s32.totalorder 1, %s13
      %p165 = scmp.lt.s32.totalorder %s13, 3
      %p166 = pnand %p164, %p165
      %p167 = pneg %p166
      // Predicated region
      $region33: #{tpu_custom_call.1} parent=5 // pred_check
        _
      $region34: #{tpu_custom_call.1} parent=5 // pred_check_branch
        %169 = sbr.rel (%p166) target = $region36
      $region35: #{tpu_custom_call.1} parent=5 // pred_region
        %s170 = ssub.s32 %s13, 1
        %p171 = scmp.lt.s32.totalorder %s18, 1
        %s172 = scalar_select %p171, %s18, 1
        %s173 = smul.addr %s172, 32
        %s174 = smul.addr %s173, 8
        %s175 = scalar_lea.vmem %s0, %s174
        %p176 = pneg %p39
        %p177 = pneg %p36
        %p178 = pneg %p60
        %p179 = pneg %p57
        %p180 = pneg %p81
        %p181 = pneg %p78
        %p182 = pneg %p102
        %p183 = pneg %p99
        %p184 = pneg %p128
        %p185 = pneg %p125
        %s186 = sand.u32 %s115, 1
        %s187 = scalar_lea.sflag [#allocation5], %s186
        %s188 = sand.u32 %s115, 1
        %s189 = smul.addr %s188, 256
        %s190 = scalar_lea.vmem [#allocation4], %s189
        %p191 = scmp.lt.s32.totalorder %s18, 1
        %s192 = scalar_select %p191, %s18, 1
        %s193 = smul.addr %s192, 32
        %s194 = smul.addr %s193, 8
        %s195 = scalar_lea.vmem %s0, %s194
        %197 = vst [vmem:[#allocation2] sm:$0xf] 0
        %198 = vst [vmem:[#allocation2 + $0x4] sm:$0xf] 0
        %199 = vst [vmem:[#allocation2 + $0x8] sm:$0xf] 0
        %200 = vst [vmem:[#allocation2 + $0xc] sm:$0xf] 0
        %vm201 = vcmask 1040384
        %vm202 = vsmask.f32 256
        %vm203 = vmand %vm201, %vm202
        %v204 = vld [vmem:[#allocation2 + $0x10] sm:$0x1]
        %v205 = vsel %vm203, 0, %v204
        %206 = vst [vmem:[#allocation2 + $0x10] sm:$0x1] %v205
        %207 = vst [vmem:[#allocation2 + $0x14] sm:$0xf] 0
        %208 = vst [vmem:[#allocation2 + $0x18] sm:$0xf] 0
        %209 = vst [vmem:[#allocation2 + $0x1c] sm:$0xf] 0
        %210 = vst [vmem:[#allocation2 + $0x20] sm:$0xf] 0
        %v211 = vld [vmem:[#allocation2 + $0x24] sm:$0x1]
        %v212 = vsel %vm203, 0, %v211
        %213 = vst [vmem:[#allocation2 + $0x24] sm:$0x1] %v212
        %214 = vst [vmem:[#allocation2 + $0x28] sm:$0xf] 0
        %215 = vst [vmem:[#allocation2 + $0x2c] sm:$0xf] 0
        %216 = vst [vmem:[#allocation2 + $0x30] sm:$0xf] 0
        %217 = vst [vmem:[#allocation2 + $0x34] sm:$0xf] 0
        %v218 = vld [vmem:[#allocation2 + $0x38] sm:$0x1]
        %v219 = vsel %vm203, 0, %v218
        %220 = vst [vmem:[#allocation2 + $0x38] sm:$0x1] %v219
        %221 = vst [vmem:[#allocation2 + $0x3c] sm:$0xf] 0
        %222 = vst [vmem:[#allocation2 + $0x40] sm:$0xf] 0
        %223 = vst [vmem:[#allocation2 + $0x44] sm:$0xf] 0
        %224 = vst [vmem:[#allocation2 + $0x48] sm:$0xf] 0
        %v225 = vld [vmem:[#allocation2 + $0x4c] sm:$0x1]
        %v226 = vsel %vm203, 0, %v225
        %227 = vst [vmem:[#allocation2 + $0x4c] sm:$0x1] %v226
        %228 = vst [vmem:[#allocation2 + $0x50] sm:$0xf] 0
        %229 = vst [vmem:[#allocation2 + $0x54] sm:$0xf] 0
        %230 = vst [vmem:[#allocation2 + $0x58] sm:$0xf] 0
        %231 = vst [vmem:[#allocation2 + $0x5c] sm:$0xf] 0
        %v232 = vld [vmem:[#allocation2 + $0x60] sm:$0x1]
        %v233 = vsel %vm203, 0, %v232
        %234 = vst [vmem:[#allocation2 + $0x60] sm:$0x1] %v233
        %235 = vst [vmem:[#allocation2 + $0x64] sm:$0xf] 0
        %236 = vst [vmem:[#allocation2 + $0x68] sm:$0xf] 0
        %237 = vst [vmem:[#allocation2 + $0x6c] sm:$0xf] 0
        %238 = vst [vmem:[#allocation2 + $0x70] sm:$0xf] 0
        %v239 = vld [vmem:[#allocation2 + $0x74] sm:$0x1]
        %v240 = vsel %vm203, 0, %v239
        %241 = vst [vmem:[#allocation2 + $0x74] sm:$0x1] %v240
        %242 = vst [vmem:[#allocation2 + $0x78] sm:$0xf] 0
        %243 = vst [vmem:[#allocation2 + $0x7c] sm:$0xf] 0
        %244 = vst [vmem:[#allocation2 + $0x80] sm:$0xf] 0
        %245 = vst [vmem:[#allocation2 + $0x84] sm:$0xf] 0
        %v246 = vld [vmem:[#allocation2 + $0x88] sm:$0x1]
        %v247 = vsel %vm203, 0, %v246
        %248 = vst [vmem:[#allocation2 + $0x88] sm:$0x1] %v247
        %249 = vst [vmem:[#allocation2 + $0x8c] sm:$0xf] 0
        %250 = vst [vmem:[#allocation2 + $0x90] sm:$0xf] 0
        %251 = vst [vmem:[#allocation2 + $0x94] sm:$0xf] 0
        %252 = vst [vmem:[#allocation2 + $0x98] sm:$0xf] 0
        %v253 = vld [vmem:[#allocation2 + $0x9c] sm:$0x1]
        %v254 = vsel %vm203, 0, %v253
        %255 = vst [vmem:[#allocation2 + $0x9c] sm:$0x1] %v254
        %256 = vst [vmem:[#allocation2 + $0xa0] sm:$0xf] 0
        %257 = vst [vmem:[#allocation2 + $0xa4] sm:$0xf] 0
        %258 = vst [vmem:[#allocation2 + $0xa8] sm:$0xf] 0
        %259 = vst [vmem:[#allocation2 + $0xac] sm:$0xf] 0
        %v260 = vld [vmem:[#allocation2 + $0xb0] sm:$0x1]
        %v261 = vsel %vm203, 0, %v260
        %262 = vst [vmem:[#allocation2 + $0xb0] sm:$0x1] %v261
        %263 = vst [vmem:[#allocation2 + $0xb4] sm:$0xf] 0
        %264 = vst [vmem:[#allocation2 + $0xb8] sm:$0xf] 0
        %265 = vst [vmem:[#allocation2 + $0xbc] sm:$0xf] 0
        %266 = vst [vmem:[#allocation2 + $0xc0] sm:$0xf] 0
        %v267 = vld [vmem:[#allocation2 + $0xc4] sm:$0x1]
        %v268 = vsel %vm203, 0, %v267
        %269 = vst [vmem:[#allocation2 + $0xc4] sm:$0x1] %v268
        %270 = vst [vmem:[#allocation2 + $0xc8] sm:$0xf] 0
        %271 = vst [vmem:[#allocation2 + $0xcc] sm:$0xf] 0
        %272 = vst [vmem:[#allocation2 + $0xd0] sm:$0xf] 0
        %273 = vst [vmem:[#allocation2 + $0xd4] sm:$0xf] 0
        %v274 = vld [vmem:[#allocation2 + $0xd8] sm:$0x1]
        %v275 = vsel %vm203, 0, %v274
        %276 = vst [vmem:[#allocation2 + $0xd8] sm:$0x1] %v275
        %277 = vst [vmem:[#allocation2 + $0xdc] sm:$0xf] 0
        %278 = vst [vmem:[#allocation2 + $0xe0] sm:$0xf] 0
        %279 = vst [vmem:[#allocation2 + $0xe4] sm:$0xf] 0
        %280 = vst [vmem:[#allocation2 + $0xe8] sm:$0xf] 0
        %v281 = vld [vmem:[#allocation2 + $0xec] sm:$0x1]
        %v282 = vsel %vm203, 0, %v281
        %283 = vst [vmem:[#allocation2 + $0xec] sm:$0x1] %v282
        %284 = vst [vmem:[#allocation2 + $0xf0] sm:$0xf] 0
        %285 = vst [vmem:[#allocation2 + $0xf4] sm:$0xf] 0
        %286 = vst [vmem:[#allocation2 + $0xf8] sm:$0xf] 0
        %287 = vst [vmem:[#allocation2 + $0xfc] sm:$0xf] 0
        %v288 = vld [vmem:[#allocation2 + $0x100] sm:$0x1]
        %v289 = vsel %vm203, 0, %v288
        %290 = vst [vmem:[#allocation2 + $0x100] sm:$0x1] %v289
        %291 = vst [vmem:[#allocation2 + $0x104] sm:$0xf] 0
        %292 = vst [vmem:[#allocation2 + $0x108] sm:$0xf] 0
        %293 = vst [vmem:[#allocation2 + $0x10c] sm:$0xf] 0
        %294 = vst [vmem:[#allocation2 + $0x110] sm:$0xf] 0
        %v295 = vld [vmem:[#allocation2 + $0x114] sm:$0x1]
        %v296 = vsel %vm203, 0, %v295
        %297 = vst [vmem:[#allocation2 + $0x114] sm:$0x1] %v296
        %298 = vst [vmem:[#allocation2 + $0x118] sm:$0xf] 0
        %299 = vst [vmem:[#allocation2 + $0x11c] sm:$0xf] 0
        %300 = vst [vmem:[#allocation2 + $0x120] sm:$0xf] 0
        %301 = vst [vmem:[#allocation2 + $0x124] sm:$0xf] 0
        %v302 = vld [vmem:[#allocation2 + $0x128] sm:$0x1]
        %v303 = vsel %vm203, 0, %v302
        %304 = vst [vmem:[#allocation2 + $0x128] sm:$0x1] %v303
        %305 = vst [vmem:[#allocation2 + $0x12c] sm:$0xf] 0
        %306 = vst [vmem:[#allocation2 + $0x130] sm:$0xf] 0
        %307 = vst [vmem:[#allocation2 + $0x134] sm:$0xf] 0
        %308 = vst [vmem:[#allocation2 + $0x138] sm:$0xf] 0
        %v309 = vld [vmem:[#allocation2 + $0x13c] sm:$0x1]
        %v310 = vsel %vm203, 0, %v309
        %311 = vst [vmem:[#allocation2 + $0x13c] sm:$0x1] %v310
        %312 = vst [vmem:[#allocation2 + $0x140] sm:$0xf] 0
        %313 = vst [vmem:[#allocation2 + $0x144] sm:$0xf] 0
        %314 = vst [vmem:[#allocation2 + $0x148] sm:$0xf] 0
        %315 = vst [vmem:[#allocation2 + $0x14c] sm:$0xf] 0
        %v316 = vld [vmem:[#allocation2 + $0x150] sm:$0x1]
        %v317 = vsel %vm203, 0, %v316
        %318 = vst [vmem:[#allocation2 + $0x150] sm:$0x1] %v317
        %319 = vst [vmem:[#allocation2 + $0x154] sm:$0xf] 0
        %320 = vst [vmem:[#allocation2 + $0x158] sm:$0xf] 0
        %321 = vst [vmem:[#allocation2 + $0x15c] sm:$0xf] 0
        %322 = vst [vmem:[#allocation2 + $0x160] sm:$0xf] 0
        %v323 = vld [vmem:[#allocation2 + $0x164] sm:$0x1]
        %v324 = vsel %vm203, 0, %v323
        %325 = vst [vmem:[#allocation2 + $0x164] sm:$0x1] %v324
        %v326 = vld [vmem:[%s195] sm:$0xff]
        %v327 = vld [vmem:[%s195 + $0x8] sm:$0xff]
        %v328 = vld [vmem:[%s195 + $0x10] sm:$0xff]
        %v329 = vld [vmem:[%s195 + $0x18] sm:$0xff]
        %v330 = vld [vmem:[%s195 + $0x20] sm:$0xff]
        %v331 = vld [vmem:[%s195 + $0x28] sm:$0xff]
        %v332 = vld [vmem:[%s195 + $0x30] sm:$0xff]
        %v333 = vld [vmem:[%s195 + $0x38] sm:$0xff]
        %v334 = vld [vmem:[%s195 + $0x40] sm:$0xff]
        %v335 = vld [vmem:[%s195 + $0x48] sm:$0xff]
        %v336 = vld [vmem:[%s195 + $0x50] sm:$0xff]
        %v337 = vld [vmem:[%s195 + $0x58] sm:$0xff]
        %v338 = vld [vmem:[%s195 + $0x60] sm:$0xff]
        %v339 = vld [vmem:[%s195 + $0x68] sm:$0xff]
        %v340 = vld [vmem:[%s195 + $0x70] sm:$0xff]
        %v341 = vld [vmem:[%s195 + $0x78] sm:$0xff]
        %v342 = vld [vmem:[%s195 + $0x80] sm:$0xff]
        %v343 = vld [vmem:[%s195 + $0x88] sm:$0xff]
        %v344 = vld [vmem:[%s195 + $0x90] sm:$0xff]
        %v345 = vld [vmem:[%s195 + $0x98] sm:$0xff]
        %v346 = vld [vmem:[%s195 + $0xa0] sm:$0xff]
        %v347 = vld [vmem:[%s195 + $0xa8] sm:$0xff]
        %v348 = vld [vmem:[%s195 + $0xb0] sm:$0xff]
        %v349 = vld [vmem:[%s195 + $0xb8] sm:$0xff]
        %v350 = vld [vmem:[%s195 + $0xc0] sm:$0xff]
        %v351 = vld [vmem:[%s195 + $0xc8] sm:$0xff]
        %v352 = vld [vmem:[%s195 + $0xd0] sm:$0xff]
        %v353 = vld [vmem:[%s195 + $0xd8] sm:$0xff]
        %v354 = vld [vmem:[%s195 + $0xe0] sm:$0xff]
        %v355 = vld [vmem:[%s195 + $0xe8] sm:$0xff]
        %v356 = vld [vmem:[%s195 + $0xf0] sm:$0xff]
        %v357 = vld [vmem:[%s195 + $0xf8] sm:$0xff]
        %vm358 = vcmask 64512
        %v359 = vsel %vm358, %v326, 0.0
        %v360 = vsel %vm358, %v327, 0.0
        %v361 = vsel %vm358, %v328, 0.0
        %v362 = vsel %vm358, %v329, 0.0
        %v363 = vsel %vm358, %v330, 0.0
        %v364 = vsel %vm358, %v331, 0.0
        %v365 = vsel %vm358, %v332, 0.0
        %v366 = vsel %vm358, %v333, 0.0
        %v367 = vsel %vm358, %v334, 0.0
        %v368 = vsel %vm358, %v335, 0.0
        %v369 = vsel %vm358, %v336, 0.0
        %v370 = vsel %vm358, %v337, 0.0
        %v371 = vsel %vm358, %v338, 0.0
        %v372 = vsel %vm358, %v339, 0.0
        %v373 = vsel %vm358, %v340, 0.0
        %v374 = vsel %vm358, %v341, 0.0
        %v375 = vsel %vm358, %v342, 0.0
        %v376 = vsel %vm358, %v343, 0.0
        %v377 = vsel %vm358, %v344, 0.0
        %v378 = vsel %vm358, %v345, 0.0
        %v379 = vsel %vm358, %v346, 0.0
        %v380 = vsel %vm358, %v347, 0.0
        %v381 = vsel %vm358, %v348, 0.0
        %v382 = vsel %vm358, %v349, 0.0
        %v383 = vsel %vm358, %v350, 0.0
        %v384 = vsel %vm358, %v351, 0.0
        %v385 = vsel %vm358, %v352, 0.0
        %v386 = vsel %vm358, %v353, 0.0
        %v387 = vsel %vm358, %v354, 0.0
        %v388 = vsel %vm358, %v355, 0.0
        %v389 = vsel %vm358, %v356, 0.0
        %v390 = vsel %vm358, %v357, 0.0
        %391 = vst [vmem:[#allocation3] sm:$0xff] %v359
        %392 = vst [vmem:[#allocation3 + $0x8] sm:$0xff] %v360
        %393 = vst [vmem:[#allocation3 + $0x10] sm:$0xff] %v361
        %394 = vst [vmem:[#allocation3 + $0x18] sm:$0xff] %v362
        %395 = vst [vmem:[#allocation3 + $0x20] sm:$0xff] %v363
        %396 = vst [vmem:[#allocation3 + $0x28] sm:$0xff] %v364
        %397 = vst [vmem:[#allocation3 + $0x30] sm:$0xff] %v365
        %398 = vst [vmem:[#allocation3 + $0x38] sm:$0xff] %v366
        %399 = vst [vmem:[#allocation3 + $0x40] sm:$0xff] %v367
        %400 = vst [vmem:[#allocation3 + $0x48] sm:$0xff] %v368
        %401 = vst [vmem:[#allocation3 + $0x50] sm:$0xff] %v369
        %402 = vst [vmem:[#allocation3 + $0x58] sm:$0xff] %v370
        %403 = vst [vmem:[#allocation3 + $0x60] sm:$0xff] %v371
        %404 = vst [vmem:[#allocation3 + $0x68] sm:$0xff] %v372
        %405 = vst [vmem:[#allocation3 + $0x70] sm:$0xff] %v373
        %406 = vst [vmem:[#allocation3 + $0x78] sm:$0xff] %v374
        %407 = vst [vmem:[#allocation3 + $0x80] sm:$0xff] %v375
        %408 = vst [vmem:[#allocation3 + $0x88] sm:$0xff] %v376
        %409 = vst [vmem:[#allocation3 + $0x90] sm:$0xff] %v377
        %410 = vst [vmem:[#allocation3 + $0x98] sm:$0xff] %v378
        %411 = vst [vmem:[#allocation3 + $0xa0] sm:$0xff] %v379
        %412 = vst [vmem:[#allocation3 + $0xa8] sm:$0xff] %v380
        %413 = vst [vmem:[#allocation3 + $0xb0] sm:$0xff] %v381
        %414 = vst [vmem:[#allocation3 + $0xb8] sm:$0xff] %v382
        %415 = vst [vmem:[#allocation3 + $0xc0] sm:$0xff] %v383
        %416 = vst [vmem:[#allocation3 + $0xc8] sm:$0xff] %v384
        %417 = vst [vmem:[#allocation3 + $0xd0] sm:$0xff] %v385
        %418 = vst [vmem:[#allocation3 + $0xd8] sm:$0xff] %v386
        %419 = vst [vmem:[#allocation3 + $0xe0] sm:$0xff] %v387
        %420 = vst [vmem:[#allocation3 + $0xe8] sm:$0xff] %v388
        %421 = vst [vmem:[#allocation3 + $0xf0] sm:$0xff] %v389
        %422 = vst [vmem:[#allocation3 + $0xf8] sm:$0xff] %v390
        %v423 = vpack.c.bf16 %v360, %v359
        %v424 = vpack.c.bf16 %v362, %v361
        %v425 = vpack.c.bf16 %v364, %v363
        %v426 = vpack.c.bf16 %v366, %v365
        %v427 = vpack.c.bf16 %v368, %v367
        %v428 = vpack.c.bf16 %v370, %v369
        %v429 = vpack.c.bf16 %v372, %v371
        %v430 = vpack.c.bf16 %v374, %v373
        %v431 = vpack.c.bf16 %v376, %v375
        %v432 = vpack.c.bf16 %v378, %v377
        %v433 = vpack.c.bf16 %v380, %v379
        %v434 = vpack.c.bf16 %v382, %v381
        %v435 = vpack.c.bf16 %v384, %v383
        %v436 = vpack.c.bf16 %v386, %v385
        %v437 = vpack.c.bf16 %v388, %v387
        %v438 = vpack.c.bf16 %v390, %v389
        %v455 = vunpack.c.l.b16 %v423
        %v456 = vunpack.c.h.b16 %v423
        %v457 = vunpack.c.l.b16 %v424
        %v458 = vunpack.c.h.b16 %v424
        %v459 = vunpack.c.l.b16 %v425
        %v460 = vunpack.c.h.b16 %v425
        %v461 = vunpack.c.l.b16 %v426
        %v462 = vunpack.c.h.b16 %v426
        %v463 = vunpack.c.l.b16 %v427
        %v464 = vunpack.c.h.b16 %v427
        %v465 = vunpack.c.l.b16 %v428
        %v466 = vunpack.c.h.b16 %v428
        %v467 = vunpack.c.l.b16 %v429
        %v468 = vunpack.c.h.b16 %v429
        %v469 = vunpack.c.l.b16 %v430
        %v470 = vunpack.c.h.b16 %v430
        %v471 = vunpack.c.l.b16 %v431
        %v472 = vunpack.c.h.b16 %v431
        %v473 = vunpack.c.l.b16 %v432
        %v474 = vunpack.c.h.b16 %v432
        %v475 = vunpack.c.l.b16 %v433
        %v476 = vunpack.c.h.b16 %v433
        %v477 = vunpack.c.l.b16 %v434
        %v478 = vunpack.c.h.b16 %v434
        %v479 = vunpack.c.l.b16 %v435
        %v480 = vunpack.c.h.b16 %v435
        %v481 = vunpack.c.l.b16 %v436
        %v482 = vunpack.c.h.b16 %v436
        %v483 = vunpack.c.l.b16 %v437
        %v484 = vunpack.c.h.b16 %v437
        %v485 = vunpack.c.l.b16 %v438
        %v486 = vunpack.c.h.b16 %v438
        %v487 = vpack.c.b16 %v455, %v455
        %v488 = vpack.c.b16 %v456, %v456
        %v489 = vpack.c.b16 %v457, %v457
        %v490 = vpack.c.b16 %v458, %v458
        %v491 = vpack.c.b16 %v459, %v459
        %v492 = vpack.c.b16 %v460, %v460
        %v493 = vpack.c.b16 %v461, %v461
        %v494 = vpack.c.b16 %v462, %v462
        %v495 = vpack.c.b16 %v463, %v463
        %v496 = vpack.c.b16 %v464, %v464
        %v497 = vpack.c.b16 %v465, %v465
        %v498 = vpack.c.b16 %v466, %v466
        %v499 = vpack.c.b16 %v467, %v467
        %v500 = vpack.c.b16 %v468, %v468
        %v501 = vpack.c.b16 %v469, %v469
        %v502 = vpack.c.b16 %v470, %v470
        %v503 = vpack.c.b16 %v471, %v471
        %v504 = vpack.c.b16 %v472, %v472
        %v505 = vpack.c.b16 %v473, %v473
        %v506 = vpack.c.b16 %v474, %v474
        %v507 = vpack.c.b16 %v475, %v475
        %v508 = vpack.c.b16 %v476, %v476
        %v509 = vpack.c.b16 %v477, %v477
        %v510 = vpack.c.b16 %v478, %v478
        %v511 = vpack.c.b16 %v479, %v479
        %v512 = vpack.c.b16 %v480, %v480
        %v513 = vpack.c.b16 %v481, %v481
        %v514 = vpack.c.b16 %v482, %v482
        %v515 = vpack.c.b16 %v483, %v483
        %v516 = vpack.c.b16 %v484, %v484
        %v517 = vpack.c.b16 %v485, %v485
        %v518 = vpack.c.b16 %v486, %v486
        %s551 = scalar_lea.vmem [#allocation2], 20
        %552 = vst [vmem:[%s551 + $0x8] sm:$0xf] %v487
        %553 = vst [vmem:[%s551 + $0xc] sm:$0xf] %v488
        %554 = vst [vmem:[%s551 + $0x1c] sm:$0xf] %v489
        %555 = vst [vmem:[%s551 + $0x20] sm:$0xf] %v490
        %556 = vst [vmem:[%s551 + $0x30] sm:$0xf] %v491
        %557 = vst [vmem:[%s551 + $0x34] sm:$0xf] %v492
        %558 = vst [vmem:[%s551 + $0x44] sm:$0xf] %v493
        %559 = vst [vmem:[%s551 + $0x48] sm:$0xf] %v494
        %560 = vst [vmem:[%s551 + $0x58] sm:$0xf] %v495
        %561 = vst [vmem:[%s551 + $0x5c] sm:$0xf] %v496
        %562 = vst [vmem:[%s551 + $0x6c] sm:$0xf] %v497
        %563 = vst [vmem:[%s551 + $0x70] sm:$0xf] %v498
        %564 = vst [vmem:[%s551 + $0x80] sm:$0xf] %v499
        %565 = vst [vmem:[%s551 + $0x84] sm:$0xf] %v500
        %566 = vst [vmem:[%s551 + $0x94] sm:$0xf] %v501
        %567 = vst [vmem:[%s551 + $0x98] sm:$0xf] %v502
        %568 = vst [vmem:[%s551 + $0xa8] sm:$0xf] %v503
        %569 = vst [vmem:[%s551 + $0xac] sm:$0xf] %v504
        %570 = vst [vmem:[%s551 + $0xbc] sm:$0xf] %v505
        %571 = vst [vmem:[%s551 + $0xc0] sm:$0xf] %v506
        %572 = vst [vmem:[%s551 + $0xd0] sm:$0xf] %v507
        %573 = vst [vmem:[%s551 + $0xd4] sm:$0xf] %v508
        %574 = vst [vmem:[%s551 + $0xe4] sm:$0xf] %v509
        %575 = vst [vmem:[%s551 + $0xe8] sm:$0xf] %v510
        %576 = vst [vmem:[%s551 + $0xf8] sm:$0xf] %v511
        %577 = vst [vmem:[%s551 + $0xfc] sm:$0xf] %v512
        %578 = vst [vmem:[%s551 + $0x10c] sm:$0xf] %v513
        %579 = vst [vmem:[%s551 + $0x110] sm:$0xf] %v514
        %580 = vst [vmem:[%s551 + $0x120] sm:$0xf] %v515
        %581 = vst [vmem:[%s551 + $0x124] sm:$0xf] %v516
        %582 = vst [vmem:[%s551 + $0x134] sm:$0xf] %v517
        %583 = vst [vmem:[%s551 + $0x138] sm:$0xf] %v518
        %v584 = vld [vmem:[%s2] sm:$0x1]
        %v585 = vld [vmem:[%s3] sm:$0x1]
        %v586 = vld [vmem:[#allocation2 + $0x4] sm:$0x8]
        %v587 = vld [vmem:[#allocation2 + $0x8] sm:$0xf]
        %v588 = vld [vmem:[#allocation2 + $0xc] sm:$0xf]
        %v589 = vld [vmem:[#allocation2 + $0x18] sm:$0x8]
        %v590 = vld [vmem:[#allocation2 + $0x1c] sm:$0xf]
        %v591 = vld [vmem:[#allocation2 + $0x20] sm:$0xf]
        %v592 = vld [vmem:[#allocation2 + $0x2c] sm:$0x8]
        %v593 = vld [vmem:[#allocation2 + $0x30] sm:$0xf]
        %v594 = vld [vmem:[#allocation2 + $0x34] sm:$0xf]
        %v595 = vld [vmem:[#allocation2 + $0x40] sm:$0x8]
        %v596 = vld [vmem:[#allocation2 + $0x44] sm:$0xf]
        %v597 = vld [vmem:[#allocation2 + $0x48] sm:$0xf]
        %v598 = vld [vmem:[#allocation2 + $0x54] sm:$0x8]
        %v599 = vld [vmem:[#allocation2 + $0x58] sm:$0xf]
        %v600 = vld [vmem:[#allocation2 + $0x5c] sm:$0xf]
        %v601 = vld [vmem:[#allocation2 + $0x68] sm:$0x8]
        %v602 = vld [vmem:[#allocation2 + $0x6c] sm:$0xf]
        %v603 = vld [vmem:[#allocation2 + $0x70] sm:$0xf]
        %v604 = vld [vmem:[#allocation2 + $0x7c] sm:$0x8]
        %v605 = vld [vmem:[#allocation2 + $0x80] sm:$0xf]
        %v606 = vld [vmem:[#allocation2 + $0x84] sm:$0xf]
        %v607 = vld [vmem:[#allocation2 + $0x90] sm:$0x8]
        %v608 = vld [vmem:[#allocation2 + $0x94] sm:$0xf]
        %v609 = vld [vmem:[#allocation2 + $0x98] sm:$0xf]
        %v610 = vld [vmem:[#allocation2 + $0xa4] sm:$0x8]
        %v611 = vld [vmem:[#allocation2 + $0xa8] sm:$0xf]
        %v612 = vld [vmem:[#allocation2 + $0xac] sm:$0xf]
        %v613 = vld [vmem:[#allocation2 + $0xb8] sm:$0x8]
        %v614 = vld [vmem:[#allocation2 + $0xbc] sm:$0xf]
        %v615 = vld [vmem:[#allocation2 + $0xc0] sm:$0xf]
        %v616 = vld [vmem:[#allocation2 + $0xcc] sm:$0x8]
        %v617 = vld [vmem:[#allocation2 + $0xd0] sm:$0xf]
        %v618 = vld [vmem:[#allocation2 + $0xd4] sm:$0xf]
        %v619 = vld [vmem:[#allocation2 + $0xe0] sm:$0x8]
        %v620 = vld [vmem:[#allocation2 + $0xe4] sm:$0xf]
        %v621 = vld [vmem:[#allocation2 + $0xe8] sm:$0xf]
        %v622 = vld [vmem:[#allocation2 + $0xf4] sm:$0x8]
        %v623 = vld [vmem:[#allocation2 + $0xf8] sm:$0xf]
        %v624 = vld [vmem:[#allocation2 + $0xfc] sm:$0xf]
        %v625 = vld [vmem:[#allocation2 + $0x108] sm:$0x8]
        %v626 = vld [vmem:[#allocation2 + $0x10c] sm:$0xf]
        %v627 = vld [vmem:[#allocation2 + $0x110] sm:$0xf]
        %v628 = vld [vmem:[#allocation2 + $0x11c] sm:$0x8]
        %v629 = vld [vmem:[#allocation2 + $0x120] sm:$0xf]
        %v630 = vld [vmem:[#allocation2 + $0x124] sm:$0xf]
        %v631 = vld [vmem:[#allocation2 + $0x130] sm:$0x8]
        %v632 = vld [vmem:[#allocation2 + $0x134] sm:$0xf]
        %v633 = vld [vmem:[#allocation2 + $0x138] sm:$0xf]
        %vm634 = vsmask.f32 4368
        %vm635 = vmor %vm202, %vm634
        %v637 = vshrl.u32 %v586, 16
        %v639 = vrot.slane %v637, 7
        %v640 = vrot.slane %v639, 4
        %v642 = vshrl.u32 %v587, 16
        %v644 = vrot.slane %v642, 7
        %v645 = vshll.u32 %v587, 16
        %v647 = vor.u32 %v644, %v645
        %v648 = vsel %vm635, %v640, %v647
        %v649 = vrot.slane %v644, 4
        %v651 = vshrl.u32 %v588, 16
        %v653 = vrot.slane %v651, 7
        %v654 = vshll.u32 %v588, 16
        %v656 = vor.u32 %v653, %v654
        %v657 = vsel %vm635, %v649, %v656
        %v659 = vshrl.u32 %v589, 16
        %v661 = vrot.slane %v659, 7
        %v662 = vrot.slane %v661, 4
        %v664 = vshrl.u32 %v590, 16
        %v666 = vrot.slane %v664, 7
        %v667 = vshll.u32 %v590, 16
        %v669 = vor.u32 %v666, %v667
        %v670 = vsel %vm635, %v662, %v669
        %v671 = vrot.slane %v666, 4
        %v673 = vshrl.u32 %v591, 16
        %v675 = vrot.slane %v673, 7
        %v676 = vshll.u32 %v591, 16
        %v678 = vor.u32 %v675, %v676
        %v679 = vsel %vm635, %v671, %v678
        %v681 = vshrl.u32 %v592, 16
        %v683 = vrot.slane %v681, 7
        %v684 = vrot.slane %v683, 4
        %v686 = vshrl.u32 %v593, 16
        %v688 = vrot.slane %v686, 7
        %v689 = vshll.u32 %v593, 16
        %v691 = vor.u32 %v688, %v689
        %v692 = vsel %vm635, %v684, %v691
        %v693 = vrot.slane %v688, 4
        %v695 = vshrl.u32 %v594, 16
        %v697 = vrot.slane %v695, 7
        %v698 = vshll.u32 %v594, 16
        %v700 = vor.u32 %v697, %v698
        %v701 = vsel %vm635, %v693, %v700
        %v703 = vshrl.u32 %v595, 16
        %v705 = vrot.slane %v703, 7
        %v706 = vrot.slane %v705, 4
        %v708 = vshrl.u32 %v596, 16
        %v710 = vrot.slane %v708, 7
        %v711 = vshll.u32 %v596, 16
        %v713 = vor.u32 %v710, %v711
        %v714 = vsel %vm635, %v706, %v713
        %v715 = vrot.slane %v710, 4
        %v717 = vshrl.u32 %v597, 16
        %v719 = vrot.slane %v717, 7
        %v720 = vshll.u32 %v597, 16
        %v722 = vor.u32 %v719, %v720
        %v723 = vsel %vm635, %v715, %v722
        %v725 = vshrl.u32 %v598, 16
        %v727 = vrot.slane %v725, 7
        %v728 = vrot.slane %v727, 4
        %v730 = vshrl.u32 %v599, 16
        %v732 = vrot.slane %v730, 7
        %v733 = vshll.u32 %v599, 16
        %v735 = vor.u32 %v732, %v733
        %v736 = vsel %vm635, %v728, %v735
        %v737 = vrot.slane %v732, 4
        %v739 = vshrl.u32 %v600, 16
        %v741 = vrot.slane %v739, 7
        %v742 = vshll.u32 %v600, 16
        %v744 = vor.u32 %v741, %v742
        %v745 = vsel %vm635, %v737, %v744
        %v747 = vshrl.u32 %v601, 16
        %v749 = vrot.slane %v747, 7
        %v750 = vrot.slane %v749, 4
        %v752 = vshrl.u32 %v602, 16
        %v754 = vrot.slane %v752, 7
        %v755 = vshll.u32 %v602, 16
        %v757 = vor.u32 %v754, %v755
        %v758 = vsel %vm635, %v750, %v757
        %v759 = vrot.slane %v754, 4
        %v761 = vshrl.u32 %v603, 16
        %v763 = vrot.slane %v761, 7
        %v764 = vshll.u32 %v603, 16
        %v766 = vor.u32 %v763, %v764
        %v767 = vsel %vm635, %v759, %v766
        %v769 = vshrl.u32 %v604, 16
        %v771 = vrot.slane %v769, 7
        %v772 = vrot.slane %v771, 4
        %v774 = vshrl.u32 %v605, 16
        %v776 = vrot.slane %v774, 7
        %v777 = vshll.u32 %v605, 16
        %v779 = vor.u32 %v776, %v777
        %v780 = vsel %vm635, %v772, %v779
        %v781 = vrot.slane %v776, 4
        %v783 = vshrl.u32 %v606, 16
        %v785 = vrot.slane %v783, 7
        %v786 = vshll.u32 %v606, 16
        %v788 = vor.u32 %v785, %v786
        %v789 = vsel %vm635, %v781, %v788
        %v791 = vshrl.u32 %v607, 16
        %v793 = vrot.slane %v791, 7
        %v794 = vrot.slane %v793, 4
        %v796 = vshrl.u32 %v608, 16
        %v798 = vrot.slane %v796, 7
        %v799 = vshll.u32 %v608, 16
        %v801 = vor.u32 %v798, %v799
        %v802 = vsel %vm635, %v794, %v801
        %v803 = vrot.slane %v798, 4
        %v805 = vshrl.u32 %v609, 16
        %v807 = vrot.slane %v805, 7
        %v808 = vshll.u32 %v609, 16
        %v810 = vor.u32 %v807, %v808
        %v811 = vsel %vm635, %v803, %v810
        %v813 = vshrl.u32 %v610, 16
        %v815 = vrot.slane %v813, 7
        %v816 = vrot.slane %v815, 4
        %v818 = vshrl.u32 %v611, 16
        %v820 = vrot.slane %v818, 7
        %v821 = vshll.u32 %v611, 16
        %v823 = vor.u32 %v820, %v821
        %v824 = vsel %vm635, %v816, %v823
        %v825 = vrot.slane %v820, 4
        %v827 = vshrl.u32 %v612, 16
        %v829 = vrot.slane %v827, 7
        %v830 = vshll.u32 %v612, 16
        %v832 = vor.u32 %v829, %v830
        %v833 = vsel %vm635, %v825, %v832
        %v835 = vshrl.u32 %v613, 16
        %v837 = vrot.slane %v835, 7
        %v838 = vrot.slane %v837, 4
        %v840 = vshrl.u32 %v614, 16
        %v842 = vrot.slane %v840, 7
        %v843 = vshll.u32 %v614, 16
        %v845 = vor.u32 %v842, %v843
        %v846 = vsel %vm635, %v838, %v845
        %v847 = vrot.slane %v842, 4
        %v849 = vshrl.u32 %v615, 16
        %v851 = vrot.slane %v849, 7
        %v852 = vshll.u32 %v615, 16
        %v854 = vor.u32 %v851, %v852
        %v855 = vsel %vm635, %v847, %v854
        %v857 = vshrl.u32 %v616, 16
        %v859 = vrot.slane %v857, 7
        %v860 = vrot.slane %v859, 4
        %v862 = vshrl.u32 %v617, 16
        %v864 = vrot.slane %v862, 7
        %v865 = vshll.u32 %v617, 16
        %v867 = vor.u32 %v864, %v865
        %v868 = vsel %vm635, %v860, %v867
        %v869 = vrot.slane %v864, 4
        %v871 = vshrl.u32 %v618, 16
        %v873 = vrot.slane %v871, 7
        %v874 = vshll.u32 %v618, 16
        %v876 = vor.u32 %v873, %v874
        %v877 = vsel %vm635, %v869, %v876
        %v879 = vshrl.u32 %v619, 16
        %v881 = vrot.slane %v879, 7
        %v882 = vrot.slane %v881, 4
        %v884 = vshrl.u32 %v620, 16
        %v886 = vrot.slane %v884, 7
        %v887 = vshll.u32 %v620, 16
        %v889 = vor.u32 %v886, %v887
        %v890 = vsel %vm635, %v882, %v889
        %v891 = vrot.slane %v886, 4
        %v893 = vshrl.u32 %v621, 16
        %v895 = vrot.slane %v893, 7
        %v896 = vshll.u32 %v621, 16
        %v898 = vor.u32 %v895, %v896
        %v899 = vsel %vm635, %v891, %v898
        %v901 = vshrl.u32 %v622, 16
        %v903 = vrot.slane %v901, 7
        %v904 = vrot.slane %v903, 4
        %v906 = vshrl.u32 %v623, 16
        %v908 = vrot.slane %v906, 7
        %v909 = vshll.u32 %v623, 16
        %v911 = vor.u32 %v908, %v909
        %v912 = vsel %vm635, %v904, %v911
        %v913 = vrot.slane %v908, 4
        %v915 = vshrl.u32 %v624, 16
        %v917 = vrot.slane %v915, 7
        %v918 = vshll.u32 %v624, 16
        %v920 = vor.u32 %v917, %v918
        %v921 = vsel %vm635, %v913, %v920
        %v923 = vshrl.u32 %v625, 16
        %v925 = vrot.slane %v923, 7
        %v926 = vrot.slane %v925, 4
        %v928 = vshrl.u32 %v626, 16
        %v930 = vrot.slane %v928, 7
        %v931 = vshll.u32 %v626, 16
        %v933 = vor.u32 %v930, %v931
        %v934 = vsel %vm635, %v926, %v933
        %v935 = vrot.slane %v930, 4
        %v937 = vshrl.u32 %v627, 16
        %v939 = vrot.slane %v937, 7
        %v940 = vshll.u32 %v627, 16
        %v942 = vor.u32 %v939, %v940
        %v943 = vsel %vm635, %v935, %v942
        %v945 = vshrl.u32 %v628, 16
        %v947 = vrot.slane %v945, 7
        %v948 = vrot.slane %v947, 4
        %v950 = vshrl.u32 %v629, 16
        %v952 = vrot.slane %v950, 7
        %v953 = vshll.u32 %v629, 16
        %v955 = vor.u32 %v952, %v953
        %v956 = vsel %vm635, %v948, %v955
        %v957 = vrot.slane %v952, 4
        %v959 = vshrl.u32 %v630, 16
        %v961 = vrot.slane %v959, 7
        %v962 = vshll.u32 %v630, 16
        %v964 = vor.u32 %v961, %v962
        %v965 = vsel %vm635, %v957, %v964
        %v967 = vshrl.u32 %v631, 16
        %v969 = vrot.slane %v967, 7
        %v970 = vrot.slane %v969, 4
        %v972 = vshrl.u32 %v632, 16
        %v974 = vrot.slane %v972, 7
        %v975 = vshll.u32 %v632, 16
        %v977 = vor.u32 %v974, %v975
        %v978 = vsel %vm635, %v970, %v977
        %v979 = vrot.slane %v974, 4
        %v981 = vshrl.u32 %v633, 16
        %v983 = vrot.slane %v981, 7
        %v984 = vshll.u32 %v633, 16
        %v986 = vor.u32 %v983, %v984
        %v987 = vsel %vm635, %v979, %v986
        %v988 = vld [vmem:[#allocation2 + $0x10] sm:$0x1]
        %v989 = vld [vmem:[#allocation2 + $0x24] sm:$0x1]
        %v990 = vld [vmem:[#allocation2 + $0x38] sm:$0x1]
        %v991 = vld [vmem:[#allocation2 + $0x4c] sm:$0x1]
        %v992 = vld [vmem:[#allocation2 + $0x60] sm:$0x1]
        %v993 = vld [vmem:[#allocation2 + $0x74] sm:$0x1]
        %v994 = vld [vmem:[#allocation2 + $0x88] sm:$0x1]
        %v995 = vld [vmem:[#allocation2 + $0x9c] sm:$0x1]
        %v996 = vld [vmem:[#allocation2 + $0xb0] sm:$0x1]
        %v997 = vld [vmem:[#allocation2 + $0xc4] sm:$0x1]
        %v998 = vld [vmem:[#allocation2 + $0xd8] sm:$0x1]
        %v999 = vld [vmem:[#allocation2 + $0xec] sm:$0x1]
        %v1000 = vld [vmem:[#allocation2 + $0x100] sm:$0x1]
        %v1001 = vld [vmem:[#allocation2 + $0x114] sm:$0x1]
        %v1002 = vld [vmem:[#allocation2 + $0x128] sm:$0x1]
        %v1003 = vld [vmem:[#allocation2 + $0x13c] sm:$0x1]
        %vm1004 = vsmask.f32 3328
        %vm1005 = vsmask.f32 7440
        %vm1006 = vmor %vm1004, %vm1005
        %v1007 = vrot.slane %v642, 4
        %v1008 = vrot.slane %v645, 5
        %v1009 = vor.u32 %v1007, %v1008
        %v1010 = vrot.slane %v1009, 4
        %v1011 = vrot.slane %v654, 5
        %v1012 = vsel %vm1006, %v1010, %v1011
        %v1013 = vrot.slane %v651, 4
        %v1014 = vor.u32 %v1013, %v1011
        %v1015 = vrot.slane %v1014, 4
        %v1017 = vshll.u32 %v988, 16
        %v1019 = vrot.slane %v1017, 5
        %v1020 = vsel %vm1006, %v1015, %v1019
        %v1021 = vrot.slane %v664, 4
        %v1022 = vrot.slane %v667, 5
        %v1023 = vor.u32 %v1021, %v1022
        %v1024 = vrot.slane %v1023, 4
        %v1025 = vrot.slane %v676, 5
        %v1026 = vsel %vm1006, %v1024, %v1025
        %v1027 = vrot.slane %v673, 4
        %v1028 = vor.u32 %v1027, %v1025
        %v1029 = vrot.slane %v1028, 4
        %v1031 = vshll.u32 %v989, 16
        %v1033 = vrot.slane %v1031, 5
        %v1034 = vsel %vm1006, %v1029, %v1033
        %v1035 = vrot.slane %v686, 4
        %v1036 = vrot.slane %v689, 5
        %v1037 = vor.u32 %v1035, %v1036
        %v1038 = vrot.slane %v1037, 4
        %v1039 = vrot.slane %v698, 5
        %v1040 = vsel %vm1006, %v1038, %v1039
        %v1041 = vrot.slane %v695, 4
        %v1042 = vor.u32 %v1041, %v1039
        %v1043 = vrot.slane %v1042, 4
        %v1045 = vshll.u32 %v990, 16
        %v1047 = vrot.slane %v1045, 5
        %v1048 = vsel %vm1006, %v1043, %v1047
        %v1049 = vrot.slane %v708, 4
        %v1050 = vrot.slane %v711, 5
        %v1051 = vor.u32 %v1049, %v1050
        %v1052 = vrot.slane %v1051, 4
        %v1053 = vrot.slane %v720, 5
        %v1054 = vsel %vm1006, %v1052, %v1053
        %v1055 = vrot.slane %v717, 4
        %v1056 = vor.u32 %v1055, %v1053
        %v1057 = vrot.slane %v1056, 4
        %v1059 = vshll.u32 %v991, 16
        %v1061 = vrot.slane %v1059, 5
        %v1062 = vsel %vm1006, %v1057, %v1061
        %v1063 = vrot.slane %v730, 4
        %v1064 = vrot.slane %v733, 5
        %v1065 = vor.u32 %v1063, %v1064
        %v1066 = vrot.slane %v1065, 4
        %v1067 = vrot.slane %v742, 5
        %v1068 = vsel %vm1006, %v1066, %v1067
        %v1069 = vrot.slane %v739, 4
        %v1070 = vor.u32 %v1069, %v1067
        %v1071 = vrot.slane %v1070, 4
        %v1073 = vshll.u32 %v992, 16
        %v1075 = vrot.slane %v1073, 5
        %v1076 = vsel %vm1006, %v1071, %v1075
        %v1077 = vrot.slane %v752, 4
        %v1078 = vrot.slane %v755, 5
        %v1079 = vor.u32 %v1077, %v1078
        %v1080 = vrot.slane %v1079, 4
        %v1081 = vrot.slane %v764, 5
        %v1082 = vsel %vm1006, %v1080, %v1081
        %v1083 = vrot.slane %v761, 4
        %v1084 = vor.u32 %v1083, %v1081
        %v1085 = vrot.slane %v1084, 4
        %v1087 = vshll.u32 %v993, 16
        %v1089 = vrot.slane %v1087, 5
        %v1090 = vsel %vm1006, %v1085, %v1089
        %v1091 = vrot.slane %v774, 4
        %v1092 = vrot.slane %v777, 5
        %v1093 = vor.u32 %v1091, %v1092
        %v1094 = vrot.slane %v1093, 4
        %v1095 = vrot.slane %v786, 5
        %v1096 = vsel %vm1006, %v1094, %v1095
        %v1097 = vrot.slane %v783, 4
        %v1098 = vor.u32 %v1097, %v1095
        %v1099 = vrot.slane %v1098, 4
        %v1101 = vshll.u32 %v994, 16
        %v1103 = vrot.slane %v1101, 5
        %v1104 = vsel %vm1006, %v1099, %v1103
        %v1105 = vrot.slane %v796, 4
        %v1106 = vrot.slane %v799, 5
        %v1107 = vor.u32 %v1105, %v1106
        %v1108 = vrot.slane %v1107, 4
        %v1109 = vrot.slane %v808, 5
        %v1110 = vsel %vm1006, %v1108, %v1109
        %v1111 = vrot.slane %v805, 4
        %v1112 = vor.u32 %v1111, %v1109
        %v1113 = vrot.slane %v1112, 4
        %v1115 = vshll.u32 %v995, 16
        %v1117 = vrot.slane %v1115, 5
        %v1118 = vsel %vm1006, %v1113, %v1117
        %v1119 = vrot.slane %v818, 4
        %v1120 = vrot.slane %v821, 5
        %v1121 = vor.u32 %v1119, %v1120
        %v1122 = vrot.slane %v1121, 4
        %v1123 = vrot.slane %v830, 5
        %v1124 = vsel %vm1006, %v1122, %v1123
        %v1125 = vrot.slane %v827, 4
        %v1126 = vor.u32 %v1125, %v1123
        %v1127 = vrot.slane %v1126, 4
        %v1129 = vshll.u32 %v996, 16
        %v1131 = vrot.slane %v1129, 5
        %v1132 = vsel %vm1006, %v1127, %v1131
        %v1133 = vrot.slane %v840, 4
        %v1134 = vrot.slane %v843, 5
        %v1135 = vor.u32 %v1133, %v1134
        %v1136 = vrot.slane %v1135, 4
        %v1137 = vrot.slane %v852, 5
        %v1138 = vsel %vm1006, %v1136, %v1137
        %v1139 = vrot.slane %v849, 4
        %v1140 = vor.u32 %v1139, %v1137
        %v1141 = vrot.slane %v1140, 4
        %v1143 = vshll.u32 %v997, 16
        %v1145 = vrot.slane %v1143, 5
        %v1146 = vsel %vm1006, %v1141, %v1145
        %v1147 = vrot.slane %v862, 4
        %v1148 = vrot.slane %v865, 5
        %v1149 = vor.u32 %v1147, %v1148
        %v1150 = vrot.slane %v1149, 4
        %v1151 = vrot.slane %v874, 5
        %v1152 = vsel %vm1006, %v1150, %v1151
        %v1153 = vrot.slane %v871, 4
        %v1154 = vor.u32 %v1153, %v1151
        %v1155 = vrot.slane %v1154, 4
        %v1157 = vshll.u32 %v998, 16
        %v1159 = vrot.slane %v1157, 5
        %v1160 = vsel %vm1006, %v1155, %v1159
        %v1161 = vrot.slane %v884, 4
        %v1162 = vrot.slane %v887, 5
        %v1163 = vor.u32 %v1161, %v1162
        %v1164 = vrot.slane %v1163, 4
        %v1165 = vrot.slane %v896, 5
        %v1166 = vsel %vm1006, %v1164, %v1165
        %v1167 = vrot.slane %v893, 4
        %v1168 = vor.u32 %v1167, %v1165
        %v1169 = vrot.slane %v1168, 4
        %v1171 = vshll.u32 %v999, 16
        %v1173 = vrot.slane %v1171, 5
        %v1174 = vsel %vm1006, %v1169, %v1173
        %v1175 = vrot.slane %v906, 4
        %v1176 = vrot.slane %v909, 5
        %v1177 = vor.u32 %v1175, %v1176
        %v1178 = vrot.slane %v1177, 4
        %v1179 = vrot.slane %v918, 5
        %v1180 = vsel %vm1006, %v1178, %v1179
        %v1181 = vrot.slane %v915, 4
        %v1182 = vor.u32 %v1181, %v1179
        %v1183 = vrot.slane %v1182, 4
        %v1185 = vshll.u32 %v1000, 16
        %v1187 = vrot.slane %v1185, 5
        %v1188 = vsel %vm1006, %v1183, %v1187
        %v1189 = vrot.slane %v928, 4
        %v1190 = vrot.slane %v931, 5
        %v1191 = vor.u32 %v1189, %v1190
        %v1192 = vrot.slane %v1191, 4
        %v1193 = vrot.slane %v940, 5
        %v1194 = vsel %vm1006, %v1192, %v1193
        %v1195 = vrot.slane %v937, 4
        %v1196 = vor.u32 %v1195, %v1193
        %v1197 = vrot.slane %v1196, 4
        %v1199 = vshll.u32 %v1001, 16
        %v1201 = vrot.slane %v1199, 5
        %v1202 = vsel %vm1006, %v1197, %v1201
        %v1203 = vrot.slane %v950, 4
        %v1204 = vrot.slane %v953, 5
        %v1205 = vor.u32 %v1203, %v1204
        %v1206 = vrot.slane %v1205, 4
        %v1207 = vrot.slane %v962, 5
        %v1208 = vsel %vm1006, %v1206, %v1207
        %v1209 = vrot.slane %v959, 4
        %v1210 = vor.u32 %v1209, %v1207
        %v1211 = vrot.slane %v1210, 4
        %v1213 = vshll.u32 %v1002, 16
        %v1215 = vrot.slane %v1213, 5
        %v1216 = vsel %vm1006, %v1211, %v1215
        %v1217 = vrot.slane %v972, 4
        %v1218 = vrot.slane %v975, 5
        %v1219 = vor.u32 %v1217, %v1218
        %v1220 = vrot.slane %v1219, 4
        %v1221 = vrot.slane %v984, 5
        %v1222 = vsel %vm1006, %v1220, %v1221
        %v1223 = vrot.slane %v981, 4
        %v1224 = vor.u32 %v1223, %v1221
        %v1225 = vrot.slane %v1224, 4
        %v1227 = vshll.u32 %v1003, 16
        %v1229 = vrot.slane %v1227, 5
        %v1230 = vsel %vm1006, %v1225, %v1229
        %v1231 = vld [vmem:[%s551 + $0x4] sm:$0x8]
        %v1232 = vld [vmem:[%s551 + $0x8] sm:$0xf]
        %v1233 = vld [vmem:[%s551 + $0xc] sm:$0xf]
        %v1234 = vld [vmem:[%s551 + $0x18] sm:$0x8]
        %v1235 = vld [vmem:[%s551 + $0x1c] sm:$0xf]
        %v1236 = vld [vmem:[%s551 + $0x20] sm:$0xf]
        %v1237 = vld [vmem:[%s551 + $0x2c] sm:$0x8]
        %v1238 = vld [vmem:[%s551 + $0x30] sm:$0xf]
        %v1239 = vld [vmem:[%s551 + $0x34] sm:$0xf]
        %v1240 = vld [vmem:[%s551 + $0x40] sm:$0x8]
        %v1241 = vld [vmem:[%s551 + $0x44] sm:$0xf]
        %v1242 = vld [vmem:[%s551 + $0x48] sm:$0xf]
        %v1243 = vld [vmem:[%s551 + $0x54] sm:$0x8]
        %v1244 = vld [vmem:[%s551 + $0x58] sm:$0xf]
        %v1245 = vld [vmem:[%s551 + $0x5c] sm:$0xf]
        %v1246 = vld [vmem:[%s551 + $0x68] sm:$0x8]
        %v1247 = vld [vmem:[%s551 + $0x6c] sm:$0xf]
        %v1248 = vld [vmem:[%s551 + $0x70] sm:$0xf]
        %v1249 = vld [vmem:[%s551 + $0x7c] sm:$0x8]
        %v1250 = vld [vmem:[%s551 + $0x80] sm:$0xf]
        %v1251 = vld [vmem:[%s551 + $0x84] sm:$0xf]
        %v1252 = vld [vmem:[%s551 + $0x90] sm:$0x8]
        %v1253 = vld [vmem:[%s551 + $0x94] sm:$0xf]
        %v1254 = vld [vmem:[%s551 + $0x98] sm:$0xf]
        %v1255 = vld [vmem:[%s551 + $0xa4] sm:$0x8]
        %v1256 = vld [vmem:[%s551 + $0xa8] sm:$0xf]
        %v1257 = vld [vmem:[%s551 + $0xac] sm:$0xf]
        %v1258 = vld [vmem:[%s551 + $0xb8] sm:$0x8]
        %v1259 = vld [vmem:[%s551 + $0xbc] sm:$0xf]
        %v1260 = vld [vmem:[%s551 + $0xc0] sm:$0xf]
        %v1261 = vld [vmem:[%s551 + $0xcc] sm:$0x8]
        %v1262 = vld [vmem:[%s551 + $0xd0] sm:$0xf]
        %v1263 = vld [vmem:[%s551 + $0xd4] sm:$0xf]
        %v1264 = vld [vmem:[%s551 + $0xe0] sm:$0x8]
        %v1265 = vld [vmem:[%s551 + $0xe4] sm:$0xf]
        %v1266 = vld [vmem:[%s551 + $0xe8] sm:$0xf]
        %v1267 = vld [vmem:[%s551 + $0xf4] sm:$0x8]
        %v1268 = vld [vmem:[%s551 + $0xf8] sm:$0xf]
        %v1269 = vld [vmem:[%s551 + $0xfc] sm:$0xf]
        %v1270 = vld [vmem:[%s551 + $0x108] sm:$0x8]
        %v1271 = vld [vmem:[%s551 + $0x10c] sm:$0xf]
        %v1272 = vld [vmem:[%s551 + $0x110] sm:$0xf]
        %v1273 = vld [vmem:[%s551 + $0x11c] sm:$0x8]
        %v1274 = vld [vmem:[%s551 + $0x120] sm:$0xf]
        %v1275 = vld [vmem:[%s551 + $0x124] sm:$0xf]
        %v1276 = vld [vmem:[%s551 + $0x130] sm:$0x8]
        %v1277 = vld [vmem:[%s551 + $0x134] sm:$0xf]
        %v1278 = vld [vmem:[%s551 + $0x138] sm:$0xf]
        %v1280 = vshrl.u32 %v1231, 16
        %v1282 = vrot.slane %v1280, 7
        %v1283 = vrot.slane %v1282, 4
        %v1285 = vshrl.u32 %v1232, 16
        %v1287 = vrot.slane %v1285, 7
        %v1288 = vshll.u32 %v1232, 16
        %v1290 = vor.u32 %v1287, %v1288
        %v1291 = vsel %vm635, %v1283, %v1290
        %v1292 = vrot.slane %v1287, 4
        %v1294 = vshrl.u32 %v1233, 16
        %v1296 = vrot.slane %v1294, 7
        %v1297 = vshll.u32 %v1233, 16
        %v1299 = vor.u32 %v1296, %v1297
        %v1300 = vsel %vm635, %v1292, %v1299
        %v1302 = vshrl.u32 %v1234, 16
        %v1304 = vrot.slane %v1302, 7
        %v1305 = vrot.slane %v1304, 4
        %v1307 = vshrl.u32 %v1235, 16
        %v1309 = vrot.slane %v1307, 7
        %v1310 = vshll.u32 %v1235, 16
        %v1312 = vor.u32 %v1309, %v1310
        %v1313 = vsel %vm635, %v1305, %v1312
        %v1314 = vrot.slane %v1309, 4
        %v1316 = vshrl.u32 %v1236, 16
        %v1318 = vrot.slane %v1316, 7
        %v1319 = vshll.u32 %v1236, 16
        %v1321 = vor.u32 %v1318, %v1319
        %v1322 = vsel %vm635, %v1314, %v1321
        %v1324 = vshrl.u32 %v1237, 16
        %v1326 = vrot.slane %v1324, 7
        %v1327 = vrot.slane %v1326, 4
        %v1329 = vshrl.u32 %v1238, 16
        %v1331 = vrot.slane %v1329, 7
        %v1332 = vshll.u32 %v1238, 16
        %v1334 = vor.u32 %v1331, %v1332
        %v1335 = vsel %vm635, %v1327, %v1334
        %v1336 = vrot.slane %v1331, 4
        %v1338 = vshrl.u32 %v1239, 16
        %v1340 = vrot.slane %v1338, 7
        %v1341 = vshll.u32 %v1239, 16
        %v1343 = vor.u32 %v1340, %v1341
        %v1344 = vsel %vm635, %v1336, %v1343
        %v1346 = vshrl.u32 %v1240, 16
        %v1348 = vrot.slane %v1346, 7
        %v1349 = vrot.slane %v1348, 4
        %v1351 = vshrl.u32 %v1241, 16
        %v1353 = vrot.slane %v1351, 7
        %v1354 = vshll.u32 %v1241, 16
        %v1356 = vor.u32 %v1353, %v1354
        %v1357 = vsel %vm635, %v1349, %v1356
        %v1358 = vrot.slane %v1353, 4
        %v1360 = vshrl.u32 %v1242, 16
        %v1362 = vrot.slane %v1360, 7
        %v1363 = vshll.u32 %v1242, 16
        %v1365 = vor.u32 %v1362, %v1363
        %v1366 = vsel %vm635, %v1358, %v1365
        %v1368 = vshrl.u32 %v1243, 16
        %v1370 = vrot.slane %v1368, 7
        %v1371 = vrot.slane %v1370, 4
        %v1373 = vshrl.u32 %v1244, 16
        %v1375 = vrot.slane %v1373, 7
        %v1376 = vshll.u32 %v1244, 16
        %v1378 = vor.u32 %v1375, %v1376
        %v1379 = vsel %vm635, %v1371, %v1378
        %v1380 = vrot.slane %v1375, 4
        %v1382 = vshrl.u32 %v1245, 16
        %v1384 = vrot.slane %v1382, 7
        %v1385 = vshll.u32 %v1245, 16
        %v1387 = vor.u32 %v1384, %v1385
        %v1388 = vsel %vm635, %v1380, %v1387
        %v1390 = vshrl.u32 %v1246, 16
        %v1392 = vrot.slane %v1390, 7
        %v1393 = vrot.slane %v1392, 4
        %v1395 = vshrl.u32 %v1247, 16
        %v1397 = vrot.slane %v1395, 7
        %v1398 = vshll.u32 %v1247, 16
        %v1400 = vor.u32 %v1397, %v1398
        %v1401 = vsel %vm635, %v1393, %v1400
        %v1402 = vrot.slane %v1397, 4
        %v1404 = vshrl.u32 %v1248, 16
        %v1406 = vrot.slane %v1404, 7
        %v1407 = vshll.u32 %v1248, 16
        %v1409 = vor.u32 %v1406, %v1407
        %v1410 = vsel %vm635, %v1402, %v1409
        %v1412 = vshrl.u32 %v1249, 16
        %v1414 = vrot.slane %v1412, 7
        %v1415 = vrot.slane %v1414, 4
        %v1417 = vshrl.u32 %v1250, 16
        %v1419 = vrot.slane %v1417, 7
        %v1420 = vshll.u32 %v1250, 16
        %v1422 = vor.u32 %v1419, %v1420
        %v1423 = vsel %vm635, %v1415, %v1422
        %v1424 = vrot.slane %v1419, 4
        %v1426 = vshrl.u32 %v1251, 16
        %v1428 = vrot.slane %v1426, 7
        %v1429 = vshll.u32 %v1251, 16
        %v1431 = vor.u32 %v1428, %v1429
        %v1432 = vsel %vm635, %v1424, %v1431
        %v1434 = vshrl.u32 %v1252, 16
        %v1436 = vrot.slane %v1434, 7
        %v1437 = vrot.slane %v1436, 4
        %v1439 = vshrl.u32 %v1253, 16
        %v1441 = vrot.slane %v1439, 7
        %v1442 = vshll.u32 %v1253, 16
        %v1444 = vor.u32 %v1441, %v1442
        %v1445 = vsel %vm635, %v1437, %v1444
        %v1446 = vrot.slane %v1441, 4
        %v1448 = vshrl.u32 %v1254, 16
        %v1450 = vrot.slane %v1448, 7
        %v1451 = vshll.u32 %v1254, 16
        %v1453 = vor.u32 %v1450, %v1451
        %v1454 = vsel %vm635, %v1446, %v1453
        %v1456 = vshrl.u32 %v1255, 16
        %v1458 = vrot.slane %v1456, 7
        %v1459 = vrot.slane %v1458, 4
        %v1461 = vshrl.u32 %v1256, 16
        %v1463 = vrot.slane %v1461, 7
        %v1464 = vshll.u32 %v1256, 16
        %v1466 = vor.u32 %v1463, %v1464
        %v1467 = vsel %vm635, %v1459, %v1466
        %v1468 = vrot.slane %v1463, 4
        %v1470 = vshrl.u32 %v1257, 16
        %v1472 = vrot.slane %v1470, 7
        %v1473 = vshll.u32 %v1257, 16
        %v1475 = vor.u32 %v1472, %v1473
        %v1476 = vsel %vm635, %v1468, %v1475
        %v1478 = vshrl.u32 %v1258, 16
        %v1480 = vrot.slane %v1478, 7
        %v1481 = vrot.slane %v1480, 4
        %v1483 = vshrl.u32 %v1259, 16
        %v1485 = vrot.slane %v1483, 7
        %v1486 = vshll.u32 %v1259, 16
        %v1488 = vor.u32 %v1485, %v1486
        %v1489 = vsel %vm635, %v1481, %v1488
        %v1490 = vrot.slane %v1485, 4
        %v1492 = vshrl.u32 %v1260, 16
        %v1494 = vrot.slane %v1492, 7
        %v1495 = vshll.u32 %v1260, 16
        %v1497 = vor.u32 %v1494, %v1495
        %v1498 = vsel %vm635, %v1490, %v1497
        %v1500 = vshrl.u32 %v1261, 16
        %v1502 = vrot.slane %v1500, 7
        %v1503 = vrot.slane %v1502, 4
        %v1505 = vshrl.u32 %v1262, 16
        %v1507 = vrot.slane %v1505, 7
        %v1508 = vshll.u32 %v1262, 16
        %v1510 = vor.u32 %v1507, %v1508
        %v1511 = vsel %vm635, %v1503, %v1510
        %v1512 = vrot.slane %v1507, 4
        %v1514 = vshrl.u32 %v1263, 16
        %v1516 = vrot.slane %v1514, 7
        %v1517 = vshll.u32 %v1263, 16
        %v1519 = vor.u32 %v1516, %v1517
        %v1520 = vsel %vm635, %v1512, %v1519
        %v1522 = vshrl.u32 %v1264, 16
        %v1524 = vrot.slane %v1522, 7
        %v1525 = vrot.slane %v1524, 4
        %v1527 = vshrl.u32 %v1265, 16
        %v1529 = vrot.slane %v1527, 7
        %v1530 = vshll.u32 %v1265, 16
        %v1532 = vor.u32 %v1529, %v1530
        %v1533 = vsel %vm635, %v1525, %v1532
        %v1534 = vrot.slane %v1529, 4
        %v1536 = vshrl.u32 %v1266, 16
        %v1538 = vrot.slane %v1536, 7
        %v1539 = vshll.u32 %v1266, 16
        %v1541 = vor.u32 %v1538, %v1539
        %v1542 = vsel %vm635, %v1534, %v1541
        %v1544 = vshrl.u32 %v1267, 16
        %v1546 = vrot.slane %v1544, 7
        %v1547 = vrot.slane %v1546, 4
        %v1549 = vshrl.u32 %v1268, 16
        %v1551 = vrot.slane %v1549, 7
        %v1552 = vshll.u32 %v1268, 16
        %v1554 = vor.u32 %v1551, %v1552
        %v1555 = vsel %vm635, %v1547, %v1554
        %v1556 = vrot.slane %v1551, 4
        %v1558 = vshrl.u32 %v1269, 16
        %v1560 = vrot.slane %v1558, 7
        %v1561 = vshll.u32 %v1269, 16
        %v1563 = vor.u32 %v1560, %v1561
        %v1564 = vsel %vm635, %v1556, %v1563
        %v1566 = vshrl.u32 %v1270, 16
        %v1568 = vrot.slane %v1566, 7
        %v1569 = vrot.slane %v1568, 4
        %v1571 = vshrl.u32 %v1271, 16
        %v1573 = vrot.slane %v1571, 7
        %v1574 = vshll.u32 %v1271, 16
        %v1576 = vor.u32 %v1573, %v1574
        %v1577 = vsel %vm635, %v1569, %v1576
        %v1578 = vrot.slane %v1573, 4
        %v1580 = vshrl.u32 %v1272, 16
        %v1582 = vrot.slane %v1580, 7
        %v1583 = vshll.u32 %v1272, 16
        %v1585 = vor.u32 %v1582, %v1583
        %v1586 = vsel %vm635, %v1578, %v1585
        %v1588 = vshrl.u32 %v1273, 16
        %v1590 = vrot.slane %v1588, 7
        %v1591 = vrot.slane %v1590, 4
        %v1593 = vshrl.u32 %v1274, 16
        %v1595 = vrot.slane %v1593, 7
        %v1596 = vshll.u32 %v1274, 16
        %v1598 = vor.u32 %v1595, %v1596
        %v1599 = vsel %vm635, %v1591, %v1598
        %v1600 = vrot.slane %v1595, 4
        %v1602 = vshrl.u32 %v1275, 16
        %v1604 = vrot.slane %v1602, 7
        %v1605 = vshll.u32 %v1275, 16
        %v1607 = vor.u32 %v1604, %v1605
        %v1608 = vsel %vm635, %v1600, %v1607
        %v1610 = vshrl.u32 %v1276, 16
        %v1612 = vrot.slane %v1610, 7
        %v1613 = vrot.slane %v1612, 4
        %v1615 = vshrl.u32 %v1277, 16
        %v1617 = vrot.slane %v1615, 7
        %v1618 = vshll.u32 %v1277, 16
        %v1620 = vor.u32 %v1617, %v1618
        %v1621 = vsel %vm635, %v1613, %v1620
        %v1622 = vrot.slane %v1617, 4
        %v1624 = vshrl.u32 %v1278, 16
        %v1626 = vrot.slane %v1624, 7
        %v1627 = vshll.u32 %v1278, 16
        %v1629 = vor.u32 %v1626, %v1627
        %v1630 = vsel %vm635, %v1622, %v1629
        %v1631 = vld [vmem:[%s551 + $0x10] sm:$0x1]
        %v1632 = vld [vmem:[%s551 + $0x24] sm:$0x1]
        %v1633 = vld [vmem:[%s551 + $0x38] sm:$0x1]
        %v1634 = vld [vmem:[%s551 + $0x4c] sm:$0x1]
        %v1635 = vld [vmem:[%s551 + $0x60] sm:$0x1]
        %v1636 = vld [vmem:[%s551 + $0x74] sm:$0x1]
        %v1637 = vld [vmem:[%s551 + $0x88] sm:$0x1]
        %v1638 = vld [vmem:[%s551 + $0x9c] sm:$0x1]
        %v1639 = vld [vmem:[%s551 + $0xb0] sm:$0x1]
        %v1640 = vld [vmem:[%s551 + $0xc4] sm:$0x1]
        %v1641 = vld [vmem:[%s551 + $0xd8] sm:$0x1]
        %v1642 = vld [vmem:[%s551 + $0xec] sm:$0x1]
        %v1643 = vld [vmem:[%s551 + $0x100] sm:$0x1]
        %v1644 = vld [vmem:[%s551 + $0x114] sm:$0x1]
        %v1645 = vld [vmem:[%s551 + $0x128] sm:$0x1]
        %v1646 = vld [vmem:[%s551 + $0x13c] sm:$0x1]
        %v1647 = vrot.slane %v1285, 4
        %v1648 = vrot.slane %v1288, 5
        %v1649 = vor.u32 %v1647, %v1648
        %v1650 = vrot.slane %v1649, 4
        %v1651 = vrot.slane %v1297, 5
        %v1652 = vsel %vm1006, %v1650, %v1651
        %v1653 = vrot.slane %v1294, 4
        %v1654 = vor.u32 %v1653, %v1651
        %v1655 = vrot.slane %v1654, 4
        %v1657 = vshll.u32 %v1631, 16
        %v1659 = vrot.slane %v1657, 5
        %v1660 = vsel %vm1006, %v1655, %v1659
        %v1661 = vrot.slane %v1307, 4
        %v1662 = vrot.slane %v1310, 5
        %v1663 = vor.u32 %v1661, %v1662
        %v1664 = vrot.slane %v1663, 4
        %v1665 = vrot.slane %v1319, 5
        %v1666 = vsel %vm1006, %v1664, %v1665
        %v1667 = vrot.slane %v1316, 4
        %v1668 = vor.u32 %v1667, %v1665
        %v1669 = vrot.slane %v1668, 4
        %v1671 = vshll.u32 %v1632, 16
        %v1673 = vrot.slane %v1671, 5
        %v1674 = vsel %vm1006, %v1669, %v1673
        %v1675 = vrot.slane %v1329, 4
        %v1676 = vrot.slane %v1332, 5
        %v1677 = vor.u32 %v1675, %v1676
        %v1678 = vrot.slane %v1677, 4
        %v1679 = vrot.slane %v1341, 5
        %v1680 = vsel %vm1006, %v1678, %v1679
        %v1681 = vrot.slane %v1338, 4
        %v1682 = vor.u32 %v1681, %v1679
        %v1683 = vrot.slane %v1682, 4
        %v1685 = vshll.u32 %v1633, 16
        %v1687 = vrot.slane %v1685, 5
        %v1688 = vsel %vm1006, %v1683, %v1687
        %v1689 = vrot.slane %v1351, 4
        %v1690 = vrot.slane %v1354, 5
        %v1691 = vor.u32 %v1689, %v1690
        %v1692 = vrot.slane %v1691, 4
        %v1693 = vrot.slane %v1363, 5
        %v1694 = vsel %vm1006, %v1692, %v1693
        %v1695 = vrot.slane %v1360, 4
        %v1696 = vor.u32 %v1695, %v1693
        %v1697 = vrot.slane %v1696, 4
        %v1699 = vshll.u32 %v1634, 16
        %v1701 = vrot.slane %v1699, 5
        %v1702 = vsel %vm1006, %v1697, %v1701
        %v1703 = vrot.slane %v1373, 4
        %v1704 = vrot.slane %v1376, 5
        %v1705 = vor.u32 %v1703, %v1704
        %v1706 = vrot.slane %v1705, 4
        %v1707 = vrot.slane %v1385, 5
        %v1708 = vsel %vm1006, %v1706, %v1707
        %v1709 = vrot.slane %v1382, 4
        %v1710 = vor.u32 %v1709, %v1707
        %v1711 = vrot.slane %v1710, 4
        %v1713 = vshll.u32 %v1635, 16
        %v1715 = vrot.slane %v1713, 5
        %v1716 = vsel %vm1006, %v1711, %v1715
        %v1717 = vrot.slane %v1395, 4
        %v1718 = vrot.slane %v1398, 5
        %v1719 = vor.u32 %v1717, %v1718
        %v1720 = vrot.slane %v1719, 4
        %v1721 = vrot.slane %v1407, 5
        %v1722 = vsel %vm1006, %v1720, %v1721
        %v1723 = vrot.slane %v1404, 4
        %v1724 = vor.u32 %v1723, %v1721
        %v1725 = vrot.slane %v1724, 4
        %v1727 = vshll.u32 %v1636, 16
        %v1729 = vrot.slane %v1727, 5
        %v1730 = vsel %vm1006, %v1725, %v1729
        %v1731 = vrot.slane %v1417, 4
        %v1732 = vrot.slane %v1420, 5
        %v1733 = vor.u32 %v1731, %v1732
        %v1734 = vrot.slane %v1733, 4
        %v1735 = vrot.slane %v1429, 5
        %v1736 = vsel %vm1006, %v1734, %v1735
        %v1737 = vrot.slane %v1426, 4
        %v1738 = vor.u32 %v1737, %v1735
        %v1739 = vrot.slane %v1738, 4
        %v1741 = vshll.u32 %v1637, 16
        %v1743 = vrot.slane %v1741, 5
        %v1744 = vsel %vm1006, %v1739, %v1743
        %v1745 = vrot.slane %v1439, 4
        %v1746 = vrot.slane %v1442, 5
        %v1747 = vor.u32 %v1745, %v1746
        %v1748 = vrot.slane %v1747, 4
        %v1749 = vrot.slane %v1451, 5
        %v1750 = vsel %vm1006, %v1748, %v1749
        %v1751 = vrot.slane %v1448, 4
        %v1752 = vor.u32 %v1751, %v1749
        %v1753 = vrot.slane %v1752, 4
        %v1755 = vshll.u32 %v1638, 16
        %v1757 = vrot.slane %v1755, 5
        %v1758 = vsel %vm1006, %v1753, %v1757
        %v1759 = vrot.slane %v1461, 4
        %v1760 = vrot.slane %v1464, 5
        %v1761 = vor.u32 %v1759, %v1760
        %v1762 = vrot.slane %v1761, 4
        %v1763 = vrot.slane %v1473, 5
        %v1764 = vsel %vm1006, %v1762, %v1763
        %v1765 = vrot.slane %v1470, 4
        %v1766 = vor.u32 %v1765, %v1763
        %v1767 = vrot.slane %v1766, 4
        %v1769 = vshll.u32 %v1639, 16
        %v1771 = vrot.slane %v1769, 5
        %v1772 = vsel %vm1006, %v1767, %v1771
        %v1773 = vrot.slane %v1483, 4
        %v1774 = vrot.slane %v1486, 5
        %v1775 = vor.u32 %v1773, %v1774
        %v1776 = vrot.slane %v1775, 4
        %v1777 = vrot.slane %v1495, 5
        %v1778 = vsel %vm1006, %v1776, %v1777
        %v1779 = vrot.slane %v1492, 4
        %v1780 = vor.u32 %v1779, %v1777
        %v1781 = vrot.slane %v1780, 4
        %v1783 = vshll.u32 %v1640, 16
        %v1785 = vrot.slane %v1783, 5
        %v1786 = vsel %vm1006, %v1781, %v1785
        %v1787 = vrot.slane %v1505, 4
        %v1788 = vrot.slane %v1508, 5
        %v1789 = vor.u32 %v1787, %v1788
        %v1790 = vrot.slane %v1789, 4
        %v1791 = vrot.slane %v1517, 5
        %v1792 = vsel %vm1006, %v1790, %v1791
        %v1793 = vrot.slane %v1514, 4
        %v1794 = vor.u32 %v1793, %v1791
        %v1795 = vrot.slane %v1794, 4
        %v1797 = vshll.u32 %v1641, 16
        %v1799 = vrot.slane %v1797, 5
        %v1800 = vsel %vm1006, %v1795, %v1799
        %v1801 = vrot.slane %v1527, 4
        %v1802 = vrot.slane %v1530, 5
        %v1803 = vor.u32 %v1801, %v1802
        %v1804 = vrot.slane %v1803, 4
        %v1805 = vrot.slane %v1539, 5
        %v1806 = vsel %vm1006, %v1804, %v1805
        %v1807 = vrot.slane %v1536, 4
        %v1808 = vor.u32 %v1807, %v1805
        %v1809 = vrot.slane %v1808, 4
        %v1811 = vshll.u32 %v1642, 16
        %v1813 = vrot.slane %v1811, 5
        %v1814 = vsel %vm1006, %v1809, %v1813
        %v1815 = vrot.slane %v1549, 4
        %v1816 = vrot.slane %v1552, 5
        %v1817 = vor.u32 %v1815, %v1816
        %v1818 = vrot.slane %v1817, 4
        %v1819 = vrot.slane %v1561, 5
        %v1820 = vsel %vm1006, %v1818, %v1819
        %v1821 = vrot.slane %v1558, 4
        %v1822 = vor.u32 %v1821, %v1819
        %v1823 = vrot.slane %v1822, 4
        %v1825 = vshll.u32 %v1643, 16
        %v1827 = vrot.slane %v1825, 5
        %v1828 = vsel %vm1006, %v1823, %v1827
        %v1829 = vrot.slane %v1571, 4
        %v1830 = vrot.slane %v1574, 5
        %v1831 = vor.u32 %v1829, %v1830
        %v1832 = vrot.slane %v1831, 4
        %v1833 = vrot.slane %v1583, 5
        %v1834 = vsel %vm1006, %v1832, %v1833
        %v1835 = vrot.slane %v1580, 4
        %v1836 = vor.u32 %v1835, %v1833
        %v1837 = vrot.slane %v1836, 4
        %v1839 = vshll.u32 %v1644, 16
        %v1841 = vrot.slane %v1839, 5
        %v1842 = vsel %vm1006, %v1837, %v1841
        %v1843 = vrot.slane %v1593, 4
        %v1844 = vrot.slane %v1596, 5
        %v1845 = vor.u32 %v1843, %v1844
        %v1846 = vrot.slane %v1845, 4
        %v1847 = vrot.slane %v1605, 5
        %v1848 = vsel %vm1006, %v1846, %v1847
        %v1849 = vrot.slane %v1602, 4
        %v1850 = vor.u32 %v1849, %v1847
        %v1851 = vrot.slane %v1850, 4
        %v1853 = vshll.u32 %v1645, 16
        %v1855 = vrot.slane %v1853, 5
        %v1856 = vsel %vm1006, %v1851, %v1855
        %v1857 = vrot.slane %v1615, 4
        %v1858 = vrot.slane %v1618, 5
        %v1859 = vor.u32 %v1857, %v1858
        %v1860 = vrot.slane %v1859, 4
        %v1861 = vrot.slane %v1627, 5
        %v1862 = vsel %vm1006, %v1860, %v1861
        %v1863 = vrot.slane %v1624, 4
        %v1864 = vor.u32 %v1863, %v1861
        %v1865 = vrot.slane %v1864, 4
        %v1867 = vshll.u32 %v1646, 16
        %v1869 = vrot.slane %v1867, 5
        %v1870 = vsel %vm1006, %v1865, %v1869
        %s1871 = scalar_lea.vmem [#allocation2], 40
        %v1872 = vld [vmem:[%s1871 + $0x4] sm:$0x8]
        %v1873 = vld [vmem:[%s1871 + $0x8] sm:$0xf]
        %v1874 = vld [vmem:[%s1871 + $0xc] sm:$0xf]
        %v1875 = vld [vmem:[%s1871 + $0x18] sm:$0x8]
        %v1876 = vld [vmem:[%s1871 + $0x1c] sm:$0xf]
        %v1877 = vld [vmem:[%s1871 + $0x20] sm:$0xf]
        %v1878 = vld [vmem:[%s1871 + $0x2c] sm:$0x8]
        %v1879 = vld [vmem:[%s1871 + $0x30] sm:$0xf]
        %v1880 = vld [vmem:[%s1871 + $0x34] sm:$0xf]
        %v1881 = vld [vmem:[%s1871 + $0x40] sm:$0x8]
        %v1882 = vld [vmem:[%s1871 + $0x44] sm:$0xf]
        %v1883 = vld [vmem:[%s1871 + $0x48] sm:$0xf]
        %v1884 = vld [vmem:[%s1871 + $0x54] sm:$0x8]
        %v1885 = vld [vmem:[%s1871 + $0x58] sm:$0xf]
        %v1886 = vld [vmem:[%s1871 + $0x5c] sm:$0xf]
        %v1887 = vld [vmem:[%s1871 + $0x68] sm:$0x8]
        %v1888 = vld [vmem:[%s1871 + $0x6c] sm:$0xf]
        %v1889 = vld [vmem:[%s1871 + $0x70] sm:$0xf]
        %v1890 = vld [vmem:[%s1871 + $0x7c] sm:$0x8]
        %v1891 = vld [vmem:[%s1871 + $0x80] sm:$0xf]
        %v1892 = vld [vmem:[%s1871 + $0x84] sm:$0xf]
        %v1893 = vld [vmem:[%s1871 + $0x90] sm:$0x8]
        %v1894 = vld [vmem:[%s1871 + $0x94] sm:$0xf]
        %v1895 = vld [vmem:[%s1871 + $0x98] sm:$0xf]
        %v1896 = vld [vmem:[%s1871 + $0xa4] sm:$0x8]
        %v1897 = vld [vmem:[%s1871 + $0xa8] sm:$0xf]
        %v1898 = vld [vmem:[%s1871 + $0xac] sm:$0xf]
        %v1899 = vld [vmem:[%s1871 + $0xb8] sm:$0x8]
        %v1900 = vld [vmem:[%s1871 + $0xbc] sm:$0xf]
        %v1901 = vld [vmem:[%s1871 + $0xc0] sm:$0xf]
        %v1902 = vld [vmem:[%s1871 + $0xcc] sm:$0x8]
        %v1903 = vld [vmem:[%s1871 + $0xd0] sm:$0xf]
        %v1904 = vld [vmem:[%s1871 + $0xd4] sm:$0xf]
        %v1905 = vld [vmem:[%s1871 + $0xe0] sm:$0x8]
        %v1906 = vld [vmem:[%s1871 + $0xe4] sm:$0xf]
        %v1907 = vld [vmem:[%s1871 + $0xe8] sm:$0xf]
        %v1908 = vld [vmem:[%s1871 + $0xf4] sm:$0x8]
        %v1909 = vld [vmem:[%s1871 + $0xf8] sm:$0xf]
        %v1910 = vld [vmem:[%s1871 + $0xfc] sm:$0xf]
        %v1911 = vld [vmem:[%s1871 + $0x108] sm:$0x8]
        %v1912 = vld [vmem:[%s1871 + $0x10c] sm:$0xf]
        %v1913 = vld [vmem:[%s1871 + $0x110] sm:$0xf]
        %v1914 = vld [vmem:[%s1871 + $0x11c] sm:$0x8]
        %v1915 = vld [vmem:[%s1871 + $0x120] sm:$0xf]
        %v1916 = vld [vmem:[%s1871 + $0x124] sm:$0xf]
        %v1917 = vld [vmem:[%s1871 + $0x130] sm:$0x8]
        %v1918 = vld [vmem:[%s1871 + $0x134] sm:$0xf]
        %v1919 = vld [vmem:[%s1871 + $0x138] sm:$0xf]
        %v1921 = vshrl.u32 %v1872, 16
        %v1923 = vrot.slane %v1921, 7
        %v1924 = vrot.slane %v1923, 4
        %v1926 = vshrl.u32 %v1873, 16
        %v1928 = vrot.slane %v1926, 7
        %v1929 = vshll.u32 %v1873, 16
        %v1931 = vor.u32 %v1928, %v1929
        %v1932 = vsel %vm635, %v1924, %v1931
        %v1933 = vrot.slane %v1928, 4
        %v1935 = vshrl.u32 %v1874, 16
        %v1937 = vrot.slane %v1935, 7
        %v1938 = vshll.u32 %v1874, 16
        %v1940 = vor.u32 %v1937, %v1938
        %v1941 = vsel %vm635, %v1933, %v1940
        %v1943 = vshrl.u32 %v1875, 16
        %v1945 = vrot.slane %v1943, 7
        %v1946 = vrot.slane %v1945, 4
        %v1948 = vshrl.u32 %v1876, 16
        %v1950 = vrot.slane %v1948, 7
        %v1951 = vshll.u32 %v1876, 16
        %v1953 = vor.u32 %v1950, %v1951
        %v1954 = vsel %vm635, %v1946, %v1953
        %v1955 = vrot.slane %v1950, 4
        %v1957 = vshrl.u32 %v1877, 16
        %v1959 = vrot.slane %v1957, 7
        %v1960 = vshll.u32 %v1877, 16
        %v1962 = vor.u32 %v1959, %v1960
        %v1963 = vsel %vm635, %v1955, %v1962
        %v1965 = vshrl.u32 %v1878, 16
        %v1967 = vrot.slane %v1965, 7
        %v1968 = vrot.slane %v1967, 4
        %v1970 = vshrl.u32 %v1879, 16
        %v1972 = vrot.slane %v1970, 7
        %v1973 = vshll.u32 %v1879, 16
        %v1975 = vor.u32 %v1972, %v1973
        %v1976 = vsel %vm635, %v1968, %v1975
        %v1977 = vrot.slane %v1972, 4
        %v1979 = vshrl.u32 %v1880, 16
        %v1981 = vrot.slane %v1979, 7
        %v1982 = vshll.u32 %v1880, 16
        %v1984 = vor.u32 %v1981, %v1982
        %v1985 = vsel %vm635, %v1977, %v1984
        %v1987 = vshrl.u32 %v1881, 16
        %v1989 = vrot.slane %v1987, 7
        %v1990 = vrot.slane %v1989, 4
        %v1992 = vshrl.u32 %v1882, 16
        %v1994 = vrot.slane %v1992, 7
        %v1995 = vshll.u32 %v1882, 16
        %v1997 = vor.u32 %v1994, %v1995
        %v1998 = vsel %vm635, %v1990, %v1997
        %v1999 = vrot.slane %v1994, 4
        %v2001 = vshrl.u32 %v1883, 16
        %v2003 = vrot.slane %v2001, 7
        %v2004 = vshll.u32 %v1883, 16
        %v2006 = vor.u32 %v2003, %v2004
        %v2007 = vsel %vm635, %v1999, %v2006
        %v2009 = vshrl.u32 %v1884, 16
        %v2011 = vrot.slane %v2009, 7
        %v2012 = vrot.slane %v2011, 4
        %v2014 = vshrl.u32 %v1885, 16
        %v2016 = vrot.slane %v2014, 7
        %v2017 = vshll.u32 %v1885, 16
        %v2019 = vor.u32 %v2016, %v2017
        %v2020 = vsel %vm635, %v2012, %v2019
        %v2021 = vrot.slane %v2016, 4
        %v2023 = vshrl.u32 %v1886, 16
        %v2025 = vrot.slane %v2023, 7
        %v2026 = vshll.u32 %v1886, 16
        %v2028 = vor.u32 %v2025, %v2026
        %v2029 = vsel %vm635, %v2021, %v2028
        %v2031 = vshrl.u32 %v1887, 16
        %v2033 = vrot.slane %v2031, 7
        %v2034 = vrot.slane %v2033, 4
        %v2036 = vshrl.u32 %v1888, 16
        %v2038 = vrot.slane %v2036, 7
        %v2039 = vshll.u32 %v1888, 16
        %v2041 = vor.u32 %v2038, %v2039
        %v2042 = vsel %vm635, %v2034, %v2041
        %v2043 = vrot.slane %v2038, 4
        %v2045 = vshrl.u32 %v1889, 16
        %v2047 = vrot.slane %v2045, 7
        %v2048 = vshll.u32 %v1889, 16
        %v2050 = vor.u32 %v2047, %v2048
        %v2051 = vsel %vm635, %v2043, %v2050
        %v2053 = vshrl.u32 %v1890, 16
        %v2055 = vrot.slane %v2053, 7
        %v2056 = vrot.slane %v2055, 4
        %v2058 = vshrl.u32 %v1891, 16
        %v2060 = vrot.slane %v2058, 7
        %v2061 = vshll.u32 %v1891, 16
        %v2063 = vor.u32 %v2060, %v2061
        %v2064 = vsel %vm635, %v2056, %v2063
        %v2065 = vrot.slane %v2060, 4
        %v2067 = vshrl.u32 %v1892, 16
        %v2069 = vrot.slane %v2067, 7
        %v2070 = vshll.u32 %v1892, 16
        %v2072 = vor.u32 %v2069, %v2070
        %v2073 = vsel %vm635, %v2065, %v2072
        %v2075 = vshrl.u32 %v1893, 16
        %v2077 = vrot.slane %v2075, 7
        %v2078 = vrot.slane %v2077, 4
        %v2080 = vshrl.u32 %v1894, 16
        %v2082 = vrot.slane %v2080, 7
        %v2083 = vshll.u32 %v1894, 16
        %v2085 = vor.u32 %v2082, %v2083
        %v2086 = vsel %vm635, %v2078, %v2085
        %v2087 = vrot.slane %v2082, 4
        %v2089 = vshrl.u32 %v1895, 16
        %v2091 = vrot.slane %v2089, 7
        %v2092 = vshll.u32 %v1895, 16
        %v2094 = vor.u32 %v2091, %v2092
        %v2095 = vsel %vm635, %v2087, %v2094
        %v2097 = vshrl.u32 %v1896, 16
        %v2099 = vrot.slane %v2097, 7
        %v2100 = vrot.slane %v2099, 4
        %v2102 = vshrl.u32 %v1897, 16
        %v2104 = vrot.slane %v2102, 7
        %v2105 = vshll.u32 %v1897, 16
        %v2107 = vor.u32 %v2104, %v2105
        %v2108 = vsel %vm635, %v2100, %v2107
        %v2109 = vrot.slane %v2104, 4
        %v2111 = vshrl.u32 %v1898, 16
        %v2113 = vrot.slane %v2111, 7
        %v2114 = vshll.u32 %v1898, 16
        %v2116 = vor.u32 %v2113, %v2114
        %v2117 = vsel %vm635, %v2109, %v2116
        %v2119 = vshrl.u32 %v1899, 16
        %v2121 = vrot.slane %v2119, 7
        %v2122 = vrot.slane %v2121, 4
        %v2124 = vshrl.u32 %v1900, 16
        %v2126 = vrot.slane %v2124, 7
        %v2127 = vshll.u32 %v1900, 16
        %v2129 = vor.u32 %v2126, %v2127
        %v2130 = vsel %vm635, %v2122, %v2129
        %v2131 = vrot.slane %v2126, 4
        %v2133 = vshrl.u32 %v1901, 16
        %v2135 = vrot.slane %v2133, 7
        %v2136 = vshll.u32 %v1901, 16
        %v2138 = vor.u32 %v2135, %v2136
        %v2139 = vsel %vm635, %v2131, %v2138
        %v2141 = vshrl.u32 %v1902, 16
        %v2143 = vrot.slane %v2141, 7
        %v2144 = vrot.slane %v2143, 4
        %v2146 = vshrl.u32 %v1903, 16
        %v2148 = vrot.slane %v2146, 7
        %v2149 = vshll.u32 %v1903, 16
        %v2151 = vor.u32 %v2148, %v2149
        %v2152 = vsel %vm635, %v2144, %v2151
        %v2153 = vrot.slane %v2148, 4
        %v2155 = vshrl.u32 %v1904, 16
        %v2157 = vrot.slane %v2155, 7
        %v2158 = vshll.u32 %v1904, 16
        %v2160 = vor.u32 %v2157, %v2158
        %v2161 = vsel %vm635, %v2153, %v2160
        %v2163 = vshrl.u32 %v1905, 16
        %v2165 = vrot.slane %v2163, 7
        %v2166 = vrot.slane %v2165, 4
        %v2168 = vshrl.u32 %v1906, 16
        %v2170 = vrot.slane %v2168, 7
        %v2171 = vshll.u32 %v1906, 16
        %v2173 = vor.u32 %v2170, %v2171
        %v2174 = vsel %vm635, %v2166, %v2173
        %v2175 = vrot.slane %v2170, 4
        %v2177 = vshrl.u32 %v1907, 16
        %v2179 = vrot.slane %v2177, 7
        %v2180 = vshll.u32 %v1907, 16
        %v2182 = vor.u32 %v2179, %v2180
        %v2183 = vsel %vm635, %v2175, %v2182
        %v2185 = vshrl.u32 %v1908, 16
        %v2187 = vrot.slane %v2185, 7
        %v2188 = vrot.slane %v2187, 4
        %v2190 = vshrl.u32 %v1909, 16
        %v2192 = vrot.slane %v2190, 7
        %v2193 = vshll.u32 %v1909, 16
        %v2195 = vor.u32 %v2192, %v2193
        %v2196 = vsel %vm635, %v2188, %v2195
        %v2197 = vrot.slane %v2192, 4
        %v2199 = vshrl.u32 %v1910, 16
        %v2201 = vrot.slane %v2199, 7
        %v2202 = vshll.u32 %v1910, 16
        %v2204 = vor.u32 %v2201, %v2202
        %v2205 = vsel %vm635, %v2197, %v2204
        %v2207 = vshrl.u32 %v1911, 16
        %v2209 = vrot.slane %v2207, 7
        %v2210 = vrot.slane %v2209, 4
        %v2212 = vshrl.u32 %v1912, 16
        %v2214 = vrot.slane %v2212, 7
        %v2215 = vshll.u32 %v1912, 16
        %v2217 = vor.u32 %v2214, %v2215
        %v2218 = vsel %vm635, %v2210, %v2217
        %v2219 = vrot.slane %v2214, 4
        %v2221 = vshrl.u32 %v1913, 16
        %v2223 = vrot.slane %v2221, 7
        %v2224 = vshll.u32 %v1913, 16
        %v2226 = vor.u32 %v2223, %v2224
        %v2227 = vsel %vm635, %v2219, %v2226
        %v2229 = vshrl.u32 %v1914, 16
        %v2231 = vrot.slane %v2229, 7
        %v2232 = vrot.slane %v2231, 4
        %v2234 = vshrl.u32 %v1915, 16
        %v2236 = vrot.slane %v2234, 7
        %v2237 = vshll.u32 %v1915, 16
        %v2239 = vor.u32 %v2236, %v2237
        %v2240 = vsel %vm635, %v2232, %v2239
        %v2241 = vrot.slane %v2236, 4
        %v2243 = vshrl.u32 %v1916, 16
        %v2245 = vrot.slane %v2243, 7
        %v2246 = vshll.u32 %v1916, 16
        %v2248 = vor.u32 %v2245, %v2246
        %v2249 = vsel %vm635, %v2241, %v2248
        %v2251 = vshrl.u32 %v1917, 16
        %v2253 = vrot.slane %v2251, 7
        %v2254 = vrot.slane %v2253, 4
        %v2256 = vshrl.u32 %v1918, 16
        %v2258 = vrot.slane %v2256, 7
        %v2259 = vshll.u32 %v1918, 16
        %v2261 = vor.u32 %v2258, %v2259
        %v2262 = vsel %vm635, %v2254, %v2261
        %v2263 = vrot.slane %v2258, 4
        %v2265 = vshrl.u32 %v1919, 16
        %v2267 = vrot.slane %v2265, 7
        %v2268 = vshll.u32 %v1919, 16
        %v2270 = vor.u32 %v2267, %v2268
        %v2271 = vsel %vm635, %v2263, %v2270
        %v2272 = vld [vmem:[%s1871 + $0x10] sm:$0x1]
        %v2273 = vld [vmem:[%s1871 + $0x24] sm:$0x1]
        %v2274 = vld [vmem:[%s1871 + $0x38] sm:$0x1]
        %v2275 = vld [vmem:[%s1871 + $0x4c] sm:$0x1]
        %v2276 = vld [vmem:[%s1871 + $0x60] sm:$0x1]
        %v2277 = vld [vmem:[%s1871 + $0x74] sm:$0x1]
        %v2278 = vld [vmem:[%s1871 + $0x88] sm:$0x1]
        %v2279 = vld [vmem:[%s1871 + $0x9c] sm:$0x1]
        %v2280 = vld [vmem:[%s1871 + $0xb0] sm:$0x1]
        %v2281 = vld [vmem:[%s1871 + $0xc4] sm:$0x1]
        %v2282 = vld [vmem:[%s1871 + $0xd8] sm:$0x1]
        %v2283 = vld [vmem:[%s1871 + $0xec] sm:$0x1]
        %v2284 = vld [vmem:[%s1871 + $0x100] sm:$0x1]
        %v2285 = vld [vmem:[%s1871 + $0x114] sm:$0x1]
        %v2286 = vld [vmem:[%s1871 + $0x128] sm:$0x1]
        %v2287 = vld [vmem:[%s1871 + $0x13c] sm:$0x1]
        %v2288 = vrot.slane %v1926, 4
        %v2289 = vrot.slane %v1929, 5
        %v2290 = vor.u32 %v2288, %v2289
        %v2291 = vrot.slane %v2290, 4
        %v2292 = vrot.slane %v1938, 5
        %v2293 = vsel %vm1006, %v2291, %v2292
        %v2294 = vrot.slane %v1935, 4
        %v2295 = vor.u32 %v2294, %v2292
        %v2296 = vrot.slane %v2295, 4
        %v2298 = vshll.u32 %v2272, 16
        %v2300 = vrot.slane %v2298, 5
        %v2301 = vsel %vm1006, %v2296, %v2300
        %v2302 = vrot.slane %v1948, 4
        %v2303 = vrot.slane %v1951, 5
        %v2304 = vor.u32 %v2302, %v2303
        %v2305 = vrot.slane %v2304, 4
        %v2306 = vrot.slane %v1960, 5
        %v2307 = vsel %vm1006, %v2305, %v2306
        %v2308 = vrot.slane %v1957, 4
        %v2309 = vor.u32 %v2308, %v2306
        %v2310 = vrot.slane %v2309, 4
        %v2312 = vshll.u32 %v2273, 16
        %v2314 = vrot.slane %v2312, 5
        %v2315 = vsel %vm1006, %v2310, %v2314
        %v2316 = vrot.slane %v1970, 4
        %v2317 = vrot.slane %v1973, 5
        %v2318 = vor.u32 %v2316, %v2317
        %v2319 = vrot.slane %v2318, 4
        %v2320 = vrot.slane %v1982, 5
        %v2321 = vsel %vm1006, %v2319, %v2320
        %v2322 = vrot.slane %v1979, 4
        %v2323 = vor.u32 %v2322, %v2320
        %v2324 = vrot.slane %v2323, 4
        %v2326 = vshll.u32 %v2274, 16
        %v2328 = vrot.slane %v2326, 5
        %v2329 = vsel %vm1006, %v2324, %v2328
        %v2330 = vrot.slane %v1992, 4
        %v2331 = vrot.slane %v1995, 5
        %v2332 = vor.u32 %v2330, %v2331
        %v2333 = vrot.slane %v2332, 4
        %v2334 = vrot.slane %v2004, 5
        %v2335 = vsel %vm1006, %v2333, %v2334
        %v2336 = vrot.slane %v2001, 4
        %v2337 = vor.u32 %v2336, %v2334
        %v2338 = vrot.slane %v2337, 4
        %v2340 = vshll.u32 %v2275, 16
        %v2342 = vrot.slane %v2340, 5
        %v2343 = vsel %vm1006, %v2338, %v2342
        %v2344 = vrot.slane %v2014, 4
        %v2345 = vrot.slane %v2017, 5
        %v2346 = vor.u32 %v2344, %v2345
        %v2347 = vrot.slane %v2346, 4
        %v2348 = vrot.slane %v2026, 5
        %v2349 = vsel %vm1006, %v2347, %v2348
        %v2350 = vrot.slane %v2023, 4
        %v2351 = vor.u32 %v2350, %v2348
        %v2352 = vrot.slane %v2351, 4
        %v2354 = vshll.u32 %v2276, 16
        %v2356 = vrot.slane %v2354, 5
        %v2357 = vsel %vm1006, %v2352, %v2356
        %v2358 = vrot.slane %v2036, 4
        %v2359 = vrot.slane %v2039, 5
        %v2360 = vor.u32 %v2358, %v2359
        %v2361 = vrot.slane %v2360, 4
        %v2362 = vrot.slane %v2048, 5
        %v2363 = vsel %vm1006, %v2361, %v2362
        %v2364 = vrot.slane %v2045, 4
        %v2365 = vor.u32 %v2364, %v2362
        %v2366 = vrot.slane %v2365, 4
        %v2368 = vshll.u32 %v2277, 16
        %v2370 = vrot.slane %v2368, 5
        %v2371 = vsel %vm1006, %v2366, %v2370
        %v2372 = vrot.slane %v2058, 4
        %v2373 = vrot.slane %v2061, 5
        %v2374 = vor.u32 %v2372, %v2373
        %v2375 = vrot.slane %v2374, 4
        %v2376 = vrot.slane %v2070, 5
        %v2377 = vsel %vm1006, %v2375, %v2376
        %v2378 = vrot.slane %v2067, 4
        %v2379 = vor.u32 %v2378, %v2376
        %v2380 = vrot.slane %v2379, 4
        %v2382 = vshll.u32 %v2278, 16
        %v2384 = vrot.slane %v2382, 5
        %v2385 = vsel %vm1006, %v2380, %v2384
        %v2386 = vrot.slane %v2080, 4
        %v2387 = vrot.slane %v2083, 5
        %v2388 = vor.u32 %v2386, %v2387
        %v2389 = vrot.slane %v2388, 4
        %v2390 = vrot.slane %v2092, 5
        %v2391 = vsel %vm1006, %v2389, %v2390
        %v2392 = vrot.slane %v2089, 4
        %v2393 = vor.u32 %v2392, %v2390
        %v2394 = vrot.slane %v2393, 4
        %v2396 = vshll.u32 %v2279, 16
        %v2398 = vrot.slane %v2396, 5
        %v2399 = vsel %vm1006, %v2394, %v2398
        %v2400 = vrot.slane %v2102, 4
        %v2401 = vrot.slane %v2105, 5
        %v2402 = vor.u32 %v2400, %v2401
        %v2403 = vrot.slane %v2402, 4
        %v2404 = vrot.slane %v2114, 5
        %v2405 = vsel %vm1006, %v2403, %v2404
        %v2406 = vrot.slane %v2111, 4
        %v2407 = vor.u32 %v2406, %v2404
        %v2408 = vrot.slane %v2407, 4
        %v2410 = vshll.u32 %v2280, 16
        %v2412 = vrot.slane %v2410, 5
        %v2413 = vsel %vm1006, %v2408, %v2412
        %v2414 = vrot.slane %v2124, 4
        %v2415 = vrot.slane %v2127, 5
        %v2416 = vor.u32 %v2414, %v2415
        %v2417 = vrot.slane %v2416, 4
        %v2418 = vrot.slane %v2136, 5
        %v2419 = vsel %vm1006, %v2417, %v2418
        %v2420 = vrot.slane %v2133, 4
        %v2421 = vor.u32 %v2420, %v2418
        %v2422 = vrot.slane %v2421, 4
        %v2424 = vshll.u32 %v2281, 16
        %v2426 = vrot.slane %v2424, 5
        %v2427 = vsel %vm1006, %v2422, %v2426
        %v2428 = vrot.slane %v2146, 4
        %v2429 = vrot.slane %v2149, 5
        %v2430 = vor.u32 %v2428, %v2429
        %v2431 = vrot.slane %v2430, 4
        %v2432 = vrot.slane %v2158, 5
        %v2433 = vsel %vm1006, %v2431, %v2432
        %v2434 = vrot.slane %v2155, 4
        %v2435 = vor.u32 %v2434, %v2432
        %v2436 = vrot.slane %v2435, 4
        %v2438 = vshll.u32 %v2282, 16
        %v2440 = vrot.slane %v2438, 5
        %v2441 = vsel %vm1006, %v2436, %v2440
        %v2442 = vrot.slane %v2168, 4
        %v2443 = vrot.slane %v2171, 5
        %v2444 = vor.u32 %v2442, %v2443
        %v2445 = vrot.slane %v2444, 4
        %v2446 = vrot.slane %v2180, 5
        %v2447 = vsel %vm1006, %v2445, %v2446
        %v2448 = vrot.slane %v2177, 4
        %v2449 = vor.u32 %v2448, %v2446
        %v2450 = vrot.slane %v2449, 4
        %v2452 = vshll.u32 %v2283, 16
        %v2454 = vrot.slane %v2452, 5
        %v2455 = vsel %vm1006, %v2450, %v2454
        %v2456 = vrot.slane %v2190, 4
        %v2457 = vrot.slane %v2193, 5
        %v2458 = vor.u32 %v2456, %v2457
        %v2459 = vrot.slane %v2458, 4
        %v2460 = vrot.slane %v2202, 5
        %v2461 = vsel %vm1006, %v2459, %v2460
        %v2462 = vrot.slane %v2199, 4
        %v2463 = vor.u32 %v2462, %v2460
        %v2464 = vrot.slane %v2463, 4
        %v2466 = vshll.u32 %v2284, 16
        %v2468 = vrot.slane %v2466, 5
        %v2469 = vsel %vm1006, %v2464, %v2468
        %v2470 = vrot.slane %v2212, 4
        %v2471 = vrot.slane %v2215, 5
        %v2472 = vor.u32 %v2470, %v2471
        %v2473 = vrot.slane %v2472, 4
        %v2474 = vrot.slane %v2224, 5
        %v2475 = vsel %vm1006, %v2473, %v2474
        %v2476 = vrot.slane %v2221, 4
        %v2477 = vor.u32 %v2476, %v2474
        %v2478 = vrot.slane %v2477, 4
        %v2480 = vshll.u32 %v2285, 16
        %v2482 = vrot.slane %v2480, 5
        %v2483 = vsel %vm1006, %v2478, %v2482
        %v2484 = vrot.slane %v2234, 4
        %v2485 = vrot.slane %v2237, 5
        %v2486 = vor.u32 %v2484, %v2485
        %v2487 = vrot.slane %v2486, 4
        %v2488 = vrot.slane %v2246, 5
        %v2489 = vsel %vm1006, %v2487, %v2488
        %v2490 = vrot.slane %v2243, 4
        %v2491 = vor.u32 %v2490, %v2488
        %v2492 = vrot.slane %v2491, 4
        %v2494 = vshll.u32 %v2286, 16
        %v2496 = vrot.slane %v2494, 5
        %v2497 = vsel %vm1006, %v2492, %v2496
        %v2498 = vrot.slane %v2256, 4
        %v2499 = vrot.slane %v2259, 5
        %v2500 = vor.u32 %v2498, %v2499
        %v2501 = vrot.slane %v2500, 4
        %v2502 = vrot.slane %v2268, 5
        %v2503 = vsel %vm1006, %v2501, %v2502
        %v2504 = vrot.slane %v2265, 4
        %v2505 = vor.u32 %v2504, %v2502
        %v2506 = vrot.slane %v2505, 4
        %v2508 = vshll.u32 %v2287, 16
        %v2510 = vrot.slane %v2508, 5
        %v2511 = vsel %vm1006, %v2506, %v2510
        %v2512 = vunpack.c.l.b16 %v648
        %v2513 = vunpack.c.l.b16 %v657
        %v2514 = vunpack.c.l.b16 %v670
        %v2515 = vunpack.c.l.b16 %v679
        %v2516 = vunpack.c.l.b16 %v692
        %v2517 = vunpack.c.l.b16 %v701
        %v2518 = vunpack.c.l.b16 %v714
        %v2519 = vunpack.c.l.b16 %v723
        %v2520 = vunpack.c.l.b16 %v736
        %v2521 = vunpack.c.l.b16 %v745
        %v2522 = vunpack.c.l.b16 %v758
        %v2523 = vunpack.c.l.b16 %v767
        %v2524 = vunpack.c.l.b16 %v780
        %v2525 = vunpack.c.l.b16 %v789
        %v2526 = vunpack.c.l.b16 %v802
        %v2527 = vunpack.c.l.b16 %v811
        %v2528 = vunpack.c.l.b16 %v824
        %v2529 = vunpack.c.l.b16 %v833
        %v2530 = vunpack.c.l.b16 %v846
        %v2531 = vunpack.c.l.b16 %v855
        %v2532 = vunpack.c.l.b16 %v868
        %v2533 = vunpack.c.l.b16 %v877
        %v2534 = vunpack.c.l.b16 %v890
        %v2535 = vunpack.c.l.b16 %v899
        %v2536 = vunpack.c.l.b16 %v912
        %v2537 = vunpack.c.l.b16 %v921
        %v2538 = vunpack.c.l.b16 %v934
        %v2539 = vunpack.c.l.b16 %v943
        %v2540 = vunpack.c.l.b16 %v956
        %v2541 = vunpack.c.l.b16 %v965
        %v2542 = vunpack.c.l.b16 %v978
        %v2543 = vunpack.c.l.b16 %v987
        %v2544 = vpack.c.b16 %v2513, %v2512
        %v2545 = vpack.c.b16 %v2515, %v2514
        %v2546 = vpack.c.b16 %v2517, %v2516
        %v2547 = vpack.c.b16 %v2519, %v2518
        %v2548 = vpack.c.b16 %v2521, %v2520
        %v2549 = vpack.c.b16 %v2523, %v2522
        %v2550 = vpack.c.b16 %v2525, %v2524
        %v2551 = vpack.c.b16 %v2527, %v2526
        %v2552 = vpack.c.b16 %v2529, %v2528
        %v2553 = vpack.c.b16 %v2531, %v2530
        %v2554 = vpack.c.b16 %v2533, %v2532
        %v2555 = vpack.c.b16 %v2535, %v2534
        %v2556 = vpack.c.b16 %v2537, %v2536
        %v2557 = vpack.c.b16 %v2539, %v2538
        %v2558 = vpack.c.b16 %v2541, %v2540
        %v2559 = vpack.c.b16 %v2543, %v2542
        %v2608 = vunpack.c.l.b16 %v587
        %v2609 = vunpack.c.l.b16 %v588
        %v2610 = vunpack.c.l.b16 %v590
        %v2611 = vunpack.c.l.b16 %v591
        %v2612 = vunpack.c.l.b16 %v593
        %v2613 = vunpack.c.l.b16 %v594
        %v2614 = vunpack.c.l.b16 %v596
        %v2615 = vunpack.c.l.b16 %v597
        %v2616 = vunpack.c.l.b16 %v599
        %v2617 = vunpack.c.l.b16 %v600
        %v2618 = vunpack.c.l.b16 %v602
        %v2619 = vunpack.c.l.b16 %v603
        %v2620 = vunpack.c.l.b16 %v605
        %v2621 = vunpack.c.l.b16 %v606
        %v2622 = vunpack.c.l.b16 %v608
        %v2623 = vunpack.c.l.b16 %v609
        %v2624 = vunpack.c.l.b16 %v611
        %v2625 = vunpack.c.l.b16 %v612
        %v2626 = vunpack.c.l.b16 %v614
        %v2627 = vunpack.c.l.b16 %v615
        %v2628 = vunpack.c.l.b16 %v617
        %v2629 = vunpack.c.l.b16 %v618
        %v2630 = vunpack.c.l.b16 %v620
        %v2631 = vunpack.c.l.b16 %v621
        %v2632 = vunpack.c.l.b16 %v623
        %v2633 = vunpack.c.l.b16 %v624
        %v2634 = vunpack.c.l.b16 %v626
        %v2635 = vunpack.c.l.b16 %v627
        %v2636 = vunpack.c.l.b16 %v629
        %v2637 = vunpack.c.l.b16 %v630
        %v2638 = vunpack.c.l.b16 %v632
        %v2639 = vunpack.c.l.b16 %v633
        %v2640 = vpack.c.b16 %v2609, %v2608
        %v2641 = vpack.c.b16 %v2611, %v2610
        %v2642 = vpack.c.b16 %v2613, %v2612
        %v2643 = vpack.c.b16 %v2615, %v2614
        %v2644 = vpack.c.b16 %v2617, %v2616
        %v2645 = vpack.c.b16 %v2619, %v2618
        %v2646 = vpack.c.b16 %v2621, %v2620
        %v2647 = vpack.c.b16 %v2623, %v2622
        %v2648 = vpack.c.b16 %v2625, %v2624
        %v2649 = vpack.c.b16 %v2627, %v2626
        %v2650 = vpack.c.b16 %v2629, %v2628
        %v2651 = vpack.c.b16 %v2631, %v2630
        %v2652 = vpack.c.b16 %v2633, %v2632
        %v2653 = vpack.c.b16 %v2635, %v2634
        %v2654 = vpack.c.b16 %v2637, %v2636
        %v2655 = vpack.c.b16 %v2639, %v2638
        %v2672 = vunpack.c.l.b16 %v1012
        %v2673 = vunpack.c.l.b16 %v1020
        %v2674 = vunpack.c.l.b16 %v1026
        %v2675 = vunpack.c.l.b16 %v1034
        %v2676 = vunpack.c.l.b16 %v1040
        %v2677 = vunpack.c.l.b16 %v1048
        %v2678 = vunpack.c.l.b16 %v1054
        %v2679 = vunpack.c.l.b16 %v1062
        %v2680 = vunpack.c.l.b16 %v1068
        %v2681 = vunpack.c.l.b16 %v1076
        %v2682 = vunpack.c.l.b16 %v1082
        %v2683 = vunpack.c.l.b16 %v1090
        %v2684 = vunpack.c.l.b16 %v1096
        %v2685 = vunpack.c.l.b16 %v1104
        %v2686 = vunpack.c.l.b16 %v1110
        %v2687 = vunpack.c.l.b16 %v1118
        %v2688 = vunpack.c.l.b16 %v1124
        %v2689 = vunpack.c.l.b16 %v1132
        %v2690 = vunpack.c.l.b16 %v1138
        %v2691 = vunpack.c.l.b16 %v1146
        %v2692 = vunpack.c.l.b16 %v1152
        %v2693 = vunpack.c.l.b16 %v1160
        %v2694 = vunpack.c.l.b16 %v1166
        %v2695 = vunpack.c.l.b16 %v1174
        %v2696 = vunpack.c.l.b16 %v1180
        %v2697 = vunpack.c.l.b16 %v1188
        %v2698 = vunpack.c.l.b16 %v1194
        %v2699 = vunpack.c.l.b16 %v1202
        %v2700 = vunpack.c.l.b16 %v1208
        %v2701 = vunpack.c.l.b16 %v1216
        %v2702 = vunpack.c.l.b16 %v1222
        %v2703 = vunpack.c.l.b16 %v1230
        %v2704 = vpack.c.b16 %v2673, %v2672
        %v2705 = vpack.c.b16 %v2675, %v2674
        %v2706 = vpack.c.b16 %v2677, %v2676
        %v2707 = vpack.c.b16 %v2679, %v2678
        %v2708 = vpack.c.b16 %v2681, %v2680
        %v2709 = vpack.c.b16 %v2683, %v2682
        %v2710 = vpack.c.b16 %v2685, %v2684
        %v2711 = vpack.c.b16 %v2687, %v2686
        %v2712 = vpack.c.b16 %v2689, %v2688
        %v2713 = vpack.c.b16 %v2691, %v2690
        %v2714 = vpack.c.b16 %v2693, %v2692
        %v2715 = vpack.c.b16 %v2695, %v2694
        %v2716 = vpack.c.b16 %v2697, %v2696
        %v2717 = vpack.c.b16 %v2699, %v2698
        %v2718 = vpack.c.b16 %v2701, %v2700
        %v2719 = vpack.c.b16 %v2703, %v2702
        %v2736 = vunpack.c.l.b16 %v1291
        %v2737 = vunpack.c.l.b16 %v1300
        %v2738 = vunpack.c.l.b16 %v1313
        %v2739 = vunpack.c.l.b16 %v1322
        %v2740 = vunpack.c.l.b16 %v1335
        %v2741 = vunpack.c.l.b16 %v1344
        %v2742 = vunpack.c.l.b16 %v1357
        %v2743 = vunpack.c.l.b16 %v1366
        %v2744 = vunpack.c.l.b16 %v1379
        %v2745 = vunpack.c.l.b16 %v1388
        %v2746 = vunpack.c.l.b16 %v1401
        %v2747 = vunpack.c.l.b16 %v1410
        %v2748 = vunpack.c.l.b16 %v1423
        %v2749 = vunpack.c.l.b16 %v1432
        %v2750 = vunpack.c.l.b16 %v1445
        %v2751 = vunpack.c.l.b16 %v1454
        %v2752 = vunpack.c.l.b16 %v1467
        %v2753 = vunpack.c.l.b16 %v1476
        %v2754 = vunpack.c.l.b16 %v1489
        %v2755 = vunpack.c.l.b16 %v1498
        %v2756 = vunpack.c.l.b16 %v1511
        %v2757 = vunpack.c.l.b16 %v1520
        %v2758 = vunpack.c.l.b16 %v1533
        %v2759 = vunpack.c.l.b16 %v1542
        %v2760 = vunpack.c.l.b16 %v1555
        %v2761 = vunpack.c.l.b16 %v1564
        %v2762 = vunpack.c.l.b16 %v1577
        %v2763 = vunpack.c.l.b16 %v1586
        %v2764 = vunpack.c.l.b16 %v1599
        %v2765 = vunpack.c.l.b16 %v1608
        %v2766 = vunpack.c.l.b16 %v1621
        %v2767 = vunpack.c.l.b16 %v1630
        %v2768 = vpack.c.b16 %v2737, %v2736
        %v2769 = vpack.c.b16 %v2739, %v2738
        %v2770 = vpack.c.b16 %v2741, %v2740
        %v2771 = vpack.c.b16 %v2743, %v2742
        %v2772 = vpack.c.b16 %v2745, %v2744
        %v2773 = vpack.c.b16 %v2747, %v2746
        %v2774 = vpack.c.b16 %v2749, %v2748
        %v2775 = vpack.c.b16 %v2751, %v2750
        %v2776 = vpack.c.b16 %v2753, %v2752
        %v2777 = vpack.c.b16 %v2755, %v2754
        %v2778 = vpack.c.b16 %v2757, %v2756
        %v2779 = vpack.c.b16 %v2759, %v2758
        %v2780 = vpack.c.b16 %v2761, %v2760
        %v2781 = vpack.c.b16 %v2763, %v2762
        %v2782 = vpack.c.b16 %v2765, %v2764
        %v2783 = vpack.c.b16 %v2767, %v2766
        %v2832 = vunpack.c.l.b16 %v1232
        %v2833 = vunpack.c.l.b16 %v1233
        %v2834 = vunpack.c.l.b16 %v1235
        %v2835 = vunpack.c.l.b16 %v1236
        %v2836 = vunpack.c.l.b16 %v1238
        %v2837 = vunpack.c.l.b16 %v1239
        %v2838 = vunpack.c.l.b16 %v1241
        %v2839 = vunpack.c.l.b16 %v1242
        %v2840 = vunpack.c.l.b16 %v1244
        %v2841 = vunpack.c.l.b16 %v1245
        %v2842 = vunpack.c.l.b16 %v1247
        %v2843 = vunpack.c.l.b16 %v1248
        %v2844 = vunpack.c.l.b16 %v1250
        %v2845 = vunpack.c.l.b16 %v1251
        %v2846 = vunpack.c.l.b16 %v1253
        %v2847 = vunpack.c.l.b16 %v1254
        %v2848 = vunpack.c.l.b16 %v1256
        %v2849 = vunpack.c.l.b16 %v1257
        %v2850 = vunpack.c.l.b16 %v1259
        %v2851 = vunpack.c.l.b16 %v1260
        %v2852 = vunpack.c.l.b16 %v1262
        %v2853 = vunpack.c.l.b16 %v1263
        %v2854 = vunpack.c.l.b16 %v1265
        %v2855 = vunpack.c.l.b16 %v1266
        %v2856 = vunpack.c.l.b16 %v1268
        %v2857 = vunpack.c.l.b16 %v1269
        %v2858 = vunpack.c.l.b16 %v1271
        %v2859 = vunpack.c.l.b16 %v1272
        %v2860 = vunpack.c.l.b16 %v1274
        %v2861 = vunpack.c.l.b16 %v1275
        %v2862 = vunpack.c.l.b16 %v1277
        %v2863 = vunpack.c.l.b16 %v1278
        %v2864 = vpack.c.b16 %v2833, %v2832
        %v2865 = vpack.c.b16 %v2835, %v2834
        %v2866 = vpack.c.b16 %v2837, %v2836
        %v2867 = vpack.c.b16 %v2839, %v2838
        %v2868 = vpack.c.b16 %v2841, %v2840
        %v2869 = vpack.c.b16 %v2843, %v2842
        %v2870 = vpack.c.b16 %v2845, %v2844
        %v2871 = vpack.c.b16 %v2847, %v2846
        %v2872 = vpack.c.b16 %v2849, %v2848
        %v2873 = vpack.c.b16 %v2851, %v2850
        %v2874 = vpack.c.b16 %v2853, %v2852
        %v2875 = vpack.c.b16 %v2855, %v2854
        %v2876 = vpack.c.b16 %v2857, %v2856
        %v2877 = vpack.c.b16 %v2859, %v2858
        %v2878 = vpack.c.b16 %v2861, %v2860
        %v2879 = vpack.c.b16 %v2863, %v2862
        %v2896 = vunpack.c.l.b16 %v1652
        %v2897 = vunpack.c.l.b16 %v1660
        %v2898 = vunpack.c.l.b16 %v1666
        %v2899 = vunpack.c.l.b16 %v1674
        %v2900 = vunpack.c.l.b16 %v1680
        %v2901 = vunpack.c.l.b16 %v1688
        %v2902 = vunpack.c.l.b16 %v1694
        %v2903 = vunpack.c.l.b16 %v1702
        %v2904 = vunpack.c.l.b16 %v1708
        %v2905 = vunpack.c.l.b16 %v1716
        %v2906 = vunpack.c.l.b16 %v1722
        %v2907 = vunpack.c.l.b16 %v1730
        %v2908 = vunpack.c.l.b16 %v1736
        %v2909 = vunpack.c.l.b16 %v1744
        %v2910 = vunpack.c.l.b16 %v1750
        %v2911 = vunpack.c.l.b16 %v1758
        %v2912 = vunpack.c.l.b16 %v1764
        %v2913 = vunpack.c.l.b16 %v1772
        %v2914 = vunpack.c.l.b16 %v1778
        %v2915 = vunpack.c.l.b16 %v1786
        %v2916 = vunpack.c.l.b16 %v1792
        %v2917 = vunpack.c.l.b16 %v1800
        %v2918 = vunpack.c.l.b16 %v1806
        %v2919 = vunpack.c.l.b16 %v1814
        %v2920 = vunpack.c.l.b16 %v1820
        %v2921 = vunpack.c.l.b16 %v1828
        %v2922 = vunpack.c.l.b16 %v1834
        %v2923 = vunpack.c.l.b16 %v1842
        %v2924 = vunpack.c.l.b16 %v1848
        %v2925 = vunpack.c.l.b16 %v1856
        %v2926 = vunpack.c.l.b16 %v1862
        %v2927 = vunpack.c.l.b16 %v1870
        %v2928 = vpack.c.b16 %v2897, %v2896
        %v2929 = vpack.c.b16 %v2899, %v2898
        %v2930 = vpack.c.b16 %v2901, %v2900
        %v2931 = vpack.c.b16 %v2903, %v2902
        %v2932 = vpack.c.b16 %v2905, %v2904
        %v2933 = vpack.c.b16 %v2907, %v2906
        %v2934 = vpack.c.b16 %v2909, %v2908
        %v2935 = vpack.c.b16 %v2911, %v2910
        %v2936 = vpack.c.b16 %v2913, %v2912
        %v2937 = vpack.c.b16 %v2915, %v2914
        %v2938 = vpack.c.b16 %v2917, %v2916
        %v2939 = vpack.c.b16 %v2919, %v2918
        %v2940 = vpack.c.b16 %v2921, %v2920
        %v2941 = vpack.c.b16 %v2923, %v2922
        %v2942 = vpack.c.b16 %v2925, %v2924
        %v2943 = vpack.c.b16 %v2927, %v2926
        %v2960 = vunpack.c.l.b16 %v1932
        %v2961 = vunpack.c.l.b16 %v1941
        %v2962 = vunpack.c.l.b16 %v1954
        %v2963 = vunpack.c.l.b16 %v1963
        %v2964 = vunpack.c.l.b16 %v1976
        %v2965 = vunpack.c.l.b16 %v1985
        %v2966 = vunpack.c.l.b16 %v1998
        %v2967 = vunpack.c.l.b16 %v2007
        %v2968 = vunpack.c.l.b16 %v2020
        %v2969 = vunpack.c.l.b16 %v2029
        %v2970 = vunpack.c.l.b16 %v2042
        %v2971 = vunpack.c.l.b16 %v2051
        %v2972 = vunpack.c.l.b16 %v2064
        %v2973 = vunpack.c.l.b16 %v2073
        %v2974 = vunpack.c.l.b16 %v2086
        %v2975 = vunpack.c.l.b16 %v2095
        %v2976 = vunpack.c.l.b16 %v2108
        %v2977 = vunpack.c.l.b16 %v2117
        %v2978 = vunpack.c.l.b16 %v2130
        %v2979 = vunpack.c.l.b16 %v2139
        %v2980 = vunpack.c.l.b16 %v2152
        %v2981 = vunpack.c.l.b16 %v2161
        %v2982 = vunpack.c.l.b16 %v2174
        %v2983 = vunpack.c.l.b16 %v2183
        %v2984 = vunpack.c.l.b16 %v2196
        %v2985 = vunpack.c.l.b16 %v2205
        %v2986 = vunpack.c.l.b16 %v2218
        %v2987 = vunpack.c.l.b16 %v2227
        %v2988 = vunpack.c.l.b16 %v2240
        %v2989 = vunpack.c.l.b16 %v2249
        %v2990 = vunpack.c.l.b16 %v2262
        %v2991 = vunpack.c.l.b16 %v2271
        %v2992 = vpack.c.b16 %v2961, %v2960
        %v2993 = vpack.c.b16 %v2963, %v2962
        %v2994 = vpack.c.b16 %v2965, %v2964
        %v2995 = vpack.c.b16 %v2967, %v2966
        %v2996 = vpack.c.b16 %v2969, %v2968
        %v2997 = vpack.c.b16 %v2971, %v2970
        %v2998 = vpack.c.b16 %v2973, %v2972
        %v2999 = vpack.c.b16 %v2975, %v2974
        %v3000 = vpack.c.b16 %v2977, %v2976
        %v3001 = vpack.c.b16 %v2979, %v2978
        %v3002 = vpack.c.b16 %v2981, %v2980
        %v3003 = vpack.c.b16 %v2983, %v2982
        %v3004 = vpack.c.b16 %v2985, %v2984
        %v3005 = vpack.c.b16 %v2987, %v2986
        %v3006 = vpack.c.b16 %v2989, %v2988
        %v3007 = vpack.c.b16 %v2991, %v2990
        %v3056 = vunpack.c.l.b16 %v1873
        %v3057 = vunpack.c.l.b16 %v1874
        %v3058 = vunpack.c.l.b16 %v1876
        %v3059 = vunpack.c.l.b16 %v1877
        %v3060 = vunpack.c.l.b16 %v1879
        %v3061 = vunpack.c.l.b16 %v1880
        %v3062 = vunpack.c.l.b16 %v1882
        %v3063 = vunpack.c.l.b16 %v1883
        %v3064 = vunpack.c.l.b16 %v1885
        %v3065 = vunpack.c.l.b16 %v1886
        %v3066 = vunpack.c.l.b16 %v1888
        %v3067 = vunpack.c.l.b16 %v1889
        %v3068 = vunpack.c.l.b16 %v1891
        %v3069 = vunpack.c.l.b16 %v1892
        %v3070 = vunpack.c.l.b16 %v1894
        %v3071 = vunpack.c.l.b16 %v1895
        %v3072 = vunpack.c.l.b16 %v1897
        %v3073 = vunpack.c.l.b16 %v1898
        %v3074 = vunpack.c.l.b16 %v1900
        %v3075 = vunpack.c.l.b16 %v1901
        %v3076 = vunpack.c.l.b16 %v1903
        %v3077 = vunpack.c.l.b16 %v1904
        %v3078 = vunpack.c.l.b16 %v1906
        %v3079 = vunpack.c.l.b16 %v1907
        %v3080 = vunpack.c.l.b16 %v1909
        %v3081 = vunpack.c.l.b16 %v1910
        %v3082 = vunpack.c.l.b16 %v1912
        %v3083 = vunpack.c.l.b16 %v1913
        %v3084 = vunpack.c.l.b16 %v1915
        %v3085 = vunpack.c.l.b16 %v1916
        %v3086 = vunpack.c.l.b16 %v1918
        %v3087 = vunpack.c.l.b16 %v1919
        %v3088 = vpack.c.b16 %v3057, %v3056
        %v3089 = vpack.c.b16 %v3059, %v3058
        %v3090 = vpack.c.b16 %v3061, %v3060
        %v3091 = vpack.c.b16 %v3063, %v3062
        %v3092 = vpack.c.b16 %v3065, %v3064
        %v3093 = vpack.c.b16 %v3067, %v3066
        %v3094 = vpack.c.b16 %v3069, %v3068
        %v3095 = vpack.c.b16 %v3071, %v3070
        %v3096 = vpack.c.b16 %v3073, %v3072
        %v3097 = vpack.c.b16 %v3075, %v3074
        %v3098 = vpack.c.b16 %v3077, %v3076
        %v3099 = vpack.c.b16 %v3079, %v3078
        %v3100 = vpack.c.b16 %v3081, %v3080
        %v3101 = vpack.c.b16 %v3083, %v3082
        %v3102 = vpack.c.b16 %v3085, %v3084
        %v3103 = vpack.c.b16 %v3087, %v3086
        %v3120 = vunpack.c.l.b16 %v2293
        %v3121 = vunpack.c.l.b16 %v2301
        %v3122 = vunpack.c.l.b16 %v2307
        %v3123 = vunpack.c.l.b16 %v2315
        %v3124 = vunpack.c.l.b16 %v2321
        %v3125 = vunpack.c.l.b16 %v2329
        %v3126 = vunpack.c.l.b16 %v2335
        %v3127 = vunpack.c.l.b16 %v2343
        %v3128 = vunpack.c.l.b16 %v2349
        %v3129 = vunpack.c.l.b16 %v2357
        %v3130 = vunpack.c.l.b16 %v2363
        %v3131 = vunpack.c.l.b16 %v2371
        %v3132 = vunpack.c.l.b16 %v2377
        %v3133 = vunpack.c.l.b16 %v2385
        %v3134 = vunpack.c.l.b16 %v2391
        %v3135 = vunpack.c.l.b16 %v2399
        %v3136 = vunpack.c.l.b16 %v2405
        %v3137 = vunpack.c.l.b16 %v2413
        %v3138 = vunpack.c.l.b16 %v2419
        %v3139 = vunpack.c.l.b16 %v2427
        %v3140 = vunpack.c.l.b16 %v2433
        %v3141 = vunpack.c.l.b16 %v2441
        %v3142 = vunpack.c.l.b16 %v2447
        %v3143 = vunpack.c.l.b16 %v2455
        %v3144 = vunpack.c.l.b16 %v2461
        %v3145 = vunpack.c.l.b16 %v2469
        %v3146 = vunpack.c.l.b16 %v2475
        %v3147 = vunpack.c.l.b16 %v2483
        %v3148 = vunpack.c.l.b16 %v2489
        %v3149 = vunpack.c.l.b16 %v2497
        %v3150 = vunpack.c.l.b16 %v2503
        %v3151 = vunpack.c.l.b16 %v2511
        %v3152 = vpack.c.b16 %v3121, %v3120
        %v3153 = vpack.c.b16 %v3123, %v3122
        %v3154 = vpack.c.b16 %v3125, %v3124
        %v3155 = vpack.c.b16 %v3127, %v3126
        %v3156 = vpack.c.b16 %v3129, %v3128
        %v3157 = vpack.c.b16 %v3131, %v3130
        %v3158 = vpack.c.b16 %v3133, %v3132
        %v3159 = vpack.c.b16 %v3135, %v3134
        %v3160 = vpack.c.b16 %v3137, %v3136
        %v3161 = vpack.c.b16 %v3139, %v3138
        %v3162 = vpack.c.b16 %v3141, %v3140
        %v3163 = vpack.c.b16 %v3143, %v3142
        %v3164 = vpack.c.b16 %v3145, %v3144
        %v3165 = vpack.c.b16 %v3147, %v3146
        %v3166 = vpack.c.b16 %v3149, %v3148
        %v3167 = vpack.c.b16 %v3151, %v3150
        %v3184 = vld [vmem:[%s1] sm:$0xf]
        %v3185 = vld [vmem:[%s1 + $0x4] sm:$0xf]
        %v3186 = vld [vmem:[%s1 + $0x8] sm:$0xf]
        %v3187 = vld [vmem:[%s1 + $0xc] sm:$0xf]
        %v3188 = vld [vmem:[%s1 + $0x10] sm:$0xf]
        %v3189 = vld [vmem:[%s1 + $0x14] sm:$0xf]
        %v3190 = vld [vmem:[%s1 + $0x18] sm:$0xf]
        %v3191 = vld [vmem:[%s1 + $0x1c] sm:$0xf]
        %v3192 = vld [vmem:[%s1 + $0x20] sm:$0xf]
        %v3193 = vld [vmem:[%s1 + $0x24] sm:$0xf]
        %v3194 = vld [vmem:[%s1 + $0x28] sm:$0xf]
        %v3195 = vld [vmem:[%s1 + $0x2c] sm:$0xf]
        %v3196 = vld [vmem:[%s1 + $0x30] sm:$0xf]
        %v3197 = vld [vmem:[%s1 + $0x34] sm:$0xf]
        %v3198 = vld [vmem:[%s1 + $0x38] sm:$0xf]
        %v3199 = vld [vmem:[%s1 + $0x3c] sm:$0xf]
        %v3200 = vld [vmem:[%s1 + $0x40] sm:$0xf]
        %v3201 = vld [vmem:[%s1 + $0x44] sm:$0xf]
        %v3202 = vld [vmem:[%s1 + $0x48] sm:$0xf]
        %v3203 = vld [vmem:[%s1 + $0x4c] sm:$0xf]
        %v3204 = vld [vmem:[%s1 + $0x50] sm:$0xf]
        %v3205 = vld [vmem:[%s1 + $0x54] sm:$0xf]
        %v3206 = vld [vmem:[%s1 + $0x58] sm:$0xf]
        %v3207 = vld [vmem:[%s1 + $0x5c] sm:$0xf]
        %v3208 = vld [vmem:[%s1 + $0x60] sm:$0xf]
        %v3209 = vld [vmem:[%s1 + $0x64] sm:$0xf]
        %v3210 = vld [vmem:[%s1 + $0x68] sm:$0xf]
        %v3211 = vld [vmem:[%s1 + $0x6c] sm:$0xf]
        %v3212 = vld [vmem:[%s1 + $0x70] sm:$0xf]
        %v3213 = vld [vmem:[%s1 + $0x74] sm:$0xf]
        %v3214 = vld [vmem:[%s1 + $0x78] sm:$0xf]
        %v3215 = vld [vmem:[%s1 + $0x7c] sm:$0xf]
        %v3216 = vld [vmem:[%s1 + $0x80] sm:$0xf]
        %v3217 = vld [vmem:[%s1 + $0x84] sm:$0xf]
        %v3218 = vld [vmem:[%s1 + $0x88] sm:$0xf]
        %v3219 = vld [vmem:[%s1 + $0x8c] sm:$0xf]
        %v3220 = vld [vmem:[%s1 + $0x90] sm:$0xf]
        %v3221 = vld [vmem:[%s1 + $0x94] sm:$0xf]
        %v3222 = vld [vmem:[%s1 + $0x98] sm:$0xf]
        %v3223 = vld [vmem:[%s1 + $0x9c] sm:$0xf]
        %v3224 = vld [vmem:[%s1 + $0xa0] sm:$0xf]
        %v3225 = vld [vmem:[%s1 + $0xa4] sm:$0xf]
        %v3226 = vld [vmem:[%s1 + $0xa8] sm:$0xf]
        %v3227 = vld [vmem:[%s1 + $0xac] sm:$0xf]
        %v3228 = vld [vmem:[%s1 + $0xb0] sm:$0xf]
        %v3229 = vld [vmem:[%s1 + $0xb4] sm:$0xf]
        %v3230 = vld [vmem:[%s1 + $0xb8] sm:$0xf]
        %v3231 = vld [vmem:[%s1 + $0xbc] sm:$0xf]
        %v3232 = vld [vmem:[%s1 + $0xc0] sm:$0xf]
        %v3233 = vld [vmem:[%s1 + $0xc4] sm:$0xf]
        %v3234 = vld [vmem:[%s1 + $0xc8] sm:$0xf]
        %v3235 = vld [vmem:[%s1 + $0xcc] sm:$0xf]
        %v3236 = vld [vmem:[%s1 + $0xd0] sm:$0xf]
        %v3237 = vld [vmem:[%s1 + $0xd4] sm:$0xf]
        %v3238 = vld [vmem:[%s1 + $0xd8] sm:$0xf]
        %v3239 = vld [vmem:[%s1 + $0xdc] sm:$0xf]
        %v3240 = vld [vmem:[%s1 + $0xe0] sm:$0xf]
        %v3241 = vld [vmem:[%s1 + $0xe4] sm:$0xf]
        %v3242 = vld [vmem:[%s1 + $0xe8] sm:$0xf]
        %v3243 = vld [vmem:[%s1 + $0xec] sm:$0xf]
        %v3244 = vld [vmem:[%s1 + $0xf0] sm:$0xf]
        %v3245 = vld [vmem:[%s1 + $0xf4] sm:$0xf]
        %v3246 = vld [vmem:[%s1 + $0xf8] sm:$0xf]
        %v3247 = vld [vmem:[%s1 + $0xfc] sm:$0xf]
        %v3248 = vld [vmem:[%s1 + $0x100] sm:$0xf]
        %v3249 = vld [vmem:[%s1 + $0x104] sm:$0xf]
        %v3250 = vld [vmem:[%s1 + $0x108] sm:$0xf]
        %v3251 = vld [vmem:[%s1 + $0x10c] sm:$0xf]
        %v3252 = vld [vmem:[%s1 + $0x110] sm:$0xf]
        %v3253 = vld [vmem:[%s1 + $0x114] sm:$0xf]
        %v3254 = vld [vmem:[%s1 + $0x118] sm:$0xf]
        %v3255 = vld [vmem:[%s1 + $0x11c] sm:$0xf]
        %v3256 = vld [vmem:[%s1 + $0x120] sm:$0xf]
        %v3257 = vld [vmem:[%s1 + $0x124] sm:$0xf]
        %v3258 = vld [vmem:[%s1 + $0x128] sm:$0xf]
        %v3259 = vld [vmem:[%s1 + $0x12c] sm:$0xf]
        %v3260 = vld [vmem:[%s1 + $0x130] sm:$0xf]
        %v3261 = vld [vmem:[%s1 + $0x134] sm:$0xf]
        %v3262 = vld [vmem:[%s1 + $0x138] sm:$0xf]
        %v3263 = vld [vmem:[%s1 + $0x13c] sm:$0xf]
        %v3264 = vld [vmem:[%s1 + $0x140] sm:$0xf]
        %v3265 = vld [vmem:[%s1 + $0x144] sm:$0xf]
        %v3266 = vld [vmem:[%s1 + $0x148] sm:$0xf]
        %v3267 = vld [vmem:[%s1 + $0x14c] sm:$0xf]
        %v3268 = vld [vmem:[%s1 + $0x150] sm:$0xf]
        %v3269 = vld [vmem:[%s1 + $0x154] sm:$0xf]
        %v3270 = vld [vmem:[%s1 + $0x158] sm:$0xf]
        %v3271 = vld [vmem:[%s1 + $0x15c] sm:$0xf]
        %v3272 = vld [vmem:[%s1 + $0x160] sm:$0xf]
        %v3273 = vld [vmem:[%s1 + $0x164] sm:$0xf]
        %v3274 = vld [vmem:[%s1 + $0x168] sm:$0xf]
        %v3275 = vld [vmem:[%s1 + $0x16c] sm:$0xf]
        %v3276 = vld [vmem:[%s1 + $0x170] sm:$0xf]
        %v3277 = vld [vmem:[%s1 + $0x174] sm:$0xf]
        %v3278 = vld [vmem:[%s1 + $0x178] sm:$0xf]
        %v3279 = vld [vmem:[%s1 + $0x17c] sm:$0xf]
        %v3280 = vld [vmem:[%s1 + $0x180] sm:$0xf]
        %v3281 = vld [vmem:[%s1 + $0x184] sm:$0xf]
        %v3282 = vld [vmem:[%s1 + $0x188] sm:$0xf]
        %v3283 = vld [vmem:[%s1 + $0x18c] sm:$0xf]
        %v3284 = vld [vmem:[%s1 + $0x190] sm:$0xf]
        %v3285 = vld [vmem:[%s1 + $0x194] sm:$0xf]
        %v3286 = vld [vmem:[%s1 + $0x198] sm:$0xf]
        %v3287 = vld [vmem:[%s1 + $0x19c] sm:$0xf]
        %v3288 = vld [vmem:[%s1 + $0x1a0] sm:$0xf]
        %v3289 = vld [vmem:[%s1 + $0x1a4] sm:$0xf]
        %v3290 = vld [vmem:[%s1 + $0x1a8] sm:$0xf]
        %v3291 = vld [vmem:[%s1 + $0x1ac] sm:$0xf]
        %v3292 = vld [vmem:[%s1 + $0x1b0] sm:$0xf]
        %v3293 = vld [vmem:[%s1 + $0x1b4] sm:$0xf]
        %v3294 = vld [vmem:[%s1 + $0x1b8] sm:$0xf]
        %v3295 = vld [vmem:[%s1 + $0x1bc] sm:$0xf]
        %v3296 = vld [vmem:[%s1 + $0x1c0] sm:$0xf]
        %v3297 = vld [vmem:[%s1 + $0x1c4] sm:$0xf]
        %v3298 = vld [vmem:[%s1 + $0x1c8] sm:$0xf]
        %v3299 = vld [vmem:[%s1 + $0x1cc] sm:$0xf]
        %v3300 = vld [vmem:[%s1 + $0x1d0] sm:$0xf]
        %v3301 = vld [vmem:[%s1 + $0x1d4] sm:$0xf]
        %v3302 = vld [vmem:[%s1 + $0x1d8] sm:$0xf]
        %v3303 = vld [vmem:[%s1 + $0x1dc] sm:$0xf]
        %v3304 = vld [vmem:[%s1 + $0x1e0] sm:$0xf]
        %v3305 = vld [vmem:[%s1 + $0x1e4] sm:$0xf]
        %v3306 = vld [vmem:[%s1 + $0x1e8] sm:$0xf]
        %v3307 = vld [vmem:[%s1 + $0x1ec] sm:$0xf]
        %v3308 = vld [vmem:[%s1 + $0x1f0] sm:$0xf]
        %v3309 = vld [vmem:[%s1 + $0x1f4] sm:$0xf]
        %v3310 = vld [vmem:[%s1 + $0x1f8] sm:$0xf]
        %v3311 = vld [vmem:[%s1 + $0x1fc] sm:$0xf]
        %v3312 = vld [vmem:[%s1 + $0x200] sm:$0xf]
        %v3313 = vld [vmem:[%s1 + $0x204] sm:$0xf]
        %v3314 = vld [vmem:[%s1 + $0x208] sm:$0xf]
        %v3315 = vld [vmem:[%s1 + $0x20c] sm:$0xf]
        %v3316 = vld [vmem:[%s1 + $0x210] sm:$0xf]
        %v3317 = vld [vmem:[%s1 + $0x214] sm:$0xf]
        %v3318 = vld [vmem:[%s1 + $0x218] sm:$0xf]
        %v3319 = vld [vmem:[%s1 + $0x21c] sm:$0xf]
        %v3320 = vld [vmem:[%s1 + $0x220] sm:$0xf]
        %v3321 = vld [vmem:[%s1 + $0x224] sm:$0xf]
        %v3322 = vld [vmem:[%s1 + $0x228] sm:$0xf]
        %v3323 = vld [vmem:[%s1 + $0x22c] sm:$0xf]
        %v3324 = vld [vmem:[%s1 + $0x230] sm:$0xf]
        %v3325 = vld [vmem:[%s1 + $0x234] sm:$0xf]
        %v3326 = vld [vmem:[%s1 + $0x238] sm:$0xf]
        %v3327 = vld [vmem:[%s1 + $0x23c] sm:$0xf]
        %v3472 = vunpack.c.l.b16 %v3184
        %v3473 = vunpack.c.l.b16 %v3185
        %v3474 = vunpack.c.l.b16 %v3186
        %v3475 = vunpack.c.l.b16 %v3187
        %v3476 = vunpack.c.l.b16 %v3188
        %v3477 = vunpack.c.l.b16 %v3189
        %v3478 = vunpack.c.l.b16 %v3190
        %v3479 = vunpack.c.l.b16 %v3191
        %v3480 = vunpack.c.l.b16 %v3192
        %v3481 = vunpack.c.l.b16 %v3193
        %v3482 = vunpack.c.l.b16 %v3194
        %v3483 = vunpack.c.l.b16 %v3195
        %v3484 = vunpack.c.l.b16 %v3196
        %v3485 = vunpack.c.l.b16 %v3197
        %v3486 = vunpack.c.l.b16 %v3198
        %v3487 = vunpack.c.l.b16 %v3199
        %v3488 = vunpack.c.l.b16 %v3200
        %v3489 = vunpack.c.l.b16 %v3201
        %v3490 = vunpack.c.l.b16 %v3202
        %v3491 = vunpack.c.l.b16 %v3203
        %v3492 = vunpack.c.l.b16 %v3204
        %v3493 = vunpack.c.l.b16 %v3205
        %v3494 = vunpack.c.l.b16 %v3206
        %v3495 = vunpack.c.l.b16 %v3207
        %v3496 = vunpack.c.l.b16 %v3208
        %v3497 = vunpack.c.l.b16 %v3209
        %v3498 = vunpack.c.l.b16 %v3210
        %v3499 = vunpack.c.l.b16 %v3211
        %v3500 = vunpack.c.l.b16 %v3212
        %v3501 = vunpack.c.l.b16 %v3213
        %v3502 = vunpack.c.l.b16 %v3214
        %v3503 = vunpack.c.l.b16 %v3215
        %v3504 = vunpack.c.l.b16 %v3216
        %v3505 = vunpack.c.l.b16 %v3217
        %v3506 = vunpack.c.l.b16 %v3218
        %v3507 = vunpack.c.l.b16 %v3219
        %v3508 = vunpack.c.l.b16 %v3220
        %v3509 = vunpack.c.l.b16 %v3221
        %v3510 = vunpack.c.l.b16 %v3222
        %v3511 = vunpack.c.l.b16 %v3223
        %v3512 = vunpack.c.l.b16 %v3224
        %v3513 = vunpack.c.l.b16 %v3225
        %v3514 = vunpack.c.l.b16 %v3226
        %v3515 = vunpack.c.l.b16 %v3227
        %v3516 = vunpack.c.l.b16 %v3228
        %v3517 = vunpack.c.l.b16 %v3229
        %v3518 = vunpack.c.l.b16 %v3230
        %v3519 = vunpack.c.l.b16 %v3231
        %v3520 = vunpack.c.l.b16 %v3232
        %v3521 = vunpack.c.l.b16 %v3233
        %v3522 = vunpack.c.l.b16 %v3234
        %v3523 = vunpack.c.l.b16 %v3235
        %v3524 = vunpack.c.l.b16 %v3236
        %v3525 = vunpack.c.l.b16 %v3237
        %v3526 = vunpack.c.l.b16 %v3238
        %v3527 = vunpack.c.l.b16 %v3239
        %v3528 = vunpack.c.l.b16 %v3240
        %v3529 = vunpack.c.l.b16 %v3241
        %v3530 = vunpack.c.l.b16 %v3242
        %v3531 = vunpack.c.l.b16 %v3243
        %v3532 = vunpack.c.l.b16 %v3244
        %v3533 = vunpack.c.l.b16 %v3245
        %v3534 = vunpack.c.l.b16 %v3246
        %v3535 = vunpack.c.l.b16 %v3247
        %v3536 = vunpack.c.l.b16 %v3248
        %v3537 = vunpack.c.l.b16 %v3249
        %v3538 = vunpack.c.l.b16 %v3250
        %v3539 = vunpack.c.l.b16 %v3251
        %v3540 = vunpack.c.l.b16 %v3252
        %v3541 = vunpack.c.l.b16 %v3253
        %v3542 = vunpack.c.l.b16 %v3254
        %v3543 = vunpack.c.l.b16 %v3255
        %v3544 = vunpack.c.l.b16 %v3256
        %v3545 = vunpack.c.l.b16 %v3257
        %v3546 = vunpack.c.l.b16 %v3258
        %v3547 = vunpack.c.l.b16 %v3259
        %v3548 = vunpack.c.l.b16 %v3260
        %v3549 = vunpack.c.l.b16 %v3261
        %v3550 = vunpack.c.l.b16 %v3262
        %v3551 = vunpack.c.l.b16 %v3263
        %v3552 = vunpack.c.l.b16 %v3264
        %v3553 = vunpack.c.l.b16 %v3265
        %v3554 = vunpack.c.l.b16 %v3266
        %v3555 = vunpack.c.l.b16 %v3267
        %v3556 = vunpack.c.l.b16 %v3268
        %v3557 = vunpack.c.l.b16 %v3269
        %v3558 = vunpack.c.l.b16 %v3270
        %v3559 = vunpack.c.l.b16 %v3271
        %v3560 = vunpack.c.l.b16 %v3272
        %v3561 = vunpack.c.l.b16 %v3273
        %v3562 = vunpack.c.l.b16 %v3274
        %v3563 = vunpack.c.l.b16 %v3275
        %v3564 = vunpack.c.l.b16 %v3276
        %v3565 = vunpack.c.l.b16 %v3277
        %v3566 = vunpack.c.l.b16 %v3278
        %v3567 = vunpack.c.l.b16 %v3279
        %v3568 = vunpack.c.l.b16 %v3280
        %v3569 = vunpack.c.l.b16 %v3281
        %v3570 = vunpack.c.l.b16 %v3282
        %v3571 = vunpack.c.l.b16 %v3283
        %v3572 = vunpack.c.l.b16 %v3284
        %v3573 = vunpack.c.l.b16 %v3285
        %v3574 = vunpack.c.l.b16 %v3286
        %v3575 = vunpack.c.l.b16 %v3287
        %v3576 = vunpack.c.l.b16 %v3288
        %v3577 = vunpack.c.l.b16 %v3289
        %v3578 = vunpack.c.l.b16 %v3290
        %v3579 = vunpack.c.l.b16 %v3291
        %v3580 = vunpack.c.l.b16 %v3292
        %v3581 = vunpack.c.l.b16 %v3293
        %v3582 = vunpack.c.l.b16 %v3294
        %v3583 = vunpack.c.l.b16 %v3295
        %v3584 = vunpack.c.l.b16 %v3296
        %v3585 = vunpack.c.l.b16 %v3297
        %v3586 = vunpack.c.l.b16 %v3298
        %v3587 = vunpack.c.l.b16 %v3299
        %v3588 = vunpack.c.l.b16 %v3300
        %v3589 = vunpack.c.l.b16 %v3301
        %v3590 = vunpack.c.l.b16 %v3302
        %v3591 = vunpack.c.l.b16 %v3303
        %v3592 = vunpack.c.l.b16 %v3304
        %v3593 = vunpack.c.l.b16 %v3305
        %v3594 = vunpack.c.l.b16 %v3306
        %v3595 = vunpack.c.l.b16 %v3307
        %v3596 = vunpack.c.l.b16 %v3308
        %v3597 = vunpack.c.l.b16 %v3309
        %v3598 = vunpack.c.l.b16 %v3310
        %v3599 = vunpack.c.l.b16 %v3311
        %v3600 = vunpack.c.l.b16 %v3312
        %v3601 = vunpack.c.l.b16 %v3313
        %v3602 = vunpack.c.l.b16 %v3314
        %v3603 = vunpack.c.l.b16 %v3315
        %v3604 = vunpack.c.l.b16 %v3316
        %v3605 = vunpack.c.l.b16 %v3317
        %v3606 = vunpack.c.l.b16 %v3318
        %v3607 = vunpack.c.l.b16 %v3319
        %v3608 = vunpack.c.l.b16 %v3320
        %v3609 = vunpack.c.l.b16 %v3321
        %v3610 = vunpack.c.l.b16 %v3322
        %v3611 = vunpack.c.l.b16 %v3323
        %v3612 = vunpack.c.l.b16 %v3324
        %v3613 = vunpack.c.l.b16 %v3325
        %v3614 = vunpack.c.l.b16 %v3326
        %v3615 = vunpack.c.l.b16 %v3327
        %v3616 = vpack.c.b16 %v3473, %v3472
        %v3617 = vpack.c.b16 %v3475, %v3474
        %v3618 = vpack.c.b16 %v3477, %v3476
        %v3619 = vpack.c.b16 %v3479, %v3478
        %v3620 = vpack.c.b16 %v3481, %v3480
        %v3621 = vpack.c.b16 %v3483, %v3482
        %v3622 = vpack.c.b16 %v3485, %v3484
        %v3623 = vpack.c.b16 %v3487, %v3486
        %v3624 = vpack.c.b16 %v3489, %v3488
        %v3625 = vpack.c.b16 %v3491, %v3490
        %v3626 = vpack.c.b16 %v3493, %v3492
        %v3627 = vpack.c.b16 %v3495, %v3494
        %v3628 = vpack.c.b16 %v3497, %v3496
        %v3629 = vpack.c.b16 %v3499, %v3498
        %v3630 = vpack.c.b16 %v3501, %v3500
        %v3631 = vpack.c.b16 %v3503, %v3502
        %v3632 = vpack.c.b16 %v3505, %v3504
        %v3633 = vpack.c.b16 %v3507, %v3506
        %v3634 = vpack.c.b16 %v3509, %v3508
        %v3635 = vpack.c.b16 %v3511, %v3510
        %v3636 = vpack.c.b16 %v3513, %v3512
        %v3637 = vpack.c.b16 %v3515, %v3514
        %v3638 = vpack.c.b16 %v3517, %v3516
        %v3639 = vpack.c.b16 %v3519, %v3518
        %v3640 = vpack.c.b16 %v3521, %v3520
        %v3641 = vpack.c.b16 %v3523, %v3522
        %v3642 = vpack.c.b16 %v3525, %v3524
        %v3643 = vpack.c.b16 %v3527, %v3526
        %v3644 = vpack.c.b16 %v3529, %v3528
        %v3645 = vpack.c.b16 %v3531, %v3530
        %v3646 = vpack.c.b16 %v3533, %v3532
        %v3647 = vpack.c.b16 %v3535, %v3534
        %v3648 = vpack.c.b16 %v3537, %v3536
        %v3649 = vpack.c.b16 %v3539, %v3538
        %v3650 = vpack.c.b16 %v3541, %v3540
        %v3651 = vpack.c.b16 %v3543, %v3542
        %v3652 = vpack.c.b16 %v3545, %v3544
        %v3653 = vpack.c.b16 %v3547, %v3546
        %v3654 = vpack.c.b16 %v3549, %v3548
        %v3655 = vpack.c.b16 %v3551, %v3550
        %v3656 = vpack.c.b16 %v3553, %v3552
        %v3657 = vpack.c.b16 %v3555, %v3554
        %v3658 = vpack.c.b16 %v3557, %v3556
        %v3659 = vpack.c.b16 %v3559, %v3558
        %v3660 = vpack.c.b16 %v3561, %v3560
        %v3661 = vpack.c.b16 %v3563, %v3562
        %v3662 = vpack.c.b16 %v3565, %v3564
        %v3663 = vpack.c.b16 %v3567, %v3566
        %v3664 = vpack.c.b16 %v3569, %v3568
        %v3665 = vpack.c.b16 %v3571, %v3570
        %v3666 = vpack.c.b16 %v3573, %v3572
        %v3667 = vpack.c.b16 %v3575, %v3574
        %v3668 = vpack.c.b16 %v3577, %v3576
        %v3669 = vpack.c.b16 %v3579, %v3578
        %v3670 = vpack.c.b16 %v3581, %v3580
        %v3671 = vpack.c.b16 %v3583, %v3582
        %v3672 = vpack.c.b16 %v3585, %v3584
        %v3673 = vpack.c.b16 %v3587, %v3586
        %v3674 = vpack.c.b16 %v3589, %v3588
        %v3675 = vpack.c.b16 %v3591, %v3590
        %v3676 = vpack.c.b16 %v3593, %v3592
        %v3677 = vpack.c.b16 %v3595, %v3594
        %v3678 = vpack.c.b16 %v3597, %v3596
        %v3679 = vpack.c.b16 %v3599, %v3598
        %v3680 = vpack.c.b16 %v3601, %v3600
        %v3681 = vpack.c.b16 %v3603, %v3602
        %v3682 = vpack.c.b16 %v3605, %v3604
        %v3683 = vpack.c.b16 %v3607, %v3606
        %v3684 = vpack.c.b16 %v3609, %v3608
        %v3685 = vpack.c.b16 %v3611, %v3610
        %v3686 = vpack.c.b16 %v3613, %v3612
        %v3687 = vpack.c.b16 %v3615, %v3614
        %3760 = vmatprep.subr.bf16.mxu0 0
        %3761 = vmatpush1.bf16.msra.mxu0 %v3616
        %3762 = vmatprep.subr.bf16.mxu0 0
        %3763 = vmatpush1.bf16.msra.mxu0 %v3617
        %3764 = vmatprep.subr.bf16.mxu0 0
        %3765 = vmatpush1.bf16.msra.mxu0 %v3618
        %3766 = vmatprep.subr.bf16.mxu0 0
        %3767 = vmatpush1.bf16.msra.mxu0 %v3619
        %3768 = vmatprep.subr.bf16.mxu0 0
        %3769 = vmatpush1.bf16.msra.mxu0 %v3620
        %3770 = vmatprep.subr.bf16.mxu0 0
        %3771 = vmatpush1.bf16.msra.mxu0 %v3621
        %3772 = vmatprep.subr.bf16.mxu0 0
        %3773 = vmatpush1.bf16.msra.mxu0 %v3622
        %3774 = vmatprep.subr.bf16.mxu0 0
        %3775 = vmatpush1.bf16.msra.mxu0 %v3623
        %3776 = vmatprep.subr.bf16.mxu0 0
        %3777 = vmatpush1.bf16.msra.mxu0 %v3624
        %3778 = vmatprep.subr.bf16.mxu0 0
        %3779 = vmatpush1.bf16.msra.mxu0 %v3625
        %3780 = vmatprep.subr.bf16.mxu0 0
        %3781 = vmatpush1.bf16.msra.mxu0 %v3626
        %3782 = vmatprep.subr.bf16.mxu0 0
        %3783 = vmatpush1.bf16.msra.mxu0 %v3627
        %3784 = vmatprep.subr.bf16.mxu0 0
        %3785 = vmatpush1.bf16.msra.mxu0 %v3628
        %3786 = vmatprep.subr.bf16.mxu0 0
        %3787 = vmatpush1.bf16.msra.mxu0 %v3629
        %3788 = vmatprep.subr.bf16.mxu0 0
        %3789 = vmatpush1.bf16.msra.mxu0 %v3630
        %3790 = vmatprep.subr.bf16.mxu0 0
        %3791 = vmatpush1.bf16.msra.mxu0 %v3631
        %3792 = vmatprep.mubr.bf16.mxu0 %v2640
        %3793 = vmatmul.mubr.bf16.gmra.mrb[0].mxu0 %v2544
        %v3794 = vpop.f32.mrb[0].mxu0
        %v3795 = vadd.f32 0.0, %v3794
        %v3796 = vpop.f32.mrb[0].mxu0
        %v3797 = vpop.f32.mrb[0].mxu0
        %v3798 = vadd.f32 0.0, %v3797
        %v3799 = vpop.f32.mrb[0].mxu0
        %3800 = vmatprep.mubr.bf16.mxu0 %v2641
        %3801 = vmatmul.mubr.bf16.gmra.mrb[0].mxu0 %v2545
        %v3802 = vpop.f32.mrb[0].mxu0
        %v3803 = vadd.f32 0.0, %v3802
        %v3804 = vpop.f32.mrb[0].mxu0
        %v3805 = vpop.f32.mrb[0].mxu0
        %v3806 = vadd.f32 0.0, %v3805
        %v3807 = vpop.f32.mrb[0].mxu0
        %3808 = vmatprep.mubr.bf16.mxu0 %v2642
        %3809 = vmatmul.mubr.bf16.gmra.mrb[0].mxu0 %v2546
        %v3810 = vpop.f32.mrb[0].mxu0
        %v3811 = vadd.f32 0.0, %v3810
        %v3812 = vpop.f32.mrb[0].mxu0
        %v3813 = vpop.f32.mrb[0].mxu0
        %v3814 = vadd.f32 0.0, %v3813
        %v3815 = vpop.f32.mrb[0].mxu0
        %3816 = vmatprep.mubr.bf16.mxu0 %v2643
        %3817 = vmatmul.mubr.bf16.gmra.mrb[0].mxu0 %v2547
        %v3818 = vpop.f32.mrb[0].mxu0
        %v3819 = vadd.f32 0.0, %v3818
        %v3820 = vpop.f32.mrb[0].mxu0
        %v3821 = vpop.f32.mrb[0].mxu0
        %v3822 = vadd.f32 0.0, %v3821
        %v3823 = vpop.f32.mrb[0].mxu0
        %3824 = vmatprep.mubr.bf16.mxu0 %v2644
        %3825 = vmatmul.mubr.bf16.gmra.mrb[0].mxu0 %v2548
        %v3826 = vpop.f32.mrb[0].mxu0
        %v3827 = vadd.f32 0.0, %v3826
        %v3828 = vpop.f32.mrb[0].mxu0
        %v3829 = vpop.f32.mrb[0].mxu0
        %v3830 = vadd.f32 0.0, %v3829
        %v3831 = vpop.f32.mrb[0].mxu0
        %3832 = vmatprep.mubr.bf16.mxu0 %v2645
        %3833 = vmatmul.mubr.bf16.gmra.mrb[0].mxu0 %v2549
        %v3834 = vpop.f32.mrb[0].mxu0
        %v3835 = vadd.f32 0.0, %v3834
        %v3836 = vpop.f32.mrb[0].mxu0
        %v3837 = vpop.f32.mrb[0].mxu0
        %v3838 = vadd.f32 0.0, %v3837
        %v3839 = vpop.f32.mrb[0].mxu0
        %3840 = vmatprep.mubr.bf16.mxu0 %v2646
        %3841 = vmatmul.mubr.bf16.gmra.mrb[0].mxu0 %v2550
        %v3842 = vpop.f32.mrb[0].mxu0
        %v3843 = vadd.f32 0.0, %v3842
        %v3844 = vpop.f32.mrb[0].mxu0
        %v3845 = vpop.f32.mrb[0].mxu0
        %v3846 = vadd.f32 0.0, %v3845
        %v3847 = vpop.f32.mrb[0].mxu0
        %3848 = vmatprep.mubr.bf16.mxu0 %v2647
        %3849 = vmatmul.mubr.bf16.gmra.mrb[0].mxu0 %v2551
        %v3850 = vpop.f32.mrb[0].mxu0
        %v3851 = vadd.f32 0.0, %v3850
        %v3852 = vpop.f32.mrb[0].mxu0
        %v3853 = vpop.f32.mrb[0].mxu0
        %v3854 = vadd.f32 0.0, %v3853
        %v3855 = vpop.f32.mrb[0].mxu0
        %3856 = vmatprep.mubr.bf16.mxu0 %v2648
        %3857 = vmatmul.mubr.bf16.gmra.mrb[0].mxu0 %v2552
        %v3858 = vpop.f32.mrb[0].mxu0
        %v3859 = vadd.f32 0.0, %v3858
        %v3860 = vpop.f32.mrb[0].mxu0
        %v3861 = vpop.f32.mrb[0].mxu0
        %v3862 = vadd.f32 0.0, %v3861
        %v3863 = vpop.f32.mrb[0].mxu0
        %3864 = vmatprep.mubr.bf16.mxu0 %v2649
        %3865 = vmatmul.mubr.bf16.gmra.mrb[0].mxu0 %v2553
        %v3866 = vpop.f32.mrb[0].mxu0
        %v3867 = vadd.f32 0.0, %v3866
        %v3868 = vpop.f32.mrb[0].mxu0
        %v3869 = vpop.f32.mrb[0].mxu0
        %v3870 = vadd.f32 0.0, %v3869
        %v3871 = vpop.f32.mrb[0].mxu0
        %3872 = vmatprep.mubr.bf16.mxu0 %v2650
        %3873 = vmatmul.mubr.bf16.gmra.mrb[0].mxu0 %v2554
        %v3874 = vpop.f32.mrb[0].mxu0
        %v3875 = vadd.f32 0.0, %v3874
        %v3876 = vpop.f32.mrb[0].mxu0
        %v3877 = vpop.f32.mrb[0].mxu0
        %v3878 = vadd.f32 0.0, %v3877
        %v3879 = vpop.f32.mrb[0].mxu0
        %3880 = vmatprep.mubr.bf16.mxu0 %v2651
        %3881 = vmatmul.mubr.bf16.gmra.mrb[0].mxu0 %v2555
        %v3882 = vpop.f32.mrb[0].mxu0
        %v3883 = vadd.f32 0.0, %v3882
        %v3884 = vpop.f32.mrb[0].mxu0
        %v3885 = vpop.f32.mrb[0].mxu0
        %v3886 = vadd.f32 0.0, %v3885
        %v3887 = vpop.f32.mrb[0].mxu0
        %3888 = vmatprep.mubr.bf16.mxu0 %v2652
        %3889 = vmatmul.mubr.bf16.gmra.mrb[0].mxu0 %v2556
        %v3890 = vpop.f32.mrb[0].mxu0
        %v3891 = vadd.f32 0.0, %v3890
        %v3892 = vpop.f32.mrb[0].mxu0
        %v3893 = vpop.f32.mrb[0].mxu0
        %v3894 = vadd.f32 0.0, %v3893
        %v3895 = vpop.f32.mrb[0].mxu0
        %3896 = vmatprep.mubr.bf16.mxu0 %v2653
        %3897 = vmatmul.mubr.bf16.gmra.mrb[0].mxu0 %v2557
        %v3898 = vpop.f32.mrb[0].mxu0
        %v3899 = vadd.f32 0.0, %v3898
        %v3900 = vpop.f32.mrb[0].mxu0
        %v3901 = vpop.f32.mrb[0].mxu0
        %v3902 = vadd.f32 0.0, %v3901
        %v3903 = vpop.f32.mrb[0].mxu0
        %3904 = vmatprep.mubr.bf16.mxu0 %v2654
        %3905 = vmatmul.mubr.bf16.gmra.mrb[0].mxu0 %v2558
        %v3906 = vpop.f32.mrb[0].mxu0
        %v3907 = vadd.f32 0.0, %v3906
        %v3908 = vpop.f32.mrb[0].mxu0
        %v3909 = vpop.f32.mrb[0].mxu0
        %v3910 = vadd.f32 0.0, %v3909
        %v3911 = vpop.f32.mrb[0].mxu0
        %3912 = vmatprep.mubr.bf16.mxu0 %v2655
        %3913 = vmatmul.mubr.bf16.gmra.mrb[0].mxu0 %v2559
        %v3914 = vpop.f32.mrb[0].mxu0
        %v3915 = vadd.f32 0.0, %v3914
        %v3916 = vpop.f32.mrb[0].mxu0
        %v3917 = vpop.f32.mrb[0].mxu0
        %v3918 = vadd.f32 0.0, %v3917
        %v3919 = vpop.f32.mrb[0].mxu0
        %3920 = vdwg.mxu0
        %3921 = vmatprep.subr.bf16.mxu0 0
        %3922 = vmatpush1.bf16.msra.mxu0 %v3632
        %3923 = vmatprep.subr.bf16.mxu0 0
        %3924 = vmatpush1.bf16.msra.mxu0 %v3633
        %3925 = vmatprep.subr.bf16.mxu0 0
        %3926 = vmatpush1.bf16.msra.mxu0 %v3634
        %3927 = vmatprep.subr.bf16.mxu0 0
        %3928 = vmatpush1.bf16.msra.mxu0 %v3635
        %3929 = vmatprep.subr.bf16.mxu0 0
        %3930 = vmatpush1.bf16.msra.mxu0 %v3636
        %3931 = vmatprep.subr.bf16.mxu0 0
        %3932 = vmatpush1.bf16.msra.mxu0 %v3637
        %3933 = vmatprep.subr.bf16.mxu0 0
        %3934 = vmatpush1.bf16.msra.mxu0 %v3638
        %3935 = vmatprep.subr.bf16.mxu0 0
        %3936 = vmatpush1.bf16.msra.mxu0 %v3639
        %3937 = vmatprep.subr.bf16.mxu0 0
        %3938 = vmatpush1.bf16.msra.mxu0 %v3640
        %3939 = vmatprep.subr.bf16.mxu0 0
        %3940 = vmatpush1.bf16.msra.mxu0 %v3641
        %3941 = vmatprep.subr.bf16.mxu0 0
        %3942 = vmatpush1.bf16.msra.mxu0 %v3642
        %3943 = vmatprep.subr.bf16.mxu0 0
        %3944 = vmatpush1.bf16.msra.mxu0 %v3643
        %3945 = vmatprep.subr.bf16.mxu0 0
        %3946 = vmatpush1.bf16.msra.mxu0 %v3644
        %3947 = vmatprep.subr.bf16.mxu0 0
        %3948 = vmatpush1.bf16.msra.mxu0 %v3645
        %3949 = vmatprep.subr.bf16.mxu0 0
        %3950 = vmatpush1.bf16.msra.mxu0 %v3646
        %3951 = vmatprep.subr.bf16.mxu0 0
        %3952 = vmatpush1.bf16.msra.mxu0 %v3647
        %3953 = vmatprep.mubr.bf16.mxu0 %v2768
        %3954 = vmatmul.mubr.bf16.gmra.mrb[0].mxu0 %v2704
        %v3955 = vpop.f32.mrb[0].mxu0
        %v3956 = vadd.f32 %v3795, %v3955
        %v3957 = vpop.f32.mrb[0].mxu0
        %v3958 = vpop.f32.mrb[0].mxu0
        %v3959 = vadd.f32 %v3798, %v3958
        %v3960 = vpop.f32.mrb[0].mxu0
        %3961 = vmatprep.mubr.bf16.mxu0 %v2769
        %3962 = vmatmul.mubr.bf16.gmra.mrb[0].mxu0 %v2705
        %v3963 = vpop.f32.mrb[0].mxu0
        %v3964 = vadd.f32 %v3803, %v3963
        %v3965 = vpop.f32.mrb[0].mxu0
        %v3966 = vpop.f32.mrb[0].mxu0
        %v3967 = vadd.f32 %v3806, %v3966
        %v3968 = vpop.f32.mrb[0].mxu0
        %3969 = vmatprep.mubr.bf16.mxu0 %v2770
        %3970 = vmatmul.mubr.bf16.gmra.mrb[0].mxu0 %v2706
        %v3971 = vpop.f32.mrb[0].mxu0
        %v3972 = vadd.f32 %v3811, %v3971
        %v3973 = vpop.f32.mrb[0].mxu0
        %v3974 = vpop.f32.mrb[0].mxu0
        %v3975 = vadd.f32 %v3814, %v3974
        %v3976 = vpop.f32.mrb[0].mxu0
        %3977 = vmatprep.mubr.bf16.mxu0 %v2771
        %3978 = vmatmul.mubr.bf16.gmra.mrb[0].mxu0 %v2707
        %v3979 = vpop.f32.mrb[0].mxu0
        %v3980 = vadd.f32 %v3819, %v3979
        %v3981 = vpop.f32.mrb[0].mxu0
        %v3982 = vpop.f32.mrb[0].mxu0
        %v3983 = vadd.f32 %v3822, %v3982
        %v3984 = vpop.f32.mrb[0].mxu0
        %3985 = vmatprep.mubr.bf16.mxu0 %v2772
        %3986 = vmatmul.mubr.bf16.gmra.mrb[0].mxu0 %v2708
        %v3987 = vpop.f32.mrb[0].mxu0
        %v3988 = vadd.f32 %v3827, %v3987
        %v3989 = vpop.f32.mrb[0].mxu0
        %v3990 = vpop.f32.mrb[0].mxu0
        %v3991 = vadd.f32 %v3830, %v3990
        %v3992 = vpop.f32.mrb[0].mxu0
        %3993 = vmatprep.mubr.bf16.mxu0 %v2773
        %3994 = vmatmul.mubr.bf16.gmra.mrb[0].mxu0 %v2709
        %v3995 = vpop.f32.mrb[0].mxu0
        %v3996 = vadd.f32 %v3835, %v3995
        %v3997 = vpop.f32.mrb[0].mxu0
        %v3998 = vpop.f32.mrb[0].mxu0
        %v3999 = vadd.f32 %v3838, %v3998
        %v4000 = vpop.f32.mrb[0].mxu0
        %4001 = vmatprep.mubr.bf16.mxu0 %v2774
        %4002 = vmatmul.mubr.bf16.gmra.mrb[0].mxu0 %v2710
        %v4003 = vpop.f32.mrb[0].mxu0
        %v4004 = vadd.f32 %v3843, %v4003
        %v4005 = vpop.f32.mrb[0].mxu0
        %v4006 = vpop.f32.mrb[0].mxu0
        %v4007 = vadd.f32 %v3846, %v4006
        %v4008 = vpop.f32.mrb[0].mxu0
        %4009 = vmatprep.mubr.bf16.mxu0 %v2775
        %4010 = vmatmul.mubr.bf16.gmra.mrb[0].mxu0 %v2711
        %v4011 = vpop.f32.mrb[0].mxu0
        %v4012 = vadd.f32 %v3851, %v4011
        %v4013 = vpop.f32.mrb[0].mxu0
        %v4014 = vpop.f32.mrb[0].mxu0
        %v4015 = vadd.f32 %v3854, %v4014
        %v4016 = vpop.f32.mrb[0].mxu0
        %4017 = vmatprep.mubr.bf16.mxu0 %v2776
        %4018 = vmatmul.mubr.bf16.gmra.mrb[0].mxu0 %v2712
        %v4019 = vpop.f32.mrb[0].mxu0
        %v4020 = vadd.f32 %v3859, %v4019
        %v4021 = vpop.f32.mrb[0].mxu0
        %v4022 = vpop.f32.mrb[0].mxu0
        %v4023 = vadd.f32 %v3862, %v4022
        %v4024 = vpop.f32.mrb[0].mxu0
        %4025 = vmatprep.mubr.bf16.mxu0 %v2777
        %4026 = vmatmul.mubr.bf16.gmra.mrb[0].mxu0 %v2713
        %v4027 = vpop.f32.mrb[0].mxu0
        %v4028 = vadd.f32 %v3867, %v4027
        %v4029 = vpop.f32.mrb[0].mxu0
        %v4030 = vpop.f32.mrb[0].mxu0
        %v4031 = vadd.f32 %v3870, %v4030
        %v4032 = vpop.f32.mrb[0].mxu0
        %4033 = vmatprep.mubr.bf16.mxu0 %v2778
        %4034 = vmatmul.mubr.bf16.gmra.mrb[0].mxu0 %v2714
        %v4035 = vpop.f32.mrb[0].mxu0
        %v4036 = vadd.f32 %v3875, %v4035
        %v4037 = vpop.f32.mrb[0].mxu0
        %v4038 = vpop.f32.mrb[0].mxu0
        %v4039 = vadd.f32 %v3878, %v4038
        %v4040 = vpop.f32.mrb[0].mxu0
        %4041 = vmatprep.mubr.bf16.mxu0 %v2779
        %4042 = vmatmul.mubr.bf16.gmra.mrb[0].mxu0 %v2715
        %v4043 = vpop.f32.mrb[0].mxu0
        %v4044 = vadd.f32 %v3883, %v4043
        %v4045 = vpop.f32.mrb[0].mxu0
        %v4046 = vpop.f32.mrb[0].mxu0
        %v4047 = vadd.f32 %v3886, %v4046
        %v4048 = vpop.f32.mrb[0].mxu0
        %4049 = vmatprep.mubr.bf16.mxu0 %v2780
        %4050 = vmatmul.mubr.bf16.gmra.mrb[0].mxu0 %v2716
        %v4051 = vpop.f32.mrb[0].mxu0
        %v4052 = vadd.f32 %v3891, %v4051
        %v4053 = vpop.f32.mrb[0].mxu0
        %v4054 = vpop.f32.mrb[0].mxu0
        %v4055 = vadd.f32 %v3894, %v4054
        %v4056 = vpop.f32.mrb[0].mxu0
        %4057 = vmatprep.mubr.bf16.mxu0 %v2781
        %4058 = vmatmul.mubr.bf16.gmra.mrb[0].mxu0 %v2717
        %v4059 = vpop.f32.mrb[0].mxu0
        %v4060 = vadd.f32 %v3899, %v4059
        %v4061 = vpop.f32.mrb[0].mxu0
        %v4062 = vpop.f32.mrb[0].mxu0
        %v4063 = vadd.f32 %v3902, %v4062
        %v4064 = vpop.f32.mrb[0].mxu0
        %4065 = vmatprep.mubr.bf16.mxu0 %v2782
        %4066 = vmatmul.mubr.bf16.gmra.mrb[0].mxu0 %v2718
        %v4067 = vpop.f32.mrb[0].mxu0
        %v4068 = vadd.f32 %v3907, %v4067
        %v4069 = vpop.f32.mrb[0].mxu0
        %v4070 = vpop.f32.mrb[0].mxu0
        %v4071 = vadd.f32 %v3910, %v4070
        %v4072 = vpop.f32.mrb[0].mxu0
        %4073 = vmatprep.mubr.bf16.mxu0 %v2783
        %4074 = vmatmul.mubr.bf16.gmra.mrb[0].mxu0 %v2719
        %v4075 = vpop.f32.mrb[0].mxu0
        %v4076 = vadd.f32 %v3915, %v4075
        %v4077 = vpop.f32.mrb[0].mxu0
        %v4078 = vpop.f32.mrb[0].mxu0
        %v4079 = vadd.f32 %v3918, %v4078
        %v4080 = vpop.f32.mrb[0].mxu0
        %4081 = vdwg.mxu0
        %4082 = vmatprep.subr.bf16.mxu0 0
        %4083 = vmatpush1.bf16.msra.mxu0 %v3648
        %4084 = vmatprep.subr.bf16.mxu0 0
        %4085 = vmatpush1.bf16.msra.mxu0 %v3649
        %4086 = vmatprep.subr.bf16.mxu0 0
        %4087 = vmatpush1.bf16.msra.mxu0 %v3650
        %4088 = vmatprep.subr.bf16.mxu0 0
        %4089 = vmatpush1.bf16.msra.mxu0 %v3651
        %4090 = vmatprep.subr.bf16.mxu0 0
        %4091 = vmatpush1.bf16.msra.mxu0 %v3652
        %4092 = vmatprep.subr.bf16.mxu0 0
        %4093 = vmatpush1.bf16.msra.mxu0 %v3653
        %4094 = vmatprep.subr.bf16.mxu0 0
        %4095 = vmatpush1.bf16.msra.mxu0 %v3654
        %4096 = vmatprep.subr.bf16.mxu0 0
        %4097 = vmatpush1.bf16.msra.mxu0 %v3655
        %4098 = vmatprep.subr.bf16.mxu0 0
        %4099 = vmatpush1.bf16.msra.mxu0 %v3656
        %4100 = vmatprep.subr.bf16.mxu0 0
        %4101 = vmatpush1.bf16.msra.mxu0 %v3657
        %4102 = vmatprep.subr.bf16.mxu0 0
        %4103 = vmatpush1.bf16.msra.mxu0 %v3658
        %4104 = vmatprep.subr.bf16.mxu0 0
        %4105 = vmatpush1.bf16.msra.mxu0 %v3659
        %4106 = vmatprep.subr.bf16.mxu0 0
        %4107 = vmatpush1.bf16.msra.mxu0 %v3660
        %4108 = vmatprep.subr.bf16.mxu0 0
        %4109 = vmatpush1.bf16.msra.mxu0 %v3661
        %4110 = vmatprep.subr.bf16.mxu0 0
        %4111 = vmatpush1.bf16.msra.mxu0 %v3662
        %4112 = vmatprep.subr.bf16.mxu0 0
        %4113 = vmatpush1.bf16.msra.mxu0 %v3663
        %4114 = vmatprep.mubr.bf16.mxu0 %v2928
        %4115 = vmatmul.mubr.bf16.gmra.mrb[0].mxu0 %v2864
        %v4116 = vpop.f32.mrb[0].mxu0
        %v4117 = vadd.f32 %v3956, %v4116
        %v4118 = vpop.f32.mrb[0].mxu0
        %v4119 = vpop.f32.mrb[0].mxu0
        %v4120 = vadd.f32 %v3959, %v4119
        %v4121 = vpop.f32.mrb[0].mxu0
        %4122 = vmatprep.mubr.bf16.mxu0 %v2929
        %4123 = vmatmul.mubr.bf16.gmra.mrb[0].mxu0 %v2865
        %v4124 = vpop.f32.mrb[0].mxu0
        %v4125 = vadd.f32 %v3964, %v4124
        %v4126 = vpop.f32.mrb[0].mxu0
        %v4127 = vpop.f32.mrb[0].mxu0
        %v4128 = vadd.f32 %v3967, %v4127
        %v4129 = vpop.f32.mrb[0].mxu0
        %4130 = vmatprep.mubr.bf16.mxu0 %v2930
        %4131 = vmatmul.mubr.bf16.gmra.mrb[0].mxu0 %v2866
        %v4132 = vpop.f32.mrb[0].mxu0
        %v4133 = vadd.f32 %v3972, %v4132
        %v4134 = vpop.f32.mrb[0].mxu0
        %v4135 = vpop.f32.mrb[0].mxu0
        %v4136 = vadd.f32 %v3975, %v4135
        %v4137 = vpop.f32.mrb[0].mxu0
        %4138 = vmatprep.mubr.bf16.mxu0 %v2931
        %4139 = vmatmul.mubr.bf16.gmra.mrb[0].mxu0 %v2867
        %v4140 = vpop.f32.mrb[0].mxu0
        %v4141 = vadd.f32 %v3980, %v4140
        %v4142 = vpop.f32.mrb[0].mxu0
        %v4143 = vpop.f32.mrb[0].mxu0
        %v4144 = vadd.f32 %v3983, %v4143
        %v4145 = vpop.f32.mrb[0].mxu0
        %4146 = vmatprep.mubr.bf16.mxu0 %v2932
        %4147 = vmatmul.mubr.bf16.gmra.mrb[0].mxu0 %v2868
        %v4148 = vpop.f32.mrb[0].mxu0
        %v4149 = vadd.f32 %v3988, %v4148
        %v4150 = vpop.f32.mrb[0].mxu0
        %v4151 = vpop.f32.mrb[0].mxu0
        %v4152 = vadd.f32 %v3991, %v4151
        %v4153 = vpop.f32.mrb[0].mxu0
        %4154 = vmatprep.mubr.bf16.mxu0 %v2933
        %4155 = vmatmul.mubr.bf16.gmra.mrb[0].mxu0 %v2869
        %v4156 = vpop.f32.mrb[0].mxu0
        %v4157 = vadd.f32 %v3996, %v4156
        %v4158 = vpop.f32.mrb[0].mxu0
        %v4159 = vpop.f32.mrb[0].mxu0
        %v4160 = vadd.f32 %v3999, %v4159
        %v4161 = vpop.f32.mrb[0].mxu0
        %4162 = vmatprep.mubr.bf16.mxu0 %v2934
        %4163 = vmatmul.mubr.bf16.gmra.mrb[0].mxu0 %v2870
        %v4164 = vpop.f32.mrb[0].mxu0
        %v4165 = vadd.f32 %v4004, %v4164
        %v4166 = vpop.f32.mrb[0].mxu0
        %v4167 = vpop.f32.mrb[0].mxu0
        %v4168 = vadd.f32 %v4007, %v4167
        %v4169 = vpop.f32.mrb[0].mxu0
        %4170 = vmatprep.mubr.bf16.mxu0 %v2935
        %4171 = vmatmul.mubr.bf16.gmra.mrb[0].mxu0 %v2871
        %v4172 = vpop.f32.mrb[0].mxu0
        %v4173 = vadd.f32 %v4012, %v4172
        %v4174 = vpop.f32.mrb[0].mxu0
        %v4175 = vpop.f32.mrb[0].mxu0
        %v4176 = vadd.f32 %v4015, %v4175
        %v4177 = vpop.f32.mrb[0].mxu0
        %4178 = vmatprep.mubr.bf16.mxu0 %v2936
        %4179 = vmatmul.mubr.bf16.gmra.mrb[0].mxu0 %v2872
        %v4180 = vpop.f32.mrb[0].mxu0
        %v4181 = vadd.f32 %v4020, %v4180
        %v4182 = vpop.f32.mrb[0].mxu0
        %v4183 = vpop.f32.mrb[0].mxu0
        %v4184 = vadd.f32 %v4023, %v4183
        %v4185 = vpop.f32.mrb[0].mxu0
        %4186 = vmatprep.mubr.bf16.mxu0 %v2937
        %4187 = vmatmul.mubr.bf16.gmra.mrb[0].mxu0 %v2873
        %v4188 = vpop.f32.mrb[0].mxu0
        %v4189 = vadd.f32 %v4028, %v4188
        %v4190 = vpop.f32.mrb[0].mxu0
        %v4191 = vpop.f32.mrb[0].mxu0
        %v4192 = vadd.f32 %v4031, %v4191
        %v4193 = vpop.f32.mrb[0].mxu0
        %4194 = vmatprep.mubr.bf16.mxu0 %v2938
        %4195 = vmatmul.mubr.bf16.gmra.mrb[0].mxu0 %v2874
        %v4196 = vpop.f32.mrb[0].mxu0
        %v4197 = vadd.f32 %v4036, %v4196
        %v4198 = vpop.f32.mrb[0].mxu0
        %v4199 = vpop.f32.mrb[0].mxu0
        %v4200 = vadd.f32 %v4039, %v4199
        %v4201 = vpop.f32.mrb[0].mxu0
        %4202 = vmatprep.mubr.bf16.mxu0 %v2939
        %4203 = vmatmul.mubr.bf16.gmra.mrb[0].mxu0 %v2875
        %v4204 = vpop.f32.mrb[0].mxu0
        %v4205 = vadd.f32 %v4044, %v4204
        %v4206 = vpop.f32.mrb[0].mxu0
        %v4207 = vpop.f32.mrb[0].mxu0
        %v4208 = vadd.f32 %v4047, %v4207
        %v4209 = vpop.f32.mrb[0].mxu0
        %4210 = vmatprep.mubr.bf16.mxu0 %v2940
        %4211 = vmatmul.mubr.bf16.gmra.mrb[0].mxu0 %v2876
        %v4212 = vpop.f32.mrb[0].mxu0
        %v4213 = vadd.f32 %v4052, %v4212
        %v4214 = vpop.f32.mrb[0].mxu0
        %v4215 = vpop.f32.mrb[0].mxu0
        %v4216 = vadd.f32 %v4055, %v4215
        %v4217 = vpop.f32.mrb[0].mxu0
        %4218 = vmatprep.mubr.bf16.mxu0 %v2941
        %4219 = vmatmul.mubr.bf16.gmra.mrb[0].mxu0 %v2877
        %v4220 = vpop.f32.mrb[0].mxu0
        %v4221 = vadd.f32 %v4060, %v4220
        %v4222 = vpop.f32.mrb[0].mxu0
        %v4223 = vpop.f32.mrb[0].mxu0
        %v4224 = vadd.f32 %v4063, %v4223
        %v4225 = vpop.f32.mrb[0].mxu0
        %4226 = vmatprep.mubr.bf16.mxu0 %v2942
        %4227 = vmatmul.mubr.bf16.gmra.mrb[0].mxu0 %v2878
        %v4228 = vpop.f32.mrb[0].mxu0
        %v4229 = vadd.f32 %v4068, %v4228
        %v4230 = vpop.f32.mrb[0].mxu0
        %v4231 = vpop.f32.mrb[0].mxu0
        %v4232 = vadd.f32 %v4071, %v4231
        %v4233 = vpop.f32.mrb[0].mxu0
        %4234 = vmatprep.mubr.bf16.mxu0 %v2943
        %4235 = vmatmul.mubr.bf16.gmra.mrb[0].mxu0 %v2879
        %v4236 = vpop.f32.mrb[0].mxu0
        %v4237 = vadd.f32 %v4076, %v4236
        %v4238 = vpop.f32.mrb[0].mxu0
        %v4239 = vpop.f32.mrb[0].mxu0
        %v4240 = vadd.f32 %v4079, %v4239
        %v4241 = vpop.f32.mrb[0].mxu0
        %4242 = vdwg.mxu0
        %4243 = vmatprep.subr.bf16.mxu0 0
        %4244 = vmatpush1.bf16.msra.mxu0 %v3664
        %4245 = vmatprep.subr.bf16.mxu0 0
        %4246 = vmatpush1.bf16.msra.mxu0 %v3665
        %4247 = vmatprep.subr.bf16.mxu0 0
        %4248 = vmatpush1.bf16.msra.mxu0 %v3666
        %4249 = vmatprep.subr.bf16.mxu0 0
        %4250 = vmatpush1.bf16.msra.mxu0 %v3667
        %4251 = vmatprep.subr.bf16.mxu0 0
        %4252 = vmatpush1.bf16.msra.mxu0 %v3668
        %4253 = vmatprep.subr.bf16.mxu0 0
        %4254 = vmatpush1.bf16.msra.mxu0 %v3669
        %4255 = vmatprep.subr.bf16.mxu0 0
        %4256 = vmatpush1.bf16.msra.mxu0 %v3670
        %4257 = vmatprep.subr.bf16.mxu0 0
        %4258 = vmatpush1.bf16.msra.mxu0 %v3671
        %4259 = vmatprep.subr.bf16.mxu0 0
        %4260 = vmatpush1.bf16.msra.mxu0 %v3672
        %4261 = vmatprep.subr.bf16.mxu0 0
        %4262 = vmatpush1.bf16.msra.mxu0 %v3673
        %4263 = vmatprep.subr.bf16.mxu0 0
        %4264 = vmatpush1.bf16.msra.mxu0 %v3674
        %4265 = vmatprep.subr.bf16.mxu0 0
        %4266 = vmatpush1.bf16.msra.mxu0 %v3675
        %4267 = vmatprep.subr.bf16.mxu0 0
        %4268 = vmatpush1.bf16.msra.mxu0 %v3676
        %4269 = vmatprep.subr.bf16.mxu0 0
        %4270 = vmatpush1.bf16.msra.mxu0 %v3677
        %4271 = vmatprep.subr.bf16.mxu0 0
        %4272 = vmatpush1.bf16.msra.mxu0 %v3678
        %4273 = vmatprep.subr.bf16.mxu0 0
        %4274 = vmatpush1.bf16.msra.mxu0 %v3679
        %4275 = vmatprep.mubr.bf16.mxu0 %v3088
        %4276 = vmatmul.mubr.bf16.gmra.mrb[0].mxu0 %v2992
        %v4277 = vpop.f32.mrb[0].mxu0
        %v4278 = vadd.f32 %v4117, %v4277
        %v4279 = vpop.f32.mrb[0].mxu0
        %v4280 = vpop.f32.mrb[0].mxu0
        %v4281 = vadd.f32 %v4120, %v4280
        %v4282 = vpop.f32.mrb[0].mxu0
        %4283 = vmatprep.mubr.bf16.mxu0 %v3089
        %4284 = vmatmul.mubr.bf16.gmra.mrb[0].mxu0 %v2993
        %v4285 = vpop.f32.mrb[0].mxu0
        %v4286 = vadd.f32 %v4125, %v4285
        %v4287 = vpop.f32.mrb[0].mxu0
        %v4288 = vpop.f32.mrb[0].mxu0
        %v4289 = vadd.f32 %v4128, %v4288
        %v4290 = vpop.f32.mrb[0].mxu0
        %4291 = vmatprep.mubr.bf16.mxu0 %v3090
        %4292 = vmatmul.mubr.bf16.gmra.mrb[0].mxu0 %v2994
        %v4293 = vpop.f32.mrb[0].mxu0
        %v4294 = vadd.f32 %v4133, %v4293
        %v4295 = vpop.f32.mrb[0].mxu0
        %v4296 = vpop.f32.mrb[0].mxu0
        %v4297 = vadd.f32 %v4136, %v4296
        %v4298 = vpop.f32.mrb[0].mxu0
        %4299 = vmatprep.mubr.bf16.mxu0 %v3091
        %4300 = vmatmul.mubr.bf16.gmra.mrb[0].mxu0 %v2995
        %v4301 = vpop.f32.mrb[0].mxu0
        %v4302 = vadd.f32 %v4141, %v4301
        %v4303 = vpop.f32.mrb[0].mxu0
        %v4304 = vpop.f32.mrb[0].mxu0
        %v4305 = vadd.f32 %v4144, %v4304
        %v4306 = vpop.f32.mrb[0].mxu0
        %4307 = vmatprep.mubr.bf16.mxu0 %v3092
        %4308 = vmatmul.mubr.bf16.gmra.mrb[0].mxu0 %v2996
        %v4309 = vpop.f32.mrb[0].mxu0
        %v4310 = vadd.f32 %v4149, %v4309
        %v4311 = vpop.f32.mrb[0].mxu0
        %v4312 = vpop.f32.mrb[0].mxu0
        %v4313 = vadd.f32 %v4152, %v4312
        %v4314 = vpop.f32.mrb[0].mxu0
        %4315 = vmatprep.mubr.bf16.mxu0 %v3093
        %4316 = vmatmul.mubr.bf16.gmra.mrb[0].mxu0 %v2997
        %v4317 = vpop.f32.mrb[0].mxu0
        %v4318 = vadd.f32 %v4157, %v4317
        %v4319 = vpop.f32.mrb[0].mxu0
        %v4320 = vpop.f32.mrb[0].mxu0
        %v4321 = vadd.f32 %v4160, %v4320
        %v4322 = vpop.f32.mrb[0].mxu0
        %4323 = vmatprep.mubr.bf16.mxu0 %v3094
        %4324 = vmatmul.mubr.bf16.gmra.mrb[0].mxu0 %v2998
        %v4325 = vpop.f32.mrb[0].mxu0
        %v4326 = vadd.f32 %v4165, %v4325
        %v4327 = vpop.f32.mrb[0].mxu0
        %v4328 = vpop.f32.mrb[0].mxu0
        %v4329 = vadd.f32 %v4168, %v4328
        %v4330 = vpop.f32.mrb[0].mxu0
        %4331 = vmatprep.mubr.bf16.mxu0 %v3095
        %4332 = vmatmul.mubr.bf16.gmra.mrb[0].mxu0 %v2999
        %v4333 = vpop.f32.mrb[0].mxu0
        %v4334 = vadd.f32 %v4173, %v4333
        %v4335 = vpop.f32.mrb[0].mxu0
        %v4336 = vpop.f32.mrb[0].mxu0
        %v4337 = vadd.f32 %v4176, %v4336
        %v4338 = vpop.f32.mrb[0].mxu0
        %4339 = vmatprep.mubr.bf16.mxu0 %v3096
        %4340 = vmatmul.mubr.bf16.gmra.mrb[0].mxu0 %v3000
        %v4341 = vpop.f32.mrb[0].mxu0
        %v4342 = vadd.f32 %v4181, %v4341
        %v4343 = vpop.f32.mrb[0].mxu0
        %v4344 = vpop.f32.mrb[0].mxu0
        %v4345 = vadd.f32 %v4184, %v4344
        %v4346 = vpop.f32.mrb[0].mxu0
        %4347 = vmatprep.mubr.bf16.mxu0 %v3097
        %4348 = vmatmul.mubr.bf16.gmra.mrb[0].mxu0 %v3001
        %v4349 = vpop.f32.mrb[0].mxu0
        %v4350 = vadd.f32 %v4189, %v4349
        %v4351 = vpop.f32.mrb[0].mxu0
        %v4352 = vpop.f32.mrb[0].mxu0
        %v4353 = vadd.f32 %v4192, %v4352
        %v4354 = vpop.f32.mrb[0].mxu0
        %4355 = vmatprep.mubr.bf16.mxu0 %v3098
        %4356 = vmatmul.mubr.bf16.gmra.mrb[0].mxu0 %v3002
        %v4357 = vpop.f32.mrb[0].mxu0
        %v4358 = vadd.f32 %v4197, %v4357
        %v4359 = vpop.f32.mrb[0].mxu0
        %v4360 = vpop.f32.mrb[0].mxu0
        %v4361 = vadd.f32 %v4200, %v4360
        %v4362 = vpop.f32.mrb[0].mxu0
        %4363 = vmatprep.mubr.bf16.mxu0 %v3099
        %4364 = vmatmul.mubr.bf16.gmra.mrb[0].mxu0 %v3003
        %v4365 = vpop.f32.mrb[0].mxu0
        %v4366 = vadd.f32 %v4205, %v4365
        %v4367 = vpop.f32.mrb[0].mxu0
        %v4368 = vpop.f32.mrb[0].mxu0
        %v4369 = vadd.f32 %v4208, %v4368
        %v4370 = vpop.f32.mrb[0].mxu0
        %4371 = vmatprep.mubr.bf16.mxu0 %v3100
        %4372 = vmatmul.mubr.bf16.gmra.mrb[0].mxu0 %v3004
        %v4373 = vpop.f32.mrb[0].mxu0
        %v4374 = vadd.f32 %v4213, %v4373
        %v4375 = vpop.f32.mrb[0].mxu0
        %v4376 = vpop.f32.mrb[0].mxu0
        %v4377 = vadd.f32 %v4216, %v4376
        %v4378 = vpop.f32.mrb[0].mxu0
        %4379 = vmatprep.mubr.bf16.mxu0 %v3101
        %4380 = vmatmul.mubr.bf16.gmra.mrb[0].mxu0 %v3005
        %v4381 = vpop.f32.mrb[0].mxu0
        %v4382 = vadd.f32 %v4221, %v4381
        %v4383 = vpop.f32.mrb[0].mxu0
        %v4384 = vpop.f32.mrb[0].mxu0
        %v4385 = vadd.f32 %v4224, %v4384
        %v4386 = vpop.f32.mrb[0].mxu0
        %4387 = vmatprep.mubr.bf16.mxu0 %v3102
        %4388 = vmatmul.mubr.bf16.gmra.mrb[0].mxu0 %v3006
        %v4389 = vpop.f32.mrb[0].mxu0
        %v4390 = vadd.f32 %v4229, %v4389
        %v4391 = vpop.f32.mrb[0].mxu0
        %v4392 = vpop.f32.mrb[0].mxu0
        %v4393 = vadd.f32 %v4232, %v4392
        %v4394 = vpop.f32.mrb[0].mxu0
        %4395 = vmatprep.mubr.bf16.mxu0 %v3103
        %4396 = vmatmul.mubr.bf16.gmra.mrb[0].mxu0 %v3007
        %v4397 = vpop.f32.mrb[0].mxu0
        %v4398 = vadd.f32 %v4237, %v4397
        %v4399 = vpop.f32.mrb[0].mxu0
        %v4400 = vpop.f32.mrb[0].mxu0
        %v4401 = vadd.f32 %v4240, %v4400
        %v4402 = vpop.f32.mrb[0].mxu0
        %4403 = vdwg.mxu0
        %4404 = vmatprep.subr.bf16.mxu0 0
        %4405 = vmatpush1.bf16.msra.mxu0 %v3680
        %4406 = vmatprep.subr.bf16.mxu0 0
        %4407 = vmatpush1.bf16.msra.mxu0 %v3681
        %4408 = vmatprep.subr.bf16.mxu0 0
        %4409 = vmatpush1.bf16.msra.mxu0 %v3682
        %4410 = vmatprep.subr.bf16.mxu0 0
        %4411 = vmatpush1.bf16.msra.mxu0 %v3683
        %4412 = vmatprep.subr.bf16.mxu0 0
        %4413 = vmatpush1.bf16.msra.mxu0 %v3684
        %4414 = vmatprep.subr.bf16.mxu0 0
        %4415 = vmatpush1.bf16.msra.mxu0 %v3685
        %4416 = vmatprep.subr.bf16.mxu0 0
        %4417 = vmatpush1.bf16.msra.mxu0 %v3686
        %4418 = vmatprep.subr.bf16.mxu0 0
        %4419 = vmatpush1.bf16.msra.mxu0 %v3687
        %4420 = vmatprep.subr.bf16.mxu0 0
        %4421 = vmatpush1.bf16.msra.mxu0 0
        %4422 = vmatprep.subr.bf16.mxu0 0
        %4423 = vmatpush1.bf16.msra.mxu0 0
        %4424 = vmatprep.subr.bf16.mxu0 0
        %4425 = vmatpush1.bf16.msra.mxu0 0
        %4426 = vmatprep.subr.bf16.mxu0 0
        %4427 = vmatpush1.bf16.msra.mxu0 0
        %4428 = vmatprep.subr.bf16.mxu0 0
        %4429 = vmatpush1.bf16.msra.mxu0 0
        %4430 = vmatprep.subr.bf16.mxu0 0
        %4431 = vmatpush1.bf16.msra.mxu0 0
        %4432 = vmatprep.subr.bf16.mxu0 0
        %4433 = vmatpush1.bf16.msra.mxu0 0
        %4434 = vmatprep.subr.bf16.mxu0 0
        %4435 = vmatpush1.bf16.msra.mxu0 0
        %4436 = vmatprep.mubr.bf16.mxu0 0
        %4437 = vmatmul.mubr.bf16.gmra.mrb[0].mxu0 %v3152
        %v4438 = vpop.f32.mrb[0].mxu0
        %v4439 = vadd.f32 %v4278, %v4438
        %v4440 = vpop.f32.mrb[0].mxu0
        %v4441 = vpop.f32.mrb[0].mxu0
        %v4442 = vadd.f32 %v4281, %v4441
        %v4443 = vpop.f32.mrb[0].mxu0
        %4444 = vmatprep.mubr.bf16.mxu0 0
        %4445 = vmatmul.mubr.bf16.gmra.mrb[0].mxu0 %v3153
        %v4446 = vpop.f32.mrb[0].mxu0
        %v4447 = vadd.f32 %v4286, %v4446
        %v4448 = vpop.f32.mrb[0].mxu0
        %v4449 = vpop.f32.mrb[0].mxu0
        %v4450 = vadd.f32 %v4289, %v4449
        %v4451 = vpop.f32.mrb[0].mxu0
        %4452 = vmatprep.mubr.bf16.mxu0 0
        %4453 = vmatmul.mubr.bf16.gmra.mrb[0].mxu0 %v3154
        %v4454 = vpop.f32.mrb[0].mxu0
        %v4455 = vadd.f32 %v4294, %v4454
        %v4456 = vpop.f32.mrb[0].mxu0
        %v4457 = vpop.f32.mrb[0].mxu0
        %v4458 = vadd.f32 %v4297, %v4457
        %v4459 = vpop.f32.mrb[0].mxu0
        %4460 = vmatprep.mubr.bf16.mxu0 0
        %4461 = vmatmul.mubr.bf16.gmra.mrb[0].mxu0 %v3155
        %v4462 = vpop.f32.mrb[0].mxu0
        %v4463 = vadd.f32 %v4302, %v4462
        %v4464 = vpop.f32.mrb[0].mxu0
        %v4465 = vpop.f32.mrb[0].mxu0
        %v4466 = vadd.f32 %v4305, %v4465
        %v4467 = vpop.f32.mrb[0].mxu0
        %4468 = vmatprep.mubr.bf16.mxu0 0
        %4469 = vmatmul.mubr.bf16.gmra.mrb[0].mxu0 %v3156
        %v4470 = vpop.f32.mrb[0].mxu0
        %v4471 = vadd.f32 %v4310, %v4470
        %v4472 = vpop.f32.mrb[0].mxu0
        %v4473 = vpop.f32.mrb[0].mxu0
        %v4474 = vadd.f32 %v4313, %v4473
        %v4475 = vpop.f32.mrb[0].mxu0
        %4476 = vmatprep.mubr.bf16.mxu0 0
        %4477 = vmatmul.mubr.bf16.gmra.mrb[0].mxu0 %v3157
        %v4478 = vpop.f32.mrb[0].mxu0
        %v4479 = vadd.f32 %v4318, %v4478
        %v4480 = vpop.f32.mrb[0].mxu0
        %v4481 = vpop.f32.mrb[0].mxu0
        %v4482 = vadd.f32 %v4321, %v4481
        %v4483 = vpop.f32.mrb[0].mxu0
        %4484 = vmatprep.mubr.bf16.mxu0 0
        %4485 = vmatmul.mubr.bf16.gmra.mrb[0].mxu0 %v3158
        %v4486 = vpop.f32.mrb[0].mxu0
        %v4487 = vadd.f32 %v4326, %v4486
        %v4488 = vpop.f32.mrb[0].mxu0
        %v4489 = vpop.f32.mrb[0].mxu0
        %v4490 = vadd.f32 %v4329, %v4489
        %v4491 = vpop.f32.mrb[0].mxu0
        %4492 = vmatprep.mubr.bf16.mxu0 0
        %4493 = vmatmul.mubr.bf16.gmra.mrb[0].mxu0 %v3159
        %v4494 = vpop.f32.mrb[0].mxu0
        %v4495 = vadd.f32 %v4334, %v4494
        %v4496 = vpop.f32.mrb[0].mxu0
        %v4497 = vpop.f32.mrb[0].mxu0
        %v4498 = vadd.f32 %v4337, %v4497
        %v4499 = vpop.f32.mrb[0].mxu0
        %4500 = vmatprep.mubr.bf16.mxu0 0
        %4501 = vmatmul.mubr.bf16.gmra.mrb[0].mxu0 %v3160
        %v4502 = vpop.f32.mrb[0].mxu0
        %v4503 = vadd.f32 %v4342, %v4502
        %v4504 = vpop.f32.mrb[0].mxu0
        %v4505 = vpop.f32.mrb[0].mxu0
        %v4506 = vadd.f32 %v4345, %v4505
        %v4507 = vpop.f32.mrb[0].mxu0
        %4508 = vmatprep.mubr.bf16.mxu0 0
        %4509 = vmatmul.mubr.bf16.gmra.mrb[0].mxu0 %v3161
        %v4510 = vpop.f32.mrb[0].mxu0
        %v4511 = vadd.f32 %v4350, %v4510
        %v4512 = vpop.f32.mrb[0].mxu0
        %v4513 = vpop.f32.mrb[0].mxu0
        %v4514 = vadd.f32 %v4353, %v4513
        %v4515 = vpop.f32.mrb[0].mxu0
        %4516 = vmatprep.mubr.bf16.mxu0 0
        %4517 = vmatmul.mubr.bf16.gmra.mrb[0].mxu0 %v3162
        %v4518 = vpop.f32.mrb[0].mxu0
        %v4519 = vadd.f32 %v4358, %v4518
        %v4520 = vpop.f32.mrb[0].mxu0
        %v4521 = vpop.f32.mrb[0].mxu0
        %v4522 = vadd.f32 %v4361, %v4521
        %v4523 = vpop.f32.mrb[0].mxu0
        %4524 = vmatprep.mubr.bf16.mxu0 0
        %4525 = vmatmul.mubr.bf16.gmra.mrb[0].mxu0 %v3163
        %v4526 = vpop.f32.mrb[0].mxu0
        %v4527 = vadd.f32 %v4366, %v4526
        %v4528 = vpop.f32.mrb[0].mxu0
        %v4529 = vpop.f32.mrb[0].mxu0
        %v4530 = vadd.f32 %v4369, %v4529
        %v4531 = vpop.f32.mrb[0].mxu0
        %4532 = vmatprep.mubr.bf16.mxu0 0
        %4533 = vmatmul.mubr.bf16.gmra.mrb[0].mxu0 %v3164
        %v4534 = vpop.f32.mrb[0].mxu0
        %v4535 = vadd.f32 %v4374, %v4534
        %v4536 = vpop.f32.mrb[0].mxu0
        %v4537 = vpop.f32.mrb[0].mxu0
        %v4538 = vadd.f32 %v4377, %v4537
        %v4539 = vpop.f32.mrb[0].mxu0
        %4540 = vmatprep.mubr.bf16.mxu0 0
        %4541 = vmatmul.mubr.bf16.gmra.mrb[0].mxu0 %v3165
        %v4542 = vpop.f32.mrb[0].mxu0
        %v4543 = vadd.f32 %v4382, %v4542
        %v4544 = vpop.f32.mrb[0].mxu0
        %v4545 = vpop.f32.mrb[0].mxu0
        %v4546 = vadd.f32 %v4385, %v4545
        %v4547 = vpop.f32.mrb[0].mxu0
        %4548 = vmatprep.mubr.bf16.mxu0 0
        %4549 = vmatmul.mubr.bf16.gmra.mrb[0].mxu0 %v3166
        %v4550 = vpop.f32.mrb[0].mxu0
        %v4551 = vadd.f32 %v4390, %v4550
        %v4552 = vpop.f32.mrb[0].mxu0
        %v4553 = vpop.f32.mrb[0].mxu0
        %v4554 = vadd.f32 %v4393, %v4553
        %v4555 = vpop.f32.mrb[0].mxu0
        %4556 = vmatprep.mubr.bf16.mxu0 0
        %4557 = vmatmul.mubr.bf16.gmra.mrb[0].mxu0 %v3167
        %v4558 = vpop.f32.mrb[0].mxu0
        %v4559 = vadd.f32 %v4398, %v4558
        %v4560 = vpop.f32.mrb[0].mxu0
        %v4561 = vpop.f32.mrb[0].mxu0
        %v4562 = vadd.f32 %v4401, %v4561
        %v4563 = vpop.f32.mrb[0].mxu0
        %4564 = vdwg.mxu0
        %v4566 = vlaneseq
        %v4567 = vshrl.u32 %v4566, 7
        %v4568 = vsub.s32 0, %v4567
        %v4569 = vrot.slane %v584, %v4568
        %v4571 = vmul.f32 %v4439, %v4569
        %v4572 = vmul.f32 %v4442, %v4569
        %v4573 = vmul.f32 %v4447, %v4569
        %v4574 = vmul.f32 %v4450, %v4569
        %v4575 = vmul.f32 %v4455, %v4569
        %v4576 = vmul.f32 %v4458, %v4569
        %v4577 = vmul.f32 %v4463, %v4569
        %v4578 = vmul.f32 %v4466, %v4569
        %v4579 = vmul.f32 %v4471, %v4569
        %v4580 = vmul.f32 %v4474, %v4569
        %v4581 = vmul.f32 %v4479, %v4569
        %v4582 = vmul.f32 %v4482, %v4569
        %v4583 = vmul.f32 %v4487, %v4569
        %v4584 = vmul.f32 %v4490, %v4569
        %v4585 = vmul.f32 %v4495, %v4569
        %v4586 = vmul.f32 %v4498, %v4569
        %v4587 = vmul.f32 %v4503, %v4569
        %v4588 = vmul.f32 %v4506, %v4569
        %v4589 = vmul.f32 %v4511, %v4569
        %v4590 = vmul.f32 %v4514, %v4569
        %v4591 = vmul.f32 %v4519, %v4569
        %v4592 = vmul.f32 %v4522, %v4569
        %v4593 = vmul.f32 %v4527, %v4569
        %v4594 = vmul.f32 %v4530, %v4569
        %v4595 = vmul.f32 %v4535, %v4569
        %v4596 = vmul.f32 %v4538, %v4569
        %v4597 = vmul.f32 %v4543, %v4569
        %v4598 = vmul.f32 %v4546, %v4569
        %v4599 = vmul.f32 %v4551, %v4569
        %v4600 = vmul.f32 %v4554, %v4569
        %v4601 = vmul.f32 %v4559, %v4569
        %v4602 = vmul.f32 %v4562, %v4569
        %v4604 = vlaneseq
        %v4605 = vshrl.u32 %v4604, 7
        %v4606 = vsub.s32 0, %v4605
        %v4607 = vrot.slane %v585, %v4606
        %v4609 = vadd.f32 %v4571, %v4607
        %v4610 = vadd.f32 %v4572, %v4607
        %v4611 = vadd.f32 %v4573, %v4607
        %v4612 = vadd.f32 %v4574, %v4607
        %v4613 = vadd.f32 %v4575, %v4607
        %v4614 = vadd.f32 %v4576, %v4607
        %v4615 = vadd.f32 %v4577, %v4607
        %v4616 = vadd.f32 %v4578, %v4607
        %v4617 = vadd.f32 %v4579, %v4607
        %v4618 = vadd.f32 %v4580, %v4607
        %v4619 = vadd.f32 %v4581, %v4607
        %v4620 = vadd.f32 %v4582, %v4607
        %v4621 = vadd.f32 %v4583, %v4607
        %v4622 = vadd.f32 %v4584, %v4607
        %v4623 = vadd.f32 %v4585, %v4607
        %v4624 = vadd.f32 %v4586, %v4607
        %v4625 = vadd.f32 %v4587, %v4607
        %v4626 = vadd.f32 %v4588, %v4607
        %v4627 = vadd.f32 %v4589, %v4607
        %v4628 = vadd.f32 %v4590, %v4607
        %v4629 = vadd.f32 %v4591, %v4607
        %v4630 = vadd.f32 %v4592, %v4607
        %v4631 = vadd.f32 %v4593, %v4607
        %v4632 = vadd.f32 %v4594, %v4607
        %v4633 = vadd.f32 %v4595, %v4607
        %v4634 = vadd.f32 %v4596, %v4607
        %v4635 = vadd.f32 %v4597, %v4607
        %v4636 = vadd.f32 %v4598, %v4607
        %v4637 = vadd.f32 %v4599, %v4607
        %v4638 = vadd.f32 %v4600, %v4607
        %v4639 = vadd.f32 %v4601, %v4607
        %v4640 = vadd.f32 %v4602, %v4607
        %v4641 = vmax.f32 %v4609, 0.0
        %v4642 = vmax.f32 %v4610, 0.0
        %v4643 = vmax.f32 %v4611, 0.0
        %v4644 = vmax.f32 %v4612, 0.0
        %v4645 = vmax.f32 %v4613, 0.0
        %v4646 = vmax.f32 %v4614, 0.0
        %v4647 = vmax.f32 %v4615, 0.0
        %v4648 = vmax.f32 %v4616, 0.0
        %v4649 = vmax.f32 %v4617, 0.0
        %v4650 = vmax.f32 %v4618, 0.0
        %v4651 = vmax.f32 %v4619, 0.0
        %v4652 = vmax.f32 %v4620, 0.0
        %v4653 = vmax.f32 %v4621, 0.0
        %v4654 = vmax.f32 %v4622, 0.0
        %v4655 = vmax.f32 %v4623, 0.0
        %v4656 = vmax.f32 %v4624, 0.0
        %v4657 = vmax.f32 %v4625, 0.0
        %v4658 = vmax.f32 %v4626, 0.0
        %v4659 = vmax.f32 %v4627, 0.0
        %v4660 = vmax.f32 %v4628, 0.0
        %v4661 = vmax.f32 %v4629, 0.0
        %v4662 = vmax.f32 %v4630, 0.0
        %v4663 = vmax.f32 %v4631, 0.0
        %v4664 = vmax.f32 %v4632, 0.0
        %v4665 = vmax.f32 %v4633, 0.0
        %v4666 = vmax.f32 %v4634, 0.0
        %v4667 = vmax.f32 %v4635, 0.0
        %v4668 = vmax.f32 %v4636, 0.0
        %v4669 = vmax.f32 %v4637, 0.0
        %v4670 = vmax.f32 %v4638, 0.0
        %v4671 = vmax.f32 %v4639, 0.0
        %v4672 = vmax.f32 %v4640, 0.0
        %v4673 = vld [vmem:[#allocation3] sm:$0xff]
        %v4674 = vld [vmem:[#allocation3 + $0x8] sm:$0xff]
        %v4675 = vld [vmem:[#allocation3 + $0x10] sm:$0xff]
        %v4676 = vld [vmem:[#allocation3 + $0x18] sm:$0xff]
        %v4677 = vld [vmem:[#allocation3 + $0x20] sm:$0xff]
        %v4678 = vld [vmem:[#allocation3 + $0x28] sm:$0xff]
        %v4679 = vld [vmem:[#allocation3 + $0x30] sm:$0xff]
        %v4680 = vld [vmem:[#allocation3 + $0x38] sm:$0xff]
        %v4681 = vld [vmem:[#allocation3 + $0x40] sm:$0xff]
        %v4682 = vld [vmem:[#allocation3 + $0x48] sm:$0xff]
        %v4683 = vld [vmem:[#allocation3 + $0x50] sm:$0xff]
        %v4684 = vld [vmem:[#allocation3 + $0x58] sm:$0xff]
        %v4685 = vld [vmem:[#allocation3 + $0x60] sm:$0xff]
        %v4686 = vld [vmem:[#allocation3 + $0x68] sm:$0xff]
        %v4687 = vld [vmem:[#allocation3 + $0x70] sm:$0xff]
        %v4688 = vld [vmem:[#allocation3 + $0x78] sm:$0xff]
        %v4689 = vld [vmem:[#allocation3 + $0x80] sm:$0xff]
        %v4690 = vld [vmem:[#allocation3 + $0x88] sm:$0xff]
        %v4691 = vld [vmem:[#allocation3 + $0x90] sm:$0xff]
        %v4692 = vld [vmem:[#allocation3 + $0x98] sm:$0xff]
        %v4693 = vld [vmem:[#allocation3 + $0xa0] sm:$0xff]
        %v4694 = vld [vmem:[#allocation3 + $0xa8] sm:$0xff]
        %v4695 = vld [vmem:[#allocation3 + $0xb0] sm:$0xff]
        %v4696 = vld [vmem:[#allocation3 + $0xb8] sm:$0xff]
        %v4697 = vld [vmem:[#allocation3 + $0xc0] sm:$0xff]
        %v4698 = vld [vmem:[#allocation3 + $0xc8] sm:$0xff]
        %v4699 = vld [vmem:[#allocation3 + $0xd0] sm:$0xff]
        %v4700 = vld [vmem:[#allocation3 + $0xd8] sm:$0xff]
        %v4701 = vld [vmem:[#allocation3 + $0xe0] sm:$0xff]
        %v4702 = vld [vmem:[#allocation3 + $0xe8] sm:$0xff]
        %v4703 = vld [vmem:[#allocation3 + $0xf0] sm:$0xff]
        %v4704 = vld [vmem:[#allocation3 + $0xf8] sm:$0xff]
        %v4705 = vadd.f32 %v4673, %v4641
        %v4706 = vadd.f32 %v4674, %v4642
        %v4707 = vadd.f32 %v4675, %v4643
        %v4708 = vadd.f32 %v4676, %v4644
        %v4709 = vadd.f32 %v4677, %v4645
        %v4710 = vadd.f32 %v4678, %v4646
        %v4711 = vadd.f32 %v4679, %v4647
        %v4712 = vadd.f32 %v4680, %v4648
        %v4713 = vadd.f32 %v4681, %v4649
        %v4714 = vadd.f32 %v4682, %v4650
        %v4715 = vadd.f32 %v4683, %v4651
        %v4716 = vadd.f32 %v4684, %v4652
        %v4717 = vadd.f32 %v4685, %v4653
        %v4718 = vadd.f32 %v4686, %v4654
        %v4719 = vadd.f32 %v4687, %v4655
        %v4720 = vadd.f32 %v4688, %v4656
        %v4721 = vadd.f32 %v4689, %v4657
        %v4722 = vadd.f32 %v4690, %v4658
        %v4723 = vadd.f32 %v4691, %v4659
        %v4724 = vadd.f32 %v4692, %v4660
        %v4725 = vadd.f32 %v4693, %v4661
        %v4726 = vadd.f32 %v4694, %v4662
        %v4727 = vadd.f32 %v4695, %v4663
        %v4728 = vadd.f32 %v4696, %v4664
        %v4729 = vadd.f32 %v4697, %v4665
        %v4730 = vadd.f32 %v4698, %v4666
        %v4731 = vadd.f32 %v4699, %v4667
        %v4732 = vadd.f32 %v4700, %v4668
        %v4733 = vadd.f32 %v4701, %v4669
        %v4734 = vadd.f32 %v4702, %v4670
        %v4735 = vadd.f32 %v4703, %v4671
        %v4736 = vadd.f32 %v4704, %v4672
        %v4737 = vpack.c.bf16 %v4706, %v4705
        %v4738 = vpack.c.bf16 %v4708, %v4707
        %v4739 = vpack.c.bf16 %v4710, %v4709
        %v4740 = vpack.c.bf16 %v4712, %v4711
        %v4741 = vpack.c.bf16 %v4714, %v4713
        %v4742 = vpack.c.bf16 %v4716, %v4715
        %v4743 = vpack.c.bf16 %v4718, %v4717
        %v4744 = vpack.c.bf16 %v4720, %v4719
        %v4745 = vpack.c.bf16 %v4722, %v4721
        %v4746 = vpack.c.bf16 %v4724, %v4723
        %v4747 = vpack.c.bf16 %v4726, %v4725
        %v4748 = vpack.c.bf16 %v4728, %v4727
        %v4749 = vpack.c.bf16 %v4730, %v4729
        %v4750 = vpack.c.bf16 %v4732, %v4731
        %v4751 = vpack.c.bf16 %v4734, %v4733
        %v4752 = vpack.c.bf16 %v4736, %v4735
        %v4769 = vunpack.c.l.b16 %v4737
        %v4770 = vunpack.c.h.b16 %v4737
        %v4771 = vunpack.c.l.b16 %v4738
        %v4772 = vunpack.c.h.b16 %v4738
        %v4773 = vunpack.c.l.b16 %v4739
        %v4774 = vunpack.c.h.b16 %v4739
        %v4775 = vunpack.c.l.b16 %v4740
        %v4776 = vunpack.c.h.b16 %v4740
        %v4777 = vunpack.c.l.b16 %v4741
        %v4778 = vunpack.c.h.b16 %v4741
        %v4779 = vunpack.c.l.b16 %v4742
        %v4780 = vunpack.c.h.b16 %v4742
        %v4781 = vunpack.c.l.b16 %v4743
        %v4782 = vunpack.c.h.b16 %v4743
        %v4783 = vunpack.c.l.b16 %v4744
        %v4784 = vunpack.c.h.b16 %v4744
        %v4785 = vunpack.c.l.b16 %v4745
        %v4786 = vunpack.c.h.b16 %v4745
        %v4787 = vunpack.c.l.b16 %v4746
        %v4788 = vunpack.c.h.b16 %v4746
        %v4789 = vunpack.c.l.b16 %v4747
        %v4790 = vunpack.c.h.b16 %v4747
        %v4791 = vunpack.c.l.b16 %v4748
        %v4792 = vunpack.c.h.b16 %v4748
        %v4793 = vunpack.c.l.b16 %v4749
        %v4794 = vunpack.c.h.b16 %v4749
        %v4795 = vunpack.c.l.b16 %v4750
        %v4796 = vunpack.c.h.b16 %v4750
        %v4797 = vunpack.c.l.b16 %v4751
        %v4798 = vunpack.c.h.b16 %v4751
        %v4799 = vunpack.c.l.b16 %v4752
        %v4800 = vunpack.c.h.b16 %v4752
        %v4801 = vpack.c.b16 %v4769, %v4769
        %v4802 = vpack.c.b16 %v4770, %v4770
        %v4803 = vpack.c.b16 %v4771, %v4771
        %v4804 = vpack.c.b16 %v4772, %v4772
        %v4805 = vpack.c.b16 %v4773, %v4773
        %v4806 = vpack.c.b16 %v4774, %v4774
        %v4807 = vpack.c.b16 %v4775, %v4775
        %v4808 = vpack.c.b16 %v4776, %v4776
        %v4809 = vpack.c.b16 %v4777, %v4777
        %v4810 = vpack.c.b16 %v4778, %v4778
        %v4811 = vpack.c.b16 %v4779, %v4779
        %v4812 = vpack.c.b16 %v4780, %v4780
        %v4813 = vpack.c.b16 %v4781, %v4781
        %v4814 = vpack.c.b16 %v4782, %v4782
        %v4815 = vpack.c.b16 %v4783, %v4783
        %v4816 = vpack.c.b16 %v4784, %v4784
        %v4817 = vpack.c.b16 %v4785, %v4785
        %v4818 = vpack.c.b16 %v4786, %v4786
        %v4819 = vpack.c.b16 %v4787, %v4787
        %v4820 = vpack.c.b16 %v4788, %v4788
        %v4821 = vpack.c.b16 %v4789, %v4789
        %v4822 = vpack.c.b16 %v4790, %v4790
        %v4823 = vpack.c.b16 %v4791, %v4791
        %v4824 = vpack.c.b16 %v4792, %v4792
        %v4825 = vpack.c.b16 %v4793, %v4793
        %v4826 = vpack.c.b16 %v4794, %v4794
        %v4827 = vpack.c.b16 %v4795, %v4795
        %v4828 = vpack.c.b16 %v4796, %v4796
        %v4829 = vpack.c.b16 %v4797, %v4797
        %v4830 = vpack.c.b16 %v4798, %v4798
        %v4831 = vpack.c.b16 %v4799, %v4799
        %v4832 = vpack.c.b16 %v4800, %v4800
        %4865 = vst [vmem:[%s551 + $0x8] sm:$0xf] %v4801
        %4866 = vst [vmem:[%s551 + $0xc] sm:$0xf] %v4802
        %4867 = vst [vmem:[%s551 + $0x1c] sm:$0xf] %v4803
        %4868 = vst [vmem:[%s551 + $0x20] sm:$0xf] %v4804
        %4869 = vst [vmem:[%s551 + $0x30] sm:$0xf] %v4805
        %4870 = vst [vmem:[%s551 + $0x34] sm:$0xf] %v4806
        %4871 = vst [vmem:[%s551 + $0x44] sm:$0xf] %v4807
        %4872 = vst [vmem:[%s551 + $0x48] sm:$0xf] %v4808
        %4873 = vst [vmem:[%s551 + $0x58] sm:$0xf] %v4809
        %4874 = vst [vmem:[%s551 + $0x5c] sm:$0xf] %v4810
        %4875 = vst [vmem:[%s551 + $0x6c] sm:$0xf] %v4811
        %4876 = vst [vmem:[%s551 + $0x70] sm:$0xf] %v4812
        %4877 = vst [vmem:[%s551 + $0x80] sm:$0xf] %v4813
        %4878 = vst [vmem:[%s551 + $0x84] sm:$0xf] %v4814
        %4879 = vst [vmem:[%s551 + $0x94] sm:$0xf] %v4815
        %4880 = vst [vmem:[%s551 + $0x98] sm:$0xf] %v4816
        %4881 = vst [vmem:[%s551 + $0xa8] sm:$0xf] %v4817
        %4882 = vst [vmem:[%s551 + $0xac] sm:$0xf] %v4818
        %4883 = vst [vmem:[%s551 + $0xbc] sm:$0xf] %v4819
        %4884 = vst [vmem:[%s551 + $0xc0] sm:$0xf] %v4820
        %4885 = vst [vmem:[%s551 + $0xd0] sm:$0xf] %v4821
        %4886 = vst [vmem:[%s551 + $0xd4] sm:$0xf] %v4822
        %4887 = vst [vmem:[%s551 + $0xe4] sm:$0xf] %v4823
        %4888 = vst [vmem:[%s551 + $0xe8] sm:$0xf] %v4824
        %4889 = vst [vmem:[%s551 + $0xf8] sm:$0xf] %v4825
        %4890 = vst [vmem:[%s551 + $0xfc] sm:$0xf] %v4826
        %4891 = vst [vmem:[%s551 + $0x10c] sm:$0xf] %v4827
        %4892 = vst [vmem:[%s551 + $0x110] sm:$0xf] %v4828
        %4893 = vst [vmem:[%s551 + $0x120] sm:$0xf] %v4829
        %4894 = vst [vmem:[%s551 + $0x124] sm:$0xf] %v4830
        %4895 = vst [vmem:[%s551 + $0x134] sm:$0xf] %v4831
        %4896 = vst [vmem:[%s551 + $0x138] sm:$0xf] %v4832
        %v4897 = vld [vmem:[#allocation2 + $0x4] sm:$0x8]
        %v4898 = vld [vmem:[#allocation2 + $0x8] sm:$0xf]
        %v4899 = vld [vmem:[#allocation2 + $0xc] sm:$0xf]
        %v4900 = vld [vmem:[#allocation2 + $0x18] sm:$0x8]
        %v4901 = vld [vmem:[#allocation2 + $0x1c] sm:$0xf]
        %v4902 = vld [vmem:[#allocation2 + $0x20] sm:$0xf]
        %v4903 = vld [vmem:[#allocation2 + $0x2c] sm:$0x8]
        %v4904 = vld [vmem:[#allocation2 + $0x30] sm:$0xf]
        %v4905 = vld [vmem:[#allocation2 + $0x34] sm:$0xf]
        %v4906 = vld [vmem:[#allocation2 + $0x40] sm:$0x8]
        %v4907 = vld [vmem:[#allocation2 + $0x44] sm:$0xf]
        %v4908 = vld [vmem:[#allocation2 + $0x48] sm:$0xf]
        %v4909 = vld [vmem:[#allocation2 + $0x54] sm:$0x8]
        %v4910 = vld [vmem:[#allocation2 + $0x58] sm:$0xf]
        %v4911 = vld [vmem:[#allocation2 + $0x5c] sm:$0xf]
        %v4912 = vld [vmem:[#allocation2 + $0x68] sm:$0x8]
        %v4913 = vld [vmem:[#allocation2 + $0x6c] sm:$0xf]
        %v4914 = vld [vmem:[#allocation2 + $0x70] sm:$0xf]
        %v4915 = vld [vmem:[#allocation2 + $0x7c] sm:$0x8]
        %v4916 = vld [vmem:[#allocation2 + $0x80] sm:$0xf]
        %v4917 = vld [vmem:[#allocation2 + $0x84] sm:$0xf]
        %v4918 = vld [vmem:[#allocation2 + $0x90] sm:$0x8]
        %v4919 = vld [vmem:[#allocation2 + $0x94] sm:$0xf]
        %v4920 = vld [vmem:[#allocation2 + $0x98] sm:$0xf]
        %v4921 = vld [vmem:[#allocation2 + $0xa4] sm:$0x8]
        %v4922 = vld [vmem:[#allocation2 + $0xa8] sm:$0xf]
        %v4923 = vld [vmem:[#allocation2 + $0xac] sm:$0xf]
        %v4924 = vld [vmem:[#allocation2 + $0xb8] sm:$0x8]
        %v4925 = vld [vmem:[#allocation2 + $0xbc] sm:$0xf]
        %v4926 = vld [vmem:[#allocation2 + $0xc0] sm:$0xf]
        %v4927 = vld [vmem:[#allocation2 + $0xcc] sm:$0x8]
        %v4928 = vld [vmem:[#allocation2 + $0xd0] sm:$0xf]
        %v4929 = vld [vmem:[#allocation2 + $0xd4] sm:$0xf]
        %v4930 = vld [vmem:[#allocation2 + $0xe0] sm:$0x8]
        %v4931 = vld [vmem:[#allocation2 + $0xe4] sm:$0xf]
        %v4932 = vld [vmem:[#allocation2 + $0xe8] sm:$0xf]
        %v4933 = vld [vmem:[#allocation2 + $0xf4] sm:$0x8]
        %v4934 = vld [vmem:[#allocation2 + $0xf8] sm:$0xf]
        %v4935 = vld [vmem:[#allocation2 + $0xfc] sm:$0xf]
        %v4936 = vld [vmem:[#allocation2 + $0x108] sm:$0x8]
        %v4937 = vld [vmem:[#allocation2 + $0x10c] sm:$0xf]
        %v4938 = vld [vmem:[#allocation2 + $0x110] sm:$0xf]
        %v4939 = vld [vmem:[#allocation2 + $0x11c] sm:$0x8]
        %v4940 = vld [vmem:[#allocation2 + $0x120] sm:$0xf]
        %v4941 = vld [vmem:[#allocation2 + $0x124] sm:$0xf]
        %v4942 = vld [vmem:[#allocation2 + $0x130] sm:$0x8]
        %v4943 = vld [vmem:[#allocation2 + $0x134] sm:$0xf]
        %v4944 = vld [vmem:[#allocation2 + $0x138] sm:$0xf]
        %v4946 = vshrl.u32 %v4897, 16
        %v4948 = vrot.slane %v4946, 7
        %v4949 = vrot.slane %v4948, 4
        %v4951 = vshrl.u32 %v4898, 16
        %v4953 = vrot.slane %v4951, 7
        %v4954 = vshll.u32 %v4898, 16
        %v4956 = vor.u32 %v4953, %v4954
        %v4957 = vsel %vm635, %v4949, %v4956
        %v4958 = vrot.slane %v4953, 4
        %v4960 = vshrl.u32 %v4899, 16
        %v4962 = vrot.slane %v4960, 7
        %v4963 = vshll.u32 %v4899, 16
        %v4965 = vor.u32 %v4962, %v4963
        %v4966 = vsel %vm635, %v4958, %v4965
        %v4968 = vshrl.u32 %v4900, 16
        %v4970 = vrot.slane %v4968, 7
        %v4971 = vrot.slane %v4970, 4
        %v4973 = vshrl.u32 %v4901, 16
        %v4975 = vrot.slane %v4973, 7
        %v4976 = vshll.u32 %v4901, 16
        %v4978 = vor.u32 %v4975, %v4976
        %v4979 = vsel %vm635, %v4971, %v4978
        %v4980 = vrot.slane %v4975, 4
        %v4982 = vshrl.u32 %v4902, 16
        %v4984 = vrot.slane %v4982, 7
        %v4985 = vshll.u32 %v4902, 16
        %v4987 = vor.u32 %v4984, %v4985
        %v4988 = vsel %vm635, %v4980, %v4987
        %v4990 = vshrl.u32 %v4903, 16
        %v4992 = vrot.slane %v4990, 7
        %v4993 = vrot.slane %v4992, 4
        %v4995 = vshrl.u32 %v4904, 16
        %v4997 = vrot.slane %v4995, 7
        %v4998 = vshll.u32 %v4904, 16
        %v5000 = vor.u32 %v4997, %v4998
        %v5001 = vsel %vm635, %v4993, %v5000
        %v5002 = vrot.slane %v4997, 4
        %v5004 = vshrl.u32 %v4905, 16
        %v5006 = vrot.slane %v5004, 7
        %v5007 = vshll.u32 %v4905, 16
        %v5009 = vor.u32 %v5006, %v5007
        %v5010 = vsel %vm635, %v5002, %v5009
        %v5012 = vshrl.u32 %v4906, 16
        %v5014 = vrot.slane %v5012, 7
        %v5015 = vrot.slane %v5014, 4
        %v5017 = vshrl.u32 %v4907, 16
        %v5019 = vrot.slane %v5017, 7
        %v5020 = vshll.u32 %v4907, 16
        %v5022 = vor.u32 %v5019, %v5020
        %v5023 = vsel %vm635, %v5015, %v5022
        %v5024 = vrot.slane %v5019, 4
        %v5026 = vshrl.u32 %v4908, 16
        %v5028 = vrot.slane %v5026, 7
        %v5029 = vshll.u32 %v4908, 16
        %v5031 = vor.u32 %v5028, %v5029
        %v5032 = vsel %vm635, %v5024, %v5031
        %v5034 = vshrl.u32 %v4909, 16
        %v5036 = vrot.slane %v5034, 7
        %v5037 = vrot.slane %v5036, 4
        %v5039 = vshrl.u32 %v4910, 16
        %v5041 = vrot.slane %v5039, 7
        %v5042 = vshll.u32 %v4910, 16
        %v5044 = vor.u32 %v5041, %v5042
        %v5045 = vsel %vm635, %v5037, %v5044
        %v5046 = vrot.slane %v5041, 4
        %v5048 = vshrl.u32 %v4911, 16
        %v5050 = vrot.slane %v5048, 7
        %v5051 = vshll.u32 %v4911, 16
        %v5053 = vor.u32 %v5050, %v5051
        %v5054 = vsel %vm635, %v5046, %v5053
        %v5056 = vshrl.u32 %v4912, 16
        %v5058 = vrot.slane %v5056, 7
        %v5059 = vrot.slane %v5058, 4
        %v5061 = vshrl.u32 %v4913, 16
        %v5063 = vrot.slane %v5061, 7
        %v5064 = vshll.u32 %v4913, 16
        %v5066 = vor.u32 %v5063, %v5064
        %v5067 = vsel %vm635, %v5059, %v5066
        %v5068 = vrot.slane %v5063, 4
        %v5070 = vshrl.u32 %v4914, 16
        %v5072 = vrot.slane %v5070, 7
        %v5073 = vshll.u32 %v4914, 16
        %v5075 = vor.u32 %v5072, %v5073
        %v5076 = vsel %vm635, %v5068, %v5075
        %v5078 = vshrl.u32 %v4915, 16
        %v5080 = vrot.slane %v5078, 7
        %v5081 = vrot.slane %v5080, 4
        %v5083 = vshrl.u32 %v4916, 16
        %v5085 = vrot.slane %v5083, 7
        %v5086 = vshll.u32 %v4916, 16
        %v5088 = vor.u32 %v5085, %v5086
        %v5089 = vsel %vm635, %v5081, %v5088
        %v5090 = vrot.slane %v5085, 4
        %v5092 = vshrl.u32 %v4917, 16
        %v5094 = vrot.slane %v5092, 7
        %v5095 = vshll.u32 %v4917, 16
        %v5097 = vor.u32 %v5094, %v5095
        %v5098 = vsel %vm635, %v5090, %v5097
        %v5100 = vshrl.u32 %v4918, 16
        %v5102 = vrot.slane %v5100, 7
        %v5103 = vrot.slane %v5102, 4
        %v5105 = vshrl.u32 %v4919, 16
        %v5107 = vrot.slane %v5105, 7
        %v5108 = vshll.u32 %v4919, 16
        %v5110 = vor.u32 %v5107, %v5108
        %v5111 = vsel %vm635, %v5103, %v5110
        %v5112 = vrot.slane %v5107, 4
        %v5114 = vshrl.u32 %v4920, 16
        %v5116 = vrot.slane %v5114, 7
        %v5117 = vshll.u32 %v4920, 16
        %v5119 = vor.u32 %v5116, %v5117
        %v5120 = vsel %vm635, %v5112, %v5119
        %v5122 = vshrl.u32 %v4921, 16
        %v5124 = vrot.slane %v5122, 7
        %v5125 = vrot.slane %v5124, 4
        %v5127 = vshrl.u32 %v4922, 16
        %v5129 = vrot.slane %v5127, 7
        %v5130 = vshll.u32 %v4922, 16
        %v5132 = vor.u32 %v5129, %v5130
        %v5133 = vsel %vm635, %v5125, %v5132
        %v5134 = vrot.slane %v5129, 4
        %v5136 = vshrl.u32 %v4923, 16
        %v5138 = vrot.slane %v5136, 7
        %v5139 = vshll.u32 %v4923, 16
        %v5141 = vor.u32 %v5138, %v5139
        %v5142 = vsel %vm635, %v5134, %v5141
        %v5144 = vshrl.u32 %v4924, 16
        %v5146 = vrot.slane %v5144, 7
        %v5147 = vrot.slane %v5146, 4
        %v5149 = vshrl.u32 %v4925, 16
        %v5151 = vrot.slane %v5149, 7
        %v5152 = vshll.u32 %v4925, 16
        %v5154 = vor.u32 %v5151, %v5152
        %v5155 = vsel %vm635, %v5147, %v5154
        %v5156 = vrot.slane %v5151, 4
        %v5158 = vshrl.u32 %v4926, 16
        %v5160 = vrot.slane %v5158, 7
        %v5161 = vshll.u32 %v4926, 16
        %v5163 = vor.u32 %v5160, %v5161
        %v5164 = vsel %vm635, %v5156, %v5163
        %v5166 = vshrl.u32 %v4927, 16
        %v5168 = vrot.slane %v5166, 7
        %v5169 = vrot.slane %v5168, 4
        %v5171 = vshrl.u32 %v4928, 16
        %v5173 = vrot.slane %v5171, 7
        %v5174 = vshll.u32 %v4928, 16
        %v5176 = vor.u32 %v5173, %v5174
        %v5177 = vsel %vm635, %v5169, %v5176
        %v5178 = vrot.slane %v5173, 4
        %v5180 = vshrl.u32 %v4929, 16
        %v5182 = vrot.slane %v5180, 7
        %v5183 = vshll.u32 %v4929, 16
        %v5185 = vor.u32 %v5182, %v5183
        %v5186 = vsel %vm635, %v5178, %v5185
        %v5188 = vshrl.u32 %v4930, 16
        %v5190 = vrot.slane %v5188, 7
        %v5191 = vrot.slane %v5190, 4
        %v5193 = vshrl.u32 %v4931, 16
        %v5195 = vrot.slane %v5193, 7
        %v5196 = vshll.u32 %v4931, 16
        %v5198 = vor.u32 %v5195, %v5196
        %v5199 = vsel %vm635, %v5191, %v5198
        %v5200 = vrot.slane %v5195, 4
        %v5202 = vshrl.u32 %v4932, 16
        %v5204 = vrot.slane %v5202, 7
        %v5205 = vshll.u32 %v4932, 16
        %v5207 = vor.u32 %v5204, %v5205
        %v5208 = vsel %vm635, %v5200, %v5207
        %v5210 = vshrl.u32 %v4933, 16
        %v5212 = vrot.slane %v5210, 7
        %v5213 = vrot.slane %v5212, 4
        %v5215 = vshrl.u32 %v4934, 16
        %v5217 = vrot.slane %v5215, 7
        %v5218 = vshll.u32 %v4934, 16
        %v5220 = vor.u32 %v5217, %v5218
        %v5221 = vsel %vm635, %v5213, %v5220
        %v5222 = vrot.slane %v5217, 4
        %v5224 = vshrl.u32 %v4935, 16
        %v5226 = vrot.slane %v5224, 7
        %v5227 = vshll.u32 %v4935, 16
        %v5229 = vor.u32 %v5226, %v5227
        %v5230 = vsel %vm635, %v5222, %v5229
        %v5232 = vshrl.u32 %v4936, 16
        %v5234 = vrot.slane %v5232, 7
        %v5235 = vrot.slane %v5234, 4
        %v5237 = vshrl.u32 %v4937, 16
        %v5239 = vrot.slane %v5237, 7
        %v5240 = vshll.u32 %v4937, 16
        %v5242 = vor.u32 %v5239, %v5240
        %v5243 = vsel %vm635, %v5235, %v5242
        %v5244 = vrot.slane %v5239, 4
        %v5246 = vshrl.u32 %v4938, 16
        %v5248 = vrot.slane %v5246, 7
        %v5249 = vshll.u32 %v4938, 16
        %v5251 = vor.u32 %v5248, %v5249
        %v5252 = vsel %vm635, %v5244, %v5251
        %v5254 = vshrl.u32 %v4939, 16
        %v5256 = vrot.slane %v5254, 7
        %v5257 = vrot.slane %v5256, 4
        %v5259 = vshrl.u32 %v4940, 16
        %v5261 = vrot.slane %v5259, 7
        %v5262 = vshll.u32 %v4940, 16
        %v5264 = vor.u32 %v5261, %v5262
        %v5265 = vsel %vm635, %v5257, %v5264
        %v5266 = vrot.slane %v5261, 4
        %v5268 = vshrl.u32 %v4941, 16
        %v5270 = vrot.slane %v5268, 7
        %v5271 = vshll.u32 %v4941, 16
        %v5273 = vor.u32 %v5270, %v5271
        %v5274 = vsel %vm635, %v5266, %v5273
        %v5276 = vshrl.u32 %v4942, 16
        %v5278 = vrot.slane %v5276, 7
        %v5279 = vrot.slane %v5278, 4
        %v5281 = vshrl.u32 %v4943, 16
        %v5283 = vrot.slane %v5281, 7
        %v5284 = vshll.u32 %v4943, 16
        %v5286 = vor.u32 %v5283, %v5284
        %v5287 = vsel %vm635, %v5279, %v5286
        %v5288 = vrot.slane %v5283, 4
        %v5290 = vshrl.u32 %v4944, 16
        %v5292 = vrot.slane %v5290, 7
        %v5293 = vshll.u32 %v4944, 16
        %v5295 = vor.u32 %v5292, %v5293
        %v5296 = vsel %vm635, %v5288, %v5295
        %v5297 = vld [vmem:[#allocation2 + $0x10] sm:$0x1]
        %v5298 = vld [vmem:[#allocation2 + $0x24] sm:$0x1]
        %v5299 = vld [vmem:[#allocation2 + $0x38] sm:$0x1]
        %v5300 = vld [vmem:[#allocation2 + $0x4c] sm:$0x1]
        %v5301 = vld [vmem:[#allocation2 + $0x60] sm:$0x1]
        %v5302 = vld [vmem:[#allocation2 + $0x74] sm:$0x1]
        %v5303 = vld [vmem:[#allocation2 + $0x88] sm:$0x1]
        %v5304 = vld [vmem:[#allocation2 + $0x9c] sm:$0x1]
        %v5305 = vld [vmem:[#allocation2 + $0xb0] sm:$0x1]
        %v5306 = vld [vmem:[#allocation2 + $0xc4] sm:$0x1]
        %v5307 = vld [vmem:[#allocation2 + $0xd8] sm:$0x1]
        %v5308 = vld [vmem:[#allocation2 + $0xec] sm:$0x1]
        %v5309 = vld [vmem:[#allocation2 + $0x100] sm:$0x1]
        %v5310 = vld [vmem:[#allocation2 + $0x114] sm:$0x1]
        %v5311 = vld [vmem:[#allocation2 + $0x128] sm:$0x1]
        %v5312 = vld [vmem:[#allocation2 + $0x13c] sm:$0x1]
        %v5313 = vrot.slane %v4951, 4
        %v5314 = vrot.slane %v4954, 5
        %v5315 = vor.u32 %v5313, %v5314
        %v5316 = vrot.slane %v5315, 4
        %v5317 = vrot.slane %v4963, 5
        %v5318 = vsel %vm1006, %v5316, %v5317
        %v5319 = vrot.slane %v4960, 4
        %v5320 = vor.u32 %v5319, %v5317
        %v5321 = vrot.slane %v5320, 4
        %v5323 = vshll.u32 %v5297, 16
        %v5325 = vrot.slane %v5323, 5
        %v5326 = vsel %vm1006, %v5321, %v5325
        %v5327 = vrot.slane %v4973, 4
        %v5328 = vrot.slane %v4976, 5
        %v5329 = vor.u32 %v5327, %v5328
        %v5330 = vrot.slane %v5329, 4
        %v5331 = vrot.slane %v4985, 5
        %v5332 = vsel %vm1006, %v5330, %v5331
        %v5333 = vrot.slane %v4982, 4
        %v5334 = vor.u32 %v5333, %v5331
        %v5335 = vrot.slane %v5334, 4
        %v5337 = vshll.u32 %v5298, 16
        %v5339 = vrot.slane %v5337, 5
        %v5340 = vsel %vm1006, %v5335, %v5339
        %v5341 = vrot.slane %v4995, 4
        %v5342 = vrot.slane %v4998, 5
        %v5343 = vor.u32 %v5341, %v5342
        %v5344 = vrot.slane %v5343, 4
        %v5345 = vrot.slane %v5007, 5
        %v5346 = vsel %vm1006, %v5344, %v5345
        %v5347 = vrot.slane %v5004, 4
        %v5348 = vor.u32 %v5347, %v5345
        %v5349 = vrot.slane %v5348, 4
        %v5351 = vshll.u32 %v5299, 16
        %v5353 = vrot.slane %v5351, 5
        %v5354 = vsel %vm1006, %v5349, %v5353
        %v5355 = vrot.slane %v5017, 4
        %v5356 = vrot.slane %v5020, 5
        %v5357 = vor.u32 %v5355, %v5356
        %v5358 = vrot.slane %v5357, 4
        %v5359 = vrot.slane %v5029, 5
        %v5360 = vsel %vm1006, %v5358, %v5359
        %v5361 = vrot.slane %v5026, 4
        %v5362 = vor.u32 %v5361, %v5359
        %v5363 = vrot.slane %v5362, 4
        %v5365 = vshll.u32 %v5300, 16
        %v5367 = vrot.slane %v5365, 5
        %v5368 = vsel %vm1006, %v5363, %v5367
        %v5369 = vrot.slane %v5039, 4
        %v5370 = vrot.slane %v5042, 5
        %v5371 = vor.u32 %v5369, %v5370
        %v5372 = vrot.slane %v5371, 4
        %v5373 = vrot.slane %v5051, 5
        %v5374 = vsel %vm1006, %v5372, %v5373
        %v5375 = vrot.slane %v5048, 4
        %v5376 = vor.u32 %v5375, %v5373
        %v5377 = vrot.slane %v5376, 4
        %v5379 = vshll.u32 %v5301, 16
        %v5381 = vrot.slane %v5379, 5
        %v5382 = vsel %vm1006, %v5377, %v5381
        %v5383 = vrot.slane %v5061, 4
        %v5384 = vrot.slane %v5064, 5
        %v5385 = vor.u32 %v5383, %v5384
        %v5386 = vrot.slane %v5385, 4
        %v5387 = vrot.slane %v5073, 5
        %v5388 = vsel %vm1006, %v5386, %v5387
        %v5389 = vrot.slane %v5070, 4
        %v5390 = vor.u32 %v5389, %v5387
        %v5391 = vrot.slane %v5390, 4
        %v5393 = vshll.u32 %v5302, 16
        %v5395 = vrot.slane %v5393, 5
        %v5396 = vsel %vm1006, %v5391, %v5395
        %v5397 = vrot.slane %v5083, 4
        %v5398 = vrot.slane %v5086, 5
        %v5399 = vor.u32 %v5397, %v5398
        %v5400 = vrot.slane %v5399, 4
        %v5401 = vrot.slane %v5095, 5
        %v5402 = vsel %vm1006, %v5400, %v5401
        %v5403 = vrot.slane %v5092, 4
        %v5404 = vor.u32 %v5403, %v5401
        %v5405 = vrot.slane %v5404, 4
        %v5407 = vshll.u32 %v5303, 16
        %v5409 = vrot.slane %v5407, 5
        %v5410 = vsel %vm1006, %v5405, %v5409
        %v5411 = vrot.slane %v5105, 4
        %v5412 = vrot.slane %v5108, 5
        %v5413 = vor.u32 %v5411, %v5412
        %v5414 = vrot.slane %v5413, 4
        %v5415 = vrot.slane %v5117, 5
        %v5416 = vsel %vm1006, %v5414, %v5415
        %v5417 = vrot.slane %v5114, 4
        %v5418 = vor.u32 %v5417, %v5415
        %v5419 = vrot.slane %v5418, 4
        %v5421 = vshll.u32 %v5304, 16
        %v5423 = vrot.slane %v5421, 5
        %v5424 = vsel %vm1006, %v5419, %v5423
        %v5425 = vrot.slane %v5127, 4
        %v5426 = vrot.slane %v5130, 5
        %v5427 = vor.u32 %v5425, %v5426
        %v5428 = vrot.slane %v5427, 4
        %v5429 = vrot.slane %v5139, 5
        %v5430 = vsel %vm1006, %v5428, %v5429
        %v5431 = vrot.slane %v5136, 4
        %v5432 = vor.u32 %v5431, %v5429
        %v5433 = vrot.slane %v5432, 4
        %v5435 = vshll.u32 %v5305, 16
        %v5437 = vrot.slane %v5435, 5
        %v5438 = vsel %vm1006, %v5433, %v5437
        %v5439 = vrot.slane %v5149, 4
        %v5440 = vrot.slane %v5152, 5
        %v5441 = vor.u32 %v5439, %v5440
        %v5442 = vrot.slane %v5441, 4
        %v5443 = vrot.slane %v5161, 5
        %v5444 = vsel %vm1006, %v5442, %v5443
        %v5445 = vrot.slane %v5158, 4
        %v5446 = vor.u32 %v5445, %v5443
        %v5447 = vrot.slane %v5446, 4
        %v5449 = vshll.u32 %v5306, 16
        %v5451 = vrot.slane %v5449, 5
        %v5452 = vsel %vm1006, %v5447, %v5451
        %v5453 = vrot.slane %v5171, 4
        %v5454 = vrot.slane %v5174, 5
        %v5455 = vor.u32 %v5453, %v5454
        %v5456 = vrot.slane %v5455, 4
        %v5457 = vrot.slane %v5183, 5
        %v5458 = vsel %vm1006, %v5456, %v5457
        %v5459 = vrot.slane %v5180, 4
        %v5460 = vor.u32 %v5459, %v5457
        %v5461 = vrot.slane %v5460, 4
        %v5463 = vshll.u32 %v5307, 16
        %v5465 = vrot.slane %v5463, 5
        %v5466 = vsel %vm1006, %v5461, %v5465
        %v5467 = vrot.slane %v5193, 4
        %v5468 = vrot.slane %v5196, 5
        %v5469 = vor.u32 %v5467, %v5468
        %v5470 = vrot.slane %v5469, 4
        %v5471 = vrot.slane %v5205, 5
        %v5472 = vsel %vm1006, %v5470, %v5471
        %v5473 = vrot.slane %v5202, 4
        %v5474 = vor.u32 %v5473, %v5471
        %v5475 = vrot.slane %v5474, 4
        %v5477 = vshll.u32 %v5308, 16
        %v5479 = vrot.slane %v5477, 5
        %v5480 = vsel %vm1006, %v5475, %v5479
        %v5481 = vrot.slane %v5215, 4
        %v5482 = vrot.slane %v5218, 5
        %v5483 = vor.u32 %v5481, %v5482
        %v5484 = vrot.slane %v5483, 4
        %v5485 = vrot.slane %v5227, 5
        %v5486 = vsel %vm1006, %v5484, %v5485
        %v5487 = vrot.slane %v5224, 4
        %v5488 = vor.u32 %v5487, %v5485
        %v5489 = vrot.slane %v5488, 4
        %v5491 = vshll.u32 %v5309, 16
        %v5493 = vrot.slane %v5491, 5
        %v5494 = vsel %vm1006, %v5489, %v5493
        %v5495 = vrot.slane %v5237, 4
        %v5496 = vrot.slane %v5240, 5
        %v5497 = vor.u32 %v5495, %v5496
        %v5498 = vrot.slane %v5497, 4
        %v5499 = vrot.slane %v5249, 5
        %v5500 = vsel %vm1006, %v5498, %v5499
        %v5501 = vrot.slane %v5246, 4
        %v5502 = vor.u32 %v5501, %v5499
        %v5503 = vrot.slane %v5502, 4
        %v5505 = vshll.u32 %v5310, 16
        %v5507 = vrot.slane %v5505, 5
        %v5508 = vsel %vm1006, %v5503, %v5507
        %v5509 = vrot.slane %v5259, 4
        %v5510 = vrot.slane %v5262, 5
        %v5511 = vor.u32 %v5509, %v5510
        %v5512 = vrot.slane %v5511, 4
        %v5513 = vrot.slane %v5271, 5
        %v5514 = vsel %vm1006, %v5512, %v5513
        %v5515 = vrot.slane %v5268, 4
        %v5516 = vor.u32 %v5515, %v5513
        %v5517 = vrot.slane %v5516, 4
        %v5519 = vshll.u32 %v5311, 16
        %v5521 = vrot.slane %v5519, 5
        %v5522 = vsel %vm1006, %v5517, %v5521
        %v5523 = vrot.slane %v5281, 4
        %v5524 = vrot.slane %v5284, 5
        %v5525 = vor.u32 %v5523, %v5524
        %v5526 = vrot.slane %v5525, 4
        %v5527 = vrot.slane %v5293, 5
        %v5528 = vsel %vm1006, %v5526, %v5527
        %v5529 = vrot.slane %v5290, 4
        %v5530 = vor.u32 %v5529, %v5527
        %v5531 = vrot.slane %v5530, 4
        %v5533 = vshll.u32 %v5312, 16
        %v5535 = vrot.slane %v5533, 5
        %v5536 = vsel %vm1006, %v5531, %v5535
        %v5537 = vld [vmem:[%s551 + $0x4] sm:$0x8]
        %v5538 = vld [vmem:[%s551 + $0x8] sm:$0xf]
        %v5539 = vld [vmem:[%s551 + $0xc] sm:$0xf]
        %v5540 = vld [vmem:[%s551 + $0x18] sm:$0x8]
        %v5541 = vld [vmem:[%s551 + $0x1c] sm:$0xf]
        %v5542 = vld [vmem:[%s551 + $0x20] sm:$0xf]
        %v5543 = vld [vmem:[%s551 + $0x2c] sm:$0x8]
        %v5544 = vld [vmem:[%s551 + $0x30] sm:$0xf]
        %v5545 = vld [vmem:[%s551 + $0x34] sm:$0xf]
        %v5546 = vld [vmem:[%s551 + $0x40] sm:$0x8]
        %v5547 = vld [vmem:[%s551 + $0x44] sm:$0xf]
        %v5548 = vld [vmem:[%s551 + $0x48] sm:$0xf]
        %v5549 = vld [vmem:[%s551 + $0x54] sm:$0x8]
        %v5550 = vld [vmem:[%s551 + $0x58] sm:$0xf]
        %v5551 = vld [vmem:[%s551 + $0x5c] sm:$0xf]
        %v5552 = vld [vmem:[%s551 + $0x68] sm:$0x8]
        %v5553 = vld [vmem:[%s551 + $0x6c] sm:$0xf]
        %v5554 = vld [vmem:[%s551 + $0x70] sm:$0xf]
        %v5555 = vld [vmem:[%s551 + $0x7c] sm:$0x8]
        %v5556 = vld [vmem:[%s551 + $0x80] sm:$0xf]
        %v5557 = vld [vmem:[%s551 + $0x84] sm:$0xf]
        %v5558 = vld [vmem:[%s551 + $0x90] sm:$0x8]
        %v5559 = vld [vmem:[%s551 + $0x94] sm:$0xf]
        %v5560 = vld [vmem:[%s551 + $0x98] sm:$0xf]
        %v5561 = vld [vmem:[%s551 + $0xa4] sm:$0x8]
        %v5562 = vld [vmem:[%s551 + $0xa8] sm:$0xf]
        %v5563 = vld [vmem:[%s551 + $0xac] sm:$0xf]
        %v5564 = vld [vmem:[%s551 + $0xb8] sm:$0x8]
        %v5565 = vld [vmem:[%s551 + $0xbc] sm:$0xf]
        %v5566 = vld [vmem:[%s551 + $0xc0] sm:$0xf]
        %v5567 = vld [vmem:[%s551 + $0xcc] sm:$0x8]
        %v5568 = vld [vmem:[%s551 + $0xd0] sm:$0xf]
        %v5569 = vld [vmem:[%s551 + $0xd4] sm:$0xf]
        %v5570 = vld [vmem:[%s551 + $0xe0] sm:$0x8]
        %v5571 = vld [vmem:[%s551 + $0xe4] sm:$0xf]
        %v5572 = vld [vmem:[%s551 + $0xe8] sm:$0xf]
        %v5573 = vld [vmem:[%s551 + $0xf4] sm:$0x8]
        %v5574 = vld [vmem:[%s551 + $0xf8] sm:$0xf]
        %v5575 = vld [vmem:[%s551 + $0xfc] sm:$0xf]
        %v5576 = vld [vmem:[%s551 + $0x108] sm:$0x8]
        %v5577 = vld [vmem:[%s551 + $0x10c] sm:$0xf]
        %v5578 = vld [vmem:[%s551 + $0x110] sm:$0xf]
        %v5579 = vld [vmem:[%s551 + $0x11c] sm:$0x8]
        %v5580 = vld [vmem:[%s551 + $0x120] sm:$0xf]
        %v5581 = vld [vmem:[%s551 + $0x124] sm:$0xf]
        %v5582 = vld [vmem:[%s551 + $0x130] sm:$0x8]
        %v5583 = vld [vmem:[%s551 + $0x134] sm:$0xf]
        %v5584 = vld [vmem:[%s551 + $0x138] sm:$0xf]
        %v5586 = vshrl.u32 %v5537, 16
        %v5588 = vrot.slane %v5586, 7
        %v5589 = vrot.slane %v5588, 4
        %v5591 = vshrl.u32 %v5538, 16
        %v5593 = vrot.slane %v5591, 7
        %v5594 = vshll.u32 %v5538, 16
        %v5596 = vor.u32 %v5593, %v5594
        %v5597 = vsel %vm635, %v5589, %v5596
        %v5598 = vrot.slane %v5593, 4
        %v5600 = vshrl.u32 %v5539, 16
        %v5602 = vrot.slane %v5600, 7
        %v5603 = vshll.u32 %v5539, 16
        %v5605 = vor.u32 %v5602, %v5603
        %v5606 = vsel %vm635, %v5598, %v5605
        %v5608 = vshrl.u32 %v5540, 16
        %v5610 = vrot.slane %v5608, 7
        %v5611 = vrot.slane %v5610, 4
        %v5613 = vshrl.u32 %v5541, 16
        %v5615 = vrot.slane %v5613, 7
        %v5616 = vshll.u32 %v5541, 16
        %v5618 = vor.u32 %v5615, %v5616
        %v5619 = vsel %vm635, %v5611, %v5618
        %v5620 = vrot.slane %v5615, 4
        %v5622 = vshrl.u32 %v5542, 16
        %v5624 = vrot.slane %v5622, 7
        %v5625 = vshll.u32 %v5542, 16
        %v5627 = vor.u32 %v5624, %v5625
        %v5628 = vsel %vm635, %v5620, %v5627
        %v5630 = vshrl.u32 %v5543, 16
        %v5632 = vrot.slane %v5630, 7
        %v5633 = vrot.slane %v5632, 4
        %v5635 = vshrl.u32 %v5544, 16
        %v5637 = vrot.slane %v5635, 7
        %v5638 = vshll.u32 %v5544, 16
        %v5640 = vor.u32 %v5637, %v5638
        %v5641 = vsel %vm635, %v5633, %v5640
        %v5642 = vrot.slane %v5637, 4
        %v5644 = vshrl.u32 %v5545, 16
        %v5646 = vrot.slane %v5644, 7
        %v5647 = vshll.u32 %v5545, 16
        %v5649 = vor.u32 %v5646, %v5647
        %v5650 = vsel %vm635, %v5642, %v5649
        %v5652 = vshrl.u32 %v5546, 16
        %v5654 = vrot.slane %v5652, 7
        %v5655 = vrot.slane %v5654, 4
        %v5657 = vshrl.u32 %v5547, 16
        %v5659 = vrot.slane %v5657, 7
        %v5660 = vshll.u32 %v5547, 16
        %v5662 = vor.u32 %v5659, %v5660
        %v5663 = vsel %vm635, %v5655, %v5662
        %v5664 = vrot.slane %v5659, 4
        %v5666 = vshrl.u32 %v5548, 16
        %v5668 = vrot.slane %v5666, 7
        %v5669 = vshll.u32 %v5548, 16
        %v5671 = vor.u32 %v5668, %v5669
        %v5672 = vsel %vm635, %v5664, %v5671
        %v5674 = vshrl.u32 %v5549, 16
        %v5676 = vrot.slane %v5674, 7
        %v5677 = vrot.slane %v5676, 4
        %v5679 = vshrl.u32 %v5550, 16
        %v5681 = vrot.slane %v5679, 7
        %v5682 = vshll.u32 %v5550, 16
        %v5684 = vor.u32 %v5681, %v5682
        %v5685 = vsel %vm635, %v5677, %v5684
        %v5686 = vrot.slane %v5681, 4
        %v5688 = vshrl.u32 %v5551, 16
        %v5690 = vrot.slane %v5688, 7
        %v5691 = vshll.u32 %v5551, 16
        %v5693 = vor.u32 %v5690, %v5691
        %v5694 = vsel %vm635, %v5686, %v5693
        %v5696 = vshrl.u32 %v5552, 16
        %v5698 = vrot.slane %v5696, 7
        %v5699 = vrot.slane %v5698, 4
        %v5701 = vshrl.u32 %v5553, 16
        %v5703 = vrot.slane %v5701, 7
        %v5704 = vshll.u32 %v5553, 16
        %v5706 = vor.u32 %v5703, %v5704
        %v5707 = vsel %vm635, %v5699, %v5706
        %v5708 = vrot.slane %v5703, 4
        %v5710 = vshrl.u32 %v5554, 16
        %v5712 = vrot.slane %v5710, 7
        %v5713 = vshll.u32 %v5554, 16
        %v5715 = vor.u32 %v5712, %v5713
        %v5716 = vsel %vm635, %v5708, %v5715
        %v5718 = vshrl.u32 %v5555, 16
        %v5720 = vrot.slane %v5718, 7
        %v5721 = vrot.slane %v5720, 4
        %v5723 = vshrl.u32 %v5556, 16
        %v5725 = vrot.slane %v5723, 7
        %v5726 = vshll.u32 %v5556, 16
        %v5728 = vor.u32 %v5725, %v5726
        %v5729 = vsel %vm635, %v5721, %v5728
        %v5730 = vrot.slane %v5725, 4
        %v5732 = vshrl.u32 %v5557, 16
        %v5734 = vrot.slane %v5732, 7
        %v5735 = vshll.u32 %v5557, 16
        %v5737 = vor.u32 %v5734, %v5735
        %v5738 = vsel %vm635, %v5730, %v5737
        %v5740 = vshrl.u32 %v5558, 16
        %v5742 = vrot.slane %v5740, 7
        %v5743 = vrot.slane %v5742, 4
        %v5745 = vshrl.u32 %v5559, 16
        %v5747 = vrot.slane %v5745, 7
        %v5748 = vshll.u32 %v5559, 16
        %v5750 = vor.u32 %v5747, %v5748
        %v5751 = vsel %vm635, %v5743, %v5750
        %v5752 = vrot.slane %v5747, 4
        %v5754 = vshrl.u32 %v5560, 16
        %v5756 = vrot.slane %v5754, 7
        %v5757 = vshll.u32 %v5560, 16
        %v5759 = vor.u32 %v5756, %v5757
        %v5760 = vsel %vm635, %v5752, %v5759
        %v5762 = vshrl.u32 %v5561, 16
        %v5764 = vrot.slane %v5762, 7
        %v5765 = vrot.slane %v5764, 4
        %v5767 = vshrl.u32 %v5562, 16
        %v5769 = vrot.slane %v5767, 7
        %v5770 = vshll.u32 %v5562, 16
        %v5772 = vor.u32 %v5769, %v5770
        %v5773 = vsel %vm635, %v5765, %v5772
        %v5774 = vrot.slane %v5769, 4
        %v5776 = vshrl.u32 %v5563, 16
        %v5778 = vrot.slane %v5776, 7
        %v5779 = vshll.u32 %v5563, 16
        %v5781 = vor.u32 %v5778, %v5779
        %v5782 = vsel %vm635, %v5774, %v5781
        %v5784 = vshrl.u32 %v5564, 16
        %v5786 = vrot.slane %v5784, 7
        %v5787 = vrot.slane %v5786, 4
        %v5789 = vshrl.u32 %v5565, 16
        %v5791 = vrot.slane %v5789, 7
        %v5792 = vshll.u32 %v5565, 16
        %v5794 = vor.u32 %v5791, %v5792
        %v5795 = vsel %vm635, %v5787, %v5794
        %v5796 = vrot.slane %v5791, 4
        %v5798 = vshrl.u32 %v5566, 16
        %v5800 = vrot.slane %v5798, 7
        %v5801 = vshll.u32 %v5566, 16
        %v5803 = vor.u32 %v5800, %v5801
        %v5804 = vsel %vm635, %v5796, %v5803
        %v5806 = vshrl.u32 %v5567, 16
        %v5808 = vrot.slane %v5806, 7
        %v5809 = vrot.slane %v5808, 4
        %v5811 = vshrl.u32 %v5568, 16
        %v5813 = vrot.slane %v5811, 7
        %v5814 = vshll.u32 %v5568, 16
        %v5816 = vor.u32 %v5813, %v5814
        %v5817 = vsel %vm635, %v5809, %v5816
        %v5818 = vrot.slane %v5813, 4
        %v5820 = vshrl.u32 %v5569, 16
        %v5822 = vrot.slane %v5820, 7
        %v5823 = vshll.u32 %v5569, 16
        %v5825 = vor.u32 %v5822, %v5823
        %v5826 = vsel %vm635, %v5818, %v5825
        %v5828 = vshrl.u32 %v5570, 16
        %v5830 = vrot.slane %v5828, 7
        %v5831 = vrot.slane %v5830, 4
        %v5833 = vshrl.u32 %v5571, 16
        %v5835 = vrot.slane %v5833, 7
        %v5836 = vshll.u32 %v5571, 16
        %v5838 = vor.u32 %v5835, %v5836
        %v5839 = vsel %vm635, %v5831, %v5838
        %v5840 = vrot.slane %v5835, 4
        %v5842 = vshrl.u32 %v5572, 16
        %v5844 = vrot.slane %v5842, 7
        %v5845 = vshll.u32 %v5572, 16
        %v5847 = vor.u32 %v5844, %v5845
        %v5848 = vsel %vm635, %v5840, %v5847
        %v5850 = vshrl.u32 %v5573, 16
        %v5852 = vrot.slane %v5850, 7
        %v5853 = vrot.slane %v5852, 4
        %v5855 = vshrl.u32 %v5574, 16
        %v5857 = vrot.slane %v5855, 7
        %v5858 = vshll.u32 %v5574, 16
        %v5860 = vor.u32 %v5857, %v5858
        %v5861 = vsel %vm635, %v5853, %v5860
        %v5862 = vrot.slane %v5857, 4
        %v5864 = vshrl.u32 %v5575, 16
        %v5866 = vrot.slane %v5864, 7
        %v5867 = vshll.u32 %v5575, 16
        %v5869 = vor.u32 %v5866, %v5867
        %v5870 = vsel %vm635, %v5862, %v5869
        %v5872 = vshrl.u32 %v5576, 16
        %v5874 = vrot.slane %v5872, 7
        %v5875 = vrot.slane %v5874, 4
        %v5877 = vshrl.u32 %v5577, 16
        %v5879 = vrot.slane %v5877, 7
        %v5880 = vshll.u32 %v5577, 16
        %v5882 = vor.u32 %v5879, %v5880
        %v5883 = vsel %vm635, %v5875, %v5882
        %v5884 = vrot.slane %v5879, 4
        %v5886 = vshrl.u32 %v5578, 16
        %v5888 = vrot.slane %v5886, 7
        %v5889 = vshll.u32 %v5578, 16
        %v5891 = vor.u32 %v5888, %v5889
        %v5892 = vsel %vm635, %v5884, %v5891
        %v5894 = vshrl.u32 %v5579, 16
        %v5896 = vrot.slane %v5894, 7
        %v5897 = vrot.slane %v5896, 4
        %v5899 = vshrl.u32 %v5580, 16
        %v5901 = vrot.slane %v5899, 7
        %v5902 = vshll.u32 %v5580, 16
        %v5904 = vor.u32 %v5901, %v5902
        %v5905 = vsel %vm635, %v5897, %v5904
        %v5906 = vrot.slane %v5901, 4
        %v5908 = vshrl.u32 %v5581, 16
        %v5910 = vrot.slane %v5908, 7
        %v5911 = vshll.u32 %v5581, 16
        %v5913 = vor.u32 %v5910, %v5911
        %v5914 = vsel %vm635, %v5906, %v5913
        %v5916 = vshrl.u32 %v5582, 16
        %v5918 = vrot.slane %v5916, 7
        %v5919 = vrot.slane %v5918, 4
        %v5921 = vshrl.u32 %v5583, 16
        %v5923 = vrot.slane %v5921, 7
        %v5924 = vshll.u32 %v5583, 16
        %v5926 = vor.u32 %v5923, %v5924
        %v5927 = vsel %vm635, %v5919, %v5926
        %v5928 = vrot.slane %v5923, 4
        %v5930 = vshrl.u32 %v5584, 16
        %v5932 = vrot.slane %v5930, 7
        %v5933 = vshll.u32 %v5584, 16
        %v5935 = vor.u32 %v5932, %v5933
        %v5936 = vsel %vm635, %v5928, %v5935
        %v5937 = vld [vmem:[%s551 + $0x10] sm:$0x1]
        %v5938 = vld [vmem:[%s551 + $0x24] sm:$0x1]
        %v5939 = vld [vmem:[%s551 + $0x38] sm:$0x1]
        %v5940 = vld [vmem:[%s551 + $0x4c] sm:$0x1]
        %v5941 = vld [vmem:[%s551 + $0x60] sm:$0x1]
        %v5942 = vld [vmem:[%s551 + $0x74] sm:$0x1]
        %v5943 = vld [vmem:[%s551 + $0x88] sm:$0x1]
        %v5944 = vld [vmem:[%s551 + $0x9c] sm:$0x1]
        %v5945 = vld [vmem:[%s551 + $0xb0] sm:$0x1]
        %v5946 = vld [vmem:[%s551 + $0xc4] sm:$0x1]
        %v5947 = vld [vmem:[%s551 + $0xd8] sm:$0x1]
        %v5948 = vld [vmem:[%s551 + $0xec] sm:$0x1]
        %v5949 = vld [vmem:[%s551 + $0x100] sm:$0x1]
        %v5950 = vld [vmem:[%s551 + $0x114] sm:$0x1]
        %v5951 = vld [vmem:[%s551 + $0x128] sm:$0x1]
        %v5952 = vld [vmem:[%s551 + $0x13c] sm:$0x1]
        %v5953 = vrot.slane %v5591, 4
        %v5954 = vrot.slane %v5594, 5
        %v5955 = vor.u32 %v5953, %v5954
        %v5956 = vrot.slane %v5955, 4
        %v5957 = vrot.slane %v5603, 5
        %v5958 = vsel %vm1006, %v5956, %v5957
        %v5959 = vrot.slane %v5600, 4
        %v5960 = vor.u32 %v5959, %v5957
        %v5961 = vrot.slane %v5960, 4
        %v5963 = vshll.u32 %v5937, 16
        %v5965 = vrot.slane %v5963, 5
        %v5966 = vsel %vm1006, %v5961, %v5965
        %v5967 = vrot.slane %v5613, 4
        %v5968 = vrot.slane %v5616, 5
        %v5969 = vor.u32 %v5967, %v5968
        %v5970 = vrot.slane %v5969, 4
        %v5971 = vrot.slane %v5625, 5
        %v5972 = vsel %vm1006, %v5970, %v5971
        %v5973 = vrot.slane %v5622, 4
        %v5974 = vor.u32 %v5973, %v5971
        %v5975 = vrot.slane %v5974, 4
        %v5977 = vshll.u32 %v5938, 16
        %v5979 = vrot.slane %v5977, 5
        %v5980 = vsel %vm1006, %v5975, %v5979
        %v5981 = vrot.slane %v5635, 4
        %v5982 = vrot.slane %v5638, 5
        %v5983 = vor.u32 %v5981, %v5982
        %v5984 = vrot.slane %v5983, 4
        %v5985 = vrot.slane %v5647, 5
        %v5986 = vsel %vm1006, %v5984, %v5985
        %v5987 = vrot.slane %v5644, 4
        %v5988 = vor.u32 %v5987, %v5985
        %v5989 = vrot.slane %v5988, 4
        %v5991 = vshll.u32 %v5939, 16
        %v5993 = vrot.slane %v5991, 5
        %v5994 = vsel %vm1006, %v5989, %v5993
        %v5995 = vrot.slane %v5657, 4
        %v5996 = vrot.slane %v5660, 5
        %v5997 = vor.u32 %v5995, %v5996
        %v5998 = vrot.slane %v5997, 4
        %v5999 = vrot.slane %v5669, 5
        %v6000 = vsel %vm1006, %v5998, %v5999
        %v6001 = vrot.slane %v5666, 4
        %v6002 = vor.u32 %v6001, %v5999
        %v6003 = vrot.slane %v6002, 4
        %v6005 = vshll.u32 %v5940, 16
        %v6007 = vrot.slane %v6005, 5
        %v6008 = vsel %vm1006, %v6003, %v6007
        %v6009 = vrot.slane %v5679, 4
        %v6010 = vrot.slane %v5682, 5
        %v6011 = vor.u32 %v6009, %v6010
        %v6012 = vrot.slane %v6011, 4
        %v6013 = vrot.slane %v5691, 5
        %v6014 = vsel %vm1006, %v6012, %v6013
        %v6015 = vrot.slane %v5688, 4
        %v6016 = vor.u32 %v6015, %v6013
        %v6017 = vrot.slane %v6016, 4
        %v6019 = vshll.u32 %v5941, 16
        %v6021 = vrot.slane %v6019, 5
        %v6022 = vsel %vm1006, %v6017, %v6021
        %v6023 = vrot.slane %v5701, 4
        %v6024 = vrot.slane %v5704, 5
        %v6025 = vor.u32 %v6023, %v6024
        %v6026 = vrot.slane %v6025, 4
        %v6027 = vrot.slane %v5713, 5
        %v6028 = vsel %vm1006, %v6026, %v6027
        %v6029 = vrot.slane %v5710, 4
        %v6030 = vor.u32 %v6029, %v6027
        %v6031 = vrot.slane %v6030, 4
        %v6033 = vshll.u32 %v5942, 16
        %v6035 = vrot.slane %v6033, 5
        %v6036 = vsel %vm1006, %v6031, %v6035
        %v6037 = vrot.slane %v5723, 4
        %v6038 = vrot.slane %v5726, 5
        %v6039 = vor.u32 %v6037, %v6038
        %v6040 = vrot.slane %v6039, 4
        %v6041 = vrot.slane %v5735, 5
        %v6042 = vsel %vm1006, %v6040, %v6041
        %v6043 = vrot.slane %v5732, 4
        %v6044 = vor.u32 %v6043, %v6041
        %v6045 = vrot.slane %v6044, 4
        %v6047 = vshll.u32 %v5943, 16
        %v6049 = vrot.slane %v6047, 5
        %v6050 = vsel %vm1006, %v6045, %v6049
        %v6051 = vrot.slane %v5745, 4
        %v6052 = vrot.slane %v5748, 5
        %v6053 = vor.u32 %v6051, %v6052
        %v6054 = vrot.slane %v6053, 4
        %v6055 = vrot.slane %v5757, 5
        %v6056 = vsel %vm1006, %v6054, %v6055
        %v6057 = vrot.slane %v5754, 4
        %v6058 = vor.u32 %v6057, %v6055
        %v6059 = vrot.slane %v6058, 4
        %v6061 = vshll.u32 %v5944, 16
        %v6063 = vrot.slane %v6061, 5
        %v6064 = vsel %vm1006, %v6059, %v6063
        %v6065 = vrot.slane %v5767, 4
        %v6066 = vrot.slane %v5770, 5
        %v6067 = vor.u32 %v6065, %v6066
        %v6068 = vrot.slane %v6067, 4
        %v6069 = vrot.slane %v5779, 5
        %v6070 = vsel %vm1006, %v6068, %v6069
        %v6071 = vrot.slane %v5776, 4
        %v6072 = vor.u32 %v6071, %v6069
        %v6073 = vrot.slane %v6072, 4
        %v6075 = vshll.u32 %v5945, 16
        %v6077 = vrot.slane %v6075, 5
        %v6078 = vsel %vm1006, %v6073, %v6077
        %v6079 = vrot.slane %v5789, 4
        %v6080 = vrot.slane %v5792, 5
        %v6081 = vor.u32 %v6079, %v6080
        %v6082 = vrot.slane %v6081, 4
        %v6083 = vrot.slane %v5801, 5
        %v6084 = vsel %vm1006, %v6082, %v6083
        %v6085 = vrot.slane %v5798, 4
        %v6086 = vor.u32 %v6085, %v6083
        %v6087 = vrot.slane %v6086, 4
        %v6089 = vshll.u32 %v5946, 16
        %v6091 = vrot.slane %v6089, 5
        %v6092 = vsel %vm1006, %v6087, %v6091
        %v6093 = vrot.slane %v5811, 4
        %v6094 = vrot.slane %v5814, 5
        %v6095 = vor.u32 %v6093, %v6094
        %v6096 = vrot.slane %v6095, 4
        %v6097 = vrot.slane %v5823, 5
        %v6098 = vsel %vm1006, %v6096, %v6097
        %v6099 = vrot.slane %v5820, 4
        %v6100 = vor.u32 %v6099, %v6097
        %v6101 = vrot.slane %v6100, 4
        %v6103 = vshll.u32 %v5947, 16
        %v6105 = vrot.slane %v6103, 5
        %v6106 = vsel %vm1006, %v6101, %v6105
        %v6107 = vrot.slane %v5833, 4
        %v6108 = vrot.slane %v5836, 5
        %v6109 = vor.u32 %v6107, %v6108
        %v6110 = vrot.slane %v6109, 4
        %v6111 = vrot.slane %v5845, 5
        %v6112 = vsel %vm1006, %v6110, %v6111
        %v6113 = vrot.slane %v5842, 4
        %v6114 = vor.u32 %v6113, %v6111
        %v6115 = vrot.slane %v6114, 4
        %v6117 = vshll.u32 %v5948, 16
        %v6119 = vrot.slane %v6117, 5
        %v6120 = vsel %vm1006, %v6115, %v6119
        %v6121 = vrot.slane %v5855, 4
        %v6122 = vrot.slane %v5858, 5
        %v6123 = vor.u32 %v6121, %v6122
        %v6124 = vrot.slane %v6123, 4
        %v6125 = vrot.slane %v5867, 5
        %v6126 = vsel %vm1006, %v6124, %v6125
        %v6127 = vrot.slane %v5864, 4
        %v6128 = vor.u32 %v6127, %v6125
        %v6129 = vrot.slane %v6128, 4
        %v6131 = vshll.u32 %v5949, 16
        %v6133 = vrot.slane %v6131, 5
        %v6134 = vsel %vm1006, %v6129, %v6133
        %v6135 = vrot.slane %v5877, 4
        %v6136 = vrot.slane %v5880, 5
        %v6137 = vor.u32 %v6135, %v6136
        %v6138 = vrot.slane %v6137, 4
        %v6139 = vrot.slane %v5889, 5
        %v6140 = vsel %vm1006, %v6138, %v6139
        %v6141 = vrot.slane %v5886, 4
        %v6142 = vor.u32 %v6141, %v6139
        %v6143 = vrot.slane %v6142, 4
        %v6145 = vshll.u32 %v5950, 16
        %v6147 = vrot.slane %v6145, 5
        %v6148 = vsel %vm1006, %v6143, %v6147
        %v6149 = vrot.slane %v5899, 4
        %v6150 = vrot.slane %v5902, 5
        %v6151 = vor.u32 %v6149, %v6150
        %v6152 = vrot.slane %v6151, 4
        %v6153 = vrot.slane %v5911, 5
        %v6154 = vsel %vm1006, %v6152, %v6153
        %v6155 = vrot.slane %v5908, 4
        %v6156 = vor.u32 %v6155, %v6153
        %v6157 = vrot.slane %v6156, 4
        %v6159 = vshll.u32 %v5951, 16
        %v6161 = vrot.slane %v6159, 5
        %v6162 = vsel %vm1006, %v6157, %v6161
        %v6163 = vrot.slane %v5921, 4
        %v6164 = vrot.slane %v5924, 5
        %v6165 = vor.u32 %v6163, %v6164
        %v6166 = vrot.slane %v6165, 4
        %v6167 = vrot.slane %v5933, 5
        %v6168 = vsel %vm1006, %v6166, %v6167
        %v6169 = vrot.slane %v5930, 4
        %v6170 = vor.u32 %v6169, %v6167
        %v6171 = vrot.slane %v6170, 4
        %v6173 = vshll.u32 %v5952, 16
        %v6175 = vrot.slane %v6173, 5
        %v6176 = vsel %vm1006, %v6171, %v6175
        %v6177 = vld [vmem:[%s1871 + $0x4] sm:$0x8]
        %v6178 = vld [vmem:[%s1871 + $0x8] sm:$0xf]
        %v6179 = vld [vmem:[%s1871 + $0xc] sm:$0xf]
        %v6180 = vld [vmem:[%s1871 + $0x18] sm:$0x8]
        %v6181 = vld [vmem:[%s1871 + $0x1c] sm:$0xf]
        %v6182 = vld [vmem:[%s1871 + $0x20] sm:$0xf]
        %v6183 = vld [vmem:[%s1871 + $0x2c] sm:$0x8]
        %v6184 = vld [vmem:[%s1871 + $0x30] sm:$0xf]
        %v6185 = vld [vmem:[%s1871 + $0x34] sm:$0xf]
        %v6186 = vld [vmem:[%s1871 + $0x40] sm:$0x8]
        %v6187 = vld [vmem:[%s1871 + $0x44] sm:$0xf]
        %v6188 = vld [vmem:[%s1871 + $0x48] sm:$0xf]
        %v6189 = vld [vmem:[%s1871 + $0x54] sm:$0x8]
        %v6190 = vld [vmem:[%s1871 + $0x58] sm:$0xf]
        %v6191 = vld [vmem:[%s1871 + $0x5c] sm:$0xf]
        %v6192 = vld [vmem:[%s1871 + $0x68] sm:$0x8]
        %v6193 = vld [vmem:[%s1871 + $0x6c] sm:$0xf]
        %v6194 = vld [vmem:[%s1871 + $0x70] sm:$0xf]
        %v6195 = vld [vmem:[%s1871 + $0x7c] sm:$0x8]
        %v6196 = vld [vmem:[%s1871 + $0x80] sm:$0xf]
        %v6197 = vld [vmem:[%s1871 + $0x84] sm:$0xf]
        %v6198 = vld [vmem:[%s1871 + $0x90] sm:$0x8]
        %v6199 = vld [vmem:[%s1871 + $0x94] sm:$0xf]
        %v6200 = vld [vmem:[%s1871 + $0x98] sm:$0xf]
        %v6201 = vld [vmem:[%s1871 + $0xa4] sm:$0x8]
        %v6202 = vld [vmem:[%s1871 + $0xa8] sm:$0xf]
        %v6203 = vld [vmem:[%s1871 + $0xac] sm:$0xf]
        %v6204 = vld [vmem:[%s1871 + $0xb8] sm:$0x8]
        %v6205 = vld [vmem:[%s1871 + $0xbc] sm:$0xf]
        %v6206 = vld [vmem:[%s1871 + $0xc0] sm:$0xf]
        %v6207 = vld [vmem:[%s1871 + $0xcc] sm:$0x8]
        %v6208 = vld [vmem:[%s1871 + $0xd0] sm:$0xf]
        %v6209 = vld [vmem:[%s1871 + $0xd4] sm:$0xf]
        %v6210 = vld [vmem:[%s1871 + $0xe0] sm:$0x8]
        %v6211 = vld [vmem:[%s1871 + $0xe4] sm:$0xf]
        %v6212 = vld [vmem:[%s1871 + $0xe8] sm:$0xf]
        %v6213 = vld [vmem:[%s1871 + $0xf4] sm:$0x8]
        %v6214 = vld [vmem:[%s1871 + $0xf8] sm:$0xf]
        %v6215 = vld [vmem:[%s1871 + $0xfc] sm:$0xf]
        %v6216 = vld [vmem:[%s1871 + $0x108] sm:$0x8]
        %v6217 = vld [vmem:[%s1871 + $0x10c] sm:$0xf]
        %v6218 = vld [vmem:[%s1871 + $0x110] sm:$0xf]
        %v6219 = vld [vmem:[%s1871 + $0x11c] sm:$0x8]
        %v6220 = vld [vmem:[%s1871 + $0x120] sm:$0xf]
        %v6221 = vld [vmem:[%s1871 + $0x124] sm:$0xf]
        %v6222 = vld [vmem:[%s1871 + $0x130] sm:$0x8]
        %v6223 = vld [vmem:[%s1871 + $0x134] sm:$0xf]
        %v6224 = vld [vmem:[%s1871 + $0x138] sm:$0xf]
        %v6226 = vshrl.u32 %v6177, 16
        %v6228 = vrot.slane %v6226, 7
        %v6229 = vrot.slane %v6228, 4
        %v6231 = vshrl.u32 %v6178, 16
        %v6233 = vrot.slane %v6231, 7
        %v6234 = vshll.u32 %v6178, 16
        %v6236 = vor.u32 %v6233, %v6234
        %v6237 = vsel %vm635, %v6229, %v6236
        %v6238 = vrot.slane %v6233, 4
        %v6240 = vshrl.u32 %v6179, 16
        %v6242 = vrot.slane %v6240, 7
        %v6243 = vshll.u32 %v6179, 16
        %v6245 = vor.u32 %v6242, %v6243
        %v6246 = vsel %vm635, %v6238, %v6245
        %v6248 = vshrl.u32 %v6180, 16
        %v6250 = vrot.slane %v6248, 7
        %v6251 = vrot.slane %v6250, 4
        %v6253 = vshrl.u32 %v6181, 16
        %v6255 = vrot.slane %v6253, 7
        %v6256 = vshll.u32 %v6181, 16
        %v6258 = vor.u32 %v6255, %v6256
        %v6259 = vsel %vm635, %v6251, %v6258
        %v6260 = vrot.slane %v6255, 4
        %v6262 = vshrl.u32 %v6182, 16
        %v6264 = vrot.slane %v6262, 7
        %v6265 = vshll.u32 %v6182, 16
        %v6267 = vor.u32 %v6264, %v6265
        %v6268 = vsel %vm635, %v6260, %v6267
        %v6270 = vshrl.u32 %v6183, 16
        %v6272 = vrot.slane %v6270, 7
        %v6273 = vrot.slane %v6272, 4
        %v6275 = vshrl.u32 %v6184, 16
        %v6277 = vrot.slane %v6275, 7
        %v6278 = vshll.u32 %v6184, 16
        %v6280 = vor.u32 %v6277, %v6278
        %v6281 = vsel %vm635, %v6273, %v6280
        %v6282 = vrot.slane %v6277, 4
        %v6284 = vshrl.u32 %v6185, 16
        %v6286 = vrot.slane %v6284, 7
        %v6287 = vshll.u32 %v6185, 16
        %v6289 = vor.u32 %v6286, %v6287
        %v6290 = vsel %vm635, %v6282, %v6289
        %v6292 = vshrl.u32 %v6186, 16
        %v6294 = vrot.slane %v6292, 7
        %v6295 = vrot.slane %v6294, 4
        %v6297 = vshrl.u32 %v6187, 16
        %v6299 = vrot.slane %v6297, 7
        %v6300 = vshll.u32 %v6187, 16
        %v6302 = vor.u32 %v6299, %v6300
        %v6303 = vsel %vm635, %v6295, %v6302
        %v6304 = vrot.slane %v6299, 4
        %v6306 = vshrl.u32 %v6188, 16
        %v6308 = vrot.slane %v6306, 7
        %v6309 = vshll.u32 %v6188, 16
        %v6311 = vor.u32 %v6308, %v6309
        %v6312 = vsel %vm635, %v6304, %v6311
        %v6314 = vshrl.u32 %v6189, 16
        %v6316 = vrot.slane %v6314, 7
        %v6317 = vrot.slane %v6316, 4
        %v6319 = vshrl.u32 %v6190, 16
        %v6321 = vrot.slane %v6319, 7
        %v6322 = vshll.u32 %v6190, 16
        %v6324 = vor.u32 %v6321, %v6322
        %v6325 = vsel %vm635, %v6317, %v6324
        %v6326 = vrot.slane %v6321, 4
        %v6328 = vshrl.u32 %v6191, 16
        %v6330 = vrot.slane %v6328, 7
        %v6331 = vshll.u32 %v6191, 16
        %v6333 = vor.u32 %v6330, %v6331
        %v6334 = vsel %vm635, %v6326, %v6333
        %v6336 = vshrl.u32 %v6192, 16
        %v6338 = vrot.slane %v6336, 7
        %v6339 = vrot.slane %v6338, 4
        %v6341 = vshrl.u32 %v6193, 16
        %v6343 = vrot.slane %v6341, 7
        %v6344 = vshll.u32 %v6193, 16
        %v6346 = vor.u32 %v6343, %v6344
        %v6347 = vsel %vm635, %v6339, %v6346
        %v6348 = vrot.slane %v6343, 4
        %v6350 = vshrl.u32 %v6194, 16
        %v6352 = vrot.slane %v6350, 7
        %v6353 = vshll.u32 %v6194, 16
        %v6355 = vor.u32 %v6352, %v6353
        %v6356 = vsel %vm635, %v6348, %v6355
        %v6358 = vshrl.u32 %v6195, 16
        %v6360 = vrot.slane %v6358, 7
        %v6361 = vrot.slane %v6360, 4
        %v6363 = vshrl.u32 %v6196, 16
        %v6365 = vrot.slane %v6363, 7
        %v6366 = vshll.u32 %v6196, 16
        %v6368 = vor.u32 %v6365, %v6366
        %v6369 = vsel %vm635, %v6361, %v6368
        %v6370 = vrot.slane %v6365, 4
        %v6372 = vshrl.u32 %v6197, 16
        %v6374 = vrot.slane %v6372, 7
        %v6375 = vshll.u32 %v6197, 16
        %v6377 = vor.u32 %v6374, %v6375
        %v6378 = vsel %vm635, %v6370, %v6377
        %v6380 = vshrl.u32 %v6198, 16
        %v6382 = vrot.slane %v6380, 7
        %v6383 = vrot.slane %v6382, 4
        %v6385 = vshrl.u32 %v6199, 16
        %v6387 = vrot.slane %v6385, 7
        %v6388 = vshll.u32 %v6199, 16
        %v6390 = vor.u32 %v6387, %v6388
        %v6391 = vsel %vm635, %v6383, %v6390
        %v6392 = vrot.slane %v6387, 4
        %v6394 = vshrl.u32 %v6200, 16
        %v6396 = vrot.slane %v6394, 7
        %v6397 = vshll.u32 %v6200, 16
        %v6399 = vor.u32 %v6396, %v6397
        %v6400 = vsel %vm635, %v6392, %v6399
        %v6402 = vshrl.u32 %v6201, 16
        %v6404 = vrot.slane %v6402, 7
        %v6405 = vrot.slane %v6404, 4
        %v6407 = vshrl.u32 %v6202, 16
        %v6409 = vrot.slane %v6407, 7
        %v6410 = vshll.u32 %v6202, 16
        %v6412 = vor.u32 %v6409, %v6410
        %v6413 = vsel %vm635, %v6405, %v6412
        %v6414 = vrot.slane %v6409, 4
        %v6416 = vshrl.u32 %v6203, 16
        %v6418 = vrot.slane %v6416, 7
        %v6419 = vshll.u32 %v6203, 16
        %v6421 = vor.u32 %v6418, %v6419
        %v6422 = vsel %vm635, %v6414, %v6421
        %v6424 = vshrl.u32 %v6204, 16
        %v6426 = vrot.slane %v6424, 7
        %v6427 = vrot.slane %v6426, 4
        %v6429 = vshrl.u32 %v6205, 16
        %v6431 = vrot.slane %v6429, 7
        %v6432 = vshll.u32 %v6205, 16
        %v6434 = vor.u32 %v6431, %v6432
        %v6435 = vsel %vm635, %v6427, %v6434
        %v6436 = vrot.slane %v6431, 4
        %v6438 = vshrl.u32 %v6206, 16
        %v6440 = vrot.slane %v6438, 7
        %v6441 = vshll.u32 %v6206, 16
        %v6443 = vor.u32 %v6440, %v6441
        %v6444 = vsel %vm635, %v6436, %v6443
        %v6446 = vshrl.u32 %v6207, 16
        %v6448 = vrot.slane %v6446, 7
        %v6449 = vrot.slane %v6448, 4
        %v6451 = vshrl.u32 %v6208, 16
        %v6453 = vrot.slane %v6451, 7
        %v6454 = vshll.u32 %v6208, 16
        %v6456 = vor.u32 %v6453, %v6454
        %v6457 = vsel %vm635, %v6449, %v6456
        %v6458 = vrot.slane %v6453, 4
        %v6460 = vshrl.u32 %v6209, 16
        %v6462 = vrot.slane %v6460, 7
        %v6463 = vshll.u32 %v6209, 16
        %v6465 = vor.u32 %v6462, %v6463
        %v6466 = vsel %vm635, %v6458, %v6465
        %v6468 = vshrl.u32 %v6210, 16
        %v6470 = vrot.slane %v6468, 7
        %v6471 = vrot.slane %v6470, 4
        %v6473 = vshrl.u32 %v6211, 16
        %v6475 = vrot.slane %v6473, 7
        %v6476 = vshll.u32 %v6211, 16
        %v6478 = vor.u32 %v6475, %v6476
        %v6479 = vsel %vm635, %v6471, %v6478
        %v6480 = vrot.slane %v6475, 4
        %v6482 = vshrl.u32 %v6212, 16
        %v6484 = vrot.slane %v6482, 7
        %v6485 = vshll.u32 %v6212, 16
        %v6487 = vor.u32 %v6484, %v6485
        %v6488 = vsel %vm635, %v6480, %v6487
        %v6490 = vshrl.u32 %v6213, 16
        %v6492 = vrot.slane %v6490, 7
        %v6493 = vrot.slane %v6492, 4
        %v6495 = vshrl.u32 %v6214, 16
        %v6497 = vrot.slane %v6495, 7
        %v6498 = vshll.u32 %v6214, 16
        %v6500 = vor.u32 %v6497, %v6498
        %v6501 = vsel %vm635, %v6493, %v6500
        %v6502 = vrot.slane %v6497, 4
        %v6504 = vshrl.u32 %v6215, 16
        %v6506 = vrot.slane %v6504, 7
        %v6507 = vshll.u32 %v6215, 16
        %v6509 = vor.u32 %v6506, %v6507
        %v6510 = vsel %vm635, %v6502, %v6509
        %v6512 = vshrl.u32 %v6216, 16
        %v6514 = vrot.slane %v6512, 7
        %v6515 = vrot.slane %v6514, 4
        %v6517 = vshrl.u32 %v6217, 16
        %v6519 = vrot.slane %v6517, 7
        %v6520 = vshll.u32 %v6217, 16
        %v6522 = vor.u32 %v6519, %v6520
        %v6523 = vsel %vm635, %v6515, %v6522
        %v6524 = vrot.slane %v6519, 4
        %v6526 = vshrl.u32 %v6218, 16
        %v6528 = vrot.slane %v6526, 7
        %v6529 = vshll.u32 %v6218, 16
        %v6531 = vor.u32 %v6528, %v6529
        %v6532 = vsel %vm635, %v6524, %v6531
        %v6534 = vshrl.u32 %v6219, 16
        %v6536 = vrot.slane %v6534, 7
        %v6537 = vrot.slane %v6536, 4
        %v6539 = vshrl.u32 %v6220, 16
        %v6541 = vrot.slane %v6539, 7
        %v6542 = vshll.u32 %v6220, 16
        %v6544 = vor.u32 %v6541, %v6542
        %v6545 = vsel %vm635, %v6537, %v6544
        %v6546 = vrot.slane %v6541, 4
        %v6548 = vshrl.u32 %v6221, 16
        %v6550 = vrot.slane %v6548, 7
        %v6551 = vshll.u32 %v6221, 16
        %v6553 = vor.u32 %v6550, %v6551
        %v6554 = vsel %vm635, %v6546, %v6553
        %v6556 = vshrl.u32 %v6222, 16
        %v6558 = vrot.slane %v6556, 7
        %v6559 = vrot.slane %v6558, 4
        %v6561 = vshrl.u32 %v6223, 16
        %v6563 = vrot.slane %v6561, 7
        %v6564 = vshll.u32 %v6223, 16
        %v6566 = vor.u32 %v6563, %v6564
        %v6567 = vsel %vm635, %v6559, %v6566
        %v6568 = vrot.slane %v6563, 4
        %v6570 = vshrl.u32 %v6224, 16
        %v6572 = vrot.slane %v6570, 7
        %v6573 = vshll.u32 %v6224, 16
        %v6575 = vor.u32 %v6572, %v6573
        %v6576 = vsel %vm635, %v6568, %v6575
        %v6577 = vld [vmem:[%s1871 + $0x10] sm:$0x1]
        %v6578 = vld [vmem:[%s1871 + $0x24] sm:$0x1]
        %v6579 = vld [vmem:[%s1871 + $0x38] sm:$0x1]
        %v6580 = vld [vmem:[%s1871 + $0x4c] sm:$0x1]
        %v6581 = vld [vmem:[%s1871 + $0x60] sm:$0x1]
        %v6582 = vld [vmem:[%s1871 + $0x74] sm:$0x1]
        %v6583 = vld [vmem:[%s1871 + $0x88] sm:$0x1]
        %v6584 = vld [vmem:[%s1871 + $0x9c] sm:$0x1]
        %v6585 = vld [vmem:[%s1871 + $0xb0] sm:$0x1]
        %v6586 = vld [vmem:[%s1871 + $0xc4] sm:$0x1]
        %v6587 = vld [vmem:[%s1871 + $0xd8] sm:$0x1]
        %v6588 = vld [vmem:[%s1871 + $0xec] sm:$0x1]
        %v6589 = vld [vmem:[%s1871 + $0x100] sm:$0x1]
        %v6590 = vld [vmem:[%s1871 + $0x114] sm:$0x1]
        %v6591 = vld [vmem:[%s1871 + $0x128] sm:$0x1]
        %v6592 = vld [vmem:[%s1871 + $0x13c] sm:$0x1]
        %v6593 = vrot.slane %v6231, 4
        %v6594 = vrot.slane %v6234, 5
        %v6595 = vor.u32 %v6593, %v6594
        %v6596 = vrot.slane %v6595, 4
        %v6597 = vrot.slane %v6243, 5
        %v6598 = vsel %vm1006, %v6596, %v6597
        %v6599 = vrot.slane %v6240, 4
        %v6600 = vor.u32 %v6599, %v6597
        %v6601 = vrot.slane %v6600, 4
        %v6603 = vshll.u32 %v6577, 16
        %v6605 = vrot.slane %v6603, 5
        %v6606 = vsel %vm1006, %v6601, %v6605
        %v6607 = vrot.slane %v6253, 4
        %v6608 = vrot.slane %v6256, 5
        %v6609 = vor.u32 %v6607, %v6608
        %v6610 = vrot.slane %v6609, 4
        %v6611 = vrot.slane %v6265, 5
        %v6612 = vsel %vm1006, %v6610, %v6611
        %v6613 = vrot.slane %v6262, 4
        %v6614 = vor.u32 %v6613, %v6611
        %v6615 = vrot.slane %v6614, 4
        %v6617 = vshll.u32 %v6578, 16
        %v6619 = vrot.slane %v6617, 5
        %v6620 = vsel %vm1006, %v6615, %v6619
        %v6621 = vrot.slane %v6275, 4
        %v6622 = vrot.slane %v6278, 5
        %v6623 = vor.u32 %v6621, %v6622
        %v6624 = vrot.slane %v6623, 4
        %v6625 = vrot.slane %v6287, 5
        %v6626 = vsel %vm1006, %v6624, %v6625
        %v6627 = vrot.slane %v6284, 4
        %v6628 = vor.u32 %v6627, %v6625
        %v6629 = vrot.slane %v6628, 4
        %v6631 = vshll.u32 %v6579, 16
        %v6633 = vrot.slane %v6631, 5
        %v6634 = vsel %vm1006, %v6629, %v6633
        %v6635 = vrot.slane %v6297, 4
        %v6636 = vrot.slane %v6300, 5
        %v6637 = vor.u32 %v6635, %v6636
        %v6638 = vrot.slane %v6637, 4
        %v6639 = vrot.slane %v6309, 5
        %v6640 = vsel %vm1006, %v6638, %v6639
        %v6641 = vrot.slane %v6306, 4
        %v6642 = vor.u32 %v6641, %v6639
        %v6643 = vrot.slane %v6642, 4
        %v6645 = vshll.u32 %v6580, 16
        %v6647 = vrot.slane %v6645, 5
        %v6648 = vsel %vm1006, %v6643, %v6647
        %v6649 = vrot.slane %v6319, 4
        %v6650 = vrot.slane %v6322, 5
        %v6651 = vor.u32 %v6649, %v6650
        %v6652 = vrot.slane %v6651, 4
        %v6653 = vrot.slane %v6331, 5
        %v6654 = vsel %vm1006, %v6652, %v6653
        %v6655 = vrot.slane %v6328, 4
        %v6656 = vor.u32 %v6655, %v6653
        %v6657 = vrot.slane %v6656, 4
        %v6659 = vshll.u32 %v6581, 16
        %v6661 = vrot.slane %v6659, 5
        %v6662 = vsel %vm1006, %v6657, %v6661
        %v6663 = vrot.slane %v6341, 4
        %v6664 = vrot.slane %v6344, 5
        %v6665 = vor.u32 %v6663, %v6664
        %v6666 = vrot.slane %v6665, 4
        %v6667 = vrot.slane %v6353, 5
        %v6668 = vsel %vm1006, %v6666, %v6667
        %v6669 = vrot.slane %v6350, 4
        %v6670 = vor.u32 %v6669, %v6667
        %v6671 = vrot.slane %v6670, 4
        %v6673 = vshll.u32 %v6582, 16
        %v6675 = vrot.slane %v6673, 5
        %v6676 = vsel %vm1006, %v6671, %v6675
        %v6677 = vrot.slane %v6363, 4
        %v6678 = vrot.slane %v6366, 5
        %v6679 = vor.u32 %v6677, %v6678
        %v6680 = vrot.slane %v6679, 4
        %v6681 = vrot.slane %v6375, 5
        %v6682 = vsel %vm1006, %v6680, %v6681
        %v6683 = vrot.slane %v6372, 4
        %v6684 = vor.u32 %v6683, %v6681
        %v6685 = vrot.slane %v6684, 4
        %v6687 = vshll.u32 %v6583, 16
        %v6689 = vrot.slane %v6687, 5
        %v6690 = vsel %vm1006, %v6685, %v6689
        %v6691 = vrot.slane %v6385, 4
        %v6692 = vrot.slane %v6388, 5
        %v6693 = vor.u32 %v6691, %v6692
        %v6694 = vrot.slane %v6693, 4
        %v6695 = vrot.slane %v6397, 5
        %v6696 = vsel %vm1006, %v6694, %v6695
        %v6697 = vrot.slane %v6394, 4
        %v6698 = vor.u32 %v6697, %v6695
        %v6699 = vrot.slane %v6698, 4
        %v6701 = vshll.u32 %v6584, 16
        %v6703 = vrot.slane %v6701, 5
        %v6704 = vsel %vm1006, %v6699, %v6703
        %v6705 = vrot.slane %v6407, 4
        %v6706 = vrot.slane %v6410, 5
        %v6707 = vor.u32 %v6705, %v6706
        %v6708 = vrot.slane %v6707, 4
        %v6709 = vrot.slane %v6419, 5
        %v6710 = vsel %vm1006, %v6708, %v6709
        %v6711 = vrot.slane %v6416, 4
        %v6712 = vor.u32 %v6711, %v6709
        %v6713 = vrot.slane %v6712, 4
        %v6715 = vshll.u32 %v6585, 16
        %v6717 = vrot.slane %v6715, 5
        %v6718 = vsel %vm1006, %v6713, %v6717
        %v6719 = vrot.slane %v6429, 4
        %v6720 = vrot.slane %v6432, 5
        %v6721 = vor.u32 %v6719, %v6720
        %v6722 = vrot.slane %v6721, 4
        %v6723 = vrot.slane %v6441, 5
        %v6724 = vsel %vm1006, %v6722, %v6723
        %v6725 = vrot.slane %v6438, 4
        %v6726 = vor.u32 %v6725, %v6723
        %v6727 = vrot.slane %v6726, 4
        %v6729 = vshll.u32 %v6586, 16
        %v6731 = vrot.slane %v6729, 5
        %v6732 = vsel %vm1006, %v6727, %v6731
        %v6733 = vrot.slane %v6451, 4
        %v6734 = vrot.slane %v6454, 5
        %v6735 = vor.u32 %v6733, %v6734
        %v6736 = vrot.slane %v6735, 4
        %v6737 = vrot.slane %v6463, 5
        %v6738 = vsel %vm1006, %v6736, %v6737
        %v6739 = vrot.slane %v6460, 4
        %v6740 = vor.u32 %v6739, %v6737
        %v6741 = vrot.slane %v6740, 4
        %v6743 = vshll.u32 %v6587, 16
        %v6745 = vrot.slane %v6743, 5
        %v6746 = vsel %vm1006, %v6741, %v6745
        %v6747 = vrot.slane %v6473, 4
        %v6748 = vrot.slane %v6476, 5
        %v6749 = vor.u32 %v6747, %v6748
        %v6750 = vrot.slane %v6749, 4
        %v6751 = vrot.slane %v6485, 5
        %v6752 = vsel %vm1006, %v6750, %v6751
        %v6753 = vrot.slane %v6482, 4
        %v6754 = vor.u32 %v6753, %v6751
        %v6755 = vrot.slane %v6754, 4
        %v6757 = vshll.u32 %v6588, 16
        %v6759 = vrot.slane %v6757, 5
        %v6760 = vsel %vm1006, %v6755, %v6759
        %v6761 = vrot.slane %v6495, 4
        %v6762 = vrot.slane %v6498, 5
        %v6763 = vor.u32 %v6761, %v6762
        %v6764 = vrot.slane %v6763, 4
        %v6765 = vrot.slane %v6507, 5
        %v6766 = vsel %vm1006, %v6764, %v6765
        %v6767 = vrot.slane %v6504, 4
        %v6768 = vor.u32 %v6767, %v6765
        %v6769 = vrot.slane %v6768, 4
        %v6771 = vshll.u32 %v6589, 16
        %v6773 = vrot.slane %v6771, 5
        %v6774 = vsel %vm1006, %v6769, %v6773
        %v6775 = vrot.slane %v6517, 4
        %v6776 = vrot.slane %v6520, 5
        %v6777 = vor.u32 %v6775, %v6776
        %v6778 = vrot.slane %v6777, 4
        %v6779 = vrot.slane %v6529, 5
        %v6780 = vsel %vm1006, %v6778, %v6779
        %v6781 = vrot.slane %v6526, 4
        %v6782 = vor.u32 %v6781, %v6779
        %v6783 = vrot.slane %v6782, 4
        %v6785 = vshll.u32 %v6590, 16
        %v6787 = vrot.slane %v6785, 5
        %v6788 = vsel %vm1006, %v6783, %v6787
        %v6789 = vrot.slane %v6539, 4
        %v6790 = vrot.slane %v6542, 5
        %v6791 = vor.u32 %v6789, %v6790
        %v6792 = vrot.slane %v6791, 4
        %v6793 = vrot.slane %v6551, 5
        %v6794 = vsel %vm1006, %v6792, %v6793
        %v6795 = vrot.slane %v6548, 4
        %v6796 = vor.u32 %v6795, %v6793
        %v6797 = vrot.slane %v6796, 4
        %v6799 = vshll.u32 %v6591, 16
        %v6801 = vrot.slane %v6799, 5
        %v6802 = vsel %vm1006, %v6797, %v6801
        %v6803 = vrot.slane %v6561, 4
        %v6804 = vrot.slane %v6564, 5
        %v6805 = vor.u32 %v6803, %v6804
        %v6806 = vrot.slane %v6805, 4
        %v6807 = vrot.slane %v6573, 5
        %v6808 = vsel %vm1006, %v6806, %v6807
        %v6809 = vrot.slane %v6570, 4
        %v6810 = vor.u32 %v6809, %v6807
        %v6811 = vrot.slane %v6810, 4
        %v6813 = vshll.u32 %v6592, 16
        %v6815 = vrot.slane %v6813, 5
        %v6816 = vsel %vm1006, %v6811, %v6815
        %v6817 = vunpack.c.l.b16 %v4957
        %v6818 = vunpack.c.l.b16 %v4966
        %v6819 = vunpack.c.l.b16 %v4979
        %v6820 = vunpack.c.l.b16 %v4988
        %v6821 = vunpack.c.l.b16 %v5001
        %v6822 = vunpack.c.l.b16 %v5010
        %v6823 = vunpack.c.l.b16 %v5023
        %v6824 = vunpack.c.l.b16 %v5032
        %v6825 = vunpack.c.l.b16 %v5045
        %v6826 = vunpack.c.l.b16 %v5054
        %v6827 = vunpack.c.l.b16 %v5067
        %v6828 = vunpack.c.l.b16 %v5076
        %v6829 = vunpack.c.l.b16 %v5089
        %v6830 = vunpack.c.l.b16 %v5098
        %v6831 = vunpack.c.l.b16 %v5111
        %v6832 = vunpack.c.l.b16 %v5120
        %v6833 = vunpack.c.l.b16 %v5133
        %v6834 = vunpack.c.l.b16 %v5142
        %v6835 = vunpack.c.l.b16 %v5155
        %v6836 = vunpack.c.l.b16 %v5164
        %v6837 = vunpack.c.l.b16 %v5177
        %v6838 = vunpack.c.l.b16 %v5186
        %v6839 = vunpack.c.l.b16 %v5199
        %v6840 = vunpack.c.l.b16 %v5208
        %v6841 = vunpack.c.l.b16 %v5221
        %v6842 = vunpack.c.l.b16 %v5230
        %v6843 = vunpack.c.l.b16 %v5243
        %v6844 = vunpack.c.l.b16 %v5252
        %v6845 = vunpack.c.l.b16 %v5265
        %v6846 = vunpack.c.l.b16 %v5274
        %v6847 = vunpack.c.l.b16 %v5287
        %v6848 = vunpack.c.l.b16 %v5296
        %v6849 = vpack.c.b16 %v6818, %v6817
        %v6850 = vpack.c.b16 %v6820, %v6819
        %v6851 = vpack.c.b16 %v6822, %v6821
        %v6852 = vpack.c.b16 %v6824, %v6823
        %v6853 = vpack.c.b16 %v6826, %v6825
        %v6854 = vpack.c.b16 %v6828, %v6827
        %v6855 = vpack.c.b16 %v6830, %v6829
        %v6856 = vpack.c.b16 %v6832, %v6831
        %v6857 = vpack.c.b16 %v6834, %v6833
        %v6858 = vpack.c.b16 %v6836, %v6835
        %v6859 = vpack.c.b16 %v6838, %v6837
        %v6860 = vpack.c.b16 %v6840, %v6839
        %v6861 = vpack.c.b16 %v6842, %v6841
        %v6862 = vpack.c.b16 %v6844, %v6843
        %v6863 = vpack.c.b16 %v6846, %v6845
        %v6864 = vpack.c.b16 %v6848, %v6847
        %v6913 = vunpack.c.l.b16 %v4898
        %v6914 = vunpack.c.l.b16 %v4899
        %v6915 = vunpack.c.l.b16 %v4901
        %v6916 = vunpack.c.l.b16 %v4902
        %v6917 = vunpack.c.l.b16 %v4904
        %v6918 = vunpack.c.l.b16 %v4905
        %v6919 = vunpack.c.l.b16 %v4907
        %v6920 = vunpack.c.l.b16 %v4908
        %v6921 = vunpack.c.l.b16 %v4910
        %v6922 = vunpack.c.l.b16 %v4911
        %v6923 = vunpack.c.l.b16 %v4913
        %v6924 = vunpack.c.l.b16 %v4914
        %v6925 = vunpack.c.l.b16 %v4916
        %v6926 = vunpack.c.l.b16 %v4917
        %v6927 = vunpack.c.l.b16 %v4919
        %v6928 = vunpack.c.l.b16 %v4920
        %v6929 = vunpack.c.l.b16 %v4922
        %v6930 = vunpack.c.l.b16 %v4923
        %v6931 = vunpack.c.l.b16 %v4925
        %v6932 = vunpack.c.l.b16 %v4926
        %v6933 = vunpack.c.l.b16 %v4928
        %v6934 = vunpack.c.l.b16 %v4929
        %v6935 = vunpack.c.l.b16 %v4931
        %v6936 = vunpack.c.l.b16 %v4932
        %v6937 = vunpack.c.l.b16 %v4934
        %v6938 = vunpack.c.l.b16 %v4935
        %v6939 = vunpack.c.l.b16 %v4937
        %v6940 = vunpack.c.l.b16 %v4938
        %v6941 = vunpack.c.l.b16 %v4940
        %v6942 = vunpack.c.l.b16 %v4941
        %v6943 = vunpack.c.l.b16 %v4943
        %v6944 = vunpack.c.l.b16 %v4944
        %v6945 = vpack.c.b16 %v6914, %v6913
        %v6946 = vpack.c.b16 %v6916, %v6915
        %v6947 = vpack.c.b16 %v6918, %v6917
        %v6948 = vpack.c.b16 %v6920, %v6919
        %v6949 = vpack.c.b16 %v6922, %v6921
        %v6950 = vpack.c.b16 %v6924, %v6923
        %v6951 = vpack.c.b16 %v6926, %v6925
        %v6952 = vpack.c.b16 %v6928, %v6927
        %v6953 = vpack.c.b16 %v6930, %v6929
        %v6954 = vpack.c.b16 %v6932, %v6931
        %v6955 = vpack.c.b16 %v6934, %v6933
        %v6956 = vpack.c.b16 %v6936, %v6935
        %v6957 = vpack.c.b16 %v6938, %v6937
        %v6958 = vpack.c.b16 %v6940, %v6939
        %v6959 = vpack.c.b16 %v6942, %v6941
        %v6960 = vpack.c.b16 %v6944, %v6943
        %v6977 = vunpack.c.l.b16 %v5318
        %v6978 = vunpack.c.l.b16 %v5326
        %v6979 = vunpack.c.l.b16 %v5332
        %v6980 = vunpack.c.l.b16 %v5340
        %v6981 = vunpack.c.l.b16 %v5346
        %v6982 = vunpack.c.l.b16 %v5354
        %v6983 = vunpack.c.l.b16 %v5360
        %v6984 = vunpack.c.l.b16 %v5368
        %v6985 = vunpack.c.l.b16 %v5374
        %v6986 = vunpack.c.l.b16 %v5382
        %v6987 = vunpack.c.l.b16 %v5388
        %v6988 = vunpack.c.l.b16 %v5396
        %v6989 = vunpack.c.l.b16 %v5402
        %v6990 = vunpack.c.l.b16 %v5410
        %v6991 = vunpack.c.l.b16 %v5416
        %v6992 = vunpack.c.l.b16 %v5424
        %v6993 = vunpack.c.l.b16 %v5430
        %v6994 = vunpack.c.l.b16 %v5438
        %v6995 = vunpack.c.l.b16 %v5444
        %v6996 = vunpack.c.l.b16 %v5452
        %v6997 = vunpack.c.l.b16 %v5458
        %v6998 = vunpack.c.l.b16 %v5466
        %v6999 = vunpack.c.l.b16 %v5472
        %v7000 = vunpack.c.l.b16 %v5480
        %v7001 = vunpack.c.l.b16 %v5486
        %v7002 = vunpack.c.l.b16 %v5494
        %v7003 = vunpack.c.l.b16 %v5500
        %v7004 = vunpack.c.l.b16 %v5508
        %v7005 = vunpack.c.l.b16 %v5514
        %v7006 = vunpack.c.l.b16 %v5522
        %v7007 = vunpack.c.l.b16 %v5528
        %v7008 = vunpack.c.l.b16 %v5536
        %v7009 = vpack.c.b16 %v6978, %v6977
        %v7010 = vpack.c.b16 %v6980, %v6979
        %v7011 = vpack.c.b16 %v6982, %v6981
        %v7012 = vpack.c.b16 %v6984, %v6983
        %v7013 = vpack.c.b16 %v6986, %v6985
        %v7014 = vpack.c.b16 %v6988, %v6987
        %v7015 = vpack.c.b16 %v6990, %v6989
        %v7016 = vpack.c.b16 %v6992, %v6991
        %v7017 = vpack.c.b16 %v6994, %v6993
        %v7018 = vpack.c.b16 %v6996, %v6995
        %v7019 = vpack.c.b16 %v6998, %v6997
        %v7020 = vpack.c.b16 %v7000, %v6999
        %v7021 = vpack.c.b16 %v7002, %v7001
        %v7022 = vpack.c.b16 %v7004, %v7003
        %v7023 = vpack.c.b16 %v7006, %v7005
        %v7024 = vpack.c.b16 %v7008, %v7007
        %v7041 = vunpack.c.l.b16 %v5597
        %v7042 = vunpack.c.l.b16 %v5606
        %v7043 = vunpack.c.l.b16 %v5619
        %v7044 = vunpack.c.l.b16 %v5628
        %v7045 = vunpack.c.l.b16 %v5641
        %v7046 = vunpack.c.l.b16 %v5650
        %v7047 = vunpack.c.l.b16 %v5663
        %v7048 = vunpack.c.l.b16 %v5672
        %v7049 = vunpack.c.l.b16 %v5685
        %v7050 = vunpack.c.l.b16 %v5694
        %v7051 = vunpack.c.l.b16 %v5707
        %v7052 = vunpack.c.l.b16 %v5716
        %v7053 = vunpack.c.l.b16 %v5729
        %v7054 = vunpack.c.l.b16 %v5738
        %v7055 = vunpack.c.l.b16 %v5751
        %v7056 = vunpack.c.l.b16 %v5760
        %v7057 = vunpack.c.l.b16 %v5773
        %v7058 = vunpack.c.l.b16 %v5782
        %v7059 = vunpack.c.l.b16 %v5795
        %v7060 = vunpack.c.l.b16 %v5804
        %v7061 = vunpack.c.l.b16 %v5817
        %v7062 = vunpack.c.l.b16 %v5826
        %v7063 = vunpack.c.l.b16 %v5839
        %v7064 = vunpack.c.l.b16 %v5848
        %v7065 = vunpack.c.l.b16 %v5861
        %v7066 = vunpack.c.l.b16 %v5870
        %v7067 = vunpack.c.l.b16 %v5883
        %v7068 = vunpack.c.l.b16 %v5892
        %v7069 = vunpack.c.l.b16 %v5905
        %v7070 = vunpack.c.l.b16 %v5914
        %v7071 = vunpack.c.l.b16 %v5927
        %v7072 = vunpack.c.l.b16 %v5936
        %v7073 = vpack.c.b16 %v7042, %v7041
        %v7074 = vpack.c.b16 %v7044, %v7043
        %v7075 = vpack.c.b16 %v7046, %v7045
        %v7076 = vpack.c.b16 %v7048, %v7047
        %v7077 = vpack.c.b16 %v7050, %v7049
        %v7078 = vpack.c.b16 %v7052, %v7051
        %v7079 = vpack.c.b16 %v7054, %v7053
        %v7080 = vpack.c.b16 %v7056, %v7055
        %v7081 = vpack.c.b16 %v7058, %v7057
        %v7082 = vpack.c.b16 %v7060, %v7059
        %v7083 = vpack.c.b16 %v7062, %v7061
        %v7084 = vpack.c.b16 %v7064, %v7063
        %v7085 = vpack.c.b16 %v7066, %v7065
        %v7086 = vpack.c.b16 %v7068, %v7067
        %v7087 = vpack.c.b16 %v7070, %v7069
        %v7088 = vpack.c.b16 %v7072, %v7071
        %v7137 = vunpack.c.l.b16 %v5538
        %v7138 = vunpack.c.l.b16 %v5539
        %v7139 = vunpack.c.l.b16 %v5541
        %v7140 = vunpack.c.l.b16 %v5542
        %v7141 = vunpack.c.l.b16 %v5544
        %v7142 = vunpack.c.l.b16 %v5545
        %v7143 = vunpack.c.l.b16 %v5547
        %v7144 = vunpack.c.l.b16 %v5548
        %v7145 = vunpack.c.l.b16 %v5550
        %v7146 = vunpack.c.l.b16 %v5551
        %v7147 = vunpack.c.l.b16 %v5553
        %v7148 = vunpack.c.l.b16 %v5554
        %v7149 = vunpack.c.l.b16 %v5556
        %v7150 = vunpack.c.l.b16 %v5557
        %v7151 = vunpack.c.l.b16 %v5559
        %v7152 = vunpack.c.l.b16 %v5560
        %v7153 = vunpack.c.l.b16 %v5562
        %v7154 = vunpack.c.l.b16 %v5563
        %v7155 = vunpack.c.l.b16 %v5565
        %v7156 = vunpack.c.l.b16 %v5566
        %v7157 = vunpack.c.l.b16 %v5568
        %v7158 = vunpack.c.l.b16 %v5569
        %v7159 = vunpack.c.l.b16 %v5571
        %v7160 = vunpack.c.l.b16 %v5572
        %v7161 = vunpack.c.l.b16 %v5574
        %v7162 = vunpack.c.l.b16 %v5575
        %v7163 = vunpack.c.l.b16 %v5577
        %v7164 = vunpack.c.l.b16 %v5578
        %v7165 = vunpack.c.l.b16 %v5580
        %v7166 = vunpack.c.l.b16 %v5581
        %v7167 = vunpack.c.l.b16 %v5583
        %v7168 = vunpack.c.l.b16 %v5584
        %v7169 = vpack.c.b16 %v7138, %v7137
        %v7170 = vpack.c.b16 %v7140, %v7139
        %v7171 = vpack.c.b16 %v7142, %v7141
        %v7172 = vpack.c.b16 %v7144, %v7143
        %v7173 = vpack.c.b16 %v7146, %v7145
        %v7174 = vpack.c.b16 %v7148, %v7147
        %v7175 = vpack.c.b16 %v7150, %v7149
        %v7176 = vpack.c.b16 %v7152, %v7151
        %v7177 = vpack.c.b16 %v7154, %v7153
        %v7178 = vpack.c.b16 %v7156, %v7155
        %v7179 = vpack.c.b16 %v7158, %v7157
        %v7180 = vpack.c.b16 %v7160, %v7159
        %v7181 = vpack.c.b16 %v7162, %v7161
        %v7182 = vpack.c.b16 %v7164, %v7163
        %v7183 = vpack.c.b16 %v7166, %v7165
        %v7184 = vpack.c.b16 %v7168, %v7167
        %v7201 = vunpack.c.l.b16 %v5958
        %v7202 = vunpack.c.l.b16 %v5966
        %v7203 = vunpack.c.l.b16 %v5972
        %v7204 = vunpack.c.l.b16 %v5980
        %v7205 = vunpack.c.l.b16 %v5986
        %v7206 = vunpack.c.l.b16 %v5994
        %v7207 = vunpack.c.l.b16 %v6000
        %v7208 = vunpack.c.l.b16 %v6008
        %v7209 = vunpack.c.l.b16 %v6014
        %v7210 = vunpack.c.l.b16 %v6022
        %v7211 = vunpack.c.l.b16 %v6028
        %v7212 = vunpack.c.l.b16 %v6036
        %v7213 = vunpack.c.l.b16 %v6042
        %v7214 = vunpack.c.l.b16 %v6050
        %v7215 = vunpack.c.l.b16 %v6056
        %v7216 = vunpack.c.l.b16 %v6064
        %v7217 = vunpack.c.l.b16 %v6070
        %v7218 = vunpack.c.l.b16 %v6078
        %v7219 = vunpack.c.l.b16 %v6084
        %v7220 = vunpack.c.l.b16 %v6092
        %v7221 = vunpack.c.l.b16 %v6098
        %v7222 = vunpack.c.l.b16 %v6106
        %v7223 = vunpack.c.l.b16 %v6112
        %v7224 = vunpack.c.l.b16 %v6120
        %v7225 = vunpack.c.l.b16 %v6126
        %v7226 = vunpack.c.l.b16 %v6134
        %v7227 = vunpack.c.l.b16 %v6140
        %v7228 = vunpack.c.l.b16 %v6148
        %v7229 = vunpack.c.l.b16 %v6154
        %v7230 = vunpack.c.l.b16 %v6162
        %v7231 = vunpack.c.l.b16 %v6168
        %v7232 = vunpack.c.l.b16 %v6176
        %v7233 = vpack.c.b16 %v7202, %v7201
        %v7234 = vpack.c.b16 %v7204, %v7203
        %v7235 = vpack.c.b16 %v7206, %v7205
        %v7236 = vpack.c.b16 %v7208, %v7207
        %v7237 = vpack.c.b16 %v7210, %v7209
        %v7238 = vpack.c.b16 %v7212, %v7211
        %v7239 = vpack.c.b16 %v7214, %v7213
        %v7240 = vpack.c.b16 %v7216, %v7215
        %v7241 = vpack.c.b16 %v7218, %v7217
        %v7242 = vpack.c.b16 %v7220, %v7219
        %v7243 = vpack.c.b16 %v7222, %v7221
        %v7244 = vpack.c.b16 %v7224, %v7223
        %v7245 = vpack.c.b16 %v7226, %v7225
        %v7246 = vpack.c.b16 %v7228, %v7227
        %v7247 = vpack.c.b16 %v7230, %v7229
        %v7248 = vpack.c.b16 %v7232, %v7231
        %v7265 = vunpack.c.l.b16 %v6237
        %v7266 = vunpack.c.l.b16 %v6246
        %v7267 = vunpack.c.l.b16 %v6259
        %v7268 = vunpack.c.l.b16 %v6268
        %v7269 = vunpack.c.l.b16 %v6281
        %v7270 = vunpack.c.l.b16 %v6290
        %v7271 = vunpack.c.l.b16 %v6303
        %v7272 = vunpack.c.l.b16 %v6312
        %v7273 = vunpack.c.l.b16 %v6325
        %v7274 = vunpack.c.l.b16 %v6334
        %v7275 = vunpack.c.l.b16 %v6347
        %v7276 = vunpack.c.l.b16 %v6356
        %v7277 = vunpack.c.l.b16 %v6369
        %v7278 = vunpack.c.l.b16 %v6378
        %v7279 = vunpack.c.l.b16 %v6391
        %v7280 = vunpack.c.l.b16 %v6400
        %v7281 = vunpack.c.l.b16 %v6413
        %v7282 = vunpack.c.l.b16 %v6422
        %v7283 = vunpack.c.l.b16 %v6435
        %v7284 = vunpack.c.l.b16 %v6444
        %v7285 = vunpack.c.l.b16 %v6457
        %v7286 = vunpack.c.l.b16 %v6466
        %v7287 = vunpack.c.l.b16 %v6479
        %v7288 = vunpack.c.l.b16 %v6488
        %v7289 = vunpack.c.l.b16 %v6501
        %v7290 = vunpack.c.l.b16 %v6510
        %v7291 = vunpack.c.l.b16 %v6523
        %v7292 = vunpack.c.l.b16 %v6532
        %v7293 = vunpack.c.l.b16 %v6545
        %v7294 = vunpack.c.l.b16 %v6554
        %v7295 = vunpack.c.l.b16 %v6567
        %v7296 = vunpack.c.l.b16 %v6576
        %v7297 = vpack.c.b16 %v7266, %v7265
        %v7298 = vpack.c.b16 %v7268, %v7267
        %v7299 = vpack.c.b16 %v7270, %v7269
        %v7300 = vpack.c.b16 %v7272, %v7271
        %v7301 = vpack.c.b16 %v7274, %v7273
        %v7302 = vpack.c.b16 %v7276, %v7275
        %v7303 = vpack.c.b16 %v7278, %v7277
        %v7304 = vpack.c.b16 %v7280, %v7279
        %v7305 = vpack.c.b16 %v7282, %v7281
        %v7306 = vpack.c.b16 %v7284, %v7283
        %v7307 = vpack.c.b16 %v7286, %v7285
        %v7308 = vpack.c.b16 %v7288, %v7287
        %v7309 = vpack.c.b16 %v7290, %v7289
        %v7310 = vpack.c.b16 %v7292, %v7291
        %v7311 = vpack.c.b16 %v7294, %v7293
        %v7312 = vpack.c.b16 %v7296, %v7295
        %v7361 = vunpack.c.l.b16 %v6178
        %v7362 = vunpack.c.l.b16 %v6179
        %v7363 = vunpack.c.l.b16 %v6181
        %v7364 = vunpack.c.l.b16 %v6182
        %v7365 = vunpack.c.l.b16 %v6184
        %v7366 = vunpack.c.l.b16 %v6185
        %v7367 = vunpack.c.l.b16 %v6187
        %v7368 = vunpack.c.l.b16 %v6188
        %v7369 = vunpack.c.l.b16 %v6190
        %v7370 = vunpack.c.l.b16 %v6191
        %v7371 = vunpack.c.l.b16 %v6193
        %v7372 = vunpack.c.l.b16 %v6194
        %v7373 = vunpack.c.l.b16 %v6196
        %v7374 = vunpack.c.l.b16 %v6197
        %v7375 = vunpack.c.l.b16 %v6199
        %v7376 = vunpack.c.l.b16 %v6200
        %v7377 = vunpack.c.l.b16 %v6202
        %v7378 = vunpack.c.l.b16 %v6203
        %v7379 = vunpack.c.l.b16 %v6205
        %v7380 = vunpack.c.l.b16 %v6206
        %v7381 = vunpack.c.l.b16 %v6208
        %v7382 = vunpack.c.l.b16 %v6209
        %v7383 = vunpack.c.l.b16 %v6211
        %v7384 = vunpack.c.l.b16 %v6212
        %v7385 = vunpack.c.l.b16 %v6214
        %v7386 = vunpack.c.l.b16 %v6215
        %v7387 = vunpack.c.l.b16 %v6217
        %v7388 = vunpack.c.l.b16 %v6218
        %v7389 = vunpack.c.l.b16 %v6220
        %v7390 = vunpack.c.l.b16 %v6221
        %v7391 = vunpack.c.l.b16 %v6223
        %v7392 = vunpack.c.l.b16 %v6224
        %v7393 = vpack.c.b16 %v7362, %v7361
        %v7394 = vpack.c.b16 %v7364, %v7363
        %v7395 = vpack.c.b16 %v7366, %v7365
        %v7396 = vpack.c.b16 %v7368, %v7367
        %v7397 = vpack.c.b16 %v7370, %v7369
        %v7398 = vpack.c.b16 %v7372, %v7371
        %v7399 = vpack.c.b16 %v7374, %v7373
        %v7400 = vpack.c.b16 %v7376, %v7375
        %v7401 = vpack.c.b16 %v7378, %v7377
        %v7402 = vpack.c.b16 %v7380, %v7379
        %v7403 = vpack.c.b16 %v7382, %v7381
        %v7404 = vpack.c.b16 %v7384, %v7383
        %v7405 = vpack.c.b16 %v7386, %v7385
        %v7406 = vpack.c.b16 %v7388, %v7387
        %v7407 = vpack.c.b16 %v7390, %v7389
        %v7408 = vpack.c.b16 %v7392, %v7391
        %v7425 = vunpack.c.l.b16 %v6598
        %v7426 = vunpack.c.l.b16 %v6606
        %v7427 = vunpack.c.l.b16 %v6612
        %v7428 = vunpack.c.l.b16 %v6620
        %v7429 = vunpack.c.l.b16 %v6626
        %v7430 = vunpack.c.l.b16 %v6634
        %v7431 = vunpack.c.l.b16 %v6640
        %v7432 = vunpack.c.l.b16 %v6648
        %v7433 = vunpack.c.l.b16 %v6654
        %v7434 = vunpack.c.l.b16 %v6662
        %v7435 = vunpack.c.l.b16 %v6668
        %v7436 = vunpack.c.l.b16 %v6676
        %v7437 = vunpack.c.l.b16 %v6682
        %v7438 = vunpack.c.l.b16 %v6690
        %v7439 = vunpack.c.l.b16 %v6696
        %v7440 = vunpack.c.l.b16 %v6704
        %v7441 = vunpack.c.l.b16 %v6710
        %v7442 = vunpack.c.l.b16 %v6718
        %v7443 = vunpack.c.l.b16 %v6724
        %v7444 = vunpack.c.l.b16 %v6732
        %v7445 = vunpack.c.l.b16 %v6738
        %v7446 = vunpack.c.l.b16 %v6746
        %v7447 = vunpack.c.l.b16 %v6752
        %v7448 = vunpack.c.l.b16 %v6760
        %v7449 = vunpack.c.l.b16 %v6766
        %v7450 = vunpack.c.l.b16 %v6774
        %v7451 = vunpack.c.l.b16 %v6780
        %v7452 = vunpack.c.l.b16 %v6788
        %v7453 = vunpack.c.l.b16 %v6794
        %v7454 = vunpack.c.l.b16 %v6802
        %v7455 = vunpack.c.l.b16 %v6808
        %v7456 = vunpack.c.l.b16 %v6816
        %v7457 = vpack.c.b16 %v7426, %v7425
        %v7458 = vpack.c.b16 %v7428, %v7427
        %v7459 = vpack.c.b16 %v7430, %v7429
        %v7460 = vpack.c.b16 %v7432, %v7431
        %v7461 = vpack.c.b16 %v7434, %v7433
        %v7462 = vpack.c.b16 %v7436, %v7435
        %v7463 = vpack.c.b16 %v7438, %v7437
        %v7464 = vpack.c.b16 %v7440, %v7439
        %v7465 = vpack.c.b16 %v7442, %v7441
        %v7466 = vpack.c.b16 %v7444, %v7443
        %v7467 = vpack.c.b16 %v7446, %v7445
        %v7468 = vpack.c.b16 %v7448, %v7447
        %v7469 = vpack.c.b16 %v7450, %v7449
        %v7470 = vpack.c.b16 %v7452, %v7451
        %v7471 = vpack.c.b16 %v7454, %v7453
        %v7472 = vpack.c.b16 %v7456, %v7455
        %v7489 = vld [vmem:[%s1] sm:$0xf]
        %v7490 = vld [vmem:[%s1 + $0x4] sm:$0xf]
        %v7491 = vld [vmem:[%s1 + $0x8] sm:$0xf]
        %v7492 = vld [vmem:[%s1 + $0xc] sm:$0xf]
        %v7493 = vld [vmem:[%s1 + $0x10] sm:$0xf]
        %v7494 = vld [vmem:[%s1 + $0x14] sm:$0xf]
        %v7495 = vld [vmem:[%s1 + $0x18] sm:$0xf]
        %v7496 = vld [vmem:[%s1 + $0x1c] sm:$0xf]
        %v7497 = vld [vmem:[%s1 + $0x20] sm:$0xf]
        %v7498 = vld [vmem:[%s1 + $0x24] sm:$0xf]
        %v7499 = vld [vmem:[%s1 + $0x28] sm:$0xf]
        %v7500 = vld [vmem:[%s1 + $0x2c] sm:$0xf]
        %v7501 = vld [vmem:[%s1 + $0x30] sm:$0xf]
        %v7502 = vld [vmem:[%s1 + $0x34] sm:$0xf]
        %v7503 = vld [vmem:[%s1 + $0x38] sm:$0xf]
        %v7504 = vld [vmem:[%s1 + $0x3c] sm:$0xf]
        %v7505 = vld [vmem:[%s1 + $0x40] sm:$0xf]
        %v7506 = vld [vmem:[%s1 + $0x44] sm:$0xf]
        %v7507 = vld [vmem:[%s1 + $0x48] sm:$0xf]
        %v7508 = vld [vmem:[%s1 + $0x4c] sm:$0xf]
        %v7509 = vld [vmem:[%s1 + $0x50] sm:$0xf]
        %v7510 = vld [vmem:[%s1 + $0x54] sm:$0xf]
        %v7511 = vld [vmem:[%s1 + $0x58] sm:$0xf]
        %v7512 = vld [vmem:[%s1 + $0x5c] sm:$0xf]
        %v7513 = vld [vmem:[%s1 + $0x60] sm:$0xf]
        %v7514 = vld [vmem:[%s1 + $0x64] sm:$0xf]
        %v7515 = vld [vmem:[%s1 + $0x68] sm:$0xf]
        %v7516 = vld [vmem:[%s1 + $0x6c] sm:$0xf]
        %v7517 = vld [vmem:[%s1 + $0x70] sm:$0xf]
        %v7518 = vld [vmem:[%s1 + $0x74] sm:$0xf]
        %v7519 = vld [vmem:[%s1 + $0x78] sm:$0xf]
        %v7520 = vld [vmem:[%s1 + $0x7c] sm:$0xf]
        %v7521 = vld [vmem:[%s1 + $0x80] sm:$0xf]
        %v7522 = vld [vmem:[%s1 + $0x84] sm:$0xf]
        %v7523 = vld [vmem:[%s1 + $0x88] sm:$0xf]
        %v7524 = vld [vmem:[%s1 + $0x8c] sm:$0xf]
        %v7525 = vld [vmem:[%s1 + $0x90] sm:$0xf]
        %v7526 = vld [vmem:[%s1 + $0x94] sm:$0xf]
        %v7527 = vld [vmem:[%s1 + $0x98] sm:$0xf]
        %v7528 = vld [vmem:[%s1 + $0x9c] sm:$0xf]
        %v7529 = vld [vmem:[%s1 + $0xa0] sm:$0xf]
        %v7530 = vld [vmem:[%s1 + $0xa4] sm:$0xf]
        %v7531 = vld [vmem:[%s1 + $0xa8] sm:$0xf]
        %v7532 = vld [vmem:[%s1 + $0xac] sm:$0xf]
        %v7533 = vld [vmem:[%s1 + $0xb0] sm:$0xf]
        %v7534 = vld [vmem:[%s1 + $0xb4] sm:$0xf]
        %v7535 = vld [vmem:[%s1 + $0xb8] sm:$0xf]
        %v7536 = vld [vmem:[%s1 + $0xbc] sm:$0xf]
        %v7537 = vld [vmem:[%s1 + $0xc0] sm:$0xf]
        %v7538 = vld [vmem:[%s1 + $0xc4] sm:$0xf]
        %v7539 = vld [vmem:[%s1 + $0xc8] sm:$0xf]
        %v7540 = vld [vmem:[%s1 + $0xcc] sm:$0xf]
        %v7541 = vld [vmem:[%s1 + $0xd0] sm:$0xf]
        %v7542 = vld [vmem:[%s1 + $0xd4] sm:$0xf]
        %v7543 = vld [vmem:[%s1 + $0xd8] sm:$0xf]
        %v7544 = vld [vmem:[%s1 + $0xdc] sm:$0xf]
        %v7545 = vld [vmem:[%s1 + $0xe0] sm:$0xf]
        %v7546 = vld [vmem:[%s1 + $0xe4] sm:$0xf]
        %v7547 = vld [vmem:[%s1 + $0xe8] sm:$0xf]
        %v7548 = vld [vmem:[%s1 + $0xec] sm:$0xf]
        %v7549 = vld [vmem:[%s1 + $0xf0] sm:$0xf]
        %v7550 = vld [vmem:[%s1 + $0xf4] sm:$0xf]
        %v7551 = vld [vmem:[%s1 + $0xf8] sm:$0xf]
        %v7552 = vld [vmem:[%s1 + $0xfc] sm:$0xf]
        %v7553 = vld [vmem:[%s1 + $0x100] sm:$0xf]
        %v7554 = vld [vmem:[%s1 + $0x104] sm:$0xf]
        %v7555 = vld [vmem:[%s1 + $0x108] sm:$0xf]
        %v7556 = vld [vmem:[%s1 + $0x10c] sm:$0xf]
        %v7557 = vld [vmem:[%s1 + $0x110] sm:$0xf]
        %v7558 = vld [vmem:[%s1 + $0x114] sm:$0xf]
        %v7559 = vld [vmem:[%s1 + $0x118] sm:$0xf]
        %v7560 = vld [vmem:[%s1 + $0x11c] sm:$0xf]
        %v7561 = vld [vmem:[%s1 + $0x120] sm:$0xf]
        %v7562 = vld [vmem:[%s1 + $0x124] sm:$0xf]
        %v7563 = vld [vmem:[%s1 + $0x128] sm:$0xf]
        %v7564 = vld [vmem:[%s1 + $0x12c] sm:$0xf]
        %v7565 = vld [vmem:[%s1 + $0x130] sm:$0xf]
        %v7566 = vld [vmem:[%s1 + $0x134] sm:$0xf]
        %v7567 = vld [vmem:[%s1 + $0x138] sm:$0xf]
        %v7568 = vld [vmem:[%s1 + $0x13c] sm:$0xf]
        %v7569 = vld [vmem:[%s1 + $0x140] sm:$0xf]
        %v7570 = vld [vmem:[%s1 + $0x144] sm:$0xf]
        %v7571 = vld [vmem:[%s1 + $0x148] sm:$0xf]
        %v7572 = vld [vmem:[%s1 + $0x14c] sm:$0xf]
        %v7573 = vld [vmem:[%s1 + $0x150] sm:$0xf]
        %v7574 = vld [vmem:[%s1 + $0x154] sm:$0xf]
        %v7575 = vld [vmem:[%s1 + $0x158] sm:$0xf]
        %v7576 = vld [vmem:[%s1 + $0x15c] sm:$0xf]
        %v7577 = vld [vmem:[%s1 + $0x160] sm:$0xf]
        %v7578 = vld [vmem:[%s1 + $0x164] sm:$0xf]
        %v7579 = vld [vmem:[%s1 + $0x168] sm:$0xf]
        %v7580 = vld [vmem:[%s1 + $0x16c] sm:$0xf]
        %v7581 = vld [vmem:[%s1 + $0x170] sm:$0xf]
        %v7582 = vld [vmem:[%s1 + $0x174] sm:$0xf]
        %v7583 = vld [vmem:[%s1 + $0x178] sm:$0xf]
        %v7584 = vld [vmem:[%s1 + $0x17c] sm:$0xf]
        %v7585 = vld [vmem:[%s1 + $0x180] sm:$0xf]
        %v7586 = vld [vmem:[%s1 + $0x184] sm:$0xf]
        %v7587 = vld [vmem:[%s1 + $0x188] sm:$0xf]
        %v7588 = vld [vmem:[%s1 + $0x18c] sm:$0xf]
        %v7589 = vld [vmem:[%s1 + $0x190] sm:$0xf]
        %v7590 = vld [vmem:[%s1 + $0x194] sm:$0xf]
        %v7591 = vld [vmem:[%s1 + $0x198] sm:$0xf]
        %v7592 = vld [vmem:[%s1 + $0x19c] sm:$0xf]
        %v7593 = vld [vmem:[%s1 + $0x1a0] sm:$0xf]
        %v7594 = vld [vmem:[%s1 + $0x1a4] sm:$0xf]
        %v7595 = vld [vmem:[%s1 + $0x1a8] sm:$0xf]
        %v7596 = vld [vmem:[%s1 + $0x1ac] sm:$0xf]
        %v7597 = vld [vmem:[%s1 + $0x1b0] sm:$0xf]
        %v7598 = vld [vmem:[%s1 + $0x1b4] sm:$0xf]
        %v7599 = vld [vmem:[%s1 + $0x1b8] sm:$0xf]
        %v7600 = vld [vmem:[%s1 + $0x1bc] sm:$0xf]
        %v7601 = vld [vmem:[%s1 + $0x1c0] sm:$0xf]
        %v7602 = vld [vmem:[%s1 + $0x1c4] sm:$0xf]
        %v7603 = vld [vmem:[%s1 + $0x1c8] sm:$0xf]
        %v7604 = vld [vmem:[%s1 + $0x1cc] sm:$0xf]
        %v7605 = vld [vmem:[%s1 + $0x1d0] sm:$0xf]
        %v7606 = vld [vmem:[%s1 + $0x1d4] sm:$0xf]
        %v7607 = vld [vmem:[%s1 + $0x1d8] sm:$0xf]
        %v7608 = vld [vmem:[%s1 + $0x1dc] sm:$0xf]
        %v7609 = vld [vmem:[%s1 + $0x1e0] sm:$0xf]
        %v7610 = vld [vmem:[%s1 + $0x1e4] sm:$0xf]
        %v7611 = vld [vmem:[%s1 + $0x1e8] sm:$0xf]
        %v7612 = vld [vmem:[%s1 + $0x1ec] sm:$0xf]
        %v7613 = vld [vmem:[%s1 + $0x1f0] sm:$0xf]
        %v7614 = vld [vmem:[%s1 + $0x1f4] sm:$0xf]
        %v7615 = vld [vmem:[%s1 + $0x1f8] sm:$0xf]
        %v7616 = vld [vmem:[%s1 + $0x1fc] sm:$0xf]
        %v7617 = vld [vmem:[%s1 + $0x200] sm:$0xf]
        %v7618 = vld [vmem:[%s1 + $0x204] sm:$0xf]
        %v7619 = vld [vmem:[%s1 + $0x208] sm:$0xf]
        %v7620 = vld [vmem:[%s1 + $0x20c] sm:$0xf]
        %v7621 = vld [vmem:[%s1 + $0x210] sm:$0xf]
        %v7622 = vld [vmem:[%s1 + $0x214] sm:$0xf]
        %v7623 = vld [vmem:[%s1 + $0x218] sm:$0xf]
        %v7624 = vld [vmem:[%s1 + $0x21c] sm:$0xf]
        %v7625 = vld [vmem:[%s1 + $0x220] sm:$0xf]
        %v7626 = vld [vmem:[%s1 + $0x224] sm:$0xf]
        %v7627 = vld [vmem:[%s1 + $0x228] sm:$0xf]
        %v7628 = vld [vmem:[%s1 + $0x22c] sm:$0xf]
        %v7629 = vld [vmem:[%s1 + $0x230] sm:$0xf]
        %v7630 = vld [vmem:[%s1 + $0x234] sm:$0xf]
        %v7631 = vld [vmem:[%s1 + $0x238] sm:$0xf]
        %v7632 = vld [vmem:[%s1 + $0x23c] sm:$0xf]
        %v7777 = vunpack.c.l.b16 %v7489
        %v7778 = vunpack.c.l.b16 %v7490
        %v7779 = vunpack.c.l.b16 %v7491
        %v7780 = vunpack.c.l.b16 %v7492
        %v7781 = vunpack.c.l.b16 %v7493
        %v7782 = vunpack.c.l.b16 %v7494
        %v7783 = vunpack.c.l.b16 %v7495
        %v7784 = vunpack.c.l.b16 %v7496
        %v7785 = vunpack.c.l.b16 %v7497
        %v7786 = vunpack.c.l.b16 %v7498
        %v7787 = vunpack.c.l.b16 %v7499
        %v7788 = vunpack.c.l.b16 %v7500
        %v7789 = vunpack.c.l.b16 %v7501
        %v7790 = vunpack.c.l.b16 %v7502
        %v7791 = vunpack.c.l.b16 %v7503
        %v7792 = vunpack.c.l.b16 %v7504
        %v7793 = vunpack.c.l.b16 %v7505
        %v7794 = vunpack.c.l.b16 %v7506
        %v7795 = vunpack.c.l.b16 %v7507
        %v7796 = vunpack.c.l.b16 %v7508
        %v7797 = vunpack.c.l.b16 %v7509
        %v7798 = vunpack.c.l.b16 %v7510
        %v7799 = vunpack.c.l.b16 %v7511
        %v7800 = vunpack.c.l.b16 %v7512
        %v7801 = vunpack.c.l.b16 %v7513
        %v7802 = vunpack.c.l.b16 %v7514
        %v7803 = vunpack.c.l.b16 %v7515
        %v7804 = vunpack.c.l.b16 %v7516
        %v7805 = vunpack.c.l.b16 %v7517
        %v7806 = vunpack.c.l.b16 %v7518
        %v7807 = vunpack.c.l.b16 %v7519
        %v7808 = vunpack.c.l.b16 %v7520
        %v7809 = vunpack.c.l.b16 %v7521
        %v7810 = vunpack.c.l.b16 %v7522
        %v7811 = vunpack.c.l.b16 %v7523
        %v7812 = vunpack.c.l.b16 %v7524
        %v7813 = vunpack.c.l.b16 %v7525
        %v7814 = vunpack.c.l.b16 %v7526
        %v7815 = vunpack.c.l.b16 %v7527
        %v7816 = vunpack.c.l.b16 %v7528
        %v7817 = vunpack.c.l.b16 %v7529
        %v7818 = vunpack.c.l.b16 %v7530
        %v7819 = vunpack.c.l.b16 %v7531
        %v7820 = vunpack.c.l.b16 %v7532
        %v7821 = vunpack.c.l.b16 %v7533
        %v7822 = vunpack.c.l.b16 %v7534
        %v7823 = vunpack.c.l.b16 %v7535
        %v7824 = vunpack.c.l.b16 %v7536
        %v7825 = vunpack.c.l.b16 %v7537
        %v7826 = vunpack.c.l.b16 %v7538
        %v7827 = vunpack.c.l.b16 %v7539
        %v7828 = vunpack.c.l.b16 %v7540
        %v7829 = vunpack.c.l.b16 %v7541
        %v7830 = vunpack.c.l.b16 %v7542
        %v7831 = vunpack.c.l.b16 %v7543
        %v7832 = vunpack.c.l.b16 %v7544
        %v7833 = vunpack.c.l.b16 %v7545
        %v7834 = vunpack.c.l.b16 %v7546
        %v7835 = vunpack.c.l.b16 %v7547
        %v7836 = vunpack.c.l.b16 %v7548
        %v7837 = vunpack.c.l.b16 %v7549
        %v7838 = vunpack.c.l.b16 %v7550
        %v7839 = vunpack.c.l.b16 %v7551
        %v7840 = vunpack.c.l.b16 %v7552
        %v7841 = vunpack.c.l.b16 %v7553
        %v7842 = vunpack.c.l.b16 %v7554
        %v7843 = vunpack.c.l.b16 %v7555
        %v7844 = vunpack.c.l.b16 %v7556
        %v7845 = vunpack.c.l.b16 %v7557
        %v7846 = vunpack.c.l.b16 %v7558
        %v7847 = vunpack.c.l.b16 %v7559
        %v7848 = vunpack.c.l.b16 %v7560
        %v7849 = vunpack.c.l.b16 %v7561
        %v7850 = vunpack.c.l.b16 %v7562
        %v7851 = vunpack.c.l.b16 %v7563
        %v7852 = vunpack.c.l.b16 %v7564
        %v7853 = vunpack.c.l.b16 %v7565
        %v7854 = vunpack.c.l.b16 %v7566
        %v7855 = vunpack.c.l.b16 %v7567
        %v7856 = vunpack.c.l.b16 %v7568
        %v7857 = vunpack.c.l.b16 %v7569
        %v7858 = vunpack.c.l.b16 %v7570
        %v7859 = vunpack.c.l.b16 %v7571
        %v7860 = vunpack.c.l.b16 %v7572
        %v7861 = vunpack.c.l.b16 %v7573
        %v7862 = vunpack.c.l.b16 %v7574
        %v7863 = vunpack.c.l.b16 %v7575
        %v7864 = vunpack.c.l.b16 %v7576
        %v7865 = vunpack.c.l.b16 %v7577
        %v7866 = vunpack.c.l.b16 %v7578
        %v7867 = vunpack.c.l.b16 %v7579
        %v7868 = vunpack.c.l.b16 %v7580
        %v7869 = vunpack.c.l.b16 %v7581
        %v7870 = vunpack.c.l.b16 %v7582
        %v7871 = vunpack.c.l.b16 %v7583
        %v7872 = vunpack.c.l.b16 %v7584
        %v7873 = vunpack.c.l.b16 %v7585
        %v7874 = vunpack.c.l.b16 %v7586
        %v7875 = vunpack.c.l.b16 %v7587
        %v7876 = vunpack.c.l.b16 %v7588
        %v7877 = vunpack.c.l.b16 %v7589
        %v7878 = vunpack.c.l.b16 %v7590
        %v7879 = vunpack.c.l.b16 %v7591
        %v7880 = vunpack.c.l.b16 %v7592
        %v7881 = vunpack.c.l.b16 %v7593
        %v7882 = vunpack.c.l.b16 %v7594
        %v7883 = vunpack.c.l.b16 %v7595
        %v7884 = vunpack.c.l.b16 %v7596
        %v7885 = vunpack.c.l.b16 %v7597
        %v7886 = vunpack.c.l.b16 %v7598
        %v7887 = vunpack.c.l.b16 %v7599
        %v7888 = vunpack.c.l.b16 %v7600
        %v7889 = vunpack.c.l.b16 %v7601
        %v7890 = vunpack.c.l.b16 %v7602
        %v7891 = vunpack.c.l.b16 %v7603
        %v7892 = vunpack.c.l.b16 %v7604
        %v7893 = vunpack.c.l.b16 %v7605
        %v7894 = vunpack.c.l.b16 %v7606
        %v7895 = vunpack.c.l.b16 %v7607
        %v7896 = vunpack.c.l.b16 %v7608
        %v7897 = vunpack.c.l.b16 %v7609
        %v7898 = vunpack.c.l.b16 %v7610
        %v7899 = vunpack.c.l.b16 %v7611
        %v7900 = vunpack.c.l.b16 %v7612
        %v7901 = vunpack.c.l.b16 %v7613
        %v7902 = vunpack.c.l.b16 %v7614
        %v7903 = vunpack.c.l.b16 %v7615
        %v7904 = vunpack.c.l.b16 %v7616
        %v7905 = vunpack.c.l.b16 %v7617
        %v7906 = vunpack.c.l.b16 %v7618
        %v7907 = vunpack.c.l.b16 %v7619
        %v7908 = vunpack.c.l.b16 %v7620
        %v7909 = vunpack.c.l.b16 %v7621
        %v7910 = vunpack.c.l.b16 %v7622
        %v7911 = vunpack.c.l.b16 %v7623
        %v7912 = vunpack.c.l.b16 %v7624
        %v7913 = vunpack.c.l.b16 %v7625
        %v7914 = vunpack.c.l.b16 %v7626
        %v7915 = vunpack.c.l.b16 %v7627
        %v7916 = vunpack.c.l.b16 %v7628
        %v7917 = vunpack.c.l.b16 %v7629
        %v7918 = vunpack.c.l.b16 %v7630
        %v7919 = vunpack.c.l.b16 %v7631
        %v7920 = vunpack.c.l.b16 %v7632
        %v7921 = vpack.c.b16 %v7778, %v7777
        %v7922 = vpack.c.b16 %v7780, %v7779
        %v7923 = vpack.c.b16 %v7782, %v7781
        %v7924 = vpack.c.b16 %v7784, %v7783
        %v7925 = vpack.c.b16 %v7786, %v7785
        %v7926 = vpack.c.b16 %v7788, %v7787
        %v7927 = vpack.c.b16 %v7790, %v7789
        %v7928 = vpack.c.b16 %v7792, %v7791
        %v7929 = vpack.c.b16 %v7794, %v7793
        %v7930 = vpack.c.b16 %v7796, %v7795
        %v7931 = vpack.c.b16 %v7798, %v7797
        %v7932 = vpack.c.b16 %v7800, %v7799
        %v7933 = vpack.c.b16 %v7802, %v7801
        %v7934 = vpack.c.b16 %v7804, %v7803
        %v7935 = vpack.c.b16 %v7806, %v7805
        %v7936 = vpack.c.b16 %v7808, %v7807
        %v7937 = vpack.c.b16 %v7810, %v7809
        %v7938 = vpack.c.b16 %v7812, %v7811
        %v7939 = vpack.c.b16 %v7814, %v7813
        %v7940 = vpack.c.b16 %v7816, %v7815
        %v7941 = vpack.c.b16 %v7818, %v7817
        %v7942 = vpack.c.b16 %v7820, %v7819
        %v7943 = vpack.c.b16 %v7822, %v7821
        %v7944 = vpack.c.b16 %v7824, %v7823
        %v7945 = vpack.c.b16 %v7826, %v7825
        %v7946 = vpack.c.b16 %v7828, %v7827
        %v7947 = vpack.c.b16 %v7830, %v7829
        %v7948 = vpack.c.b16 %v7832, %v7831
        %v7949 = vpack.c.b16 %v7834, %v7833
        %v7950 = vpack.c.b16 %v7836, %v7835
        %v7951 = vpack.c.b16 %v7838, %v7837
        %v7952 = vpack.c.b16 %v7840, %v7839
        %v7953 = vpack.c.b16 %v7842, %v7841
        %v7954 = vpack.c.b16 %v7844, %v7843
        %v7955 = vpack.c.b16 %v7846, %v7845
        %v7956 = vpack.c.b16 %v7848, %v7847
        %v7957 = vpack.c.b16 %v7850, %v7849
        %v7958 = vpack.c.b16 %v7852, %v7851
        %v7959 = vpack.c.b16 %v7854, %v7853
        %v7960 = vpack.c.b16 %v7856, %v7855
        %v7961 = vpack.c.b16 %v7858, %v7857
        %v7962 = vpack.c.b16 %v7860, %v7859
        %v7963 = vpack.c.b16 %v7862, %v7861
        %v7964 = vpack.c.b16 %v7864, %v7863
        %v7965 = vpack.c.b16 %v7866, %v7865
        %v7966 = vpack.c.b16 %v7868, %v7867
        %v7967 = vpack.c.b16 %v7870, %v7869
        %v7968 = vpack.c.b16 %v7872, %v7871
        %v7969 = vpack.c.b16 %v7874, %v7873
        %v7970 = vpack.c.b16 %v7876, %v7875
        %v7971 = vpack.c.b16 %v7878, %v7877
        %v7972 = vpack.c.b16 %v7880, %v7879
        %v7973 = vpack.c.b16 %v7882, %v7881
        %v7974 = vpack.c.b16 %v7884, %v7883
        %v7975 = vpack.c.b16 %v7886, %v7885
        %v7976 = vpack.c.b16 %v7888, %v7887
        %v7977 = vpack.c.b16 %v7890, %v7889
        %v7978 = vpack.c.b16 %v7892, %v7891
        %v7979 = vpack.c.b16 %v7894, %v7893
        %v7980 = vpack.c.b16 %v7896, %v7895
        %v7981 = vpack.c.b16 %v7898, %v7897
        %v7982 = vpack.c.b16 %v7900, %v7899
        %v7983 = vpack.c.b16 %v7902, %v7901
        %v7984 = vpack.c.b16 %v7904, %v7903
        %v7985 = vpack.c.b16 %v7906, %v7905
        %v7986 = vpack.c.b16 %v7908, %v7907
        %v7987 = vpack.c.b16 %v7910, %v7909
        %v7988 = vpack.c.b16 %v7912, %v7911
        %v7989 = vpack.c.b16 %v7914, %v7913
        %v7990 = vpack.c.b16 %v7916, %v7915
        %v7991 = vpack.c.b16 %v7918, %v7917
        %v7992 = vpack.c.b16 %v7920, %v7919
        %8065 = vmatprep.subr.bf16.mxu0 0
        %8066 = vmatpush1.bf16.msra.mxu0 %v7921
        %8067 = vmatprep.subr.bf16.mxu0 0
        %8068 = vmatpush1.bf16.msra.mxu0 %v7922
        %8069 = vmatprep.subr.bf16.mxu0 0
        %8070 = vmatpush1.bf16.msra.mxu0 %v7923
        %8071 = vmatprep.subr.bf16.mxu0 0
        %8072 = vmatpush1.bf16.msra.mxu0 %v7924
        %8073 = vmatprep.subr.bf16.mxu0 0
        %8074 = vmatpush1.bf16.msra.mxu0 %v7925
        %8075 = vmatprep.subr.bf16.mxu0 0
        %8076 = vmatpush1.bf16.msra.mxu0 %v7926
        %8077 = vmatprep.subr.bf16.mxu0 0
        %8078 = vmatpush1.bf16.msra.mxu0 %v7927
        %8079 = vmatprep.subr.bf16.mxu0 0
        %8080 = vmatpush1.bf16.msra.mxu0 %v7928
        %8081 = vmatprep.subr.bf16.mxu0 0
        %8082 = vmatpush1.bf16.msra.mxu0 %v7929
        %8083 = vmatprep.subr.bf16.mxu0 0
        %8084 = vmatpush1.bf16.msra.mxu0 %v7930
        %8085 = vmatprep.subr.bf16.mxu0 0
        %8086 = vmatpush1.bf16.msra.mxu0 %v7931
        %8087 = vmatprep.subr.bf16.mxu0 0
        %8088 = vmatpush1.bf16.msra.mxu0 %v7932
        %8089 = vmatprep.subr.bf16.mxu0 0
        %8090 = vmatpush1.bf16.msra.mxu0 %v7933
        %8091 = vmatprep.subr.bf16.mxu0 0
        %8092 = vmatpush1.bf16.msra.mxu0 %v7934
        %8093 = vmatprep.subr.bf16.mxu0 0
        %8094 = vmatpush1.bf16.msra.mxu0 %v7935
        %8095 = vmatprep.subr.bf16.mxu0 0
        %8096 = vmatpush1.bf16.msra.mxu0 %v7936
        %8097 = vmatprep.mubr.bf16.mxu0 %v6945
        %8098 = vmatmul.mubr.bf16.gmra.mrb[0].mxu0 %v6849
        %v8099 = vpop.f32.mrb[0].mxu0
        %v8100 = vadd.f32 0.0, %v8099
        %v8101 = vpop.f32.mrb[0].mxu0
        %v8102 = vpop.f32.mrb[0].mxu0
        %v8103 = vadd.f32 0.0, %v8102
        %v8104 = vpop.f32.mrb[0].mxu0
        %8105 = vmatprep.mubr.bf16.mxu0 %v6946
        %8106 = vmatmul.mubr.bf16.gmra.mrb[0].mxu0 %v6850
        %v8107 = vpop.f32.mrb[0].mxu0
        %v8108 = vadd.f32 0.0, %v8107
        %v8109 = vpop.f32.mrb[0].mxu0
        %v8110 = vpop.f32.mrb[0].mxu0
        %v8111 = vadd.f32 0.0, %v8110
        %v8112 = vpop.f32.mrb[0].mxu0
        %8113 = vmatprep.mubr.bf16.mxu0 %v6947
        %8114 = vmatmul.mubr.bf16.gmra.mrb[0].mxu0 %v6851
        %v8115 = vpop.f32.mrb[0].mxu0
        %v8116 = vadd.f32 0.0, %v8115
        %v8117 = vpop.f32.mrb[0].mxu0
        %v8118 = vpop.f32.mrb[0].mxu0
        %v8119 = vadd.f32 0.0, %v8118
        %v8120 = vpop.f32.mrb[0].mxu0
        %8121 = vmatprep.mubr.bf16.mxu0 %v6948
        %8122 = vmatmul.mubr.bf16.gmra.mrb[0].mxu0 %v6852
        %v8123 = vpop.f32.mrb[0].mxu0
        %v8124 = vadd.f32 0.0, %v8123
        %v8125 = vpop.f32.mrb[0].mxu0
        %v8126 = vpop.f32.mrb[0].mxu0
        %v8127 = vadd.f32 0.0, %v8126
        %v8128 = vpop.f32.mrb[0].mxu0
        %8129 = vmatprep.mubr.bf16.mxu0 %v6949
        %8130 = vmatmul.mubr.bf16.gmra.mrb[0].mxu0 %v6853
        %v8131 = vpop.f32.mrb[0].mxu0
        %v8132 = vadd.f32 0.0, %v8131
        %v8133 = vpop.f32.mrb[0].mxu0
        %v8134 = vpop.f32.mrb[0].mxu0
        %v8135 = vadd.f32 0.0, %v8134
        %v8136 = vpop.f32.mrb[0].mxu0
        %8137 = vmatprep.mubr.bf16.mxu0 %v6950
        %8138 = vmatmul.mubr.bf16.gmra.mrb[0].mxu0 %v6854
        %v8139 = vpop.f32.mrb[0].mxu0
        %v8140 = vadd.f32 0.0, %v8139
        %v8141 = vpop.f32.mrb[0].mxu0
        %v8142 = vpop.f32.mrb[0].mxu0
        %v8143 = vadd.f32 0.0, %v8142
        %v8144 = vpop.f32.mrb[0].mxu0
        %8145 = vmatprep.mubr.bf16.mxu0 %v6951
        %8146 = vmatmul.mubr.bf16.gmra.mrb[0].mxu0 %v6855
        %v8147 = vpop.f32.mrb[0].mxu0
        %v8148 = vadd.f32 0.0, %v8147
        %v8149 = vpop.f32.mrb[0].mxu0
        %v8150 = vpop.f32.mrb[0].mxu0
        %v8151 = vadd.f32 0.0, %v8150
        %v8152 = vpop.f32.mrb[0].mxu0
        %8153 = vmatprep.mubr.bf16.mxu0 %v6952
        %8154 = vmatmul.mubr.bf16.gmra.mrb[0].mxu0 %v6856
        %v8155 = vpop.f32.mrb[0].mxu0
        %v8156 = vadd.f32 0.0, %v8155
        %v8157 = vpop.f32.mrb[0].mxu0
        %v8158 = vpop.f32.mrb[0].mxu0
        %v8159 = vadd.f32 0.0, %v8158
        %v8160 = vpop.f32.mrb[0].mxu0
        %8161 = vmatprep.mubr.bf16.mxu0 %v6953
        %8162 = vmatmul.mubr.bf16.gmra.mrb[0].mxu0 %v6857
        %v8163 = vpop.f32.mrb[0].mxu0
        %v8164 = vadd.f32 0.0, %v8163
        %v8165 = vpop.f32.mrb[0].mxu0
        %v8166 = vpop.f32.mrb[0].mxu0
        %v8167 = vadd.f32 0.0, %v8166
        %v8168 = vpop.f32.mrb[0].mxu0
        %8169 = vmatprep.mubr.bf16.mxu0 %v6954
        %8170 = vmatmul.mubr.bf16.gmra.mrb[0].mxu0 %v6858
        %v8171 = vpop.f32.mrb[0].mxu0
        %v8172 = vadd.f32 0.0, %v8171
        %v8173 = vpop.f32.mrb[0].mxu0
        %v8174 = vpop.f32.mrb[0].mxu0
        %v8175 = vadd.f32 0.0, %v8174
        %v8176 = vpop.f32.mrb[0].mxu0
        %8177 = vmatprep.mubr.bf16.mxu0 %v6955
        %8178 = vmatmul.mubr.bf16.gmra.mrb[0].mxu0 %v6859
        %v8179 = vpop.f32.mrb[0].mxu0
        %v8180 = vadd.f32 0.0, %v8179
        %v8181 = vpop.f32.mrb[0].mxu0
        %v8182 = vpop.f32.mrb[0].mxu0
        %v8183 = vadd.f32 0.0, %v8182
        %v8184 = vpop.f32.mrb[0].mxu0
        %8185 = vmatprep.mubr.bf16.mxu0 %v6956
        %8186 = vmatmul.mubr.bf16.gmra.mrb[0].mxu0 %v6860
        %v8187 = vpop.f32.mrb[0].mxu0
        %v8188 = vadd.f32 0.0, %v8187
        %v8189 = vpop.f32.mrb[0].mxu0
        %v8190 = vpop.f32.mrb[0].mxu0
        %v8191 = vadd.f32 0.0, %v8190
        %v8192 = vpop.f32.mrb[0].mxu0
        %8193 = vmatprep.mubr.bf16.mxu0 %v6957
        %8194 = vmatmul.mubr.bf16.gmra.mrb[0].mxu0 %v6861
        %v8195 = vpop.f32.mrb[0].mxu0
        %v8196 = vadd.f32 0.0, %v8195
        %v8197 = vpop.f32.mrb[0].mxu0
        %v8198 = vpop.f32.mrb[0].mxu0
        %v8199 = vadd.f32 0.0, %v8198
        %v8200 = vpop.f32.mrb[0].mxu0
        %8201 = vmatprep.mubr.bf16.mxu0 %v6958
        %8202 = vmatmul.mubr.bf16.gmra.mrb[0].mxu0 %v6862
        %v8203 = vpop.f32.mrb[0].mxu0
        %v8204 = vadd.f32 0.0, %v8203
        %v8205 = vpop.f32.mrb[0].mxu0
        %v8206 = vpop.f32.mrb[0].mxu0
        %v8207 = vadd.f32 0.0, %v8206
        %v8208 = vpop.f32.mrb[0].mxu0
        %8209 = vmatprep.mubr.bf16.mxu0 %v6959
        %8210 = vmatmul.mubr.bf16.gmra.mrb[0].mxu0 %v6863
        %v8211 = vpop.f32.mrb[0].mxu0
        %v8212 = vadd.f32 0.0, %v8211
        %v8213 = vpop.f32.mrb[0].mxu0
        %v8214 = vpop.f32.mrb[0].mxu0
        %v8215 = vadd.f32 0.0, %v8214
        %v8216 = vpop.f32.mrb[0].mxu0
        %8217 = vmatprep.mubr.bf16.mxu0 %v6960
        %8218 = vmatmul.mubr.bf16.gmra.mrb[0].mxu0 %v6864
        %v8219 = vpop.f32.mrb[0].mxu0
        %v8220 = vadd.f32 0.0, %v8219
        %v8221 = vpop.f32.mrb[0].mxu0
        %v8222 = vpop.f32.mrb[0].mxu0
        %v8223 = vadd.f32 0.0, %v8222
        %v8224 = vpop.f32.mrb[0].mxu0
        %8225 = vdwg.mxu0
        %8226 = vmatprep.subr.bf16.mxu0 0
        %8227 = vmatpush1.bf16.msra.mxu0 %v7937
        %8228 = vmatprep.subr.bf16.mxu0 0
        %8229 = vmatpush1.bf16.msra.mxu0 %v7938
        %8230 = vmatprep.subr.bf16.mxu0 0
        %8231 = vmatpush1.bf16.msra.mxu0 %v7939
        %8232 = vmatprep.subr.bf16.mxu0 0
        %8233 = vmatpush1.bf16.msra.mxu0 %v7940
        %8234 = vmatprep.subr.bf16.mxu0 0
        %8235 = vmatpush1.bf16.msra.mxu0 %v7941
        %8236 = vmatprep.subr.bf16.mxu0 0
        %8237 = vmatpush1.bf16.msra.mxu0 %v7942
        %8238 = vmatprep.subr.bf16.mxu0 0
        %8239 = vmatpush1.bf16.msra.mxu0 %v7943
        %8240 = vmatprep.subr.bf16.mxu0 0
        %8241 = vmatpush1.bf16.msra.mxu0 %v7944
        %8242 = vmatprep.subr.bf16.mxu0 0
        %8243 = vmatpush1.bf16.msra.mxu0 %v7945
        %8244 = vmatprep.subr.bf16.mxu0 0
        %8245 = vmatpush1.bf16.msra.mxu0 %v7946
        %8246 = vmatprep.subr.bf16.mxu0 0
        %8247 = vmatpush1.bf16.msra.mxu0 %v7947
        %8248 = vmatprep.subr.bf16.mxu0 0
        %8249 = vmatpush1.bf16.msra.mxu0 %v7948
        %8250 = vmatprep.subr.bf16.mxu0 0
        %8251 = vmatpush1.bf16.msra.mxu0 %v7949
        %8252 = vmatprep.subr.bf16.mxu0 0
        %8253 = vmatpush1.bf16.msra.mxu0 %v7950
        %8254 = vmatprep.subr.bf16.mxu0 0
        %8255 = vmatpush1.bf16.msra.mxu0 %v7951
        %8256 = vmatprep.subr.bf16.mxu0 0
        %8257 = vmatpush1.bf16.msra.mxu0 %v7952
        %8258 = vmatprep.mubr.bf16.mxu0 %v7073
        %8259 = vmatmul.mubr.bf16.gmra.mrb[0].mxu0 %v7009
        %v8260 = vpop.f32.mrb[0].mxu0
        %v8261 = vadd.f32 %v8100, %v8260
        %v8262 = vpop.f32.mrb[0].mxu0
        %v8263 = vpop.f32.mrb[0].mxu0
        %v8264 = vadd.f32 %v8103, %v8263
        %v8265 = vpop.f32.mrb[0].mxu0
        %8266 = vmatprep.mubr.bf16.mxu0 %v7074
        %8267 = vmatmul.mubr.bf16.gmra.mrb[0].mxu0 %v7010
        %v8268 = vpop.f32.mrb[0].mxu0
        %v8269 = vadd.f32 %v8108, %v8268
        %v8270 = vpop.f32.mrb[0].mxu0
        %v8271 = vpop.f32.mrb[0].mxu0
        %v8272 = vadd.f32 %v8111, %v8271
        %v8273 = vpop.f32.mrb[0].mxu0
        %8274 = vmatprep.mubr.bf16.mxu0 %v7075
        %8275 = vmatmul.mubr.bf16.gmra.mrb[0].mxu0 %v7011
        %v8276 = vpop.f32.mrb[0].mxu0
        %v8277 = vadd.f32 %v8116, %v8276
        %v8278 = vpop.f32.mrb[0].mxu0
        %v8279 = vpop.f32.mrb[0].mxu0
        %v8280 = vadd.f32 %v8119, %v8279
        %v8281 = vpop.f32.mrb[0].mxu0
        %8282 = vmatprep.mubr.bf16.mxu0 %v7076
        %8283 = vmatmul.mubr.bf16.gmra.mrb[0].mxu0 %v7012
        %v8284 = vpop.f32.mrb[0].mxu0
        %v8285 = vadd.f32 %v8124, %v8284
        %v8286 = vpop.f32.mrb[0].mxu0
        %v8287 = vpop.f32.mrb[0].mxu0
        %v8288 = vadd.f32 %v8127, %v8287
        %v8289 = vpop.f32.mrb[0].mxu0
        %8290 = vmatprep.mubr.bf16.mxu0 %v7077
        %8291 = vmatmul.mubr.bf16.gmra.mrb[0].mxu0 %v7013
        %v8292 = vpop.f32.mrb[0].mxu0
        %v8293 = vadd.f32 %v8132, %v8292
        %v8294 = vpop.f32.mrb[0].mxu0
        %v8295 = vpop.f32.mrb[0].mxu0
        %v8296 = vadd.f32 %v8135, %v8295
        %v8297 = vpop.f32.mrb[0].mxu0
        %8298 = vmatprep.mubr.bf16.mxu0 %v7078
        %8299 = vmatmul.mubr.bf16.gmra.mrb[0].mxu0 %v7014
        %v8300 = vpop.f32.mrb[0].mxu0
        %v8301 = vadd.f32 %v8140, %v8300
        %v8302 = vpop.f32.mrb[0].mxu0
        %v8303 = vpop.f32.mrb[0].mxu0
        %v8304 = vadd.f32 %v8143, %v8303
        %v8305 = vpop.f32.mrb[0].mxu0
        %8306 = vmatprep.mubr.bf16.mxu0 %v7079
        %8307 = vmatmul.mubr.bf16.gmra.mrb[0].mxu0 %v7015
        %v8308 = vpop.f32.mrb[0].mxu0
        %v8309 = vadd.f32 %v8148, %v8308
        %v8310 = vpop.f32.mrb[0].mxu0
        %v8311 = vpop.f32.mrb[0].mxu0
        %v8312 = vadd.f32 %v8151, %v8311
        %v8313 = vpop.f32.mrb[0].mxu0
        %8314 = vmatprep.mubr.bf16.mxu0 %v7080
        %8315 = vmatmul.mubr.bf16.gmra.mrb[0].mxu0 %v7016
        %v8316 = vpop.f32.mrb[0].mxu0
        %v8317 = vadd.f32 %v8156, %v8316
        %v8318 = vpop.f32.mrb[0].mxu0
        %v8319 = vpop.f32.mrb[0].mxu0
        %v8320 = vadd.f32 %v8159, %v8319
        %v8321 = vpop.f32.mrb[0].mxu0
        %8322 = vmatprep.mubr.bf16.mxu0 %v7081
        %8323 = vmatmul.mubr.bf16.gmra.mrb[0].mxu0 %v7017
        %v8324 = vpop.f32.mrb[0].mxu0
        %v8325 = vadd.f32 %v8164, %v8324
        %v8326 = vpop.f32.mrb[0].mxu0
        %v8327 = vpop.f32.mrb[0].mxu0
        %v8328 = vadd.f32 %v8167, %v8327
        %v8329 = vpop.f32.mrb[0].mxu0
        %8330 = vmatprep.mubr.bf16.mxu0 %v7082
        %8331 = vmatmul.mubr.bf16.gmra.mrb[0].mxu0 %v7018
        %v8332 = vpop.f32.mrb[0].mxu0
        %v8333 = vadd.f32 %v8172, %v8332
        %v8334 = vpop.f32.mrb[0].mxu0
        %v8335 = vpop.f32.mrb[0].mxu0
        %v8336 = vadd.f32 %v8175, %v8335
        %v8337 = vpop.f32.mrb[0].mxu0
        %8338 = vmatprep.mubr.bf16.mxu0 %v7083
        %8339 = vmatmul.mubr.bf16.gmra.mrb[0].mxu0 %v7019
        %v8340 = vpop.f32.mrb[0].mxu0
        %v8341 = vadd.f32 %v8180, %v8340
        %v8342 = vpop.f32.mrb[0].mxu0
        %v8343 = vpop.f32.mrb[0].mxu0
        %v8344 = vadd.f32 %v8183, %v8343
        %v8345 = vpop.f32.mrb[0].mxu0
        %8346 = vmatprep.mubr.bf16.mxu0 %v7084
        %8347 = vmatmul.mubr.bf16.gmra.mrb[0].mxu0 %v7020
        %v8348 = vpop.f32.mrb[0].mxu0
        %v8349 = vadd.f32 %v8188, %v8348
        %v8350 = vpop.f32.mrb[0].mxu0
        %v8351 = vpop.f32.mrb[0].mxu0
        %v8352 = vadd.f32 %v8191, %v8351
        %v8353 = vpop.f32.mrb[0].mxu0
        %8354 = vmatprep.mubr.bf16.mxu0 %v7085
        %8355 = vmatmul.mubr.bf16.gmra.mrb[0].mxu0 %v7021
        %v8356 = vpop.f32.mrb[0].mxu0
        %v8357 = vadd.f32 %v8196, %v8356
        %v8358 = vpop.f32.mrb[0].mxu0
        %v8359 = vpop.f32.mrb[0].mxu0
        %v8360 = vadd.f32 %v8199, %v8359
        %v8361 = vpop.f32.mrb[0].mxu0
        %8362 = vmatprep.mubr.bf16.mxu0 %v7086
        %8363 = vmatmul.mubr.bf16.gmra.mrb[0].mxu0 %v7022
        %v8364 = vpop.f32.mrb[0].mxu0
        %v8365 = vadd.f32 %v8204, %v8364
        %v8366 = vpop.f32.mrb[0].mxu0
        %v8367 = vpop.f32.mrb[0].mxu0
        %v8368 = vadd.f32 %v8207, %v8367
        %v8369 = vpop.f32.mrb[0].mxu0
        %8370 = vmatprep.mubr.bf16.mxu0 %v7087
        %8371 = vmatmul.mubr.bf16.gmra.mrb[0].mxu0 %v7023
        %v8372 = vpop.f32.mrb[0].mxu0
        %v8373 = vadd.f32 %v8212, %v8372
        %v8374 = vpop.f32.mrb[0].mxu0
        %v8375 = vpop.f32.mrb[0].mxu0
        %v8376 = vadd.f32 %v8215, %v8375
        %v8377 = vpop.f32.mrb[0].mxu0
        %8378 = vmatprep.mubr.bf16.mxu0 %v7088
        %8379 = vmatmul.mubr.bf16.gmra.mrb[0].mxu0 %v7024
        %v8380 = vpop.f32.mrb[0].mxu0
        %v8381 = vadd.f32 %v8220, %v8380
        %v8382 = vpop.f32.mrb[0].mxu0
        %v8383 = vpop.f32.mrb[0].mxu0
        %v8384 = vadd.f32 %v8223, %v8383
        %v8385 = vpop.f32.mrb[0].mxu0
        %8386 = vdwg.mxu0
        %8387 = vmatprep.subr.bf16.mxu0 0
        %8388 = vmatpush1.bf16.msra.mxu0 %v7953
        %8389 = vmatprep.subr.bf16.mxu0 0
        %8390 = vmatpush1.bf16.msra.mxu0 %v7954
        %8391 = vmatprep.subr.bf16.mxu0 0
        %8392 = vmatpush1.bf16.msra.mxu0 %v7955
        %8393 = vmatprep.subr.bf16.mxu0 0
        %8394 = vmatpush1.bf16.msra.mxu0 %v7956
        %8395 = vmatprep.subr.bf16.mxu0 0
        %8396 = vmatpush1.bf16.msra.mxu0 %v7957
        %8397 = vmatprep.subr.bf16.mxu0 0
        %8398 = vmatpush1.bf16.msra.mxu0 %v7958
        %8399 = vmatprep.subr.bf16.mxu0 0
        %8400 = vmatpush1.bf16.msra.mxu0 %v7959
        %8401 = vmatprep.subr.bf16.mxu0 0
        %8402 = vmatpush1.bf16.msra.mxu0 %v7960
        %8403 = vmatprep.subr.bf16.mxu0 0
        %8404 = vmatpush1.bf16.msra.mxu0 %v7961
        %8405 = vmatprep.subr.bf16.mxu0 0
        %8406 = vmatpush1.bf16.msra.mxu0 %v7962
        %8407 = vmatprep.subr.bf16.mxu0 0
        %8408 = vmatpush1.bf16.msra.mxu0 %v7963
        %8409 = vmatprep.subr.bf16.mxu0 0
        %8410 = vmatpush1.bf16.msra.mxu0 %v7964
        %8411 = vmatprep.subr.bf16.mxu0 0
        %8412 = vmatpush1.bf16.msra.mxu0 %v7965
        %8413 = vmatprep.subr.bf16.mxu0 0
        %8414 = vmatpush1.bf16.msra.mxu0 %v7966
        %8415 = vmatprep.subr.bf16.mxu0 0
        %8416 = vmatpush1.bf16.msra.mxu0 %v7967
        %8417 = vmatprep.subr.bf16.mxu0 0
        %8418 = vmatpush1.bf16.msra.mxu0 %v7968
        %8419 = vmatprep.mubr.bf16.mxu0 %v7233
        %8420 = vmatmul.mubr.bf16.gmra.mrb[0].mxu0 %v7169
        %v8421 = vpop.f32.mrb[0].mxu0
        %v8422 = vadd.f32 %v8261, %v8421
        %v8423 = vpop.f32.mrb[0].mxu0
        %v8424 = vpop.f32.mrb[0].mxu0
        %v8425 = vadd.f32 %v8264, %v8424
        %v8426 = vpop.f32.mrb[0].mxu0
        %8427 = vmatprep.mubr.bf16.mxu0 %v7234
        %8428 = vmatmul.mubr.bf16.gmra.mrb[0].mxu0 %v7170
        %v8429 = vpop.f32.mrb[0].mxu0
        %v8430 = vadd.f32 %v8269, %v8429
        %v8431 = vpop.f32.mrb[0].mxu0
        %v8432 = vpop.f32.mrb[0].mxu0
        %v8433 = vadd.f32 %v8272, %v8432
        %v8434 = vpop.f32.mrb[0].mxu0
        %8435 = vmatprep.mubr.bf16.mxu0 %v7235
        %8436 = vmatmul.mubr.bf16.gmra.mrb[0].mxu0 %v7171
        %v8437 = vpop.f32.mrb[0].mxu0
        %v8438 = vadd.f32 %v8277, %v8437
        %v8439 = vpop.f32.mrb[0].mxu0
        %v8440 = vpop.f32.mrb[0].mxu0
        %v8441 = vadd.f32 %v8280, %v8440
        %v8442 = vpop.f32.mrb[0].mxu0
        %8443 = vmatprep.mubr.bf16.mxu0 %v7236
        %8444 = vmatmul.mubr.bf16.gmra.mrb[0].mxu0 %v7172
        %v8445 = vpop.f32.mrb[0].mxu0
        %v8446 = vadd.f32 %v8285, %v8445
        %v8447 = vpop.f32.mrb[0].mxu0
        %v8448 = vpop.f32.mrb[0].mxu0
        %v8449 = vadd.f32 %v8288, %v8448
        %v8450 = vpop.f32.mrb[0].mxu0
        %8451 = vmatprep.mubr.bf16.mxu0 %v7237
        %8452 = vmatmul.mubr.bf16.gmra.mrb[0].mxu0 %v7173
        %v8453 = vpop.f32.mrb[0].mxu0
        %v8454 = vadd.f32 %v8293, %v8453
        %v8455 = vpop.f32.mrb[0].mxu0
        %v8456 = vpop.f32.mrb[0].mxu0
        %v8457 = vadd.f32 %v8296, %v8456
        %v8458 = vpop.f32.mrb[0].mxu0
        %8459 = vmatprep.mubr.bf16.mxu0 %v7238
        %8460 = vmatmul.mubr.bf16.gmra.mrb[0].mxu0 %v7174
        %v8461 = vpop.f32.mrb[0].mxu0
        %v8462 = vadd.f32 %v8301, %v8461
        %v8463 = vpop.f32.mrb[0].mxu0
        %v8464 = vpop.f32.mrb[0].mxu0
        %v8465 = vadd.f32 %v8304, %v8464
        %v8466 = vpop.f32.mrb[0].mxu0
        %8467 = vmatprep.mubr.bf16.mxu0 %v7239
        %8468 = vmatmul.mubr.bf16.gmra.mrb[0].mxu0 %v7175
        %v8469 = vpop.f32.mrb[0].mxu0
        %v8470 = vadd.f32 %v8309, %v8469
        %v8471 = vpop.f32.mrb[0].mxu0
        %v8472 = vpop.f32.mrb[0].mxu0
        %v8473 = vadd.f32 %v8312, %v8472
        %v8474 = vpop.f32.mrb[0].mxu0
        %8475 = vmatprep.mubr.bf16.mxu0 %v7240
        %8476 = vmatmul.mubr.bf16.gmra.mrb[0].mxu0 %v7176
        %v8477 = vpop.f32.mrb[0].mxu0
        %v8478 = vadd.f32 %v8317, %v8477
        %v8479 = vpop.f32.mrb[0].mxu0
        %v8480 = vpop.f32.mrb[0].mxu0
        %v8481 = vadd.f32 %v8320, %v8480
        %v8482 = vpop.f32.mrb[0].mxu0
        %8483 = vmatprep.mubr.bf16.mxu0 %v7241
        %8484 = vmatmul.mubr.bf16.gmra.mrb[0].mxu0 %v7177
        %v8485 = vpop.f32.mrb[0].mxu0
        %v8486 = vadd.f32 %v8325, %v8485
        %v8487 = vpop.f32.mrb[0].mxu0
        %v8488 = vpop.f32.mrb[0].mxu0
        %v8489 = vadd.f32 %v8328, %v8488
        %v8490 = vpop.f32.mrb[0].mxu0
        %8491 = vmatprep.mubr.bf16.mxu0 %v7242
        %8492 = vmatmul.mubr.bf16.gmra.mrb[0].mxu0 %v7178
        %v8493 = vpop.f32.mrb[0].mxu0
        %v8494 = vadd.f32 %v8333, %v8493
        %v8495 = vpop.f32.mrb[0].mxu0
        %v8496 = vpop.f32.mrb[0].mxu0
        %v8497 = vadd.f32 %v8336, %v8496
        %v8498 = vpop.f32.mrb[0].mxu0
        %8499 = vmatprep.mubr.bf16.mxu0 %v7243
        %8500 = vmatmul.mubr.bf16.gmra.mrb[0].mxu0 %v7179
        %v8501 = vpop.f32.mrb[0].mxu0
        %v8502 = vadd.f32 %v8341, %v8501
        %v8503 = vpop.f32.mrb[0].mxu0
        %v8504 = vpop.f32.mrb[0].mxu0
        %v8505 = vadd.f32 %v8344, %v8504
        %v8506 = vpop.f32.mrb[0].mxu0
        %8507 = vmatprep.mubr.bf16.mxu0 %v7244
        %8508 = vmatmul.mubr.bf16.gmra.mrb[0].mxu0 %v7180
        %v8509 = vpop.f32.mrb[0].mxu0
        %v8510 = vadd.f32 %v8349, %v8509
        %v8511 = vpop.f32.mrb[0].mxu0
        %v8512 = vpop.f32.mrb[0].mxu0
        %v8513 = vadd.f32 %v8352, %v8512
        %v8514 = vpop.f32.mrb[0].mxu0
        %8515 = vmatprep.mubr.bf16.mxu0 %v7245
        %8516 = vmatmul.mubr.bf16.gmra.mrb[0].mxu0 %v7181
        %v8517 = vpop.f32.mrb[0].mxu0
        %v8518 = vadd.f32 %v8357, %v8517
        %v8519 = vpop.f32.mrb[0].mxu0
        %v8520 = vpop.f32.mrb[0].mxu0
        %v8521 = vadd.f32 %v8360, %v8520
        %v8522 = vpop.f32.mrb[0].mxu0
        %8523 = vmatprep.mubr.bf16.mxu0 %v7246
        %8524 = vmatmul.mubr.bf16.gmra.mrb[0].mxu0 %v7182
        %v8525 = vpop.f32.mrb[0].mxu0
        %v8526 = vadd.f32 %v8365, %v8525
        %v8527 = vpop.f32.mrb[0].mxu0
        %v8528 = vpop.f32.mrb[0].mxu0
        %v8529 = vadd.f32 %v8368, %v8528
        %v8530 = vpop.f32.mrb[0].mxu0
        %8531 = vmatprep.mubr.bf16.mxu0 %v7247
        %8532 = vmatmul.mubr.bf16.gmra.mrb[0].mxu0 %v7183
        %v8533 = vpop.f32.mrb[0].mxu0
        %v8534 = vadd.f32 %v8373, %v8533
        %v8535 = vpop.f32.mrb[0].mxu0
        %v8536 = vpop.f32.mrb[0].mxu0
        %v8537 = vadd.f32 %v8376, %v8536
        %v8538 = vpop.f32.mrb[0].mxu0
        %8539 = vmatprep.mubr.bf16.mxu0 %v7248
        %8540 = vmatmul.mubr.bf16.gmra.mrb[0].mxu0 %v7184
        %v8541 = vpop.f32.mrb[0].mxu0
        %v8542 = vadd.f32 %v8381, %v8541
        %v8543 = vpop.f32.mrb[0].mxu0
        %v8544 = vpop.f32.mrb[0].mxu0
        %v8545 = vadd.f32 %v8384, %v8544
        %v8546 = vpop.f32.mrb[0].mxu0
        %8547 = vdwg.mxu0
        %8548 = vmatprep.subr.bf16.mxu0 0
        %8549 = vmatpush1.bf16.msra.mxu0 %v7969
        %8550 = vmatprep.subr.bf16.mxu0 0
        %8551 = vmatpush1.bf16.msra.mxu0 %v7970
        %8552 = vmatprep.subr.bf16.mxu0 0
        %8553 = vmatpush1.bf16.msra.mxu0 %v7971
        %8554 = vmatprep.subr.bf16.mxu0 0
        %8555 = vmatpush1.bf16.msra.mxu0 %v7972
        %8556 = vmatprep.subr.bf16.mxu0 0
        %8557 = vmatpush1.bf16.msra.mxu0 %v7973
        %8558 = vmatprep.subr.bf16.mxu0 0
        %8559 = vmatpush1.bf16.msra.mxu0 %v7974
        %8560 = vmatprep.subr.bf16.mxu0 0
        %8561 = vmatpush1.bf16.msra.mxu0 %v7975
        %8562 = vmatprep.subr.bf16.mxu0 0
        %8563 = vmatpush1.bf16.msra.mxu0 %v7976
        %8564 = vmatprep.subr.bf16.mxu0 0
        %8565 = vmatpush1.bf16.msra.mxu0 %v7977
        %8566 = vmatprep.subr.bf16.mxu0 0
        %8567 = vmatpush1.bf16.msra.mxu0 %v7978
        %8568 = vmatprep.subr.bf16.mxu0 0
        %8569 = vmatpush1.bf16.msra.mxu0 %v7979
        %8570 = vmatprep.subr.bf16.mxu0 0
        %8571 = vmatpush1.bf16.msra.mxu0 %v7980
        %8572 = vmatprep.subr.bf16.mxu0 0
        %8573 = vmatpush1.bf16.msra.mxu0 %v7981
        %8574 = vmatprep.subr.bf16.mxu0 0
        %8575 = vmatpush1.bf16.msra.mxu0 %v7982
        %8576 = vmatprep.subr.bf16.mxu0 0
        %8577 = vmatpush1.bf16.msra.mxu0 %v7983
        %8578 = vmatprep.subr.bf16.mxu0 0
        %8579 = vmatpush1.bf16.msra.mxu0 %v7984
        %8580 = vmatprep.mubr.bf16.mxu0 %v7393
        %8581 = vmatmul.mubr.bf16.gmra.mrb[0].mxu0 %v7297
        %v8582 = vpop.f32.mrb[0].mxu0
        %v8583 = vadd.f32 %v8422, %v8582
        %v8584 = vpop.f32.mrb[0].mxu0
        %v8585 = vpop.f32.mrb[0].mxu0
        %v8586 = vadd.f32 %v8425, %v8585
        %v8587 = vpop.f32.mrb[0].mxu0
        %8588 = vmatprep.mubr.bf16.mxu0 %v7394
        %8589 = vmatmul.mubr.bf16.gmra.mrb[0].mxu0 %v7298
        %v8590 = vpop.f32.mrb[0].mxu0
        %v8591 = vadd.f32 %v8430, %v8590
        %v8592 = vpop.f32.mrb[0].mxu0
        %v8593 = vpop.f32.mrb[0].mxu0
        %v8594 = vadd.f32 %v8433, %v8593
        %v8595 = vpop.f32.mrb[0].mxu0
        %8596 = vmatprep.mubr.bf16.mxu0 %v7395
        %8597 = vmatmul.mubr.bf16.gmra.mrb[0].mxu0 %v7299
        %v8598 = vpop.f32.mrb[0].mxu0
        %v8599 = vadd.f32 %v8438, %v8598
        %v8600 = vpop.f32.mrb[0].mxu0
        %v8601 = vpop.f32.mrb[0].mxu0
        %v8602 = vadd.f32 %v8441, %v8601
        %v8603 = vpop.f32.mrb[0].mxu0
        %8604 = vmatprep.mubr.bf16.mxu0 %v7396
        %8605 = vmatmul.mubr.bf16.gmra.mrb[0].mxu0 %v7300
        %v8606 = vpop.f32.mrb[0].mxu0
        %v8607 = vadd.f32 %v8446, %v8606
        %v8608 = vpop.f32.mrb[0].mxu0
        %v8609 = vpop.f32.mrb[0].mxu0
        %v8610 = vadd.f32 %v8449, %v8609
        %v8611 = vpop.f32.mrb[0].mxu0
        %8612 = vmatprep.mubr.bf16.mxu0 %v7397
        %8613 = vmatmul.mubr.bf16.gmra.mrb[0].mxu0 %v7301
        %v8614 = vpop.f32.mrb[0].mxu0
        %v8615 = vadd.f32 %v8454, %v8614
        %v8616 = vpop.f32.mrb[0].mxu0
        %v8617 = vpop.f32.mrb[0].mxu0
        %v8618 = vadd.f32 %v8457, %v8617
        %v8619 = vpop.f32.mrb[0].mxu0
        %8620 = vmatprep.mubr.bf16.mxu0 %v7398
        %8621 = vmatmul.mubr.bf16.gmra.mrb[0].mxu0 %v7302
        %v8622 = vpop.f32.mrb[0].mxu0
        %v8623 = vadd.f32 %v8462, %v8622
        %v8624 = vpop.f32.mrb[0].mxu0
        %v8625 = vpop.f32.mrb[0].mxu0
        %v8626 = vadd.f32 %v8465, %v8625
        %v8627 = vpop.f32.mrb[0].mxu0
        %8628 = vmatprep.mubr.bf16.mxu0 %v7399
        %8629 = vmatmul.mubr.bf16.gmra.mrb[0].mxu0 %v7303
        %v8630 = vpop.f32.mrb[0].mxu0
        %v8631 = vadd.f32 %v8470, %v8630
        %v8632 = vpop.f32.mrb[0].mxu0
        %v8633 = vpop.f32.mrb[0].mxu0
        %v8634 = vadd.f32 %v8473, %v8633
        %v8635 = vpop.f32.mrb[0].mxu0
        %8636 = vmatprep.mubr.bf16.mxu0 %v7400
        %8637 = vmatmul.mubr.bf16.gmra.mrb[0].mxu0 %v7304
        %v8638 = vpop.f32.mrb[0].mxu0
        %v8639 = vadd.f32 %v8478, %v8638
        %v8640 = vpop.f32.mrb[0].mxu0
        %v8641 = vpop.f32.mrb[0].mxu0
        %v8642 = vadd.f32 %v8481, %v8641
        %v8643 = vpop.f32.mrb[0].mxu0
        %8644 = vmatprep.mubr.bf16.mxu0 %v7401
        %8645 = vmatmul.mubr.bf16.gmra.mrb[0].mxu0 %v7305
        %v8646 = vpop.f32.mrb[0].mxu0
        %v8647 = vadd.f32 %v8486, %v8646
        %v8648 = vpop.f32.mrb[0].mxu0
        %v8649 = vpop.f32.mrb[0].mxu0
        %v8650 = vadd.f32 %v8489, %v8649
        %v8651 = vpop.f32.mrb[0].mxu0
        %8652 = vmatprep.mubr.bf16.mxu0 %v7402
        %8653 = vmatmul.mubr.bf16.gmra.mrb[0].mxu0 %v7306
        %v8654 = vpop.f32.mrb[0].mxu0
        %v8655 = vadd.f32 %v8494, %v8654
        %v8656 = vpop.f32.mrb[0].mxu0
        %v8657 = vpop.f32.mrb[0].mxu0
        %v8658 = vadd.f32 %v8497, %v8657
        %v8659 = vpop.f32.mrb[0].mxu0
        %8660 = vmatprep.mubr.bf16.mxu0 %v7403
        %8661 = vmatmul.mubr.bf16.gmra.mrb[0].mxu0 %v7307
        %v8662 = vpop.f32.mrb[0].mxu0
        %v8663 = vadd.f32 %v8502, %v8662
        %v8664 = vpop.f32.mrb[0].mxu0
        %v8665 = vpop.f32.mrb[0].mxu0
        %v8666 = vadd.f32 %v8505, %v8665
        %v8667 = vpop.f32.mrb[0].mxu0
        %8668 = vmatprep.mubr.bf16.mxu0 %v7404
        %8669 = vmatmul.mubr.bf16.gmra.mrb[0].mxu0 %v7308
        %v8670 = vpop.f32.mrb[0].mxu0
        %v8671 = vadd.f32 %v8510, %v8670
        %v8672 = vpop.f32.mrb[0].mxu0
        %v8673 = vpop.f32.mrb[0].mxu0
        %v8674 = vadd.f32 %v8513, %v8673
        %v8675 = vpop.f32.mrb[0].mxu0
        %8676 = vmatprep.mubr.bf16.mxu0 %v7405
        %8677 = vmatmul.mubr.bf16.gmra.mrb[0].mxu0 %v7309
        %v8678 = vpop.f32.mrb[0].mxu0
        %v8679 = vadd.f32 %v8518, %v8678
        %v8680 = vpop.f32.mrb[0].mxu0
        %v8681 = vpop.f32.mrb[0].mxu0
        %v8682 = vadd.f32 %v8521, %v8681
        %v8683 = vpop.f32.mrb[0].mxu0
        %8684 = vmatprep.mubr.bf16.mxu0 %v7406
        %8685 = vmatmul.mubr.bf16.gmra.mrb[0].mxu0 %v7310
        %v8686 = vpop.f32.mrb[0].mxu0
        %v8687 = vadd.f32 %v8526, %v8686
        %v8688 = vpop.f32.mrb[0].mxu0
        %v8689 = vpop.f32.mrb[0].mxu0
        %v8690 = vadd.f32 %v8529, %v8689
        %v8691 = vpop.f32.mrb[0].mxu0
        %8692 = vmatprep.mubr.bf16.mxu0 %v7407
        %8693 = vmatmul.mubr.bf16.gmra.mrb[0].mxu0 %v7311
        %v8694 = vpop.f32.mrb[0].mxu0
        %v8695 = vadd.f32 %v8534, %v8694
        %v8696 = vpop.f32.mrb[0].mxu0
        %v8697 = vpop.f32.mrb[0].mxu0
        %v8698 = vadd.f32 %v8537, %v8697
        %v8699 = vpop.f32.mrb[0].mxu0
        %8700 = vmatprep.mubr.bf16.mxu0 %v7408
        %8701 = vmatmul.mubr.bf16.gmra.mrb[0].mxu0 %v7312
        %v8702 = vpop.f32.mrb[0].mxu0
        %v8703 = vadd.f32 %v8542, %v8702
        %v8704 = vpop.f32.mrb[0].mxu0
        %v8705 = vpop.f32.mrb[0].mxu0
        %v8706 = vadd.f32 %v8545, %v8705
        %v8707 = vpop.f32.mrb[0].mxu0
        %8708 = vdwg.mxu0
        %8709 = vmatprep.subr.bf16.mxu0 0
        %8710 = vmatpush1.bf16.msra.mxu0 %v7985
        %8711 = vmatprep.subr.bf16.mxu0 0
        %8712 = vmatpush1.bf16.msra.mxu0 %v7986
        %8713 = vmatprep.subr.bf16.mxu0 0
        %8714 = vmatpush1.bf16.msra.mxu0 %v7987
        %8715 = vmatprep.subr.bf16.mxu0 0
        %8716 = vmatpush1.bf16.msra.mxu0 %v7988
        %8717 = vmatprep.subr.bf16.mxu0 0
        %8718 = vmatpush1.bf16.msra.mxu0 %v7989
        %8719 = vmatprep.subr.bf16.mxu0 0
        %8720 = vmatpush1.bf16.msra.mxu0 %v7990
        %8721 = vmatprep.subr.bf16.mxu0 0
        %8722 = vmatpush1.bf16.msra.mxu0 %v7991
        %8723 = vmatprep.subr.bf16.mxu0 0
        %8724 = vmatpush1.bf16.msra.mxu0 %v7992
        %8725 = vmatprep.subr.bf16.mxu0 0
        %8726 = vmatpush1.bf16.msra.mxu0 0
        %8727 = vmatprep.subr.bf16.mxu0 0
        %8728 = vmatpush1.bf16.msra.mxu0 0
        %8729 = vmatprep.subr.bf16.mxu0 0
        %8730 = vmatpush1.bf16.msra.mxu0 0
        %8731 = vmatprep.subr.bf16.mxu0 0
        %8732 = vmatpush1.bf16.msra.mxu0 0
        %8733 = vmatprep.subr.bf16.mxu0 0
        %8734 = vmatpush1.bf16.msra.mxu0 0
        %8735 = vmatprep.subr.bf16.mxu0 0
        %8736 = vmatpush1.bf16.msra.mxu0 0
        %8737 = vmatprep.subr.bf16.mxu0 0
        %8738 = vmatpush1.bf16.msra.mxu0 0
        %8739 = vmatprep.subr.bf16.mxu0 0
        %8740 = vmatpush1.bf16.msra.mxu0 0
        %8741 = vmatprep.mubr.bf16.mxu0 0
        %8742 = vmatmul.mubr.bf16.gmra.mrb[0].mxu0 %v7457
        %v8743 = vpop.f32.mrb[0].mxu0
        %v8744 = vadd.f32 %v8583, %v8743
        %v8745 = vpop.f32.mrb[0].mxu0
        %v8746 = vpop.f32.mrb[0].mxu0
        %v8747 = vadd.f32 %v8586, %v8746
        %v8748 = vpop.f32.mrb[0].mxu0
        %8749 = vmatprep.mubr.bf16.mxu0 0
        %8750 = vmatmul.mubr.bf16.gmra.mrb[0].mxu0 %v7458
        %v8751 = vpop.f32.mrb[0].mxu0
        %v8752 = vadd.f32 %v8591, %v8751
        %v8753 = vpop.f32.mrb[0].mxu0
        %v8754 = vpop.f32.mrb[0].mxu0
        %v8755 = vadd.f32 %v8594, %v8754
        %v8756 = vpop.f32.mrb[0].mxu0
        %8757 = vmatprep.mubr.bf16.mxu0 0
        %8758 = vmatmul.mubr.bf16.gmra.mrb[0].mxu0 %v7459
        %v8759 = vpop.f32.mrb[0].mxu0
        %v8760 = vadd.f32 %v8599, %v8759
        %v8761 = vpop.f32.mrb[0].mxu0
        %v8762 = vpop.f32.mrb[0].mxu0
        %v8763 = vadd.f32 %v8602, %v8762
        %v8764 = vpop.f32.mrb[0].mxu0
        %8765 = vmatprep.mubr.bf16.mxu0 0
        %8766 = vmatmul.mubr.bf16.gmra.mrb[0].mxu0 %v7460
        %v8767 = vpop.f32.mrb[0].mxu0
        %v8768 = vadd.f32 %v8607, %v8767
        %v8769 = vpop.f32.mrb[0].mxu0
        %v8770 = vpop.f32.mrb[0].mxu0
        %v8771 = vadd.f32 %v8610, %v8770
        %v8772 = vpop.f32.mrb[0].mxu0
        %8773 = vmatprep.mubr.bf16.mxu0 0
        %8774 = vmatmul.mubr.bf16.gmra.mrb[0].mxu0 %v7461
        %v8775 = vpop.f32.mrb[0].mxu0
        %v8776 = vadd.f32 %v8615, %v8775
        %v8777 = vpop.f32.mrb[0].mxu0
        %v8778 = vpop.f32.mrb[0].mxu0
        %v8779 = vadd.f32 %v8618, %v8778
        %v8780 = vpop.f32.mrb[0].mxu0
        %8781 = vmatprep.mubr.bf16.mxu0 0
        %8782 = vmatmul.mubr.bf16.gmra.mrb[0].mxu0 %v7462
        %v8783 = vpop.f32.mrb[0].mxu0
        %v8784 = vadd.f32 %v8623, %v8783
        %v8785 = vpop.f32.mrb[0].mxu0
        %v8786 = vpop.f32.mrb[0].mxu0
        %v8787 = vadd.f32 %v8626, %v8786
        %v8788 = vpop.f32.mrb[0].mxu0
        %8789 = vmatprep.mubr.bf16.mxu0 0
        %8790 = vmatmul.mubr.bf16.gmra.mrb[0].mxu0 %v7463
        %v8791 = vpop.f32.mrb[0].mxu0
        %v8792 = vadd.f32 %v8631, %v8791
        %v8793 = vpop.f32.mrb[0].mxu0
        %v8794 = vpop.f32.mrb[0].mxu0
        %v8795 = vadd.f32 %v8634, %v8794
        %v8796 = vpop.f32.mrb[0].mxu0
        %8797 = vmatprep.mubr.bf16.mxu0 0
        %8798 = vmatmul.mubr.bf16.gmra.mrb[0].mxu0 %v7464
        %v8799 = vpop.f32.mrb[0].mxu0
        %v8800 = vadd.f32 %v8639, %v8799
        %v8801 = vpop.f32.mrb[0].mxu0
        %v8802 = vpop.f32.mrb[0].mxu0
        %v8803 = vadd.f32 %v8642, %v8802
        %v8804 = vpop.f32.mrb[0].mxu0
        %8805 = vmatprep.mubr.bf16.mxu0 0
        %8806 = vmatmul.mubr.bf16.gmra.mrb[0].mxu0 %v7465
        %v8807 = vpop.f32.mrb[0].mxu0
        %v8808 = vadd.f32 %v8647, %v8807
        %v8809 = vpop.f32.mrb[0].mxu0
        %v8810 = vpop.f32.mrb[0].mxu0
        %v8811 = vadd.f32 %v8650, %v8810
        %v8812 = vpop.f32.mrb[0].mxu0
        %8813 = vmatprep.mubr.bf16.mxu0 0
        %8814 = vmatmul.mubr.bf16.gmra.mrb[0].mxu0 %v7466
        %v8815 = vpop.f32.mrb[0].mxu0
        %v8816 = vadd.f32 %v8655, %v8815
        %v8817 = vpop.f32.mrb[0].mxu0
        %v8818 = vpop.f32.mrb[0].mxu0
        %v8819 = vadd.f32 %v8658, %v8818
        %v8820 = vpop.f32.mrb[0].mxu0
        %8821 = vmatprep.mubr.bf16.mxu0 0
        %8822 = vmatmul.mubr.bf16.gmra.mrb[0].mxu0 %v7467
        %v8823 = vpop.f32.mrb[0].mxu0
        %v8824 = vadd.f32 %v8663, %v8823
        %v8825 = vpop.f32.mrb[0].mxu0
        %v8826 = vpop.f32.mrb[0].mxu0
        %v8827 = vadd.f32 %v8666, %v8826
        %v8828 = vpop.f32.mrb[0].mxu0
        %8829 = vmatprep.mubr.bf16.mxu0 0
        %8830 = vmatmul.mubr.bf16.gmra.mrb[0].mxu0 %v7468
        %v8831 = vpop.f32.mrb[0].mxu0
        %v8832 = vadd.f32 %v8671, %v8831
        %v8833 = vpop.f32.mrb[0].mxu0
        %v8834 = vpop.f32.mrb[0].mxu0
        %v8835 = vadd.f32 %v8674, %v8834
        %v8836 = vpop.f32.mrb[0].mxu0
        %8837 = vmatprep.mubr.bf16.mxu0 0
        %8838 = vmatmul.mubr.bf16.gmra.mrb[0].mxu0 %v7469
        %v8839 = vpop.f32.mrb[0].mxu0
        %v8840 = vadd.f32 %v8679, %v8839
        %v8841 = vpop.f32.mrb[0].mxu0
        %v8842 = vpop.f32.mrb[0].mxu0
        %v8843 = vadd.f32 %v8682, %v8842
        %v8844 = vpop.f32.mrb[0].mxu0
        %8845 = vmatprep.mubr.bf16.mxu0 0
        %8846 = vmatmul.mubr.bf16.gmra.mrb[0].mxu0 %v7470
        %v8847 = vpop.f32.mrb[0].mxu0
        %v8848 = vadd.f32 %v8687, %v8847
        %v8849 = vpop.f32.mrb[0].mxu0
        %v8850 = vpop.f32.mrb[0].mxu0
        %v8851 = vadd.f32 %v8690, %v8850
        %v8852 = vpop.f32.mrb[0].mxu0
        %8853 = vmatprep.mubr.bf16.mxu0 0
        %8854 = vmatmul.mubr.bf16.gmra.mrb[0].mxu0 %v7471
        %v8855 = vpop.f32.mrb[0].mxu0
        %v8856 = vadd.f32 %v8695, %v8855
        %v8857 = vpop.f32.mrb[0].mxu0
        %v8858 = vpop.f32.mrb[0].mxu0
        %v8859 = vadd.f32 %v8698, %v8858
        %v8860 = vpop.f32.mrb[0].mxu0
        %8861 = vmatprep.mubr.bf16.mxu0 0
        %8862 = vmatmul.mubr.bf16.gmra.mrb[0].mxu0 %v7472
        %v8863 = vpop.f32.mrb[0].mxu0
        %v8864 = vadd.f32 %v8703, %v8863
        %v8865 = vpop.f32.mrb[0].mxu0
        %v8866 = vpop.f32.mrb[0].mxu0
        %v8867 = vadd.f32 %v8706, %v8866
        %v8868 = vpop.f32.mrb[0].mxu0
        %8869 = vdwg.mxu0
        %v8870 = vmul.f32 %v8744, %v4569
        %v8871 = vmul.f32 %v8747, %v4569
        %v8872 = vmul.f32 %v8752, %v4569
        %v8873 = vmul.f32 %v8755, %v4569
        %v8874 = vmul.f32 %v8760, %v4569
        %v8875 = vmul.f32 %v8763, %v4569
        %v8876 = vmul.f32 %v8768, %v4569
        %v8877 = vmul.f32 %v8771, %v4569
        %v8878 = vmul.f32 %v8776, %v4569
        %v8879 = vmul.f32 %v8779, %v4569
        %v8880 = vmul.f32 %v8784, %v4569
        %v8881 = vmul.f32 %v8787, %v4569
        %v8882 = vmul.f32 %v8792, %v4569
        %v8883 = vmul.f32 %v8795, %v4569
        %v8884 = vmul.f32 %v8800, %v4569
        %v8885 = vmul.f32 %v8803, %v4569
        %v8886 = vmul.f32 %v8808, %v4569
        %v8887 = vmul.f32 %v8811, %v4569
        %v8888 = vmul.f32 %v8816, %v4569
        %v8889 = vmul.f32 %v8819, %v4569
        %v8890 = vmul.f32 %v8824, %v4569
        %v8891 = vmul.f32 %v8827, %v4569
        %v8892 = vmul.f32 %v8832, %v4569
        %v8893 = vmul.f32 %v8835, %v4569
        %v8894 = vmul.f32 %v8840, %v4569
        %v8895 = vmul.f32 %v8843, %v4569
        %v8896 = vmul.f32 %v8848, %v4569
        %v8897 = vmul.f32 %v8851, %v4569
        %v8898 = vmul.f32 %v8856, %v4569
        %v8899 = vmul.f32 %v8859, %v4569
        %v8900 = vmul.f32 %v8864, %v4569
        %v8901 = vmul.f32 %v8867, %v4569
        %v8902 = vadd.f32 %v8870, %v4607
        %v8903 = vadd.f32 %v8871, %v4607
        %v8904 = vadd.f32 %v8872, %v4607
        %v8905 = vadd.f32 %v8873, %v4607
        %v8906 = vadd.f32 %v8874, %v4607
        %v8907 = vadd.f32 %v8875, %v4607
        %v8908 = vadd.f32 %v8876, %v4607
        %v8909 = vadd.f32 %v8877, %v4607
        %v8910 = vadd.f32 %v8878, %v4607
        %v8911 = vadd.f32 %v8879, %v4607
        %v8912 = vadd.f32 %v8880, %v4607
        %v8913 = vadd.f32 %v8881, %v4607
        %v8914 = vadd.f32 %v8882, %v4607
        %v8915 = vadd.f32 %v8883, %v4607
        %v8916 = vadd.f32 %v8884, %v4607
        %v8917 = vadd.f32 %v8885, %v4607
        %v8918 = vadd.f32 %v8886, %v4607
        %v8919 = vadd.f32 %v8887, %v4607
        %v8920 = vadd.f32 %v8888, %v4607
        %v8921 = vadd.f32 %v8889, %v4607
        %v8922 = vadd.f32 %v8890, %v4607
        %v8923 = vadd.f32 %v8891, %v4607
        %v8924 = vadd.f32 %v8892, %v4607
        %v8925 = vadd.f32 %v8893, %v4607
        %v8926 = vadd.f32 %v8894, %v4607
        %v8927 = vadd.f32 %v8895, %v4607
        %v8928 = vadd.f32 %v8896, %v4607
        %v8929 = vadd.f32 %v8897, %v4607
        %v8930 = vadd.f32 %v8898, %v4607
        %v8931 = vadd.f32 %v8899, %v4607
        %v8932 = vadd.f32 %v8900, %v4607
        %v8933 = vadd.f32 %v8901, %v4607
        %v8934 = vmax.f32 %v8902, 0.0
        %v8935 = vmax.f32 %v8903, 0.0
        %v8936 = vmax.f32 %v8904, 0.0
        %v8937 = vmax.f32 %v8905, 0.0
        %v8938 = vmax.f32 %v8906, 0.0
        %v8939 = vmax.f32 %v8907, 0.0
        %v8940 = vmax.f32 %v8908, 0.0
        %v8941 = vmax.f32 %v8909, 0.0
        %v8942 = vmax.f32 %v8910, 0.0
        %v8943 = vmax.f32 %v8911, 0.0
        %v8944 = vmax.f32 %v8912, 0.0
        %v8945 = vmax.f32 %v8913, 0.0
        %v8946 = vmax.f32 %v8914, 0.0
        %v8947 = vmax.f32 %v8915, 0.0
        %v8948 = vmax.f32 %v8916, 0.0
        %v8949 = vmax.f32 %v8917, 0.0
        %v8950 = vmax.f32 %v8918, 0.0
        %v8951 = vmax.f32 %v8919, 0.0
        %v8952 = vmax.f32 %v8920, 0.0
        %v8953 = vmax.f32 %v8921, 0.0
        %v8954 = vmax.f32 %v8922, 0.0
        %v8955 = vmax.f32 %v8923, 0.0
        %v8956 = vmax.f32 %v8924, 0.0
        %v8957 = vmax.f32 %v8925, 0.0
        %v8958 = vmax.f32 %v8926, 0.0
        %v8959 = vmax.f32 %v8927, 0.0
        %v8960 = vmax.f32 %v8928, 0.0
        %v8961 = vmax.f32 %v8929, 0.0
        %v8962 = vmax.f32 %v8930, 0.0
        %v8963 = vmax.f32 %v8931, 0.0
        %v8964 = vmax.f32 %v8932, 0.0
        %v8965 = vmax.f32 %v8933, 0.0
        %8966 = vst [vmem:[%s190] sm:$0xff] %v8934
        %8967 = vst [vmem:[%s190 + $0x8] sm:$0xff] %v8935
        %8968 = vst [vmem:[%s190 + $0x10] sm:$0xff] %v8936
        %8969 = vst [vmem:[%s190 + $0x18] sm:$0xff] %v8937
        %8970 = vst [vmem:[%s190 + $0x20] sm:$0xff] %v8938
        %8971 = vst [vmem:[%s190 + $0x28] sm:$0xff] %v8939
        %8972 = vst [vmem:[%s190 + $0x30] sm:$0xff] %v8940
        %8973 = vst [vmem:[%s190 + $0x38] sm:$0xff] %v8941
        %8974 = vst [vmem:[%s190 + $0x40] sm:$0xff] %v8942
        %8975 = vst [vmem:[%s190 + $0x48] sm:$0xff] %v8943
        %8976 = vst [vmem:[%s190 + $0x50] sm:$0xff] %v8944
        %8977 = vst [vmem:[%s190 + $0x58] sm:$0xff] %v8945
        %8978 = vst [vmem:[%s190 + $0x60] sm:$0xff] %v8946
        %8979 = vst [vmem:[%s190 + $0x68] sm:$0xff] %v8947
        %8980 = vst [vmem:[%s190 + $0x70] sm:$0xff] %v8948
        %8981 = vst [vmem:[%s190 + $0x78] sm:$0xff] %v8949
        %8982 = vst [vmem:[%s190 + $0x80] sm:$0xff] %v8950
        %8983 = vst [vmem:[%s190 + $0x88] sm:$0xff] %v8951
        %8984 = vst [vmem:[%s190 + $0x90] sm:$0xff] %v8952
        %8985 = vst [vmem:[%s190 + $0x98] sm:$0xff] %v8953
        %8986 = vst [vmem:[%s190 + $0xa0] sm:$0xff] %v8954
        %8987 = vst [vmem:[%s190 + $0xa8] sm:$0xff] %v8955
        %8988 = vst [vmem:[%s190 + $0xb0] sm:$0xff] %v8956
        %8989 = vst [vmem:[%s190 + $0xb8] sm:$0xff] %v8957
        %8990 = vst [vmem:[%s190 + $0xc0] sm:$0xff] %v8958
        %8991 = vst [vmem:[%s190 + $0xc8] sm:$0xff] %v8959
        %8992 = vst [vmem:[%s190 + $0xd0] sm:$0xff] %v8960
        %8993 = vst [vmem:[%s190 + $0xd8] sm:$0xff] %v8961
        %8994 = vst [vmem:[%s190 + $0xe0] sm:$0xff] %v8962
        %8995 = vst [vmem:[%s190 + $0xe8] sm:$0xff] %v8963
        %8996 = vst [vmem:[%s190 + $0xf0] sm:$0xff] %v8964
        %8997 = vst [vmem:[%s190 + $0xf8] sm:$0xff] %v8965
        %s8998 = sand.u32 %s115, 1
        %s8999 = scalar_lea.sflag [#allocation5], %s8998
        %s9000 = sand.u32 %s115, 1
        %s9001 = smul.addr %s9000, 256
        %s9002 = scalar_lea.vmem [#allocation4], %s9001
        // Predicated region
        $region37: #{tpu_custom_call.1} parent=35 // pred_check
          %p9003 = pneg %p125
        $region38: #{tpu_custom_call.1} parent=35 // pred_check_branch
          %9005 = sbr.rel (%p9003) target = $region40
        $region39: #{tpu_custom_call.1} parent=35 // pred_region
          %s9007 = ssub.s32 4096, 4096
          %9008 = vsyncadd %s8999, %s9007
          %s9009 = smul.addr %s18, 32
          %s9010 = smul.addr %s9009, 128
          %s9011 = scalar_lea.hbm %s4, %s9010
          %s9012 = sshll.u32 %s9002, 4
          %s9013 = int_to_ptr.vmem [resolvable:$true] %s9012
          %9018 = dma.vmem_to_hbm [thread:$0]  %s9013, 4096, %s9011, %s8999, 128, 128, 8
        $region40: #{tpu_custom_call.1} parent=35 // pred_fallthru
          _
      $region36: #{tpu_custom_call.1} parent=5 // pred_fallthru
        _
      %p9019 = scmp.le.s32.totalorder 2, %s13
      // Predicated region
      $region41: #{tpu_custom_call.1} parent=5 // pred_check
        %p9020 = pneg %p9019
      $region42: #{tpu_custom_call.1} parent=5 // pred_check_branch
        %9022 = sbr.rel (%p9020) target = $region44
      $region43: #{tpu_custom_call.1} parent=5 // pred_region
        %s9023 = ssub.s32 %s13, 2
        // Predicated region
        $region45: #{tpu_custom_call.1} parent=43 // pred_check
          %p9024 = pneg %p131
        $region46: #{tpu_custom_call.1} parent=43 // pred_check_branch
          %9026 = sbr.rel (%p9024) target = $region48
        $region47: #{tpu_custom_call.1} parent=43 // pred_region
          %s9027 = sand.u32 %s116, 1
          %s9028 = scalar_lea.sflag [#allocation5], %s9027
          %s9029 = sand.u32 %s116, 1
          %s9030 = smul.addr %s9029, 256
          %s9031 = scalar_lea.vmem [#allocation4], %s9030
          %9032 = dma.done %s9028, 4096
        $region48: #{tpu_custom_call.1} parent=43 // pred_fallthru
          _
      $region44: #{tpu_custom_call.1} parent=5 // pred_fallthru
        _
    $region6: #{tpu_custom_call.1} parent=1 // loop_footer
      %s17 = sadd.s32 1, %s13
    $region7: #{tpu_custom_call.1} parent=1 // loop_footer_branch
      %12 = sbr.rel target = $region3
    $region8: #{tpu_custom_call.1} parent=1 // loop_exit
      _
    %9033 = vsyncpa [#allocation5], 1
    %s9034 = scalar_lea.sflag [#allocation5], 1
    %9035 = vsyncpa %s9034, 1

</llo_original>
